<compile_context>
chip_gen: v7x
topology: tpu7x:2x2x1
jax: 0.10.0
libtpu: 0.0.40
codegen_flags: <defaults>
</compile_context>

<pallas_src>
import functools
import math

import jax
import jax.numpy as jnp
from jax import lax
from jax.experimental import pallas as pl
from jax.experimental.pallas import tpu as pltpu


# ----------------------------- Pallas kernel --------------------------------
def convnext_block_kernel(
    x_ref,      # (1, H, W, C)   unpadded NHWC input (also the residual shortcut)
    wdw_ref,    # (49, C)        depthwise 7x7 weights, flattened kh*7+kw
    bdw_ref,    # (1, C)         depthwise bias
    lnw_ref,    # (1, C)         layernorm weight
    lnb_ref,    # (1, C)         layernorm bias
    w1_ref,     # (C, 4C)        pwconv1 weight (in x out), bf16
    b1_ref,     # (1, 4C)        f32
    w2_ref,     # (4C, C)        pwconv2 weight, bf16
    b2_ref,     # (1, C)         f32
    gamma_ref,  # (1, C)         layer scale
    o_ref,      # (1, H, W*C)    lane-dense output
    xpad_ref,   # VMEM scratch (H+6, W+6, C) f32  -- zero-padded image
    *, H, W, C, eps,
):
    # ---- build the zero-padded image in VMEM (padding fused into the kernel) ----
    xpad_ref[...] = jnp.zeros_like(xpad_ref)
    xpad_ref[pl.ds(3, H), pl.ds(3, W), :] = x_ref[0]

    # ---- depthwise 7x7 conv (padding=3) ----
    wdw = wdw_ref[...]                                           # hoisted, loaded once
    acc = jnp.broadcast_to(bdw_ref[...], (H, W, C)).astype(jnp.float32)
    for kw in range(7):
        # one kw-shifted slab per kw: 7 sublane relayouts instead of 49
        xk = xpad_ref[:, pl.ds(kw, W), :]                        # (H+6, W, C)
        for kh in range(7):
            # kh slice is on the 3rd-from-last axis -> free (no relayout)
            acc = acc + xk[kh:kh + H] * wdw[kh * 7 + kw]

    # ---- LayerNorm over channels (channels_last, biased variance), single pass ----
    flat = acc.reshape(H * W, C)                                 # leading-dim collapse (layout preserving, W%8==0)
    inv_c = 1.0 / C
    s = jnp.sum(flat, axis=-1, keepdims=True)
    ss = jnp.sum(flat * flat, axis=-1, keepdims=True)
    mean = s * inv_c
    var = jnp.maximum(ss * inv_c - mean * mean, 0.0)             # clamp: E[x^2]-mean^2 cancellation
    xn = (flat - mean) * lax.rsqrt(var + eps)
    xn = xn * lnw_ref[...] + lnb_ref[...]                        # (HW, C)

    # ---- pointwise MLP on the MXU (bf16 operands, f32 accumulate) ----
    h = jnp.dot(xn.astype(jnp.bfloat16), w1_ref[...],
                preferred_element_type=jnp.float32) + b1_ref[...]
    # exact erf-based GELU (matches torch.nn.GELU default)
    h = 0.5 * h * (1.0 + lax.erf(h * (1.0 / math.sqrt(2.0))))
    y = jnp.dot(h.astype(jnp.bfloat16), w2_ref[...],
                preferred_element_type=jnp.float32) + b2_ref[...]

    # ---- layer scale + residual (drop_path = identity at drop_rate=0 / eval) ----
    y = y * gamma_ref[...]                                       # (HW, C)
    out = x_ref[0] + y.reshape(H, W, C)                          # residual with unpadded input block
    # lane-dense store: last dim W*C is a multiple of 128 -> unmasked vst
    o_ref[0] = out.reshape(H, W * C).astype(o_ref.dtype)


# ------------------------------ wrapper --------------------------------------
def convnext_block(x_nchw, params, *, eps=1e-6):
    """x_nchw: (B, C, H, W) float32. Returns (B, C, H, W)."""
    B, C, H, W = x_nchw.shape
    assert W % 8 == 0 and (W * C) % 128 == 0, "lane-dense layout assumes W%8==0 and W*C%128==0"

    # NCHW -> NHWC only to match the PyTorch interface; a real ConvNeXt pipeline
    # would keep activations NHWC between blocks and skip this transpose.
    x_nhwc = jnp.transpose(x_nchw, (0, 2, 3, 1))                 # (B, H, W, C)

    wdw = params["w_dw"].reshape(49, C).astype(jnp.float32)      # (7,7,C) -> (49,C)
    bdw = params["b_dw"].reshape(1, C).astype(jnp.float32)
    lnw = params["ln_w"].reshape(1, C).astype(jnp.float32)
    lnb = params["ln_b"].reshape(1, C).astype(jnp.float32)
    w1 = params["w1"].astype(jnp.bfloat16)                       # (C, 4C)
    b1 = params["b1"].reshape(1, 4 * C).astype(jnp.float32)
    w2 = params["w2"].astype(jnp.bfloat16)                       # (4C, C)
    b2 = params["b2"].reshape(1, C).astype(jnp.float32)
    gamma = params["gamma"].reshape(1, C).astype(jnp.float32)

    kernel = functools.partial(convnext_block_kernel, H=H, W=W, C=C, eps=eps)
    const = lambda shape: pl.BlockSpec(shape, lambda b: (0,) * len(shape))

    out_flat = pl.pallas_call(
        kernel,
        out_shape=jax.ShapeDtypeStruct((B, H, W * C), x_nchw.dtype),
        grid_spec=pltpu.PrefetchScalarGridSpec(
            num_scalar_prefetch=0,
            grid=(B,),
            in_specs=[
                pl.BlockSpec((1, H, W, C), lambda b: (b, 0, 0, 0)),   # x (unpadded)
                const((49, C)),        # dw weights
                const((1, C)),         # dw bias
                const((1, C)),         # ln weight
                const((1, C)),         # ln bias
                const((C, 4 * C)),     # w1 (bf16)
                const((1, 4 * C)),     # b1
                const((4 * C, C)),     # w2 (bf16)
                const((1, C)),         # b2
                const((1, C)),         # gamma
            ],
            out_specs=pl.BlockSpec((1, H, W * C), lambda b: (b, 0, 0)),
            scratch_shapes=[pltpu.VMEM((H + 6, W + 6, C), jnp.float32)],
        ),
        compiler_params=pltpu.CompilerParams(dimension_semantics=("parallel",)),
    )(x_nhwc, wdw, bdw, lnw, lnb, w1, b1, w2, b2, gamma)

    out_nhwc = out_flat.reshape(B, H, W, C)                      # free metadata reshape
    return jnp.transpose(out_nhwc, (0, 3, 1, 2))                 # back to NCHW


# --------------------------- pure-JAX reference -------------------------------
def convnext_block_ref(x_nchw, params, *, eps=1e-6):
    B, C, H, W = x_nchw.shape
    w = jnp.transpose(params["w_dw"], (2, 0, 1))[:, None, :, :]  # (C,1,7,7) OIHW
    y = lax.conv_general_dilated(
        x_nchw, w, window_strides=(1, 1), padding=((3, 3), (3, 3)),
        feature_group_count=C,
        dimension_numbers=("NCHW", "OIHW", "NCHW"),
    ) + params["b_dw"][None, :, None, None]
    y = jnp.transpose(y, (0, 2, 3, 1))                           # NHWC
    mean = jnp.mean(y, -1, keepdims=True)
    var = jnp.mean((y - mean) ** 2, -1, keepdims=True)
    y = (y - mean) / jnp.sqrt(var + eps) * params["ln_w"] + params["ln_b"]
    h = y @ params["w1"].astype(jnp.float32) + params["b1"]
    h = 0.5 * h * (1.0 + lax.erf(h / math.sqrt(2.0)))
    y = h @ params["w2"].astype(jnp.float32) + params["b2"]
    y = y * params["gamma"]
    y = jnp.transpose(y, (0, 3, 1, 2))
    return x_nchw + y


# --------------------------------- main ---------------------------------------
if __name__ == "__main__":
    B, C, H, W = 2, 32, 16, 16   # dim=32 -> hidden 4*dim=128, W*C=512 (lane-dense)

    key = jax.random.PRNGKey(0)
    ks = jax.random.split(key, 9)
    params = {
        "w_dw": jax.random.normal(ks[0], (7, 7, C), jnp.float32) * 0.05,
        "b_dw": jax.random.normal(ks[1], (C,), jnp.float32) * 0.01,
        "ln_w": jnp.ones((C,), jnp.float32),
        "ln_b": jnp.zeros((C,), jnp.float32),
        # pointwise weights stored in bf16 (MXU-native); reference upcasts the same values
        "w1": (jax.random.normal(ks[2], (C, 4 * C), jnp.float32) * 0.05).astype(jnp.bfloat16),
        "b1": jax.random.normal(ks[3], (4 * C,), jnp.float32) * 0.01,
        "w2": (jax.random.normal(ks[4], (4 * C, C), jnp.float32) * 0.05).astype(jnp.bfloat16),
        "b2": jax.random.normal(ks[5], (C,), jnp.float32) * 0.01,
        # non-trivial layer-scale so the MLP path is actually exercised by the check
        "gamma": jax.random.normal(ks[6], (C,), jnp.float32) * 0.1,
    }
    x = jax.random.normal(ks[7], (B, C, H, W), jnp.float32)

    out = jax.block_until_ready(convnext_block(x, params))
    ref = jax.block_until_ready(convnext_block_ref(x, params))

    assert out.shape == (B, C, H, W)
    # bf16 activations on the MXU vs. a pure-f32 reference -> bf16-level tolerance
    max_err = float(jnp.max(jnp.abs(out - ref)))
    assert jnp.allclose(out, ref, atol=1e-2, rtol=1e-2), max_err
    print("KERNEL_OK")
</pallas_src>

<mosaic_0001>
module attributes {stable_mosaic.version = 11 : i64} {
  func.func @convnext_block_kernel(%arg0: i32, %arg1: memref<1x16x16x32xf32, #tpu.memory_space<vmem>>, %arg2: memref<49x32xf32, #tpu.memory_space<vmem>>, %arg3: memref<1x32xf32, #tpu.memory_space<vmem>>, %arg4: memref<1x32xf32, #tpu.memory_space<vmem>>, %arg5: memref<1x32xf32, #tpu.memory_space<vmem>>, %arg6: memref<32x128xbf16, #tpu.memory_space<vmem>>, %arg7: memref<1x128xf32, #tpu.memory_space<vmem>>, %arg8: memref<128x32xbf16, #tpu.memory_space<vmem>>, %arg9: memref<1x32xf32, #tpu.memory_space<vmem>>, %arg10: memref<1x32xf32, #tpu.memory_space<vmem>>, %arg11: memref<1x16x512xf32, #tpu.memory_space<vmem>>, %arg12: memref<22x22x32xf32, #tpu.memory_space<vmem>>) attributes {dimension_semantics = [#tpu.dimension_semantics<parallel>], iteration_bounds = array<i64: 2>, scalar_prefetch = 0 : i64, scratch_operands = 1 : i64, tpu.core_type = #tpu.core_type<tc>, window_params = [{transform_indices = @transform_0, window_bounds = array<i64: 1, 16, 16, 32>}, {pipeline_mode = #tpu.pipeline_mode<synchronous>, transform_indices = @transform_1, window_bounds = array<i64: 49, 32>}, {pipeline_mode = #tpu.pipeline_mode<synchronous>, transform_indices = @transform_2, window_bounds = array<i64: 1, 32>}, {pipeline_mode = #tpu.pipeline_mode<synchronous>, transform_indices = @transform_3, window_bounds = array<i64: 1, 32>}, {pipeline_mode = #tpu.pipeline_mode<synchronous>, transform_indices = @transform_4, window_bounds = array<i64: 1, 32>}, {pipeline_mode = #tpu.pipeline_mode<synchronous>, transform_indices = @transform_5, window_bounds = array<i64: 32, 128>}, {pipeline_mode = #tpu.pipeline_mode<synchronous>, transform_indices = @transform_6, window_bounds = array<i64: 1, 128>}, {pipeline_mode = #tpu.pipeline_mode<synchronous>, transform_indices = @transform_7, window_bounds = array<i64: 128, 32>}, {pipeline_mode = #tpu.pipeline_mode<synchronous>, transform_indices = @transform_8, window_bounds = array<i64: 1, 32>}, {pipeline_mode = #tpu.pipeline_mode<synchronous>, transform_indices = @transform_9, window_bounds = array<i64: 1, 32>}, {transform_indices = @transform_10, window_bounds = array<i64: 1, 16, 512>}]} {
    %cst = arith.constant 0.000000e+00 : f32
    %0 = vector.broadcast %cst : f32 to vector<22x22x32xf32>
    %c0 = arith.constant 0 : index
    %c0_0 = arith.constant 0 : index
    %c0_1 = arith.constant 0 : index
    %1 = vector.load %arg12[%c0, %c0_0, %c0_1] : memref<22x22x32xf32, #tpu.memory_space<vmem>>, vector<22x22x32xf32>
    tpu.vector_store %arg12[%c0, %c0_0, %c0_1], %0 {strides = array<i32>} : memref<22x22x32xf32, #tpu.memory_space<vmem>>, vector<22x22x32xf32>,
    %c0_2 = arith.constant 0 : index
    %c0_3 = arith.constant 0 : index
    %c0_4 = arith.constant 0 : index
    %c0_5 = arith.constant 0 : index
    %2 = vector.load %arg1[%c0_2, %c0_3, %c0_4, %c0_5] : memref<1x16x16x32xf32, #tpu.memory_space<vmem>>, vector<1x16x16x32xf32>
    %3 = vector.shape_cast %2 : vector<1x16x16x32xf32> to vector<16x16x32xf32>
    %c3 = arith.constant 3 : index
    %c3_6 = arith.constant 3 : index
    %c0_7 = arith.constant 0 : index
    %4 = vector.load %arg12[%c3, %c3_6, %c0_7] : memref<22x22x32xf32, #tpu.memory_space<vmem>>, vector<16x16x32xf32>
    tpu.vector_store %arg12[%c3, %c3_6, %c0_7], %3 {strides = array<i32>} : memref<22x22x32xf32, #tpu.memory_space<vmem>>, vector<16x16x32xf32>,
    %c0_8 = arith.constant 0 : index
    %c0_9 = arith.constant 0 : index
    %5 = vector.load %arg2[%c0_8, %c0_9] : memref<49x32xf32, #tpu.memory_space<vmem>>, vector<49x32xf32>
    %c0_10 = arith.constant 0 : index
    %c0_11 = arith.constant 0 : index
    %6 = vector.load %arg3[%c0_10, %c0_11] : memref<1x32xf32, #tpu.memory_space<vmem>>, vector<1x32xf32>
    %7 = vector.shape_cast %6 : vector<1x32xf32> to vector<1x1x32xf32>
    %8 = vector.broadcast %7 : vector<1x1x32xf32> to vector<16x16x32xf32>
    %c0_12 = arith.constant 0 : index
    %c0_13 = arith.constant 0 : index
    %c0_14 = arith.constant 0 : index
    %9 = vector.load %arg12[%c0_12, %c0_13, %c0_14] : memref<22x22x32xf32, #tpu.memory_space<vmem>>, vector<22x16x32xf32>
    %10 = vector.extract_strided_slice %9 {offsets = [0, 0, 0], sizes = [16, 16, 32], strides = [1, 1, 1]} : vector<22x16x32xf32> to vector<16x16x32xf32>
    %11 = vector.extract_strided_slice %5 {offsets = [0, 0], sizes = [1, 32], strides = [1, 1]} : vector<49x32xf32> to vector<1x32xf32>
    %12 = vector.shape_cast %11 : vector<1x32xf32> to vector<32xf32>
    %13 = vector.shape_cast %12 : vector<32xf32> to vector<1x1x32xf32>
    %14 = vector.broadcast %13 : vector<1x1x32xf32> to vector<16x16x32xf32>
    %15 = arith.mulf %10, %14 : vector<16x16x32xf32>
    %16 = arith.addf %8, %15 : vector<16x16x32xf32>
    %17 = vector.extract_strided_slice %9 {offsets = [1, 0, 0], sizes = [16, 16, 32], strides = [1, 1, 1]} : vector<22x16x32xf32> to vector<16x16x32xf32>
    %18 = vector.extract_strided_slice %5 {offsets = [7, 0], sizes = [1, 32], strides = [1, 1]} : vector<49x32xf32> to vector<1x32xf32>
    %19 = vector.shape_cast %18 : vector<1x32xf32> to vector<32xf32>
    %20 = vector.shape_cast %19 : vector<32xf32> to vector<1x1x32xf32>
    %21 = vector.broadcast %20 : vector<1x1x32xf32> to vector<16x16x32xf32>
    %22 = arith.mulf %17, %21 : vector<16x16x32xf32>
    %23 = arith.addf %16, %22 : vector<16x16x32xf32>
    %24 = vector.extract_strided_slice %9 {offsets = [2, 0, 0], sizes = [16, 16, 32], strides = [1, 1, 1]} : vector<22x16x32xf32> to vector<16x16x32xf32>
    %25 = vector.extract_strided_slice %5 {offsets = [14, 0], sizes = [1, 32], strides = [1, 1]} : vector<49x32xf32> to vector<1x32xf32>
    %26 = vector.shape_cast %25 : vector<1x32xf32> to vector<32xf32>
    %27 = vector.shape_cast %26 : vector<32xf32> to vector<1x1x32xf32>
    %28 = vector.broadcast %27 : vector<1x1x32xf32> to vector<16x16x32xf32>
    %29 = arith.mulf %24, %28 : vector<16x16x32xf32>
    %30 = arith.addf %23, %29 : vector<16x16x32xf32>
    %31 = vector.extract_strided_slice %9 {offsets = [3, 0, 0], sizes = [16, 16, 32], strides = [1, 1, 1]} : vector<22x16x32xf32> to vector<16x16x32xf32>
    %32 = vector.extract_strided_slice %5 {offsets = [21, 0], sizes = [1, 32], strides = [1, 1]} : vector<49x32xf32> to vector<1x32xf32>
    %33 = vector.shape_cast %32 : vector<1x32xf32> to vector<32xf32>
    %34 = vector.shape_cast %33 : vector<32xf32> to vector<1x1x32xf32>
    %35 = vector.broadcast %34 : vector<1x1x32xf32> to vector<16x16x32xf32>
    %36 = arith.mulf %31, %35 : vector<16x16x32xf32>
    %37 = arith.addf %30, %36 : vector<16x16x32xf32>
    %38 = vector.extract_strided_slice %9 {offsets = [4, 0, 0], sizes = [16, 16, 32], strides = [1, 1, 1]} : vector<22x16x32xf32> to vector<16x16x32xf32>
    %39 = vector.extract_strided_slice %5 {offsets = [28, 0], sizes = [1, 32], strides = [1, 1]} : vector<49x32xf32> to vector<1x32xf32>
    %40 = vector.shape_cast %39 : vector<1x32xf32> to vector<32xf32>
    %41 = vector.shape_cast %40 : vector<32xf32> to vector<1x1x32xf32>
    %42 = vector.broadcast %41 : vector<1x1x32xf32> to vector<16x16x32xf32>
    %43 = arith.mulf %38, %42 : vector<16x16x32xf32>
    %44 = arith.addf %37, %43 : vector<16x16x32xf32>
    %45 = vector.extract_strided_slice %9 {offsets = [5, 0, 0], sizes = [16, 16, 32], strides = [1, 1, 1]} : vector<22x16x32xf32> to vector<16x16x32xf32>
    %46 = vector.extract_strided_slice %5 {offsets = [35, 0], sizes = [1, 32], strides = [1, 1]} : vector<49x32xf32> to vector<1x32xf32>
    %47 = vector.shape_cast %46 : vector<1x32xf32> to vector<32xf32>
    %48 = vector.shape_cast %47 : vector<32xf32> to vector<1x1x32xf32>
    %49 = vector.broadcast %48 : vector<1x1x32xf32> to vector<16x16x32xf32>
    %50 = arith.mulf %45, %49 : vector<16x16x32xf32>
    %51 = arith.addf %44, %50 : vector<16x16x32xf32>
    %52 = vector.extract_strided_slice %9 {offsets = [6, 0, 0], sizes = [16, 16, 32], strides = [1, 1, 1]} : vector<22x16x32xf32> to vector<16x16x32xf32>
    %53 = vector.extract_strided_slice %5 {offsets = [42, 0], sizes = [1, 32], strides = [1, 1]} : vector<49x32xf32> to vector<1x32xf32>
    %54 = vector.shape_cast %53 : vector<1x32xf32> to vector<32xf32>
    %55 = vector.shape_cast %54 : vector<32xf32> to vector<1x1x32xf32>
    %56 = vector.broadcast %55 : vector<1x1x32xf32> to vector<16x16x32xf32>
    %57 = arith.mulf %52, %56 : vector<16x16x32xf32>
    %58 = arith.addf %51, %57 : vector<16x16x32xf32>
    %c0_15 = arith.constant 0 : index
    %c1 = arith.constant 1 : index
    %c0_16 = arith.constant 0 : index
    %59 = vector.load %arg12[%c0_15, %c1, %c0_16] : memref<22x22x32xf32, #tpu.memory_space<vmem>>, vector<22x16x32xf32>
    %60 = vector.extract_strided_slice %59 {offsets = [0, 0, 0], sizes = [16, 16, 32], strides = [1, 1, 1]} : vector<22x16x32xf32> to vector<16x16x32xf32>
    %61 = vector.extract_strided_slice %5 {offsets = [1, 0], sizes = [1, 32], strides = [1, 1]} : vector<49x32xf32> to vector<1x32xf32>
    %62 = vector.shape_cast %61 : vector<1x32xf32> to vector<32xf32>
    %63 = vector.shape_cast %62 : vector<32xf32> to vector<1x1x32xf32>
    %64 = vector.broadcast %63 : vector<1x1x32xf32> to vector<16x16x32xf32>
    %65 = arith.mulf %60, %64 : vector<16x16x32xf32>
    %66 = arith.addf %58, %65 : vector<16x16x32xf32>
    %67 = vector.extract_strided_slice %59 {offsets = [1, 0, 0], sizes = [16, 16, 32], strides = [1, 1, 1]} : vector<22x16x32xf32> to vector<16x16x32xf32>
    %68 = vector.extract_strided_slice %5 {offsets = [8, 0], sizes = [1, 32], strides = [1, 1]} : vector<49x32xf32> to vector<1x32xf32>
    %69 = vector.shape_cast %68 : vector<1x32xf32> to vector<32xf32>
    %70 = vector.shape_cast %69 : vector<32xf32> to vector<1x1x32xf32>
    %71 = vector.broadcast %70 : vector<1x1x32xf32> to vector<16x16x32xf32>
    %72 = arith.mulf %67, %71 : vector<16x16x32xf32>
    %73 = arith.addf %66, %72 : vector<16x16x32xf32>
    %74 = vector.extract_strided_slice %59 {offsets = [2, 0, 0], sizes = [16, 16, 32], strides = [1, 1, 1]} : vector<22x16x32xf32> to vector<16x16x32xf32>
    %75 = vector.extract_strided_slice %5 {offsets = [15, 0], sizes = [1, 32], strides = [1, 1]} : vector<49x32xf32> to vector<1x32xf32>
    %76 = vector.shape_cast %75 : vector<1x32xf32> to vector<32xf32>
    %77 = vector.shape_cast %76 : vector<32xf32> to vector<1x1x32xf32>
    %78 = vector.broadcast %77 : vector<1x1x32xf32> to vector<16x16x32xf32>
    %79 = arith.mulf %74, %78 : vector<16x16x32xf32>
    %80 = arith.addf %73, %79 : vector<16x16x32xf32>
    %81 = vector.extract_strided_slice %59 {offsets = [3, 0, 0], sizes = [16, 16, 32], strides = [1, 1, 1]} : vector<22x16x32xf32> to vector<16x16x32xf32>
    %82 = vector.extract_strided_slice %5 {offsets = [22, 0], sizes = [1, 32], strides = [1, 1]} : vector<49x32xf32> to vector<1x32xf32>
    %83 = vector.shape_cast %82 : vector<1x32xf32> to vector<32xf32>
    %84 = vector.shape_cast %83 : vector<32xf32> to vector<1x1x32xf32>
    %85 = vector.broadcast %84 : vector<1x1x32xf32> to vector<16x16x32xf32>
    %86 = arith.mulf %81, %85 : vector<16x16x32xf32>
    %87 = arith.addf %80, %86 : vector<16x16x32xf32>
    %88 = vector.extract_strided_slice %59 {offsets = [4, 0, 0], sizes = [16, 16, 32], strides = [1, 1, 1]} : vector<22x16x32xf32> to vector<16x16x32xf32>
    %89 = vector.extract_strided_slice %5 {offsets = [29, 0], sizes = [1, 32], strides = [1, 1]} : vector<49x32xf32> to vector<1x32xf32>
    %90 = vector.shape_cast %89 : vector<1x32xf32> to vector<32xf32>
    %91 = vector.shape_cast %90 : vector<32xf32> to vector<1x1x32xf32>
    %92 = vector.broadcast %91 : vector<1x1x32xf32> to vector<16x16x32xf32>
    %93 = arith.mulf %88, %92 : vector<16x16x32xf32>
    %94 = arith.addf %87, %93 : vector<16x16x32xf32>
    %95 = vector.extract_strided_slice %59 {offsets = [5, 0, 0], sizes = [16, 16, 32], strides = [1, 1, 1]} : vector<22x16x32xf32> to vector<16x16x32xf32>
    %96 = vector.extract_strided_slice %5 {offsets = [36, 0], sizes = [1, 32], strides = [1, 1]} : vector<49x32xf32> to vector<1x32xf32>
    %97 = vector.shape_cast %96 : vector<1x32xf32> to vector<32xf32>
    %98 = vector.shape_cast %97 : vector<32xf32> to vector<1x1x32xf32>
    %99 = vector.broadcast %98 : vector<1x1x32xf32> to vector<16x16x32xf32>
    %100 = arith.mulf %95, %99 : vector<16x16x32xf32>
    %101 = arith.addf %94, %100 : vector<16x16x32xf32>
    %102 = vector.extract_strided_slice %59 {offsets = [6, 0, 0], sizes = [16, 16, 32], strides = [1, 1, 1]} : vector<22x16x32xf32> to vector<16x16x32xf32>
    %103 = vector.extract_strided_slice %5 {offsets = [43, 0], sizes = [1, 32], strides = [1, 1]} : vector<49x32xf32> to vector<1x32xf32>
    %104 = vector.shape_cast %103 : vector<1x32xf32> to vector<32xf32>
    %105 = vector.shape_cast %104 : vector<32xf32> to vector<1x1x32xf32>
    %106 = vector.broadcast %105 : vector<1x1x32xf32> to vector<16x16x32xf32>
    %107 = arith.mulf %102, %106 : vector<16x16x32xf32>
    %108 = arith.addf %101, %107 : vector<16x16x32xf32>
    %c0_17 = arith.constant 0 : index
    %c2 = arith.constant 2 : index
    %c0_18 = arith.constant 0 : index
    %109 = vector.load %arg12[%c0_17, %c2, %c0_18] : memref<22x22x32xf32, #tpu.memory_space<vmem>>, vector<22x16x32xf32>
    %110 = vector.extract_strided_slice %109 {offsets = [0, 0, 0], sizes = [16, 16, 32], strides = [1, 1, 1]} : vector<22x16x32xf32> to vector<16x16x32xf32>
    %111 = vector.extract_strided_slice %5 {offsets = [2, 0], sizes = [1, 32], strides = [1, 1]} : vector<49x32xf32> to vector<1x32xf32>
    %112 = vector.shape_cast %111 : vector<1x32xf32> to vector<32xf32>
    %113 = vector.shape_cast %112 : vector<32xf32> to vector<1x1x32xf32>
    %114 = vector.broadcast %113 : vector<1x1x32xf32> to vector<16x16x32xf32>
    %115 = arith.mulf %110, %114 : vector<16x16x32xf32>
    %116 = arith.addf %108, %115 : vector<16x16x32xf32>
    %117 = vector.extract_strided_slice %109 {offsets = [1, 0, 0], sizes = [16, 16, 32], strides = [1, 1, 1]} : vector<22x16x32xf32> to vector<16x16x32xf32>
    %118 = vector.extract_strided_slice %5 {offsets = [9, 0], sizes = [1, 32], strides = [1, 1]} : vector<49x32xf32> to vector<1x32xf32>
    %119 = vector.shape_cast %118 : vector<1x32xf32> to vector<32xf32>
    %120 = vector.shape_cast %119 : vector<32xf32> to vector<1x1x32xf32>
    %121 = vector.broadcast %120 : vector<1x1x32xf32> to vector<16x16x32xf32>
    %122 = arith.mulf %117, %121 : vector<16x16x32xf32>
    %123 = arith.addf %116, %122 : vector<16x16x32xf32>
    %124 = vector.extract_strided_slice %109 {offsets = [2, 0, 0], sizes = [16, 16, 32], strides = [1, 1, 1]} : vector<22x16x32xf32> to vector<16x16x32xf32>
    %125 = vector.extract_strided_slice %5 {offsets = [16, 0], sizes = [1, 32], strides = [1, 1]} : vector<49x32xf32> to vector<1x32xf32>
    %126 = vector.shape_cast %125 : vector<1x32xf32> to vector<32xf32>
    %127 = vector.shape_cast %126 : vector<32xf32> to vector<1x1x32xf32>
    %128 = vector.broadcast %127 : vector<1x1x32xf32> to vector<16x16x32xf32>
    %129 = arith.mulf %124, %128 : vector<16x16x32xf32>
    %130 = arith.addf %123, %129 : vector<16x16x32xf32>
    %131 = vector.extract_strided_slice %109 {offsets = [3, 0, 0], sizes = [16, 16, 32], strides = [1, 1, 1]} : vector<22x16x32xf32> to vector<16x16x32xf32>
    %132 = vector.extract_strided_slice %5 {offsets = [23, 0], sizes = [1, 32], strides = [1, 1]} : vector<49x32xf32> to vector<1x32xf32>
    %133 = vector.shape_cast %132 : vector<1x32xf32> to vector<32xf32>
    %134 = vector.shape_cast %133 : vector<32xf32> to vector<1x1x32xf32>
    %135 = vector.broadcast %134 : vector<1x1x32xf32> to vector<16x16x32xf32>
    %136 = arith.mulf %131, %135 : vector<16x16x32xf32>
    %137 = arith.addf %130, %136 : vector<16x16x32xf32>
    %138 = vector.extract_strided_slice %109 {offsets = [4, 0, 0], sizes = [16, 16, 32], strides = [1, 1, 1]} : vector<22x16x32xf32> to vector<16x16x32xf32>
    %139 = vector.extract_strided_slice %5 {offsets = [30, 0], sizes = [1, 32], strides = [1, 1]} : vector<49x32xf32> to vector<1x32xf32>
    %140 = vector.shape_cast %139 : vector<1x32xf32> to vector<32xf32>
    %141 = vector.shape_cast %140 : vector<32xf32> to vector<1x1x32xf32>
    %142 = vector.broadcast %141 : vector<1x1x32xf32> to vector<16x16x32xf32>
    %143 = arith.mulf %138, %142 : vector<16x16x32xf32>
    %144 = arith.addf %137, %143 : vector<16x16x32xf32>
    %145 = vector.extract_strided_slice %109 {offsets = [5, 0, 0], sizes = [16, 16, 32], strides = [1, 1, 1]} : vector<22x16x32xf32> to vector<16x16x32xf32>
    %146 = vector.extract_strided_slice %5 {offsets = [37, 0], sizes = [1, 32], strides = [1, 1]} : vector<49x32xf32> to vector<1x32xf32>
    %147 = vector.shape_cast %146 : vector<1x32xf32> to vector<32xf32>
    %148 = vector.shape_cast %147 : vector<32xf32> to vector<1x1x32xf32>
    %149 = vector.broadcast %148 : vector<1x1x32xf32> to vector<16x16x32xf32>
    %150 = arith.mulf %145, %149 : vector<16x16x32xf32>
    %151 = arith.addf %144, %150 : vector<16x16x32xf32>
    %152 = vector.extract_strided_slice %109 {offsets = [6, 0, 0], sizes = [16, 16, 32], strides = [1, 1, 1]} : vector<22x16x32xf32> to vector<16x16x32xf32>
    %153 = vector.extract_strided_slice %5 {offsets = [44, 0], sizes = [1, 32], strides = [1, 1]} : vector<49x32xf32> to vector<1x32xf32>
    %154 = vector.shape_cast %153 : vector<1x32xf32> to vector<32xf32>
    %155 = vector.shape_cast %154 : vector<32xf32> to vector<1x1x32xf32>
    %156 = vector.broadcast %155 : vector<1x1x32xf32> to vector<16x16x32xf32>
    %157 = arith.mulf %152, %156 : vector<16x16x32xf32>
    %158 = arith.addf %151, %157 : vector<16x16x32xf32>
    %c0_19 = arith.constant 0 : index
    %c3_20 = arith.constant 3 : index
    %c0_21 = arith.constant 0 : index
    %159 = vector.load %arg12[%c0_19, %c3_20, %c0_21] : memref<22x22x32xf32, #tpu.memory_space<vmem>>, vector<22x16x32xf32>
    %160 = vector.extract_strided_slice %159 {offsets = [0, 0, 0], sizes = [16, 16, 32], strides = [1, 1, 1]} : vector<22x16x32xf32> to vector<16x16x32xf32>
    %161 = vector.extract_strided_slice %5 {offsets = [3, 0], sizes = [1, 32], strides = [1, 1]} : vector<49x32xf32> to vector<1x32xf32>
    %162 = vector.shape_cast %161 : vector<1x32xf32> to vector<32xf32>
    %163 = vector.shape_cast %162 : vector<32xf32> to vector<1x1x32xf32>
    %164 = vector.broadcast %163 : vector<1x1x32xf32> to vector<16x16x32xf32>
    %165 = arith.mulf %160, %164 : vector<16x16x32xf32>
    %166 = arith.addf %158, %165 : vector<16x16x32xf32>
    %167 = vector.extract_strided_slice %159 {offsets = [1, 0, 0], sizes = [16, 16, 32], strides = [1, 1, 1]} : vector<22x16x32xf32> to vector<16x16x32xf32>
    %168 = vector.extract_strided_slice %5 {offsets = [10, 0], sizes = [1, 32], strides = [1, 1]} : vector<49x32xf32> to vector<1x32xf32>
    %169 = vector.shape_cast %168 : vector<1x32xf32> to vector<32xf32>
    %170 = vector.shape_cast %169 : vector<32xf32> to vector<1x1x32xf32>
    %171 = vector.broadcast %170 : vector<1x1x32xf32> to vector<16x16x32xf32>
    %172 = arith.mulf %167, %171 : vector<16x16x32xf32>
    %173 = arith.addf %166, %172 : vector<16x16x32xf32>
    %174 = vector.extract_strided_slice %159 {offsets = [2, 0, 0], sizes = [16, 16, 32], strides = [1, 1, 1]} : vector<22x16x32xf32> to vector<16x16x32xf32>
    %175 = vector.extract_strided_slice %5 {offsets = [17, 0], sizes = [1, 32], strides = [1, 1]} : vector<49x32xf32> to vector<1x32xf32>
    %176 = vector.shape_cast %175 : vector<1x32xf32> to vector<32xf32>
    %177 = vector.shape_cast %176 : vector<32xf32> to vector<1x1x32xf32>
    %178 = vector.broadcast %177 : vector<1x1x32xf32> to vector<16x16x32xf32>
    %179 = arith.mulf %174, %178 : vector<16x16x32xf32>
    %180 = arith.addf %173, %179 : vector<16x16x32xf32>
    %181 = vector.extract_strided_slice %159 {offsets = [3, 0, 0], sizes = [16, 16, 32], strides = [1, 1, 1]} : vector<22x16x32xf32> to vector<16x16x32xf32>
    %182 = vector.extract_strided_slice %5 {offsets = [24, 0], sizes = [1, 32], strides = [1, 1]} : vector<49x32xf32> to vector<1x32xf32>
    %183 = vector.shape_cast %182 : vector<1x32xf32> to vector<32xf32>
    %184 = vector.shape_cast %183 : vector<32xf32> to vector<1x1x32xf32>
    %185 = vector.broadcast %184 : vector<1x1x32xf32> to vector<16x16x32xf32>
    %186 = arith.mulf %181, %185 : vector<16x16x32xf32>
    %187 = arith.addf %180, %186 : vector<16x16x32xf32>
    %188 = vector.extract_strided_slice %159 {offsets = [4, 0, 0], sizes = [16, 16, 32], strides = [1, 1, 1]} : vector<22x16x32xf32> to vector<16x16x32xf32>
    %189 = vector.extract_strided_slice %5 {offsets = [31, 0], sizes = [1, 32], strides = [1, 1]} : vector<49x32xf32> to vector<1x32xf32>
    %190 = vector.shape_cast %189 : vector<1x32xf32> to vector<32xf32>
    %191 = vector.shape_cast %190 : vector<32xf32> to vector<1x1x32xf32>
    %192 = vector.broadcast %191 : vector<1x1x32xf32> to vector<16x16x32xf32>
    %193 = arith.mulf %188, %192 : vector<16x16x32xf32>
    %194 = arith.addf %187, %193 : vector<16x16x32xf32>
    %195 = vector.extract_strided_slice %159 {offsets = [5, 0, 0], sizes = [16, 16, 32], strides = [1, 1, 1]} : vector<22x16x32xf32> to vector<16x16x32xf32>
    %196 = vector.extract_strided_slice %5 {offsets = [38, 0], sizes = [1, 32], strides = [1, 1]} : vector<49x32xf32> to vector<1x32xf32>
    %197 = vector.shape_cast %196 : vector<1x32xf32> to vector<32xf32>
    %198 = vector.shape_cast %197 : vector<32xf32> to vector<1x1x32xf32>
    %199 = vector.broadcast %198 : vector<1x1x32xf32> to vector<16x16x32xf32>
    %200 = arith.mulf %195, %199 : vector<16x16x32xf32>
    %201 = arith.addf %194, %200 : vector<16x16x32xf32>
    %202 = vector.extract_strided_slice %159 {offsets = [6, 0, 0], sizes = [16, 16, 32], strides = [1, 1, 1]} : vector<22x16x32xf32> to vector<16x16x32xf32>
    %203 = vector.extract_strided_slice %5 {offsets = [45, 0], sizes = [1, 32], strides = [1, 1]} : vector<49x32xf32> to vector<1x32xf32>
    %204 = vector.shape_cast %203 : vector<1x32xf32> to vector<32xf32>
    %205 = vector.shape_cast %204 : vector<32xf32> to vector<1x1x32xf32>
    %206 = vector.broadcast %205 : vector<1x1x32xf32> to vector<16x16x32xf32>
    %207 = arith.mulf %202, %206 : vector<16x16x32xf32>
    %208 = arith.addf %201, %207 : vector<16x16x32xf32>
    %c0_22 = arith.constant 0 : index
    %c4 = arith.constant 4 : index
    %c0_23 = arith.constant 0 : index
    %209 = vector.load %arg12[%c0_22, %c4, %c0_23] : memref<22x22x32xf32, #tpu.memory_space<vmem>>, vector<22x16x32xf32>
    %210 = vector.extract_strided_slice %209 {offsets = [0, 0, 0], sizes = [16, 16, 32], strides = [1, 1, 1]} : vector<22x16x32xf32> to vector<16x16x32xf32>
    %211 = vector.extract_strided_slice %5 {offsets = [4, 0], sizes = [1, 32], strides = [1, 1]} : vector<49x32xf32> to vector<1x32xf32>
    %212 = vector.shape_cast %211 : vector<1x32xf32> to vector<32xf32>
    %213 = vector.shape_cast %212 : vector<32xf32> to vector<1x1x32xf32>
    %214 = vector.broadcast %213 : vector<1x1x32xf32> to vector<16x16x32xf32>
    %215 = arith.mulf %210, %214 : vector<16x16x32xf32>
    %216 = arith.addf %208, %215 : vector<16x16x32xf32>
    %217 = vector.extract_strided_slice %209 {offsets = [1, 0, 0], sizes = [16, 16, 32], strides = [1, 1, 1]} : vector<22x16x32xf32> to vector<16x16x32xf32>
    %218 = vector.extract_strided_slice %5 {offsets = [11, 0], sizes = [1, 32], strides = [1, 1]} : vector<49x32xf32> to vector<1x32xf32>
    %219 = vector.shape_cast %218 : vector<1x32xf32> to vector<32xf32>
    %220 = vector.shape_cast %219 : vector<32xf32> to vector<1x1x32xf32>
    %221 = vector.broadcast %220 : vector<1x1x32xf32> to vector<16x16x32xf32>
    %222 = arith.mulf %217, %221 : vector<16x16x32xf32>
    %223 = arith.addf %216, %222 : vector<16x16x32xf32>
    %224 = vector.extract_strided_slice %209 {offsets = [2, 0, 0], sizes = [16, 16, 32], strides = [1, 1, 1]} : vector<22x16x32xf32> to vector<16x16x32xf32>
    %225 = vector.extract_strided_slice %5 {offsets = [18, 0], sizes = [1, 32], strides = [1, 1]} : vector<49x32xf32> to vector<1x32xf32>
    %226 = vector.shape_cast %225 : vector<1x32xf32> to vector<32xf32>
    %227 = vector.shape_cast %226 : vector<32xf32> to vector<1x1x32xf32>
    %228 = vector.broadcast %227 : vector<1x1x32xf32> to vector<16x16x32xf32>
    %229 = arith.mulf %224, %228 : vector<16x16x32xf32>
    %230 = arith.addf %223, %229 : vector<16x16x32xf32>
    %231 = vector.extract_strided_slice %209 {offsets = [3, 0, 0], sizes = [16, 16, 32], strides = [1, 1, 1]} : vector<22x16x32xf32> to vector<16x16x32xf32>
    %232 = vector.extract_strided_slice %5 {offsets = [25, 0], sizes = [1, 32], strides = [1, 1]} : vector<49x32xf32> to vector<1x32xf32>
    %233 = vector.shape_cast %232 : vector<1x32xf32> to vector<32xf32>
    %234 = vector.shape_cast %233 : vector<32xf32> to vector<1x1x32xf32>
    %235 = vector.broadcast %234 : vector<1x1x32xf32> to vector<16x16x32xf32>
    %236 = arith.mulf %231, %235 : vector<16x16x32xf32>
    %237 = arith.addf %230, %236 : vector<16x16x32xf32>
    %238 = vector.extract_strided_slice %209 {offsets = [4, 0, 0], sizes = [16, 16, 32], strides = [1, 1, 1]} : vector<22x16x32xf32> to vector<16x16x32xf32>
    %239 = vector.extract_strided_slice %5 {offsets = [32, 0], sizes = [1, 32], strides = [1, 1]} : vector<49x32xf32> to vector<1x32xf32>
    %240 = vector.shape_cast %239 : vector<1x32xf32> to vector<32xf32>
    %241 = vector.shape_cast %240 : vector<32xf32> to vector<1x1x32xf32>
    %242 = vector.broadcast %241 : vector<1x1x32xf32> to vector<16x16x32xf32>
    %243 = arith.mulf %238, %242 : vector<16x16x32xf32>
    %244 = arith.addf %237, %243 : vector<16x16x32xf32>
    %245 = vector.extract_strided_slice %209 {offsets = [5, 0, 0], sizes = [16, 16, 32], strides = [1, 1, 1]} : vector<22x16x32xf32> to vector<16x16x32xf32>
    %246 = vector.extract_strided_slice %5 {offsets = [39, 0], sizes = [1, 32], strides = [1, 1]} : vector<49x32xf32> to vector<1x32xf32>
    %247 = vector.shape_cast %246 : vector<1x32xf32> to vector<32xf32>
    %248 = vector.shape_cast %247 : vector<32xf32> to vector<1x1x32xf32>
    %249 = vector.broadcast %248 : vector<1x1x32xf32> to vector<16x16x32xf32>
    %250 = arith.mulf %245, %249 : vector<16x16x32xf32>
    %251 = arith.addf %244, %250 : vector<16x16x32xf32>
    %252 = vector.extract_strided_slice %209 {offsets = [6, 0, 0], sizes = [16, 16, 32], strides = [1, 1, 1]} : vector<22x16x32xf32> to vector<16x16x32xf32>
    %253 = vector.extract_strided_slice %5 {offsets = [46, 0], sizes = [1, 32], strides = [1, 1]} : vector<49x32xf32> to vector<1x32xf32>
    %254 = vector.shape_cast %253 : vector<1x32xf32> to vector<32xf32>
    %255 = vector.shape_cast %254 : vector<32xf32> to vector<1x1x32xf32>
    %256 = vector.broadcast %255 : vector<1x1x32xf32> to vector<16x16x32xf32>
    %257 = arith.mulf %252, %256 : vector<16x16x32xf32>
    %258 = arith.addf %251, %257 : vector<16x16x32xf32>
    %c0_24 = arith.constant 0 : index
    %c5 = arith.constant 5 : index
    %c0_25 = arith.constant 0 : index
    %259 = vector.load %arg12[%c0_24, %c5, %c0_25] : memref<22x22x32xf32, #tpu.memory_space<vmem>>, vector<22x16x32xf32>
    %260 = vector.extract_strided_slice %259 {offsets = [0, 0, 0], sizes = [16, 16, 32], strides = [1, 1, 1]} : vector<22x16x32xf32> to vector<16x16x32xf32>
    %261 = vector.extract_strided_slice %5 {offsets = [5, 0], sizes = [1, 32], strides = [1, 1]} : vector<49x32xf32> to vector<1x32xf32>
    %262 = vector.shape_cast %261 : vector<1x32xf32> to vector<32xf32>
    %263 = vector.shape_cast %262 : vector<32xf32> to vector<1x1x32xf32>
    %264 = vector.broadcast %263 : vector<1x1x32xf32> to vector<16x16x32xf32>
    %265 = arith.mulf %260, %264 : vector<16x16x32xf32>
    %266 = arith.addf %258, %265 : vector<16x16x32xf32>
    %267 = vector.extract_strided_slice %259 {offsets = [1, 0, 0], sizes = [16, 16, 32], strides = [1, 1, 1]} : vector<22x16x32xf32> to vector<16x16x32xf32>
    %268 = vector.extract_strided_slice %5 {offsets = [12, 0], sizes = [1, 32], strides = [1, 1]} : vector<49x32xf32> to vector<1x32xf32>
    %269 = vector.shape_cast %268 : vector<1x32xf32> to vector<32xf32>
    %270 = vector.shape_cast %269 : vector<32xf32> to vector<1x1x32xf32>
    %271 = vector.broadcast %270 : vector<1x1x32xf32> to vector<16x16x32xf32>
    %272 = arith.mulf %267, %271 : vector<16x16x32xf32>
    %273 = arith.addf %266, %272 : vector<16x16x32xf32>
    %274 = vector.extract_strided_slice %259 {offsets = [2, 0, 0], sizes = [16, 16, 32], strides = [1, 1, 1]} : vector<22x16x32xf32> to vector<16x16x32xf32>
    %275 = vector.extract_strided_slice %5 {offsets = [19, 0], sizes = [1, 32], strides = [1, 1]} : vector<49x32xf32> to vector<1x32xf32>
    %276 = vector.shape_cast %275 : vector<1x32xf32> to vector<32xf32>
    %277 = vector.shape_cast %276 : vector<32xf32> to vector<1x1x32xf32>
    %278 = vector.broadcast %277 : vector<1x1x32xf32> to vector<16x16x32xf32>
    %279 = arith.mulf %274, %278 : vector<16x16x32xf32>
    %280 = arith.addf %273, %279 : vector<16x16x32xf32>
    %281 = vector.extract_strided_slice %259 {offsets = [3, 0, 0], sizes = [16, 16, 32], strides = [1, 1, 1]} : vector<22x16x32xf32> to vector<16x16x32xf32>
    %282 = vector.extract_strided_slice %5 {offsets = [26, 0], sizes = [1, 32], strides = [1, 1]} : vector<49x32xf32> to vector<1x32xf32>
    %283 = vector.shape_cast %282 : vector<1x32xf32> to vector<32xf32>
    %284 = vector.shape_cast %283 : vector<32xf32> to vector<1x1x32xf32>
    %285 = vector.broadcast %284 : vector<1x1x32xf32> to vector<16x16x32xf32>
    %286 = arith.mulf %281, %285 : vector<16x16x32xf32>
    %287 = arith.addf %280, %286 : vector<16x16x32xf32>
    %288 = vector.extract_strided_slice %259 {offsets = [4, 0, 0], sizes = [16, 16, 32], strides = [1, 1, 1]} : vector<22x16x32xf32> to vector<16x16x32xf32>
    %289 = vector.extract_strided_slice %5 {offsets = [33, 0], sizes = [1, 32], strides = [1, 1]} : vector<49x32xf32> to vector<1x32xf32>
    %290 = vector.shape_cast %289 : vector<1x32xf32> to vector<32xf32>
    %291 = vector.shape_cast %290 : vector<32xf32> to vector<1x1x32xf32>
    %292 = vector.broadcast %291 : vector<1x1x32xf32> to vector<16x16x32xf32>
    %293 = arith.mulf %288, %292 : vector<16x16x32xf32>
    %294 = arith.addf %287, %293 : vector<16x16x32xf32>
    %295 = vector.extract_strided_slice %259 {offsets = [5, 0, 0], sizes = [16, 16, 32], strides = [1, 1, 1]} : vector<22x16x32xf32> to vector<16x16x32xf32>
    %296 = vector.extract_strided_slice %5 {offsets = [40, 0], sizes = [1, 32], strides = [1, 1]} : vector<49x32xf32> to vector<1x32xf32>
    %297 = vector.shape_cast %296 : vector<1x32xf32> to vector<32xf32>
    %298 = vector.shape_cast %297 : vector<32xf32> to vector<1x1x32xf32>
    %299 = vector.broadcast %298 : vector<1x1x32xf32> to vector<16x16x32xf32>
    %300 = arith.mulf %295, %299 : vector<16x16x32xf32>
    %301 = arith.addf %294, %300 : vector<16x16x32xf32>
    %302 = vector.extract_strided_slice %259 {offsets = [6, 0, 0], sizes = [16, 16, 32], strides = [1, 1, 1]} : vector<22x16x32xf32> to vector<16x16x32xf32>
    %303 = vector.extract_strided_slice %5 {offsets = [47, 0], sizes = [1, 32], strides = [1, 1]} : vector<49x32xf32> to vector<1x32xf32>
    %304 = vector.shape_cast %303 : vector<1x32xf32> to vector<32xf32>
    %305 = vector.shape_cast %304 : vector<32xf32> to vector<1x1x32xf32>
    %306 = vector.broadcast %305 : vector<1x1x32xf32> to vector<16x16x32xf32>
    %307 = arith.mulf %302, %306 : vector<16x16x32xf32>
    %308 = arith.addf %301, %307 : vector<16x16x32xf32>
    %c0_26 = arith.constant 0 : index
    %c6 = arith.constant 6 : index
    %c0_27 = arith.constant 0 : index
    %309 = vector.load %arg12[%c0_26, %c6, %c0_27] : memref<22x22x32xf32, #tpu.memory_space<vmem>>, vector<22x16x32xf32>
    %310 = vector.extract_strided_slice %309 {offsets = [0, 0, 0], sizes = [16, 16, 32], strides = [1, 1, 1]} : vector<22x16x32xf32> to vector<16x16x32xf32>
    %311 = vector.extract_strided_slice %5 {offsets = [6, 0], sizes = [1, 32], strides = [1, 1]} : vector<49x32xf32> to vector<1x32xf32>
    %312 = vector.shape_cast %311 : vector<1x32xf32> to vector<32xf32>
    %313 = vector.shape_cast %312 : vector<32xf32> to vector<1x1x32xf32>
    %314 = vector.broadcast %313 : vector<1x1x32xf32> to vector<16x16x32xf32>
    %315 = arith.mulf %310, %314 : vector<16x16x32xf32>
    %316 = arith.addf %308, %315 : vector<16x16x32xf32>
    %317 = vector.extract_strided_slice %309 {offsets = [1, 0, 0], sizes = [16, 16, 32], strides = [1, 1, 1]} : vector<22x16x32xf32> to vector<16x16x32xf32>
    %318 = vector.extract_strided_slice %5 {offsets = [13, 0], sizes = [1, 32], strides = [1, 1]} : vector<49x32xf32> to vector<1x32xf32>
    %319 = vector.shape_cast %318 : vector<1x32xf32> to vector<32xf32>
    %320 = vector.shape_cast %319 : vector<32xf32> to vector<1x1x32xf32>
    %321 = vector.broadcast %320 : vector<1x1x32xf32> to vector<16x16x32xf32>
    %322 = arith.mulf %317, %321 : vector<16x16x32xf32>
    %323 = arith.addf %316, %322 : vector<16x16x32xf32>
    %324 = vector.extract_strided_slice %309 {offsets = [2, 0, 0], sizes = [16, 16, 32], strides = [1, 1, 1]} : vector<22x16x32xf32> to vector<16x16x32xf32>
    %325 = vector.extract_strided_slice %5 {offsets = [20, 0], sizes = [1, 32], strides = [1, 1]} : vector<49x32xf32> to vector<1x32xf32>
    %326 = vector.shape_cast %325 : vector<1x32xf32> to vector<32xf32>
    %327 = vector.shape_cast %326 : vector<32xf32> to vector<1x1x32xf32>
    %328 = vector.broadcast %327 : vector<1x1x32xf32> to vector<16x16x32xf32>
    %329 = arith.mulf %324, %328 : vector<16x16x32xf32>
    %330 = arith.addf %323, %329 : vector<16x16x32xf32>
    %331 = vector.extract_strided_slice %309 {offsets = [3, 0, 0], sizes = [16, 16, 32], strides = [1, 1, 1]} : vector<22x16x32xf32> to vector<16x16x32xf32>
    %332 = vector.extract_strided_slice %5 {offsets = [27, 0], sizes = [1, 32], strides = [1, 1]} : vector<49x32xf32> to vector<1x32xf32>
    %333 = vector.shape_cast %332 : vector<1x32xf32> to vector<32xf32>
    %334 = vector.shape_cast %333 : vector<32xf32> to vector<1x1x32xf32>
    %335 = vector.broadcast %334 : vector<1x1x32xf32> to vector<16x16x32xf32>
    %336 = arith.mulf %331, %335 : vector<16x16x32xf32>
    %337 = arith.addf %330, %336 : vector<16x16x32xf32>
    %338 = vector.extract_strided_slice %309 {offsets = [4, 0, 0], sizes = [16, 16, 32], strides = [1, 1, 1]} : vector<22x16x32xf32> to vector<16x16x32xf32>
    %339 = vector.extract_strided_slice %5 {offsets = [34, 0], sizes = [1, 32], strides = [1, 1]} : vector<49x32xf32> to vector<1x32xf32>
    %340 = vector.shape_cast %339 : vector<1x32xf32> to vector<32xf32>
    %341 = vector.shape_cast %340 : vector<32xf32> to vector<1x1x32xf32>
    %342 = vector.broadcast %341 : vector<1x1x32xf32> to vector<16x16x32xf32>
    %343 = arith.mulf %338, %342 : vector<16x16x32xf32>
    %344 = arith.addf %337, %343 : vector<16x16x32xf32>
    %345 = vector.extract_strided_slice %309 {offsets = [5, 0, 0], sizes = [16, 16, 32], strides = [1, 1, 1]} : vector<22x16x32xf32> to vector<16x16x32xf32>
    %346 = vector.extract_strided_slice %5 {offsets = [41, 0], sizes = [1, 32], strides = [1, 1]} : vector<49x32xf32> to vector<1x32xf32>
    %347 = vector.shape_cast %346 : vector<1x32xf32> to vector<32xf32>
    %348 = vector.shape_cast %347 : vector<32xf32> to vector<1x1x32xf32>
    %349 = vector.broadcast %348 : vector<1x1x32xf32> to vector<16x16x32xf32>
    %350 = arith.mulf %345, %349 : vector<16x16x32xf32>
    %351 = arith.addf %344, %350 : vector<16x16x32xf32>
    %352 = vector.extract_strided_slice %309 {offsets = [6, 0, 0], sizes = [16, 16, 32], strides = [1, 1, 1]} : vector<22x16x32xf32> to vector<16x16x32xf32>
    %353 = vector.extract_strided_slice %5 {offsets = [48, 0], sizes = [1, 32], strides = [1, 1]} : vector<49x32xf32> to vector<1x32xf32>
    %354 = vector.shape_cast %353 : vector<1x32xf32> to vector<32xf32>
    %355 = vector.shape_cast %354 : vector<32xf32> to vector<1x1x32xf32>
    %356 = vector.broadcast %355 : vector<1x1x32xf32> to vector<16x16x32xf32>
    %357 = arith.mulf %352, %356 : vector<16x16x32xf32>
    %358 = arith.addf %351, %357 : vector<16x16x32xf32>
    %359 = vector.shape_cast %358 : vector<16x16x32xf32> to vector<256x32xf32>
    %cst_28 = arith.constant dense<0.000000e+00> : vector<256xf32>
    %360 = vector.multi_reduction <add>, %359, %cst_28 [1] : vector<256x32xf32> to vector<256xf32>
    %361 = vector.shape_cast %360 : vector<256xf32> to vector<256x1xf32>
    %362 = arith.mulf %359, %359 : vector<256x32xf32>
    %cst_29 = arith.constant dense<0.000000e+00> : vector<256xf32>
    %363 = vector.multi_reduction <add>, %362, %cst_29 [1] : vector<256x32xf32> to vector<256xf32>
    %364 = vector.shape_cast %363 : vector<256xf32> to vector<256x1xf32>
    %cst_30 = arith.constant 3.125000e-02 : f32
    %365 = vector.broadcast %cst_30 : f32 to vector<256x1xf32>
    %366 = arith.mulf %361, %365 : vector<256x1xf32>
    %cst_31 = arith.constant 3.125000e-02 : f32
    %367 = vector.broadcast %cst_31 : f32 to vector<256x1xf32>
    %368 = arith.mulf %364, %367 : vector<256x1xf32>
    %369 = arith.mulf %366, %366 : vector<256x1xf32>
    %370 = arith.subf %368, %369 : vector<256x1xf32>
    %cst_32 = arith.constant 0.000000e+00 : f32
    %371 = vector.broadcast %cst_32 : f32 to vector<256x1xf32>
    %372 = arith.maximumf %370, %371 : vector<256x1xf32>
    %373 = vector.broadcast %366 : vector<256x1xf32> to vector<256x32xf32>
    %374 = arith.subf %359, %373 : vector<256x32xf32>
    %cst_33 = arith.constant 9.99999997E-7 : f32
    %375 = vector.broadcast %cst_33 : f32 to vector<256x1xf32>
    %376 = arith.addf %372, %375 : vector<256x1xf32>
    %377 = math.rsqrt %376 : vector<256x1xf32>
    %378 = vector.broadcast %377 : vector<256x1xf32> to vector<256x32xf32>
    %379 = arith.mulf %374, %378 : vector<256x32xf32>
    %c0_34 = arith.constant 0 : index
    %c0_35 = arith.constant 0 : index
    %380 = vector.load %arg4[%c0_34, %c0_35] : memref<1x32xf32, #tpu.memory_space<vmem>>, vector<1x32xf32>
    %381 = vector.broadcast %380 : vector<1x32xf32> to vector<256x32xf32>
    %382 = arith.mulf %379, %381 : vector<256x32xf32>
    %c0_36 = arith.constant 0 : index
    %c0_37 = arith.constant 0 : index
    %383 = vector.load %arg5[%c0_36, %c0_37] : memref<1x32xf32, #tpu.memory_space<vmem>>, vector<1x32xf32>
    %384 = vector.broadcast %383 : vector<1x32xf32> to vector<256x32xf32>
    %385 = arith.addf %382, %384 : vector<256x32xf32>
    %386 = arith.truncf %385 : vector<256x32xf32> to vector<256x32xbf16>
    %c0_38 = arith.constant 0 : index
    %c0_39 = arith.constant 0 : index
    %387 = vector.load %arg6[%c0_38, %c0_39] : memref<32x128xbf16, #tpu.memory_space<vmem>>, vector<32x128xbf16>
    %cst_40 = arith.constant dense<0.000000e+00> : vector<256x128xf32>
    %388 = tpu.matmul %386, %387, %cst_40 {dimension_numbers = #tpu.dot_dimension_numbers<[1], [0], [0], [1], [0, 0, 1, 1], [], []>} : vector<256x32xbf16>, vector<32x128xbf16>, vector<256x128xf32> -> vector<256x128xf32>
    %c0_41 = arith.constant 0 : index
    %c0_42 = arith.constant 0 : index
    %389 = vector.load %arg7[%c0_41, %c0_42] : memref<1x128xf32, #tpu.memory_space<vmem>>, vector<1x128xf32>
    %390 = vector.broadcast %389 : vector<1x128xf32> to vector<256x128xf32>
    %391 = arith.addf %388, %390 : vector<256x128xf32>
    %cst_43 = arith.constant 5.000000e-01 : f32
    %392 = vector.broadcast %cst_43 : f32 to vector<256x128xf32>
    %393 = arith.mulf %392, %391 : vector<256x128xf32>
    %cst_44 = arith.constant 0.707106769 : f32
    %394 = vector.broadcast %cst_44 : f32 to vector<256x128xf32>
    %395 = arith.mulf %391, %394 : vector<256x128xf32>
    %396 = math.erf %395 : vector<256x128xf32>
    %cst_45 = arith.constant 1.000000e+00 : f32
    %397 = vector.broadcast %cst_45 : f32 to vector<256x128xf32>
    %398 = arith.addf %397, %396 : vector<256x128xf32>
    %399 = arith.mulf %393, %398 : vector<256x128xf32>
    %400 = arith.truncf %399 : vector<256x128xf32> to vector<256x128xbf16>
    %c0_46 = arith.constant 0 : index
    %c0_47 = arith.constant 0 : index
    %401 = vector.load %arg8[%c0_46, %c0_47] : memref<128x32xbf16, #tpu.memory_space<vmem>>, vector<128x32xbf16>
    %cst_48 = arith.constant dense<0.000000e+00> : vector<256x32xf32>
    %402 = tpu.matmul %400, %401, %cst_48 {dimension_numbers = #tpu.dot_dimension_numbers<[1], [0], [0], [1], [0, 0, 1, 1], [], []>} : vector<256x128xbf16>, vector<128x32xbf16>, vector<256x32xf32> -> vector<256x32xf32>
    %c0_49 = arith.constant 0 : index
    %c0_50 = arith.constant 0 : index
    %403 = vector.load %arg9[%c0_49, %c0_50] : memref<1x32xf32, #tpu.memory_space<vmem>>, vector<1x32xf32>
    %404 = vector.broadcast %403 : vector<1x32xf32> to vector<256x32xf32>
    %405 = arith.addf %402, %404 : vector<256x32xf32>
    %c0_51 = arith.constant 0 : index
    %c0_52 = arith.constant 0 : index
    %406 = vector.load %arg10[%c0_51, %c0_52] : memref<1x32xf32, #tpu.memory_space<vmem>>, vector<1x32xf32>
    %407 = vector.broadcast %406 : vector<1x32xf32> to vector<256x32xf32>
    %408 = arith.mulf %405, %407 : vector<256x32xf32>
    %c0_53 = arith.constant 0 : index
    %c0_54 = arith.constant 0 : index
    %c0_55 = arith.constant 0 : index
    %c0_56 = arith.constant 0 : index
    %409 = vector.load %arg1[%c0_53, %c0_54, %c0_55, %c0_56] : memref<1x16x16x32xf32, #tpu.memory_space<vmem>>, vector<1x16x16x32xf32>
    %410 = vector.shape_cast %409 : vector<1x16x16x32xf32> to vector<16x16x32xf32>
    %411 = vector.shape_cast %408 : vector<256x32xf32> to vector<16x16x32xf32>
    %412 = arith.addf %410, %411 : vector<16x16x32xf32>
    %413 = vector.shape_cast %412 : vector<16x16x32xf32> to vector<16x512xf32>
    %c0_57 = arith.constant 0 : index
    %c0_58 = arith.constant 0 : index
    %c0_59 = arith.constant 0 : index
    %414 = vector.load %arg11[%c0_57, %c0_58, %c0_59] : memref<1x16x512xf32, #tpu.memory_space<vmem>>, vector<1x16x512xf32>
    %415 = vector.shape_cast %414 : vector<1x16x512xf32> to vector<16x512xf32>
    %416 = vector.shape_cast %413 : vector<16x512xf32> to vector<1x16x512xf32>
    tpu.vector_store %arg11[%c0_57, %c0_58, %c0_59], %416 {strides = array<i32>} : memref<1x16x512xf32, #tpu.memory_space<vmem>>, vector<1x16x512xf32>,
    return
  }
  func.func @transform_0(%arg0: i32) -> (i32, i32, i32, i32) {
    %c0_i32 = arith.constant 0 : i32
    %c0_i32_0 = arith.constant 0 : i32
    %c0_i32_1 = arith.constant 0 : i32
    %c0_i32_2 = arith.constant 0 : i32
    return %arg0, %c0_i32, %c0_i32_0, %c0_i32_1 : i32, i32, i32, i32
  }
  func.func @transform_1(%arg0: i32) -> (i32, i32) {
    %c0_i32 = arith.constant 0 : i32
    %c0_i32_0 = arith.constant 0 : i32
    %c0_i32_1 = arith.constant 0 : i32
    return %c0_i32, %c0_i32_0 : i32, i32
  }
  func.func @transform_2(%arg0: i32) -> (i32, i32) {
    %c0_i32 = arith.constant 0 : i32
    %c0_i32_0 = arith.constant 0 : i32
    %c0_i32_1 = arith.constant 0 : i32
    return %c0_i32, %c0_i32_0 : i32, i32
  }
  func.func @transform_3(%arg0: i32) -> (i32, i32) {
    %c0_i32 = arith.constant 0 : i32
    %c0_i32_0 = arith.constant 0 : i32
    %c0_i32_1 = arith.constant 0 : i32
    return %c0_i32, %c0_i32_0 : i32, i32
  }
  func.func @transform_4(%arg0: i32) -> (i32, i32) {
    %c0_i32 = arith.constant 0 : i32
    %c0_i32_0 = arith.constant 0 : i32
    %c0_i32_1 = arith.constant 0 : i32
    return %c0_i32, %c0_i32_0 : i32, i32
  }
  func.func @transform_5(%arg0: i32) -> (i32, i32) {
    %c0_i32 = arith.constant 0 : i32
    %c0_i32_0 = arith.constant 0 : i32
    %c0_i32_1 = arith.constant 0 : i32
    return %c0_i32, %c0_i32_0 : i32, i32
  }
  func.func @transform_6(%arg0: i32) -> (i32, i32) {
    %c0_i32 = arith.constant 0 : i32
    %c0_i32_0 = arith.constant 0 : i32
    %c0_i32_1 = arith.constant 0 : i32
    return %c0_i32, %c0_i32_0 : i32, i32
  }
  func.func @transform_7(%arg0: i32) -> (i32, i32) {
    %c0_i32 = arith.constant 0 : i32
    %c0_i32_0 = arith.constant 0 : i32
    %c0_i32_1 = arith.constant 0 : i32
    return %c0_i32, %c0_i32_0 : i32, i32
  }
  func.func @transform_8(%arg0: i32) -> (i32, i32) {
    %c0_i32 = arith.constant 0 : i32
    %c0_i32_0 = arith.constant 0 : i32
    %c0_i32_1 = arith.constant 0 : i32
    return %c0_i32, %c0_i32_0 : i32, i32
  }
  func.func @transform_9(%arg0: i32) -> (i32, i32) {
    %c0_i32 = arith.constant 0 : i32
    %c0_i32_0 = arith.constant 0 : i32
    %c0_i32_1 = arith.constant 0 : i32
    return %c0_i32, %c0_i32_0 : i32, i32
  }
  func.func @transform_10(%arg0: i32) -> (i32, i32, i32) {
    %c0_i32 = arith.constant 0 : i32
    %c0_i32_0 = arith.constant 0 : i32
    %c0_i32_1 = arith.constant 0 : i32
    return %arg0, %c0_i32, %c0_i32_0 : i32, i32, i32
  }
}

</mosaic_0001>

<llo_original>
// kernel: tpu_custom_call.1
$region0: #{tpu_custom_call.1}
  #allocation0 [shape = 'u32[]', space=smem, size = 0x4, offset = 0x4, fixed_abs, tag = 'smem constant byte address 0x4 - core index']
  #allocation1 [shape = 'u32[144,128]{1,0:T(1,128)}', space=vmem, size = 0x12000, scoped, tag = 'internal scratch']
  #allocation2 [shape = 'f32[22,22,32]{2,1,0:T(8,128)}', space=vmem, size = 0x42000, scoped, tag = 'scratch operand']
  %s0 = inlined_call_operand.hbm [shape: f32[2,16,16,32], index: 0, kind: input, shape index: {}]
  %s1 = inlined_call_operand.vmem [shape: f32[49,32], index: 1, kind: input, shape index: {}]
  %s2 = inlined_call_operand.vmem [shape: f32[1,32], index: 2, kind: input, shape index: {}]
  %s3 = inlined_call_operand.vmem [shape: f32[1,32], index: 3, kind: input, shape index: {}]
  %s4 = inlined_call_operand.vmem [shape: f32[1,32], index: 4, kind: input, shape index: {}]
  %s5 = inlined_call_operand.vmem [shape: bf16[32,128], index: 5, kind: input, shape index: {}]
  %s6 = inlined_call_operand.vmem [shape: f32[1,128], index: 6, kind: input, shape index: {}]
  %s7 = inlined_call_operand.vmem [shape: bf16[128,32], index: 7, kind: input, shape index: {}]
  %s8 = inlined_call_operand.vmem [shape: f32[1,32], index: 8, kind: input, shape index: {}]
  %s9 = inlined_call_operand.vmem [shape: f32[1,32], index: 9, kind: input, shape index: {}]
  %s10 = inlined_call_operand.hbm [shape: f32[2,16,512], index: 10, kind: output, shape index: {}]
  %s11 = sld [smem:[#allocation0]]
  $region77: #{tpu_custom_call.1} parent=0
    _
  %s13 = ssub.s32 1, %s11
  %s14 = scalar_select 0, %s13, %s11
  $region1: #{tpu_custom_call.1} parent=0
    #allocation3 [shape = 'u8[262144]{0}', space=vmem, size = 0x40000, scoped, tag = 'input window, operand 0']
    #allocation4 [shape = 's32[2]{0}', space=sflag, size = 0x8, scoped, tag = 'scoped memory for tpu_custom_call.1']
    #allocation5 [shape = 's32[2]{0}', space=sflag, size = 0x8, scoped, tag = 'scoped memory for tpu_custom_call.1']
    #allocation6 [shape = 'u8[65536]{0}', space=vmem, size = 0x10000, scoped, tag = 'output window, operand 0']
    %15 = vsyncpa [#allocation4], 0
    %s16 = scalar_lea.sflag [#allocation4], 1
    %17 = vsyncpa %s16, 0
    %18 = vsyncpa [#allocation5], 0
    %s19 = scalar_lea.sflag [#allocation5], 1
    %20 = vsyncpa %s19, 0
    loop: start=0, step=1, limit=4
    $region2: #{tpu_custom_call.1} parent=1 // loop_pre_header
      _
    $region3: #{tpu_custom_call.1} parent=1 // loop_header
      %s22 = sphi 0, %s26
      %p23 = scmp.ge.s32.totalorder %s22, 4
      %s32 = sphi 0, %s34
      %s35 = sphi 0, %s32
      %s36 = sphi 0, %s35
      %s52 = sphi 0, %s36
      %s56 = sphi 0, %s56
      %s58 = sphi 0, %s56
      %s59 = sphi 0, %s58
      %s73 = sphi 0, %s59
      %s77 = sphi 0, %s77
      %s79 = sphi 0, %s77
      %s80 = sphi 0, %s79
      %s94 = sphi 0, %s80
      %s98 = sphi 0, %s98
      %s100 = sphi 0, %s98
      %s101 = sphi 0, %s100
      %s115 = sphi 0, %s101
      %s119 = sphi 0, %s119
      %s121 = sphi 0, %s119
      %s122 = sphi 0, %s121
      %s136 = sphi 0, %s122
      %s140 = sphi 0, %s140
      %s142 = sphi 0, %s140
      %s143 = sphi 0, %s142
      %s157 = sphi 0, %s143
      %s161 = sphi 0, %s161
      %s163 = sphi 0, %s161
      %s164 = sphi 0, %s163
      %s178 = sphi 0, %s164
      %s182 = sphi 0, %s182
      %s184 = sphi 0, %s182
      %s185 = sphi 0, %s184
      %s199 = sphi 0, %s185
      %s203 = sphi 0, %s203
      %s205 = sphi 0, %s203
      %s206 = sphi 0, %s205
      %s220 = sphi 0, %s206
      %s224 = sphi 0, %s224
      %s226 = sphi 0, %s224
      %s227 = sphi 0, %s226
      %s241 = sphi 0, %s227
      %s247 = sphi 0, %s249
      %s250 = sphi 0, %s247
      %s251 = sphi 0, %s250
      %s267 = sphi 0, %s251
    $region4: #{tpu_custom_call.1} parent=1 // loop_header_branch
      %25 = sbr.rel (%p23) target = $region8
    $region5: #{tpu_custom_call.1} parent=1 // loop_body
      %s27 = ssub.s32 %s22, 1
      %s28 = ssub.s32 %s22, 2
      %s29 = sadd.s32 %s22, 1
      %s30 = ssub.s32 %s22, %s29
      %p31 = scmp.eq.s32.totalorder %s30, 0
      %s33 = sadd.s32 %s32, 1
      %s34 = scalar_select %p31, %s32, %s33
      %p37 = pneg %p31
      %p38 = scmp.eq.s32.totalorder %s22, 1
      %p39 = por %p37, %p38
      %p40 = scmp.ne.s32.totalorder %s32, %s35
      %p41 = scmp.eq.s32.totalorder %s22, 0
      %p42 = por %p40, %p41
      %p43 = scmp.ne.s32.totalorder %s32, %s35
      %p44 = scmp.eq.s32.totalorder %s27, 1
      %p45 = por %p43, %p44
      %p46 = scmp.ne.s32.totalorder %s35, %s36
      %p47 = scmp.eq.s32.totalorder %s27, 0
      %p48 = por %p46, %p47
      %p49 = scmp.ne.s32.totalorder %s35, %s36
      %p50 = scmp.eq.s32.totalorder %s28, 1
      %p51 = por %p49, %p50
      %p53 = scmp.ne.s32.totalorder %s36, %s52
      %p54 = scmp.eq.s32.totalorder %s28, 0
      %p55 = por %p53, %p54
      %s57 = sadd.s32 %s56, 1
      %p60 = scmp.eq.s32.totalorder %s22, 1
      %p61 = scmp.ne.s32.totalorder %s56, %s58
      %p62 = scmp.eq.s32.totalorder %s22, 0
      %p63 = por %p61, %p62
      %p64 = scmp.ne.s32.totalorder %s56, %s58
      %p65 = scmp.eq.s32.totalorder %s27, 1
      %p66 = por %p64, %p65
      %p67 = scmp.ne.s32.totalorder %s58, %s59
      %p68 = scmp.eq.s32.totalorder %s27, 0
      %p69 = por %p67, %p68
      %p70 = scmp.ne.s32.totalorder %s58, %s59
      %p71 = scmp.eq.s32.totalorder %s28, 1
      %p72 = por %p70, %p71
      %p74 = scmp.ne.s32.totalorder %s59, %s73
      %p75 = scmp.eq.s32.totalorder %s28, 0
      %p76 = por %p74, %p75
      %s78 = sadd.s32 %s77, 1
      %p81 = scmp.eq.s32.totalorder %s22, 1
      %p82 = scmp.ne.s32.totalorder %s77, %s79
      %p83 = scmp.eq.s32.totalorder %s22, 0
      %p84 = por %p82, %p83
      %p85 = scmp.ne.s32.totalorder %s77, %s79
      %p86 = scmp.eq.s32.totalorder %s27, 1
      %p87 = por %p85, %p86
      %p88 = scmp.ne.s32.totalorder %s79, %s80
      %p89 = scmp.eq.s32.totalorder %s27, 0
      %p90 = por %p88, %p89
      %p91 = scmp.ne.s32.totalorder %s79, %s80
      %p92 = scmp.eq.s32.totalorder %s28, 1
      %p93 = por %p91, %p92
      %p95 = scmp.ne.s32.totalorder %s80, %s94
      %p96 = scmp.eq.s32.totalorder %s28, 0
      %p97 = por %p95, %p96
      %s99 = sadd.s32 %s98, 1
      %p102 = scmp.eq.s32.totalorder %s22, 1
      %p103 = scmp.ne.s32.totalorder %s98, %s100
      %p104 = scmp.eq.s32.totalorder %s22, 0
      %p105 = por %p103, %p104
      %p106 = scmp.ne.s32.totalorder %s98, %s100
      %p107 = scmp.eq.s32.totalorder %s27, 1
      %p108 = por %p106, %p107
      %p109 = scmp.ne.s32.totalorder %s100, %s101
      %p110 = scmp.eq.s32.totalorder %s27, 0
      %p111 = por %p109, %p110
      %p112 = scmp.ne.s32.totalorder %s100, %s101
      %p113 = scmp.eq.s32.totalorder %s28, 1
      %p114 = por %p112, %p113
      %p116 = scmp.ne.s32.totalorder %s101, %s115
      %p117 = scmp.eq.s32.totalorder %s28, 0
      %p118 = por %p116, %p117
      %s120 = sadd.s32 %s119, 1
      %p123 = scmp.eq.s32.totalorder %s22, 1
      %p124 = scmp.ne.s32.totalorder %s119, %s121
      %p125 = scmp.eq.s32.totalorder %s22, 0
      %p126 = por %p124, %p125
      %p127 = scmp.ne.s32.totalorder %s119, %s121
      %p128 = scmp.eq.s32.totalorder %s27, 1
      %p129 = por %p127, %p128
      %p130 = scmp.ne.s32.totalorder %s121, %s122
      %p131 = scmp.eq.s32.totalorder %s27, 0
      %p132 = por %p130, %p131
      %p133 = scmp.ne.s32.totalorder %s121, %s122
      %p134 = scmp.eq.s32.totalorder %s28, 1
      %p135 = por %p133, %p134
      %p137 = scmp.ne.s32.totalorder %s122, %s136
      %p138 = scmp.eq.s32.totalorder %s28, 0
      %p139 = por %p137, %p138
      %s141 = sadd.s32 %s140, 1
      %p144 = scmp.eq.s32.totalorder %s22, 1
      %p145 = scmp.ne.s32.totalorder %s140, %s142
      %p146 = scmp.eq.s32.totalorder %s22, 0
      %p147 = por %p145, %p146
      %p148 = scmp.ne.s32.totalorder %s140, %s142
      %p149 = scmp.eq.s32.totalorder %s27, 1
      %p150 = por %p148, %p149
      %p151 = scmp.ne.s32.totalorder %s142, %s143
      %p152 = scmp.eq.s32.totalorder %s27, 0
      %p153 = por %p151, %p152
      %p154 = scmp.ne.s32.totalorder %s142, %s143
      %p155 = scmp.eq.s32.totalorder %s28, 1
      %p156 = por %p154, %p155
      %p158 = scmp.ne.s32.totalorder %s143, %s157
      %p159 = scmp.eq.s32.totalorder %s28, 0
      %p160 = por %p158, %p159
      %s162 = sadd.s32 %s161, 1
      %p165 = scmp.eq.s32.totalorder %s22, 1
      %p166 = scmp.ne.s32.totalorder %s161, %s163
      %p167 = scmp.eq.s32.totalorder %s22, 0
      %p168 = por %p166, %p167
      %p169 = scmp.ne.s32.totalorder %s161, %s163
      %p170 = scmp.eq.s32.totalorder %s27, 1
      %p171 = por %p169, %p170
      %p172 = scmp.ne.s32.totalorder %s163, %s164
      %p173 = scmp.eq.s32.totalorder %s27, 0
      %p174 = por %p172, %p173
      %p175 = scmp.ne.s32.totalorder %s163, %s164
      %p176 = scmp.eq.s32.totalorder %s28, 1
      %p177 = por %p175, %p176
      %p179 = scmp.ne.s32.totalorder %s164, %s178
      %p180 = scmp.eq.s32.totalorder %s28, 0
      %p181 = por %p179, %p180
      %s183 = sadd.s32 %s182, 1
      %p186 = scmp.eq.s32.totalorder %s22, 1
      %p187 = scmp.ne.s32.totalorder %s182, %s184
      %p188 = scmp.eq.s32.totalorder %s22, 0
      %p189 = por %p187, %p188
      %p190 = scmp.ne.s32.totalorder %s182, %s184
      %p191 = scmp.eq.s32.totalorder %s27, 1
      %p192 = por %p190, %p191
      %p193 = scmp.ne.s32.totalorder %s184, %s185
      %p194 = scmp.eq.s32.totalorder %s27, 0
      %p195 = por %p193, %p194
      %p196 = scmp.ne.s32.totalorder %s184, %s185
      %p197 = scmp.eq.s32.totalorder %s28, 1
      %p198 = por %p196, %p197
      %p200 = scmp.ne.s32.totalorder %s185, %s199
      %p201 = scmp.eq.s32.totalorder %s28, 0
      %p202 = por %p200, %p201
      %s204 = sadd.s32 %s203, 1
      %p207 = scmp.eq.s32.totalorder %s22, 1
      %p208 = scmp.ne.s32.totalorder %s203, %s205
      %p209 = scmp.eq.s32.totalorder %s22, 0
      %p210 = por %p208, %p209
      %p211 = scmp.ne.s32.totalorder %s203, %s205
      %p212 = scmp.eq.s32.totalorder %s27, 1
      %p213 = por %p211, %p212
      %p214 = scmp.ne.s32.totalorder %s205, %s206
      %p215 = scmp.eq.s32.totalorder %s27, 0
      %p216 = por %p214, %p215
      %p217 = scmp.ne.s32.totalorder %s205, %s206
      %p218 = scmp.eq.s32.totalorder %s28, 1
      %p219 = por %p217, %p218
      %p221 = scmp.ne.s32.totalorder %s206, %s220
      %p222 = scmp.eq.s32.totalorder %s28, 0
      %p223 = por %p221, %p222
      %s225 = sadd.s32 %s224, 1
      %p228 = scmp.eq.s32.totalorder %s22, 1
      %p229 = scmp.ne.s32.totalorder %s224, %s226
      %p230 = scmp.eq.s32.totalorder %s22, 0
      %p231 = por %p229, %p230
      %p232 = scmp.ne.s32.totalorder %s224, %s226
      %p233 = scmp.eq.s32.totalorder %s27, 1
      %p234 = por %p232, %p233
      %p235 = scmp.ne.s32.totalorder %s226, %s227
      %p236 = scmp.eq.s32.totalorder %s27, 0
      %p237 = por %p235, %p236
      %p238 = scmp.ne.s32.totalorder %s226, %s227
      %p239 = scmp.eq.s32.totalorder %s28, 1
      %p240 = por %p238, %p239
      %p242 = scmp.ne.s32.totalorder %s227, %s241
      %p243 = scmp.eq.s32.totalorder %s28, 0
      %p244 = por %p242, %p243
      %s245 = ssub.s32 %s22, %s29
      %p246 = scmp.eq.s32.totalorder %s245, 0
      %s248 = sadd.s32 %s247, 1
      %s249 = scalar_select %p246, %s247, %s248
      %p252 = pneg %p246
      %p253 = scmp.eq.s32.totalorder %s22, 1
      %p254 = por %p252, %p253
      %p255 = scmp.ne.s32.totalorder %s247, %s250
      %p256 = scmp.eq.s32.totalorder %s22, 0
      %p257 = por %p255, %p256
      %p258 = scmp.ne.s32.totalorder %s247, %s250
      %p259 = scmp.eq.s32.totalorder %s27, 1
      %p260 = por %p258, %p259
      %p261 = scmp.ne.s32.totalorder %s250, %s251
      %p262 = scmp.eq.s32.totalorder %s27, 0
      %p263 = por %p261, %p262
      %p264 = scmp.ne.s32.totalorder %s250, %s251
      %p265 = scmp.eq.s32.totalorder %s28, 1
      %p266 = por %p264, %p265
      %p268 = scmp.ne.s32.totalorder %s251, %s267
      %p269 = scmp.eq.s32.totalorder %s28, 0
      %p270 = por %p268, %p269
      %p271 = scmp.le.s32.totalorder 1, %s22
      %p272 = scmp.lt.s32.totalorder %s22, 3
      %p273 = pnand %p271, %p272
      %p274 = pneg %p273
      // Predicated region
      $region9: #{tpu_custom_call.1} parent=5 // pred_check
        _
      $region10: #{tpu_custom_call.1} parent=5 // pred_check_branch
        %276 = sbr.rel (%p273) target = $region12
      $region11: #{tpu_custom_call.1} parent=5 // pred_region
        %s277 = ssub.s32 %s22, 1
        // Predicated region
        $region13: #{tpu_custom_call.1} parent=11 // pred_check
          %p278 = pneg %p69
        $region14: #{tpu_custom_call.1} parent=11 // pred_check_branch
          %280 = sbr.rel (%p278) target = $region16
        $region15: #{tpu_custom_call.1} parent=11 // pred_region
          _
        $region16: #{tpu_custom_call.1} parent=11 // pred_fallthru
          _
        // Predicated region
        $region17: #{tpu_custom_call.1} parent=11 // pred_check
          %p281 = pneg %p90
        $region18: #{tpu_custom_call.1} parent=11 // pred_check_branch
          %283 = sbr.rel (%p281) target = $region20
        $region19: #{tpu_custom_call.1} parent=11 // pred_region
          _
        $region20: #{tpu_custom_call.1} parent=11 // pred_fallthru
          _
        // Predicated region
        $region21: #{tpu_custom_call.1} parent=11 // pred_check
          %p284 = pneg %p111
        $region22: #{tpu_custom_call.1} parent=11 // pred_check_branch
          %286 = sbr.rel (%p284) target = $region24
        $region23: #{tpu_custom_call.1} parent=11 // pred_region
          _
        $region24: #{tpu_custom_call.1} parent=11 // pred_fallthru
          _
        // Predicated region
        $region25: #{tpu_custom_call.1} parent=11 // pred_check
          %p287 = pneg %p132
        $region26: #{tpu_custom_call.1} parent=11 // pred_check_branch
          %289 = sbr.rel (%p287) target = $region28
        $region27: #{tpu_custom_call.1} parent=11 // pred_region
          _
        $region28: #{tpu_custom_call.1} parent=11 // pred_fallthru
          _
        // Predicated region
        $region29: #{tpu_custom_call.1} parent=11 // pred_check
          %p290 = pneg %p153
        $region30: #{tpu_custom_call.1} parent=11 // pred_check_branch
          %292 = sbr.rel (%p290) target = $region32
        $region31: #{tpu_custom_call.1} parent=11 // pred_region
          _
        $region32: #{tpu_custom_call.1} parent=11 // pred_fallthru
          _
        // Predicated region
        $region33: #{tpu_custom_call.1} parent=11 // pred_check
          %p293 = pneg %p174
        $region34: #{tpu_custom_call.1} parent=11 // pred_check_branch
          %295 = sbr.rel (%p293) target = $region36
        $region35: #{tpu_custom_call.1} parent=11 // pred_region
          _
        $region36: #{tpu_custom_call.1} parent=11 // pred_fallthru
          _
        // Predicated region
        $region37: #{tpu_custom_call.1} parent=11 // pred_check
          %p296 = pneg %p195
        $region38: #{tpu_custom_call.1} parent=11 // pred_check_branch
          %298 = sbr.rel (%p296) target = $region40
        $region39: #{tpu_custom_call.1} parent=11 // pred_region
          _
        $region40: #{tpu_custom_call.1} parent=11 // pred_fallthru
          _
        // Predicated region
        $region41: #{tpu_custom_call.1} parent=11 // pred_check
          %p299 = pneg %p216
        $region42: #{tpu_custom_call.1} parent=11 // pred_check_branch
          %301 = sbr.rel (%p299) target = $region44
        $region43: #{tpu_custom_call.1} parent=11 // pred_region
          _
        $region44: #{tpu_custom_call.1} parent=11 // pred_fallthru
          _
        // Predicated region
        $region45: #{tpu_custom_call.1} parent=11 // pred_check
          %p302 = pneg %p237
        $region46: #{tpu_custom_call.1} parent=11 // pred_check_branch
          %304 = sbr.rel (%p302) target = $region48
        $region47: #{tpu_custom_call.1} parent=11 // pred_region
          _
        $region48: #{tpu_custom_call.1} parent=11 // pred_fallthru
          _
      $region12: #{tpu_custom_call.1} parent=5 // pred_fallthru
        _
      %p305 = scmp.lt.s32.totalorder %s22, 2
      // Predicated region
      $region49: #{tpu_custom_call.1} parent=5 // pred_check
        %p306 = pneg %p305
      $region50: #{tpu_custom_call.1} parent=5 // pred_check_branch
        %308 = sbr.rel (%p306) target = $region52
      $region51: #{tpu_custom_call.1} parent=5 // pred_region
        // Predicated region
        $region53: #{tpu_custom_call.1} parent=51 // pred_check
          %p309 = pneg %p42
        $region54: #{tpu_custom_call.1} parent=51 // pred_check_branch
          %311 = sbr.rel (%p309) target = $region56
        $region55: #{tpu_custom_call.1} parent=51 // pred_region
          %s312 = sand.u32 %s32, 1
          %s313 = scalar_lea.sflag [#allocation4], %s312
          %s314 = sand.u32 %s32, 1
          %s315 = smul.addr %s314, 256
          %s316 = scalar_lea.vmem [#allocation3], %s315
          %s318 = ssub.s32 4096, 4096
          %319 = vsyncadd %s313, %s318
          %s320 = smul.addr %s22, 32
          %s321 = smul.addr %s320, 128
          %s322 = scalar_lea.hbm %s0, %s321
          %s323 = sshll.u32 %s316, 4
          %s324 = int_to_ptr.vmem [resolvable:$true] %s323
          %329 = dma.hbm_to_vmem [thread:$0]  %s322, 4096, %s324, %s313, 128, 128, 8
        $region56: #{tpu_custom_call.1} parent=51 // pred_fallthru
          _
      $region52: #{tpu_custom_call.1} parent=5 // pred_fallthru
        _
      %p330 = scmp.le.s32.totalorder 1, %s22
      %p331 = scmp.lt.s32.totalorder %s22, 3
      %p332 = pnand %p330, %p331
      %p333 = pneg %p332
      // Predicated region
      $region57: #{tpu_custom_call.1} parent=5 // pred_check
        _
      $region58: #{tpu_custom_call.1} parent=5 // pred_check_branch
        %335 = sbr.rel (%p332) target = $region60
      $region59: #{tpu_custom_call.1} parent=5 // pred_region
        %s336 = ssub.s32 %s22, 1
        %s337 = sand.u32 %s35, 1
        %s338 = scalar_lea.sflag [#allocation4], %s337
        %s339 = sand.u32 %s35, 1
        %s340 = smul.addr %s339, 256
        %s341 = scalar_lea.vmem [#allocation3], %s340
        // Predicated region
        $region61: #{tpu_custom_call.1} parent=59 // pred_check
          %p342 = pneg %p48
        $region62: #{tpu_custom_call.1} parent=59 // pred_check_branch
          %344 = sbr.rel (%p342) target = $region64
        $region63: #{tpu_custom_call.1} parent=59 // pred_region
          %345 = dma.done %s338, 4096
        $region64: #{tpu_custom_call.1} parent=59 // pred_fallthru
          _
        %s346 = sand.u32 %s35, 1
        %s347 = scalar_lea.sflag [#allocation4], %s346
        %s348 = sand.u32 %s35, 1
        %s349 = smul.addr %s348, 256
        %s350 = scalar_lea.vmem [#allocation3], %s349
        %p351 = pneg %p48
        %p352 = pneg %p45
        %p353 = pneg %p69
        %p354 = pneg %p66
        %p355 = pneg %p90
        %p356 = pneg %p87
        %p357 = pneg %p111
        %p358 = pneg %p108
        %p359 = pneg %p132
        %p360 = pneg %p129
        %p361 = pneg %p153
        %p362 = pneg %p150
        %p363 = pneg %p174
        %p364 = pneg %p171
        %p365 = pneg %p195
        %p366 = pneg %p192
        %p367 = pneg %p216
        %p368 = pneg %p213
        %p369 = pneg %p237
        %p370 = pneg %p234
        %p371 = pneg %p263
        %p372 = pneg %p260
        %s373 = sand.u32 %s250, 1
        %s374 = scalar_lea.sflag [#allocation5], %s373
        %s375 = sand.u32 %s250, 1
        %s376 = smul.addr %s375, 64
        %s377 = scalar_lea.vmem [#allocation6], %s376
        %vm379 = vcmask 261120
        %380 = vst.msk [vmem:[#allocation2] sm:$0xff] %vm379, 0.0
        %381 = vst.msk [vmem:[#allocation2 + $0x8] sm:$0xff] %vm379, 0.0
        %vm382 = vcmask 259072
        %383 = vst.msk [vmem:[#allocation2 + $0x10] sm:$0x3f] %vm382, 0.0
        %384 = vst.msk [vmem:[#allocation2 + $0x18] sm:$0xff] %vm379, 0.0
        %385 = vst.msk [vmem:[#allocation2 + $0x20] sm:$0xff] %vm379, 0.0
        %386 = vst.msk [vmem:[#allocation2 + $0x28] sm:$0x3f] %vm382, 0.0
        %387 = vst.msk [vmem:[#allocation2 + $0x30] sm:$0xff] %vm379, 0.0
        %388 = vst.msk [vmem:[#allocation2 + $0x38] sm:$0xff] %vm379, 0.0
        %389 = vst.msk [vmem:[#allocation2 + $0x40] sm:$0x3f] %vm382, 0.0
        %390 = vst.msk [vmem:[#allocation2 + $0x48] sm:$0xff] %vm379, 0.0
        %391 = vst.msk [vmem:[#allocation2 + $0x50] sm:$0xff] %vm379, 0.0
        %392 = vst.msk [vmem:[#allocation2 + $0x58] sm:$0x3f] %vm382, 0.0
        %393 = vst.msk [vmem:[#allocation2 + $0x60] sm:$0xff] %vm379, 0.0
        %394 = vst.msk [vmem:[#allocation2 + $0x68] sm:$0xff] %vm379, 0.0
        %395 = vst.msk [vmem:[#allocation2 + $0x70] sm:$0x3f] %vm382, 0.0
        %396 = vst.msk [vmem:[#allocation2 + $0x78] sm:$0xff] %vm379, 0.0
        %397 = vst.msk [vmem:[#allocation2 + $0x80] sm:$0xff] %vm379, 0.0
        %398 = vst.msk [vmem:[#allocation2 + $0x88] sm:$0x3f] %vm382, 0.0
        %399 = vst.msk [vmem:[#allocation2 + $0x90] sm:$0xff] %vm379, 0.0
        %400 = vst.msk [vmem:[#allocation2 + $0x98] sm:$0xff] %vm379, 0.0
        %401 = vst.msk [vmem:[#allocation2 + $0xa0] sm:$0x3f] %vm382, 0.0
        %402 = vst.msk [vmem:[#allocation2 + $0xa8] sm:$0xff] %vm379, 0.0
        %403 = vst.msk [vmem:[#allocation2 + $0xb0] sm:$0xff] %vm379, 0.0
        %404 = vst.msk [vmem:[#allocation2 + $0xb8] sm:$0x3f] %vm382, 0.0
        %405 = vst.msk [vmem:[#allocation2 + $0xc0] sm:$0xff] %vm379, 0.0
        %406 = vst.msk [vmem:[#allocation2 + $0xc8] sm:$0xff] %vm379, 0.0
        %407 = vst.msk [vmem:[#allocation2 + $0xd0] sm:$0x3f] %vm382, 0.0
        %408 = vst.msk [vmem:[#allocation2 + $0xd8] sm:$0xff] %vm379, 0.0
        %409 = vst.msk [vmem:[#allocation2 + $0xe0] sm:$0xff] %vm379, 0.0
        %410 = vst.msk [vmem:[#allocation2 + $0xe8] sm:$0x3f] %vm382, 0.0
        %411 = vst.msk [vmem:[#allocation2 + $0xf0] sm:$0xff] %vm379, 0.0
        %412 = vst.msk [vmem:[#allocation2 + $0xf8] sm:$0xff] %vm379, 0.0
        %413 = vst.msk [vmem:[#allocation2 + $0x100] sm:$0x3f] %vm382, 0.0
        %414 = vst.msk [vmem:[#allocation2 + $0x108] sm:$0xff] %vm379, 0.0
        %415 = vst.msk [vmem:[#allocation2 + $0x110] sm:$0xff] %vm379, 0.0
        %416 = vst.msk [vmem:[#allocation2 + $0x118] sm:$0x3f] %vm382, 0.0
        %417 = vst.msk [vmem:[#allocation2 + $0x120] sm:$0xff] %vm379, 0.0
        %418 = vst.msk [vmem:[#allocation2 + $0x128] sm:$0xff] %vm379, 0.0
        %419 = vst.msk [vmem:[#allocation2 + $0x130] sm:$0x3f] %vm382, 0.0
        %420 = vst.msk [vmem:[#allocation2 + $0x138] sm:$0xff] %vm379, 0.0
        %421 = vst.msk [vmem:[#allocation2 + $0x140] sm:$0xff] %vm379, 0.0
        %422 = vst.msk [vmem:[#allocation2 + $0x148] sm:$0x3f] %vm382, 0.0
        %423 = vst.msk [vmem:[#allocation2 + $0x150] sm:$0xff] %vm379, 0.0
        %424 = vst.msk [vmem:[#allocation2 + $0x158] sm:$0xff] %vm379, 0.0
        %425 = vst.msk [vmem:[#allocation2 + $0x160] sm:$0x3f] %vm382, 0.0
        %426 = vst.msk [vmem:[#allocation2 + $0x168] sm:$0xff] %vm379, 0.0
        %427 = vst.msk [vmem:[#allocation2 + $0x170] sm:$0xff] %vm379, 0.0
        %428 = vst.msk [vmem:[#allocation2 + $0x178] sm:$0x3f] %vm382, 0.0
        %429 = vst.msk [vmem:[#allocation2 + $0x180] sm:$0xff] %vm379, 0.0
        %430 = vst.msk [vmem:[#allocation2 + $0x188] sm:$0xff] %vm379, 0.0
        %431 = vst.msk [vmem:[#allocation2 + $0x190] sm:$0x3f] %vm382, 0.0
        %432 = vst.msk [vmem:[#allocation2 + $0x198] sm:$0xff] %vm379, 0.0
        %433 = vst.msk [vmem:[#allocation2 + $0x1a0] sm:$0xff] %vm379, 0.0
        %434 = vst.msk [vmem:[#allocation2 + $0x1a8] sm:$0x3f] %vm382, 0.0
        %435 = vst.msk [vmem:[#allocation2 + $0x1b0] sm:$0xff] %vm379, 0.0
        %436 = vst.msk [vmem:[#allocation2 + $0x1b8] sm:$0xff] %vm379, 0.0
        %437 = vst.msk [vmem:[#allocation2 + $0x1c0] sm:$0x3f] %vm382, 0.0
        %438 = vst.msk [vmem:[#allocation2 + $0x1c8] sm:$0xff] %vm379, 0.0
        %439 = vst.msk [vmem:[#allocation2 + $0x1d0] sm:$0xff] %vm379, 0.0
        %440 = vst.msk [vmem:[#allocation2 + $0x1d8] sm:$0x3f] %vm382, 0.0
        %441 = vst.msk [vmem:[#allocation2 + $0x1e0] sm:$0xff] %vm379, 0.0
        %442 = vst.msk [vmem:[#allocation2 + $0x1e8] sm:$0xff] %vm379, 0.0
        %443 = vst.msk [vmem:[#allocation2 + $0x1f0] sm:$0x3f] %vm382, 0.0
        %444 = vst.msk [vmem:[#allocation2 + $0x1f8] sm:$0xff] %vm379, 0.0
        %445 = vst.msk [vmem:[#allocation2 + $0x200] sm:$0xff] %vm379, 0.0
        %446 = vst.msk [vmem:[#allocation2 + $0x208] sm:$0x3f] %vm382, 0.0
        %v447 = vld [vmem:[%s341] sm:$0xff]
        %v448 = vld [vmem:[%s341 + $0x8] sm:$0xff]
        %v449 = vld [vmem:[%s341 + $0x10] sm:$0xff]
        %v450 = vld [vmem:[%s341 + $0x18] sm:$0xff]
        %v451 = vld [vmem:[%s341 + $0x20] sm:$0xff]
        %v452 = vld [vmem:[%s341 + $0x28] sm:$0xff]
        %v453 = vld [vmem:[%s341 + $0x30] sm:$0xff]
        %v454 = vld [vmem:[%s341 + $0x38] sm:$0xff]
        %v455 = vld [vmem:[%s341 + $0x40] sm:$0xff]
        %v456 = vld [vmem:[%s341 + $0x48] sm:$0xff]
        %v457 = vld [vmem:[%s341 + $0x50] sm:$0xff]
        %v458 = vld [vmem:[%s341 + $0x58] sm:$0xff]
        %v459 = vld [vmem:[%s341 + $0x60] sm:$0xff]
        %v460 = vld [vmem:[%s341 + $0x68] sm:$0xff]
        %v461 = vld [vmem:[%s341 + $0x70] sm:$0xff]
        %v462 = vld [vmem:[%s341 + $0x78] sm:$0xff]
        %v463 = vld [vmem:[%s341 + $0x80] sm:$0xff]
        %v464 = vld [vmem:[%s341 + $0x88] sm:$0xff]
        %v465 = vld [vmem:[%s341 + $0x90] sm:$0xff]
        %v466 = vld [vmem:[%s341 + $0x98] sm:$0xff]
        %v467 = vld [vmem:[%s341 + $0xa0] sm:$0xff]
        %v468 = vld [vmem:[%s341 + $0xa8] sm:$0xff]
        %v469 = vld [vmem:[%s341 + $0xb0] sm:$0xff]
        %v470 = vld [vmem:[%s341 + $0xb8] sm:$0xff]
        %v471 = vld [vmem:[%s341 + $0xc0] sm:$0xff]
        %v472 = vld [vmem:[%s341 + $0xc8] sm:$0xff]
        %v473 = vld [vmem:[%s341 + $0xd0] sm:$0xff]
        %v474 = vld [vmem:[%s341 + $0xd8] sm:$0xff]
        %v475 = vld [vmem:[%s341 + $0xe0] sm:$0xff]
        %v476 = vld [vmem:[%s341 + $0xe8] sm:$0xff]
        %v477 = vld [vmem:[%s341 + $0xf0] sm:$0xff]
        %v478 = vld [vmem:[%s341 + $0xf8] sm:$0xff]
        %s479 = scalar_lea.vmem [#allocation2], 72
        %480 = vst.msk [vmem:[%s479 + $0x3] sm:$0xff] %vm379, %v447
        %481 = vst.msk [vmem:[%s479 + $0xb] sm:$0xff] %vm379, %v448
        %482 = vst.msk [vmem:[%s479 + $0x1b] sm:$0xff] %vm379, %v449
        %483 = vst.msk [vmem:[%s479 + $0x23] sm:$0xff] %vm379, %v450
        %484 = vst.msk [vmem:[%s479 + $0x33] sm:$0xff] %vm379, %v451
        %485 = vst.msk [vmem:[%s479 + $0x3b] sm:$0xff] %vm379, %v452
        %486 = vst.msk [vmem:[%s479 + $0x4b] sm:$0xff] %vm379, %v453
        %487 = vst.msk [vmem:[%s479 + $0x53] sm:$0xff] %vm379, %v454
        %488 = vst.msk [vmem:[%s479 + $0x63] sm:$0xff] %vm379, %v455
        %489 = vst.msk [vmem:[%s479 + $0x6b] sm:$0xff] %vm379, %v456
        %490 = vst.msk [vmem:[%s479 + $0x7b] sm:$0xff] %vm379, %v457
        %491 = vst.msk [vmem:[%s479 + $0x83] sm:$0xff] %vm379, %v458
        %492 = vst.msk [vmem:[%s479 + $0x93] sm:$0xff] %vm379, %v459
        %493 = vst.msk [vmem:[%s479 + $0x9b] sm:$0xff] %vm379, %v460
        %494 = vst.msk [vmem:[%s479 + $0xab] sm:$0xff] %vm379, %v461
        %495 = vst.msk [vmem:[%s479 + $0xb3] sm:$0xff] %vm379, %v462
        %496 = vst.msk [vmem:[%s479 + $0xc3] sm:$0xff] %vm379, %v463
        %497 = vst.msk [vmem:[%s479 + $0xcb] sm:$0xff] %vm379, %v464
        %498 = vst.msk [vmem:[%s479 + $0xdb] sm:$0xff] %vm379, %v465
        %499 = vst.msk [vmem:[%s479 + $0xe3] sm:$0xff] %vm379, %v466
        %500 = vst.msk [vmem:[%s479 + $0xf3] sm:$0xff] %vm379, %v467
        %501 = vst.msk [vmem:[%s479 + $0xfb] sm:$0xff] %vm379, %v468
        %502 = vst.msk [vmem:[%s479 + $0x10b] sm:$0xff] %vm379, %v469
        %503 = vst.msk [vmem:[%s479 + $0x113] sm:$0xff] %vm379, %v470
        %504 = vst.msk [vmem:[%s479 + $0x123] sm:$0xff] %vm379, %v471
        %505 = vst.msk [vmem:[%s479 + $0x12b] sm:$0xff] %vm379, %v472
        %506 = vst.msk [vmem:[%s479 + $0x13b] sm:$0xff] %vm379, %v473
        %507 = vst.msk [vmem:[%s479 + $0x143] sm:$0xff] %vm379, %v474
        %508 = vst.msk [vmem:[%s479 + $0x153] sm:$0xff] %vm379, %v475
        %509 = vst.msk [vmem:[%s479 + $0x15b] sm:$0xff] %vm379, %v476
        %510 = vst.msk [vmem:[%s479 + $0x16b] sm:$0xff] %vm379, %v477
        %511 = vst.msk [vmem:[%s479 + $0x173] sm:$0xff] %vm379, %v478
        %v512 = vld [vmem:[%s1] sm:$0xff]
        %v513 = vld [vmem:[%s1 + $0x8] sm:$0xff]
        %v514 = vld [vmem:[%s1 + $0x10] sm:$0xff]
        %v515 = vld [vmem:[%s1 + $0x18] sm:$0xff]
        %v516 = vld [vmem:[%s1 + $0x20] sm:$0xff]
        %v517 = vld [vmem:[%s1 + $0x28] sm:$0xff]
        %v518 = vld [vmem:[%s1 + $0x30] sm:$0x1]
        %v519 = vld [vmem:[%s2] sm:$0x1]
        %v521 = vlaneseq
        %v522 = vshrl.u32 %v521, 7
        %v523 = vsub.s32 0, %v522
        %v524 = vrot.slane %v519, %v523
        %v526 = vld [vmem:[#allocation2] sm:$0xff]
        %v527 = vld [vmem:[#allocation2 + $0x8] sm:$0xff]
        %v528 = vld [vmem:[#allocation2 + $0x18] sm:$0xff]
        %v529 = vld [vmem:[#allocation2 + $0x20] sm:$0xff]
        %v530 = vld [vmem:[#allocation2 + $0x30] sm:$0xff]
        %v531 = vld [vmem:[#allocation2 + $0x38] sm:$0xff]
        %v532 = vld [vmem:[#allocation2 + $0x48] sm:$0xff]
        %v533 = vld [vmem:[#allocation2 + $0x50] sm:$0xff]
        %v534 = vld [vmem:[#allocation2 + $0x60] sm:$0xff]
        %v535 = vld [vmem:[#allocation2 + $0x68] sm:$0xff]
        %v536 = vld [vmem:[#allocation2 + $0x78] sm:$0xff]
        %v537 = vld [vmem:[#allocation2 + $0x80] sm:$0xff]
        %v538 = vld [vmem:[#allocation2 + $0x90] sm:$0xff]
        %v539 = vld [vmem:[#allocation2 + $0x98] sm:$0xff]
        %v540 = vld [vmem:[#allocation2 + $0xa8] sm:$0xff]
        %v541 = vld [vmem:[#allocation2 + $0xb0] sm:$0xff]
        %v542 = vld [vmem:[#allocation2 + $0xc0] sm:$0xff]
        %v543 = vld [vmem:[#allocation2 + $0xc8] sm:$0xff]
        %v544 = vld [vmem:[#allocation2 + $0xd8] sm:$0xff]
        %v545 = vld [vmem:[#allocation2 + $0xe0] sm:$0xff]
        %v546 = vld [vmem:[#allocation2 + $0xf0] sm:$0xff]
        %v547 = vld [vmem:[#allocation2 + $0xf8] sm:$0xff]
        %v548 = vld [vmem:[#allocation2 + $0x108] sm:$0xff]
        %v549 = vld [vmem:[#allocation2 + $0x110] sm:$0xff]
        %v550 = vld [vmem:[#allocation2 + $0x120] sm:$0xff]
        %v551 = vld [vmem:[#allocation2 + $0x128] sm:$0xff]
        %v552 = vld [vmem:[#allocation2 + $0x138] sm:$0xff]
        %v553 = vld [vmem:[#allocation2 + $0x140] sm:$0xff]
        %v554 = vld [vmem:[#allocation2 + $0x150] sm:$0xff]
        %v555 = vld [vmem:[#allocation2 + $0x158] sm:$0xff]
        %v556 = vld [vmem:[#allocation2 + $0x168] sm:$0xff]
        %v557 = vld [vmem:[#allocation2 + $0x170] sm:$0xff]
        %v558 = vld [vmem:[#allocation2 + $0x180] sm:$0xff]
        %v559 = vld [vmem:[#allocation2 + $0x188] sm:$0xff]
        %v560 = vld [vmem:[#allocation2 + $0x198] sm:$0xff]
        %v561 = vld [vmem:[#allocation2 + $0x1a0] sm:$0xff]
        %v562 = vld [vmem:[#allocation2 + $0x1b0] sm:$0xff]
        %v563 = vld [vmem:[#allocation2 + $0x1b8] sm:$0xff]
        %v564 = vld [vmem:[#allocation2 + $0x1c8] sm:$0xff]
        %v565 = vld [vmem:[#allocation2 + $0x1d0] sm:$0xff]
        %v566 = vld [vmem:[#allocation2 + $0x1e0] sm:$0xff]
        %v567 = vld [vmem:[#allocation2 + $0x1e8] sm:$0xff]
        %v568 = vld [vmem:[#allocation2 + $0x1f8] sm:$0xff]
        %v569 = vld [vmem:[#allocation2 + $0x200] sm:$0xff]
        %v570 = vlaneseq
        %v571 = vshrl.u32 %v570, 7
        %v572 = vsub.s32 0, %v571
        %v573 = vrot.slane %v512, %v572
        %v574 = vmul.f32 %v526, %v573
        %v575 = vmul.f32 %v527, %v573
        %v576 = vmul.f32 %v528, %v573
        %v577 = vmul.f32 %v529, %v573
        %v578 = vmul.f32 %v530, %v573
        %v579 = vmul.f32 %v531, %v573
        %v580 = vmul.f32 %v532, %v573
        %v581 = vmul.f32 %v533, %v573
        %v582 = vmul.f32 %v534, %v573
        %v583 = vmul.f32 %v535, %v573
        %v584 = vmul.f32 %v536, %v573
        %v585 = vmul.f32 %v537, %v573
        %v586 = vmul.f32 %v538, %v573
        %v587 = vmul.f32 %v539, %v573
        %v588 = vmul.f32 %v540, %v573
        %v589 = vmul.f32 %v541, %v573
        %v590 = vmul.f32 %v542, %v573
        %v591 = vmul.f32 %v543, %v573
        %v592 = vmul.f32 %v544, %v573
        %v593 = vmul.f32 %v545, %v573
        %v594 = vmul.f32 %v546, %v573
        %v595 = vmul.f32 %v547, %v573
        %v596 = vmul.f32 %v548, %v573
        %v597 = vmul.f32 %v549, %v573
        %v598 = vmul.f32 %v550, %v573
        %v599 = vmul.f32 %v551, %v573
        %v600 = vmul.f32 %v552, %v573
        %v601 = vmul.f32 %v553, %v573
        %v602 = vmul.f32 %v554, %v573
        %v603 = vmul.f32 %v555, %v573
        %v604 = vmul.f32 %v556, %v573
        %v605 = vmul.f32 %v557, %v573
        %v606 = vadd.f32 %v524, %v574
        %v607 = vadd.f32 %v524, %v575
        %v608 = vadd.f32 %v524, %v576
        %v609 = vadd.f32 %v524, %v577
        %v610 = vadd.f32 %v524, %v578
        %v611 = vadd.f32 %v524, %v579
        %v612 = vadd.f32 %v524, %v580
        %v613 = vadd.f32 %v524, %v581
        %v614 = vadd.f32 %v524, %v582
        %v615 = vadd.f32 %v524, %v583
        %v616 = vadd.f32 %v524, %v584
        %v617 = vadd.f32 %v524, %v585
        %v618 = vadd.f32 %v524, %v586
        %v619 = vadd.f32 %v524, %v587
        %v620 = vadd.f32 %v524, %v588
        %v621 = vadd.f32 %v524, %v589
        %v622 = vadd.f32 %v524, %v590
        %v623 = vadd.f32 %v524, %v591
        %v624 = vadd.f32 %v524, %v592
        %v625 = vadd.f32 %v524, %v593
        %v626 = vadd.f32 %v524, %v594
        %v627 = vadd.f32 %v524, %v595
        %v628 = vadd.f32 %v524, %v596
        %v629 = vadd.f32 %v524, %v597
        %v630 = vadd.f32 %v524, %v598
        %v631 = vadd.f32 %v524, %v599
        %v632 = vadd.f32 %v524, %v600
        %v633 = vadd.f32 %v524, %v601
        %v634 = vadd.f32 %v524, %v602
        %v635 = vadd.f32 %v524, %v603
        %v636 = vadd.f32 %v524, %v604
        %v637 = vadd.f32 %v524, %v605
        %v638 = vlaneseq
        %v639 = vshrl.u32 %v638, 7
        %v640 = vsub.s32 7, %v639
        %v641 = vrot.slane %v512, %v640
        %v642 = vmul.f32 %v528, %v641
        %v643 = vmul.f32 %v529, %v641
        %v644 = vmul.f32 %v530, %v641
        %v645 = vmul.f32 %v531, %v641
        %v646 = vmul.f32 %v532, %v641
        %v647 = vmul.f32 %v533, %v641
        %v648 = vmul.f32 %v534, %v641
        %v649 = vmul.f32 %v535, %v641
        %v650 = vmul.f32 %v536, %v641
        %v651 = vmul.f32 %v537, %v641
        %v652 = vmul.f32 %v538, %v641
        %v653 = vmul.f32 %v539, %v641
        %v654 = vmul.f32 %v540, %v641
        %v655 = vmul.f32 %v541, %v641
        %v656 = vmul.f32 %v542, %v641
        %v657 = vmul.f32 %v543, %v641
        %v658 = vmul.f32 %v544, %v641
        %v659 = vmul.f32 %v545, %v641
        %v660 = vmul.f32 %v546, %v641
        %v661 = vmul.f32 %v547, %v641
        %v662 = vmul.f32 %v548, %v641
        %v663 = vmul.f32 %v549, %v641
        %v664 = vmul.f32 %v550, %v641
        %v665 = vmul.f32 %v551, %v641
        %v666 = vmul.f32 %v552, %v641
        %v667 = vmul.f32 %v553, %v641
        %v668 = vmul.f32 %v554, %v641
        %v669 = vmul.f32 %v555, %v641
        %v670 = vmul.f32 %v556, %v641
        %v671 = vmul.f32 %v557, %v641
        %v672 = vmul.f32 %v558, %v641
        %v673 = vmul.f32 %v559, %v641
        %v674 = vadd.f32 %v606, %v642
        %v675 = vadd.f32 %v607, %v643
        %v676 = vadd.f32 %v608, %v644
        %v677 = vadd.f32 %v609, %v645
        %v678 = vadd.f32 %v610, %v646
        %v679 = vadd.f32 %v611, %v647
        %v680 = vadd.f32 %v612, %v648
        %v681 = vadd.f32 %v613, %v649
        %v682 = vadd.f32 %v614, %v650
        %v683 = vadd.f32 %v615, %v651
        %v684 = vadd.f32 %v616, %v652
        %v685 = vadd.f32 %v617, %v653
        %v686 = vadd.f32 %v618, %v654
        %v687 = vadd.f32 %v619, %v655
        %v688 = vadd.f32 %v620, %v656
        %v689 = vadd.f32 %v621, %v657
        %v690 = vadd.f32 %v622, %v658
        %v691 = vadd.f32 %v623, %v659
        %v692 = vadd.f32 %v624, %v660
        %v693 = vadd.f32 %v625, %v661
        %v694 = vadd.f32 %v626, %v662
        %v695 = vadd.f32 %v627, %v663
        %v696 = vadd.f32 %v628, %v664
        %v697 = vadd.f32 %v629, %v665
        %v698 = vadd.f32 %v630, %v666
        %v699 = vadd.f32 %v631, %v667
        %v700 = vadd.f32 %v632, %v668
        %v701 = vadd.f32 %v633, %v669
        %v702 = vadd.f32 %v634, %v670
        %v703 = vadd.f32 %v635, %v671
        %v704 = vadd.f32 %v636, %v672
        %v705 = vadd.f32 %v637, %v673
        %v706 = vlaneseq
        %v707 = vshrl.u32 %v706, 7
        %v708 = vsub.s32 6, %v707
        %v709 = vrot.slane %v513, %v708
        %v710 = vmul.f32 %v530, %v709
        %v711 = vmul.f32 %v531, %v709
        %v712 = vmul.f32 %v532, %v709
        %v713 = vmul.f32 %v533, %v709
        %v714 = vmul.f32 %v534, %v709
        %v715 = vmul.f32 %v535, %v709
        %v716 = vmul.f32 %v536, %v709
        %v717 = vmul.f32 %v537, %v709
        %v718 = vmul.f32 %v538, %v709
        %v719 = vmul.f32 %v539, %v709
        %v720 = vmul.f32 %v540, %v709
        %v721 = vmul.f32 %v541, %v709
        %v722 = vmul.f32 %v542, %v709
        %v723 = vmul.f32 %v543, %v709
        %v724 = vmul.f32 %v544, %v709
        %v725 = vmul.f32 %v545, %v709
        %v726 = vmul.f32 %v546, %v709
        %v727 = vmul.f32 %v547, %v709
        %v728 = vmul.f32 %v548, %v709
        %v729 = vmul.f32 %v549, %v709
        %v730 = vmul.f32 %v550, %v709
        %v731 = vmul.f32 %v551, %v709
        %v732 = vmul.f32 %v552, %v709
        %v733 = vmul.f32 %v553, %v709
        %v734 = vmul.f32 %v554, %v709
        %v735 = vmul.f32 %v555, %v709
        %v736 = vmul.f32 %v556, %v709
        %v737 = vmul.f32 %v557, %v709
        %v738 = vmul.f32 %v558, %v709
        %v739 = vmul.f32 %v559, %v709
        %v740 = vmul.f32 %v560, %v709
        %v741 = vmul.f32 %v561, %v709
        %v742 = vadd.f32 %v674, %v710
        %v743 = vadd.f32 %v675, %v711
        %v744 = vadd.f32 %v676, %v712
        %v745 = vadd.f32 %v677, %v713
        %v746 = vadd.f32 %v678, %v714
        %v747 = vadd.f32 %v679, %v715
        %v748 = vadd.f32 %v680, %v716
        %v749 = vadd.f32 %v681, %v717
        %v750 = vadd.f32 %v682, %v718
        %v751 = vadd.f32 %v683, %v719
        %v752 = vadd.f32 %v684, %v720
        %v753 = vadd.f32 %v685, %v721
        %v754 = vadd.f32 %v686, %v722
        %v755 = vadd.f32 %v687, %v723
        %v756 = vadd.f32 %v688, %v724
        %v757 = vadd.f32 %v689, %v725
        %v758 = vadd.f32 %v690, %v726
        %v759 = vadd.f32 %v691, %v727
        %v760 = vadd.f32 %v692, %v728
        %v761 = vadd.f32 %v693, %v729
        %v762 = vadd.f32 %v694, %v730
        %v763 = vadd.f32 %v695, %v731
        %v764 = vadd.f32 %v696, %v732
        %v765 = vadd.f32 %v697, %v733
        %v766 = vadd.f32 %v698, %v734
        %v767 = vadd.f32 %v699, %v735
        %v768 = vadd.f32 %v700, %v736
        %v769 = vadd.f32 %v701, %v737
        %v770 = vadd.f32 %v702, %v738
        %v771 = vadd.f32 %v703, %v739
        %v772 = vadd.f32 %v704, %v740
        %v773 = vadd.f32 %v705, %v741
        %v774 = vlaneseq
        %v775 = vshrl.u32 %v774, 7
        %v776 = vsub.s32 5, %v775
        %v777 = vrot.slane %v514, %v776
        %v778 = vmul.f32 %v532, %v777
        %v779 = vmul.f32 %v533, %v777
        %v780 = vmul.f32 %v534, %v777
        %v781 = vmul.f32 %v535, %v777
        %v782 = vmul.f32 %v536, %v777
        %v783 = vmul.f32 %v537, %v777
        %v784 = vmul.f32 %v538, %v777
        %v785 = vmul.f32 %v539, %v777
        %v786 = vmul.f32 %v540, %v777
        %v787 = vmul.f32 %v541, %v777
        %v788 = vmul.f32 %v542, %v777
        %v789 = vmul.f32 %v543, %v777
        %v790 = vmul.f32 %v544, %v777
        %v791 = vmul.f32 %v545, %v777
        %v792 = vmul.f32 %v546, %v777
        %v793 = vmul.f32 %v547, %v777
        %v794 = vmul.f32 %v548, %v777
        %v795 = vmul.f32 %v549, %v777
        %v796 = vmul.f32 %v550, %v777
        %v797 = vmul.f32 %v551, %v777
        %v798 = vmul.f32 %v552, %v777
        %v799 = vmul.f32 %v553, %v777
        %v800 = vmul.f32 %v554, %v777
        %v801 = vmul.f32 %v555, %v777
        %v802 = vmul.f32 %v556, %v777
        %v803 = vmul.f32 %v557, %v777
        %v804 = vmul.f32 %v558, %v777
        %v805 = vmul.f32 %v559, %v777
        %v806 = vmul.f32 %v560, %v777
        %v807 = vmul.f32 %v561, %v777
        %v808 = vmul.f32 %v562, %v777
        %v809 = vmul.f32 %v563, %v777
        %v810 = vadd.f32 %v742, %v778
        %v811 = vadd.f32 %v743, %v779
        %v812 = vadd.f32 %v744, %v780
        %v813 = vadd.f32 %v745, %v781
        %v814 = vadd.f32 %v746, %v782
        %v815 = vadd.f32 %v747, %v783
        %v816 = vadd.f32 %v748, %v784
        %v817 = vadd.f32 %v749, %v785
        %v818 = vadd.f32 %v750, %v786
        %v819 = vadd.f32 %v751, %v787
        %v820 = vadd.f32 %v752, %v788
        %v821 = vadd.f32 %v753, %v789
        %v822 = vadd.f32 %v754, %v790
        %v823 = vadd.f32 %v755, %v791
        %v824 = vadd.f32 %v756, %v792
        %v825 = vadd.f32 %v757, %v793
        %v826 = vadd.f32 %v758, %v794
        %v827 = vadd.f32 %v759, %v795
        %v828 = vadd.f32 %v760, %v796
        %v829 = vadd.f32 %v761, %v797
        %v830 = vadd.f32 %v762, %v798
        %v831 = vadd.f32 %v763, %v799
        %v832 = vadd.f32 %v764, %v800
        %v833 = vadd.f32 %v765, %v801
        %v834 = vadd.f32 %v766, %v802
        %v835 = vadd.f32 %v767, %v803
        %v836 = vadd.f32 %v768, %v804
        %v837 = vadd.f32 %v769, %v805
        %v838 = vadd.f32 %v770, %v806
        %v839 = vadd.f32 %v771, %v807
        %v840 = vadd.f32 %v772, %v808
        %v841 = vadd.f32 %v773, %v809
        %v842 = vlaneseq
        %v843 = vshrl.u32 %v842, 7
        %v844 = vsub.s32 4, %v843
        %v845 = vrot.slane %v515, %v844
        %v846 = vmul.f32 %v534, %v845
        %v847 = vmul.f32 %v535, %v845
        %v848 = vmul.f32 %v536, %v845
        %v849 = vmul.f32 %v537, %v845
        %v850 = vmul.f32 %v538, %v845
        %v851 = vmul.f32 %v539, %v845
        %v852 = vmul.f32 %v540, %v845
        %v853 = vmul.f32 %v541, %v845
        %v854 = vmul.f32 %v542, %v845
        %v855 = vmul.f32 %v543, %v845
        %v856 = vmul.f32 %v544, %v845
        %v857 = vmul.f32 %v545, %v845
        %v858 = vmul.f32 %v546, %v845
        %v859 = vmul.f32 %v547, %v845
        %v860 = vmul.f32 %v548, %v845
        %v861 = vmul.f32 %v549, %v845
        %v862 = vmul.f32 %v550, %v845
        %v863 = vmul.f32 %v551, %v845
        %v864 = vmul.f32 %v552, %v845
        %v865 = vmul.f32 %v553, %v845
        %v866 = vmul.f32 %v554, %v845
        %v867 = vmul.f32 %v555, %v845
        %v868 = vmul.f32 %v556, %v845
        %v869 = vmul.f32 %v557, %v845
        %v870 = vmul.f32 %v558, %v845
        %v871 = vmul.f32 %v559, %v845
        %v872 = vmul.f32 %v560, %v845
        %v873 = vmul.f32 %v561, %v845
        %v874 = vmul.f32 %v562, %v845
        %v875 = vmul.f32 %v563, %v845
        %v876 = vmul.f32 %v564, %v845
        %v877 = vmul.f32 %v565, %v845
        %v878 = vadd.f32 %v810, %v846
        %v879 = vadd.f32 %v811, %v847
        %v880 = vadd.f32 %v812, %v848
        %v881 = vadd.f32 %v813, %v849
        %v882 = vadd.f32 %v814, %v850
        %v883 = vadd.f32 %v815, %v851
        %v884 = vadd.f32 %v816, %v852
        %v885 = vadd.f32 %v817, %v853
        %v886 = vadd.f32 %v818, %v854
        %v887 = vadd.f32 %v819, %v855
        %v888 = vadd.f32 %v820, %v856
        %v889 = vadd.f32 %v821, %v857
        %v890 = vadd.f32 %v822, %v858
        %v891 = vadd.f32 %v823, %v859
        %v892 = vadd.f32 %v824, %v860
        %v893 = vadd.f32 %v825, %v861
        %v894 = vadd.f32 %v826, %v862
        %v895 = vadd.f32 %v827, %v863
        %v896 = vadd.f32 %v828, %v864
        %v897 = vadd.f32 %v829, %v865
        %v898 = vadd.f32 %v830, %v866
        %v899 = vadd.f32 %v831, %v867
        %v900 = vadd.f32 %v832, %v868
        %v901 = vadd.f32 %v833, %v869
        %v902 = vadd.f32 %v834, %v870
        %v903 = vadd.f32 %v835, %v871
        %v904 = vadd.f32 %v836, %v872
        %v905 = vadd.f32 %v837, %v873
        %v906 = vadd.f32 %v838, %v874
        %v907 = vadd.f32 %v839, %v875
        %v908 = vadd.f32 %v840, %v876
        %v909 = vadd.f32 %v841, %v877
        %v910 = vlaneseq
        %v911 = vshrl.u32 %v910, 7
        %v912 = vsub.s32 3, %v911
        %v913 = vrot.slane %v516, %v912
        %v914 = vmul.f32 %v536, %v913
        %v915 = vmul.f32 %v537, %v913
        %v916 = vmul.f32 %v538, %v913
        %v917 = vmul.f32 %v539, %v913
        %v918 = vmul.f32 %v540, %v913
        %v919 = vmul.f32 %v541, %v913
        %v920 = vmul.f32 %v542, %v913
        %v921 = vmul.f32 %v543, %v913
        %v922 = vmul.f32 %v544, %v913
        %v923 = vmul.f32 %v545, %v913
        %v924 = vmul.f32 %v546, %v913
        %v925 = vmul.f32 %v547, %v913
        %v926 = vmul.f32 %v548, %v913
        %v927 = vmul.f32 %v549, %v913
        %v928 = vmul.f32 %v550, %v913
        %v929 = vmul.f32 %v551, %v913
        %v930 = vmul.f32 %v552, %v913
        %v931 = vmul.f32 %v553, %v913
        %v932 = vmul.f32 %v554, %v913
        %v933 = vmul.f32 %v555, %v913
        %v934 = vmul.f32 %v556, %v913
        %v935 = vmul.f32 %v557, %v913
        %v936 = vmul.f32 %v558, %v913
        %v937 = vmul.f32 %v559, %v913
        %v938 = vmul.f32 %v560, %v913
        %v939 = vmul.f32 %v561, %v913
        %v940 = vmul.f32 %v562, %v913
        %v941 = vmul.f32 %v563, %v913
        %v942 = vmul.f32 %v564, %v913
        %v943 = vmul.f32 %v565, %v913
        %v944 = vmul.f32 %v566, %v913
        %v945 = vmul.f32 %v567, %v913
        %v946 = vadd.f32 %v878, %v914
        %v947 = vadd.f32 %v879, %v915
        %v948 = vadd.f32 %v880, %v916
        %v949 = vadd.f32 %v881, %v917
        %v950 = vadd.f32 %v882, %v918
        %v951 = vadd.f32 %v883, %v919
        %v952 = vadd.f32 %v884, %v920
        %v953 = vadd.f32 %v885, %v921
        %v954 = vadd.f32 %v886, %v922
        %v955 = vadd.f32 %v887, %v923
        %v956 = vadd.f32 %v888, %v924
        %v957 = vadd.f32 %v889, %v925
        %v958 = vadd.f32 %v890, %v926
        %v959 = vadd.f32 %v891, %v927
        %v960 = vadd.f32 %v892, %v928
        %v961 = vadd.f32 %v893, %v929
        %v962 = vadd.f32 %v894, %v930
        %v963 = vadd.f32 %v895, %v931
        %v964 = vadd.f32 %v896, %v932
        %v965 = vadd.f32 %v897, %v933
        %v966 = vadd.f32 %v898, %v934
        %v967 = vadd.f32 %v899, %v935
        %v968 = vadd.f32 %v900, %v936
        %v969 = vadd.f32 %v901, %v937
        %v970 = vadd.f32 %v902, %v938
        %v971 = vadd.f32 %v903, %v939
        %v972 = vadd.f32 %v904, %v940
        %v973 = vadd.f32 %v905, %v941
        %v974 = vadd.f32 %v906, %v942
        %v975 = vadd.f32 %v907, %v943
        %v976 = vadd.f32 %v908, %v944
        %v977 = vadd.f32 %v909, %v945
        %v978 = vlaneseq
        %v979 = vshrl.u32 %v978, 7
        %v980 = vsub.s32 2, %v979
        %v981 = vrot.slane %v517, %v980
        %v982 = vmul.f32 %v538, %v981
        %v983 = vmul.f32 %v539, %v981
        %v984 = vmul.f32 %v540, %v981
        %v985 = vmul.f32 %v541, %v981
        %v986 = vmul.f32 %v542, %v981
        %v987 = vmul.f32 %v543, %v981
        %v988 = vmul.f32 %v544, %v981
        %v989 = vmul.f32 %v545, %v981
        %v990 = vmul.f32 %v546, %v981
        %v991 = vmul.f32 %v547, %v981
        %v992 = vmul.f32 %v548, %v981
        %v993 = vmul.f32 %v549, %v981
        %v994 = vmul.f32 %v550, %v981
        %v995 = vmul.f32 %v551, %v981
        %v996 = vmul.f32 %v552, %v981
        %v997 = vmul.f32 %v553, %v981
        %v998 = vmul.f32 %v554, %v981
        %v999 = vmul.f32 %v555, %v981
        %v1000 = vmul.f32 %v556, %v981
        %v1001 = vmul.f32 %v557, %v981
        %v1002 = vmul.f32 %v558, %v981
        %v1003 = vmul.f32 %v559, %v981
        %v1004 = vmul.f32 %v560, %v981
        %v1005 = vmul.f32 %v561, %v981
        %v1006 = vmul.f32 %v562, %v981
        %v1007 = vmul.f32 %v563, %v981
        %v1008 = vmul.f32 %v564, %v981
        %v1009 = vmul.f32 %v565, %v981
        %v1010 = vmul.f32 %v566, %v981
        %v1011 = vmul.f32 %v567, %v981
        %v1012 = vmul.f32 %v568, %v981
        %v1013 = vmul.f32 %v569, %v981
        %v1014 = vadd.f32 %v946, %v982
        %v1015 = vadd.f32 %v947, %v983
        %v1016 = vadd.f32 %v948, %v984
        %v1017 = vadd.f32 %v949, %v985
        %v1018 = vadd.f32 %v950, %v986
        %v1019 = vadd.f32 %v951, %v987
        %v1020 = vadd.f32 %v952, %v988
        %v1021 = vadd.f32 %v953, %v989
        %v1022 = vadd.f32 %v954, %v990
        %v1023 = vadd.f32 %v955, %v991
        %v1024 = vadd.f32 %v956, %v992
        %v1025 = vadd.f32 %v957, %v993
        %v1026 = vadd.f32 %v958, %v994
        %v1027 = vadd.f32 %v959, %v995
        %v1028 = vadd.f32 %v960, %v996
        %v1029 = vadd.f32 %v961, %v997
        %v1030 = vadd.f32 %v962, %v998
        %v1031 = vadd.f32 %v963, %v999
        %v1032 = vadd.f32 %v964, %v1000
        %v1033 = vadd.f32 %v965, %v1001
        %v1034 = vadd.f32 %v966, %v1002
        %v1035 = vadd.f32 %v967, %v1003
        %v1036 = vadd.f32 %v968, %v1004
        %v1037 = vadd.f32 %v969, %v1005
        %v1038 = vadd.f32 %v970, %v1006
        %v1039 = vadd.f32 %v971, %v1007
        %v1040 = vadd.f32 %v972, %v1008
        %v1041 = vadd.f32 %v973, %v1009
        %v1042 = vadd.f32 %v974, %v1010
        %v1043 = vadd.f32 %v975, %v1011
        %v1044 = vadd.f32 %v976, %v1012
        %v1045 = vadd.f32 %v977, %v1013
        %v1046 = vld [vmem:[#allocation2 + $0x1] sm:$0xff]
        %v1047 = vld [vmem:[#allocation2 + $0x9] sm:$0xff]
        %v1048 = vld [vmem:[#allocation2 + $0x19] sm:$0xff]
        %v1049 = vld [vmem:[#allocation2 + $0x21] sm:$0xff]
        %v1050 = vld [vmem:[#allocation2 + $0x31] sm:$0xff]
        %v1051 = vld [vmem:[#allocation2 + $0x39] sm:$0xff]
        %v1052 = vld [vmem:[#allocation2 + $0x49] sm:$0xff]
        %v1053 = vld [vmem:[#allocation2 + $0x51] sm:$0xff]
        %v1054 = vld [vmem:[#allocation2 + $0x61] sm:$0xff]
        %v1055 = vld [vmem:[#allocation2 + $0x69] sm:$0xff]
        %v1056 = vld [vmem:[#allocation2 + $0x79] sm:$0xff]
        %v1057 = vld [vmem:[#allocation2 + $0x81] sm:$0xff]
        %v1058 = vld [vmem:[#allocation2 + $0x91] sm:$0xff]
        %v1059 = vld [vmem:[#allocation2 + $0x99] sm:$0xff]
        %v1060 = vld [vmem:[#allocation2 + $0xa9] sm:$0xff]
        %v1061 = vld [vmem:[#allocation2 + $0xb1] sm:$0xff]
        %v1062 = vld [vmem:[#allocation2 + $0xc1] sm:$0xff]
        %v1063 = vld [vmem:[#allocation2 + $0xc9] sm:$0xff]
        %v1064 = vld [vmem:[#allocation2 + $0xd9] sm:$0xff]
        %v1065 = vld [vmem:[#allocation2 + $0xe1] sm:$0xff]
        %v1066 = vld [vmem:[#allocation2 + $0xf1] sm:$0xff]
        %v1067 = vld [vmem:[#allocation2 + $0xf9] sm:$0xff]
        %v1068 = vld [vmem:[#allocation2 + $0x109] sm:$0xff]
        %v1069 = vld [vmem:[#allocation2 + $0x111] sm:$0xff]
        %v1070 = vld [vmem:[#allocation2 + $0x121] sm:$0xff]
        %v1071 = vld [vmem:[#allocation2 + $0x129] sm:$0xff]
        %v1072 = vld [vmem:[#allocation2 + $0x139] sm:$0xff]
        %v1073 = vld [vmem:[#allocation2 + $0x141] sm:$0xff]
        %v1074 = vld [vmem:[#allocation2 + $0x151] sm:$0xff]
        %v1075 = vld [vmem:[#allocation2 + $0x159] sm:$0xff]
        %v1076 = vld [vmem:[#allocation2 + $0x169] sm:$0xff]
        %v1077 = vld [vmem:[#allocation2 + $0x171] sm:$0xff]
        %v1078 = vld [vmem:[#allocation2 + $0x181] sm:$0xff]
        %v1079 = vld [vmem:[#allocation2 + $0x189] sm:$0xff]
        %v1080 = vld [vmem:[#allocation2 + $0x199] sm:$0xff]
        %v1081 = vld [vmem:[#allocation2 + $0x1a1] sm:$0xff]
        %v1082 = vld [vmem:[#allocation2 + $0x1b1] sm:$0xff]
        %v1083 = vld [vmem:[#allocation2 + $0x1b9] sm:$0xff]
        %v1084 = vld [vmem:[#allocation2 + $0x1c9] sm:$0xff]
        %v1085 = vld [vmem:[#allocation2 + $0x1d1] sm:$0xff]
        %v1086 = vld [vmem:[#allocation2 + $0x1e1] sm:$0xff]
        %v1087 = vld [vmem:[#allocation2 + $0x1e9] sm:$0xff]
        %v1088 = vld [vmem:[#allocation2 + $0x1f9] sm:$0xff]
        %v1089 = vld [vmem:[#allocation2 + $0x201] sm:$0xff]
        %v1090 = vlaneseq
        %v1091 = vshrl.u32 %v1090, 7
        %v1092 = vsub.s32 1, %v1091
        %v1093 = vrot.slane %v512, %v1092
        %v1094 = vmul.f32 %v1046, %v1093
        %v1095 = vmul.f32 %v1047, %v1093
        %v1096 = vmul.f32 %v1048, %v1093
        %v1097 = vmul.f32 %v1049, %v1093
        %v1098 = vmul.f32 %v1050, %v1093
        %v1099 = vmul.f32 %v1051, %v1093
        %v1100 = vmul.f32 %v1052, %v1093
        %v1101 = vmul.f32 %v1053, %v1093
        %v1102 = vmul.f32 %v1054, %v1093
        %v1103 = vmul.f32 %v1055, %v1093
        %v1104 = vmul.f32 %v1056, %v1093
        %v1105 = vmul.f32 %v1057, %v1093
        %v1106 = vmul.f32 %v1058, %v1093
        %v1107 = vmul.f32 %v1059, %v1093
        %v1108 = vmul.f32 %v1060, %v1093
        %v1109 = vmul.f32 %v1061, %v1093
        %v1110 = vmul.f32 %v1062, %v1093
        %v1111 = vmul.f32 %v1063, %v1093
        %v1112 = vmul.f32 %v1064, %v1093
        %v1113 = vmul.f32 %v1065, %v1093
        %v1114 = vmul.f32 %v1066, %v1093
        %v1115 = vmul.f32 %v1067, %v1093
        %v1116 = vmul.f32 %v1068, %v1093
        %v1117 = vmul.f32 %v1069, %v1093
        %v1118 = vmul.f32 %v1070, %v1093
        %v1119 = vmul.f32 %v1071, %v1093
        %v1120 = vmul.f32 %v1072, %v1093
        %v1121 = vmul.f32 %v1073, %v1093
        %v1122 = vmul.f32 %v1074, %v1093
        %v1123 = vmul.f32 %v1075, %v1093
        %v1124 = vmul.f32 %v1076, %v1093
        %v1125 = vmul.f32 %v1077, %v1093
        %v1126 = vadd.f32 %v1014, %v1094
        %v1127 = vadd.f32 %v1015, %v1095
        %v1128 = vadd.f32 %v1016, %v1096
        %v1129 = vadd.f32 %v1017, %v1097
        %v1130 = vadd.f32 %v1018, %v1098
        %v1131 = vadd.f32 %v1019, %v1099
        %v1132 = vadd.f32 %v1020, %v1100
        %v1133 = vadd.f32 %v1021, %v1101
        %v1134 = vadd.f32 %v1022, %v1102
        %v1135 = vadd.f32 %v1023, %v1103
        %v1136 = vadd.f32 %v1024, %v1104
        %v1137 = vadd.f32 %v1025, %v1105
        %v1138 = vadd.f32 %v1026, %v1106
        %v1139 = vadd.f32 %v1027, %v1107
        %v1140 = vadd.f32 %v1028, %v1108
        %v1141 = vadd.f32 %v1029, %v1109
        %v1142 = vadd.f32 %v1030, %v1110
        %v1143 = vadd.f32 %v1031, %v1111
        %v1144 = vadd.f32 %v1032, %v1112
        %v1145 = vadd.f32 %v1033, %v1113
        %v1146 = vadd.f32 %v1034, %v1114
        %v1147 = vadd.f32 %v1035, %v1115
        %v1148 = vadd.f32 %v1036, %v1116
        %v1149 = vadd.f32 %v1037, %v1117
        %v1150 = vadd.f32 %v1038, %v1118
        %v1151 = vadd.f32 %v1039, %v1119
        %v1152 = vadd.f32 %v1040, %v1120
        %v1153 = vadd.f32 %v1041, %v1121
        %v1154 = vadd.f32 %v1042, %v1122
        %v1155 = vadd.f32 %v1043, %v1123
        %v1156 = vadd.f32 %v1044, %v1124
        %v1157 = vadd.f32 %v1045, %v1125
        %v1158 = vlaneseq
        %v1159 = vshrl.u32 %v1158, 7
        %v1160 = vsub.s32 0, %v1159
        %v1161 = vrot.slane %v513, %v1160
        %v1162 = vmul.f32 %v1048, %v1161
        %v1163 = vmul.f32 %v1049, %v1161
        %v1164 = vmul.f32 %v1050, %v1161
        %v1165 = vmul.f32 %v1051, %v1161
        %v1166 = vmul.f32 %v1052, %v1161
        %v1167 = vmul.f32 %v1053, %v1161
        %v1168 = vmul.f32 %v1054, %v1161
        %v1169 = vmul.f32 %v1055, %v1161
        %v1170 = vmul.f32 %v1056, %v1161
        %v1171 = vmul.f32 %v1057, %v1161
        %v1172 = vmul.f32 %v1058, %v1161
        %v1173 = vmul.f32 %v1059, %v1161
        %v1174 = vmul.f32 %v1060, %v1161
        %v1175 = vmul.f32 %v1061, %v1161
        %v1176 = vmul.f32 %v1062, %v1161
        %v1177 = vmul.f32 %v1063, %v1161
        %v1178 = vmul.f32 %v1064, %v1161
        %v1179 = vmul.f32 %v1065, %v1161
        %v1180 = vmul.f32 %v1066, %v1161
        %v1181 = vmul.f32 %v1067, %v1161
        %v1182 = vmul.f32 %v1068, %v1161
        %v1183 = vmul.f32 %v1069, %v1161
        %v1184 = vmul.f32 %v1070, %v1161
        %v1185 = vmul.f32 %v1071, %v1161
        %v1186 = vmul.f32 %v1072, %v1161
        %v1187 = vmul.f32 %v1073, %v1161
        %v1188 = vmul.f32 %v1074, %v1161
        %v1189 = vmul.f32 %v1075, %v1161
        %v1190 = vmul.f32 %v1076, %v1161
        %v1191 = vmul.f32 %v1077, %v1161
        %v1192 = vmul.f32 %v1078, %v1161
        %v1193 = vmul.f32 %v1079, %v1161
        %v1194 = vadd.f32 %v1126, %v1162
        %v1195 = vadd.f32 %v1127, %v1163
        %v1196 = vadd.f32 %v1128, %v1164
        %v1197 = vadd.f32 %v1129, %v1165
        %v1198 = vadd.f32 %v1130, %v1166
        %v1199 = vadd.f32 %v1131, %v1167
        %v1200 = vadd.f32 %v1132, %v1168
        %v1201 = vadd.f32 %v1133, %v1169
        %v1202 = vadd.f32 %v1134, %v1170
        %v1203 = vadd.f32 %v1135, %v1171
        %v1204 = vadd.f32 %v1136, %v1172
        %v1205 = vadd.f32 %v1137, %v1173
        %v1206 = vadd.f32 %v1138, %v1174
        %v1207 = vadd.f32 %v1139, %v1175
        %v1208 = vadd.f32 %v1140, %v1176
        %v1209 = vadd.f32 %v1141, %v1177
        %v1210 = vadd.f32 %v1142, %v1178
        %v1211 = vadd.f32 %v1143, %v1179
        %v1212 = vadd.f32 %v1144, %v1180
        %v1213 = vadd.f32 %v1145, %v1181
        %v1214 = vadd.f32 %v1146, %v1182
        %v1215 = vadd.f32 %v1147, %v1183
        %v1216 = vadd.f32 %v1148, %v1184
        %v1217 = vadd.f32 %v1149, %v1185
        %v1218 = vadd.f32 %v1150, %v1186
        %v1219 = vadd.f32 %v1151, %v1187
        %v1220 = vadd.f32 %v1152, %v1188
        %v1221 = vadd.f32 %v1153, %v1189
        %v1222 = vadd.f32 %v1154, %v1190
        %v1223 = vadd.f32 %v1155, %v1191
        %v1224 = vadd.f32 %v1156, %v1192
        %v1225 = vadd.f32 %v1157, %v1193
        %v1226 = vlaneseq
        %v1227 = vshrl.u32 %v1226, 7
        %v1228 = vsub.s32 7, %v1227
        %v1229 = vrot.slane %v513, %v1228
        %v1230 = vmul.f32 %v1050, %v1229
        %v1231 = vmul.f32 %v1051, %v1229
        %v1232 = vmul.f32 %v1052, %v1229
        %v1233 = vmul.f32 %v1053, %v1229
        %v1234 = vmul.f32 %v1054, %v1229
        %v1235 = vmul.f32 %v1055, %v1229
        %v1236 = vmul.f32 %v1056, %v1229
        %v1237 = vmul.f32 %v1057, %v1229
        %v1238 = vmul.f32 %v1058, %v1229
        %v1239 = vmul.f32 %v1059, %v1229
        %v1240 = vmul.f32 %v1060, %v1229
        %v1241 = vmul.f32 %v1061, %v1229
        %v1242 = vmul.f32 %v1062, %v1229
        %v1243 = vmul.f32 %v1063, %v1229
        %v1244 = vmul.f32 %v1064, %v1229
        %v1245 = vmul.f32 %v1065, %v1229
        %v1246 = vmul.f32 %v1066, %v1229
        %v1247 = vmul.f32 %v1067, %v1229
        %v1248 = vmul.f32 %v1068, %v1229
        %v1249 = vmul.f32 %v1069, %v1229
        %v1250 = vmul.f32 %v1070, %v1229
        %v1251 = vmul.f32 %v1071, %v1229
        %v1252 = vmul.f32 %v1072, %v1229
        %v1253 = vmul.f32 %v1073, %v1229
        %v1254 = vmul.f32 %v1074, %v1229
        %v1255 = vmul.f32 %v1075, %v1229
        %v1256 = vmul.f32 %v1076, %v1229
        %v1257 = vmul.f32 %v1077, %v1229
        %v1258 = vmul.f32 %v1078, %v1229
        %v1259 = vmul.f32 %v1079, %v1229
        %v1260 = vmul.f32 %v1080, %v1229
        %v1261 = vmul.f32 %v1081, %v1229
        %v1262 = vadd.f32 %v1194, %v1230
        %v1263 = vadd.f32 %v1195, %v1231
        %v1264 = vadd.f32 %v1196, %v1232
        %v1265 = vadd.f32 %v1197, %v1233
        %v1266 = vadd.f32 %v1198, %v1234
        %v1267 = vadd.f32 %v1199, %v1235
        %v1268 = vadd.f32 %v1200, %v1236
        %v1269 = vadd.f32 %v1201, %v1237
        %v1270 = vadd.f32 %v1202, %v1238
        %v1271 = vadd.f32 %v1203, %v1239
        %v1272 = vadd.f32 %v1204, %v1240
        %v1273 = vadd.f32 %v1205, %v1241
        %v1274 = vadd.f32 %v1206, %v1242
        %v1275 = vadd.f32 %v1207, %v1243
        %v1276 = vadd.f32 %v1208, %v1244
        %v1277 = vadd.f32 %v1209, %v1245
        %v1278 = vadd.f32 %v1210, %v1246
        %v1279 = vadd.f32 %v1211, %v1247
        %v1280 = vadd.f32 %v1212, %v1248
        %v1281 = vadd.f32 %v1213, %v1249
        %v1282 = vadd.f32 %v1214, %v1250
        %v1283 = vadd.f32 %v1215, %v1251
        %v1284 = vadd.f32 %v1216, %v1252
        %v1285 = vadd.f32 %v1217, %v1253
        %v1286 = vadd.f32 %v1218, %v1254
        %v1287 = vadd.f32 %v1219, %v1255
        %v1288 = vadd.f32 %v1220, %v1256
        %v1289 = vadd.f32 %v1221, %v1257
        %v1290 = vadd.f32 %v1222, %v1258
        %v1291 = vadd.f32 %v1223, %v1259
        %v1292 = vadd.f32 %v1224, %v1260
        %v1293 = vadd.f32 %v1225, %v1261
        %v1294 = vlaneseq
        %v1295 = vshrl.u32 %v1294, 7
        %v1296 = vsub.s32 6, %v1295
        %v1297 = vrot.slane %v514, %v1296
        %v1298 = vmul.f32 %v1052, %v1297
        %v1299 = vmul.f32 %v1053, %v1297
        %v1300 = vmul.f32 %v1054, %v1297
        %v1301 = vmul.f32 %v1055, %v1297
        %v1302 = vmul.f32 %v1056, %v1297
        %v1303 = vmul.f32 %v1057, %v1297
        %v1304 = vmul.f32 %v1058, %v1297
        %v1305 = vmul.f32 %v1059, %v1297
        %v1306 = vmul.f32 %v1060, %v1297
        %v1307 = vmul.f32 %v1061, %v1297
        %v1308 = vmul.f32 %v1062, %v1297
        %v1309 = vmul.f32 %v1063, %v1297
        %v1310 = vmul.f32 %v1064, %v1297
        %v1311 = vmul.f32 %v1065, %v1297
        %v1312 = vmul.f32 %v1066, %v1297
        %v1313 = vmul.f32 %v1067, %v1297
        %v1314 = vmul.f32 %v1068, %v1297
        %v1315 = vmul.f32 %v1069, %v1297
        %v1316 = vmul.f32 %v1070, %v1297
        %v1317 = vmul.f32 %v1071, %v1297
        %v1318 = vmul.f32 %v1072, %v1297
        %v1319 = vmul.f32 %v1073, %v1297
        %v1320 = vmul.f32 %v1074, %v1297
        %v1321 = vmul.f32 %v1075, %v1297
        %v1322 = vmul.f32 %v1076, %v1297
        %v1323 = vmul.f32 %v1077, %v1297
        %v1324 = vmul.f32 %v1078, %v1297
        %v1325 = vmul.f32 %v1079, %v1297
        %v1326 = vmul.f32 %v1080, %v1297
        %v1327 = vmul.f32 %v1081, %v1297
        %v1328 = vmul.f32 %v1082, %v1297
        %v1329 = vmul.f32 %v1083, %v1297
        %v1330 = vadd.f32 %v1262, %v1298
        %v1331 = vadd.f32 %v1263, %v1299
        %v1332 = vadd.f32 %v1264, %v1300
        %v1333 = vadd.f32 %v1265, %v1301
        %v1334 = vadd.f32 %v1266, %v1302
        %v1335 = vadd.f32 %v1267, %v1303
        %v1336 = vadd.f32 %v1268, %v1304
        %v1337 = vadd.f32 %v1269, %v1305
        %v1338 = vadd.f32 %v1270, %v1306
        %v1339 = vadd.f32 %v1271, %v1307
        %v1340 = vadd.f32 %v1272, %v1308
        %v1341 = vadd.f32 %v1273, %v1309
        %v1342 = vadd.f32 %v1274, %v1310
        %v1343 = vadd.f32 %v1275, %v1311
        %v1344 = vadd.f32 %v1276, %v1312
        %v1345 = vadd.f32 %v1277, %v1313
        %v1346 = vadd.f32 %v1278, %v1314
        %v1347 = vadd.f32 %v1279, %v1315
        %v1348 = vadd.f32 %v1280, %v1316
        %v1349 = vadd.f32 %v1281, %v1317
        %v1350 = vadd.f32 %v1282, %v1318
        %v1351 = vadd.f32 %v1283, %v1319
        %v1352 = vadd.f32 %v1284, %v1320
        %v1353 = vadd.f32 %v1285, %v1321
        %v1354 = vadd.f32 %v1286, %v1322
        %v1355 = vadd.f32 %v1287, %v1323
        %v1356 = vadd.f32 %v1288, %v1324
        %v1357 = vadd.f32 %v1289, %v1325
        %v1358 = vadd.f32 %v1290, %v1326
        %v1359 = vadd.f32 %v1291, %v1327
        %v1360 = vadd.f32 %v1292, %v1328
        %v1361 = vadd.f32 %v1293, %v1329
        %v1362 = vlaneseq
        %v1363 = vshrl.u32 %v1362, 7
        %v1364 = vsub.s32 5, %v1363
        %v1365 = vrot.slane %v515, %v1364
        %v1366 = vmul.f32 %v1054, %v1365
        %v1367 = vmul.f32 %v1055, %v1365
        %v1368 = vmul.f32 %v1056, %v1365
        %v1369 = vmul.f32 %v1057, %v1365
        %v1370 = vmul.f32 %v1058, %v1365
        %v1371 = vmul.f32 %v1059, %v1365
        %v1372 = vmul.f32 %v1060, %v1365
        %v1373 = vmul.f32 %v1061, %v1365
        %v1374 = vmul.f32 %v1062, %v1365
        %v1375 = vmul.f32 %v1063, %v1365
        %v1376 = vmul.f32 %v1064, %v1365
        %v1377 = vmul.f32 %v1065, %v1365
        %v1378 = vmul.f32 %v1066, %v1365
        %v1379 = vmul.f32 %v1067, %v1365
        %v1380 = vmul.f32 %v1068, %v1365
        %v1381 = vmul.f32 %v1069, %v1365
        %v1382 = vmul.f32 %v1070, %v1365
        %v1383 = vmul.f32 %v1071, %v1365
        %v1384 = vmul.f32 %v1072, %v1365
        %v1385 = vmul.f32 %v1073, %v1365
        %v1386 = vmul.f32 %v1074, %v1365
        %v1387 = vmul.f32 %v1075, %v1365
        %v1388 = vmul.f32 %v1076, %v1365
        %v1389 = vmul.f32 %v1077, %v1365
        %v1390 = vmul.f32 %v1078, %v1365
        %v1391 = vmul.f32 %v1079, %v1365
        %v1392 = vmul.f32 %v1080, %v1365
        %v1393 = vmul.f32 %v1081, %v1365
        %v1394 = vmul.f32 %v1082, %v1365
        %v1395 = vmul.f32 %v1083, %v1365
        %v1396 = vmul.f32 %v1084, %v1365
        %v1397 = vmul.f32 %v1085, %v1365
        %v1398 = vadd.f32 %v1330, %v1366
        %v1399 = vadd.f32 %v1331, %v1367
        %v1400 = vadd.f32 %v1332, %v1368
        %v1401 = vadd.f32 %v1333, %v1369
        %v1402 = vadd.f32 %v1334, %v1370
        %v1403 = vadd.f32 %v1335, %v1371
        %v1404 = vadd.f32 %v1336, %v1372
        %v1405 = vadd.f32 %v1337, %v1373
        %v1406 = vadd.f32 %v1338, %v1374
        %v1407 = vadd.f32 %v1339, %v1375
        %v1408 = vadd.f32 %v1340, %v1376
        %v1409 = vadd.f32 %v1341, %v1377
        %v1410 = vadd.f32 %v1342, %v1378
        %v1411 = vadd.f32 %v1343, %v1379
        %v1412 = vadd.f32 %v1344, %v1380
        %v1413 = vadd.f32 %v1345, %v1381
        %v1414 = vadd.f32 %v1346, %v1382
        %v1415 = vadd.f32 %v1347, %v1383
        %v1416 = vadd.f32 %v1348, %v1384
        %v1417 = vadd.f32 %v1349, %v1385
        %v1418 = vadd.f32 %v1350, %v1386
        %v1419 = vadd.f32 %v1351, %v1387
        %v1420 = vadd.f32 %v1352, %v1388
        %v1421 = vadd.f32 %v1353, %v1389
        %v1422 = vadd.f32 %v1354, %v1390
        %v1423 = vadd.f32 %v1355, %v1391
        %v1424 = vadd.f32 %v1356, %v1392
        %v1425 = vadd.f32 %v1357, %v1393
        %v1426 = vadd.f32 %v1358, %v1394
        %v1427 = vadd.f32 %v1359, %v1395
        %v1428 = vadd.f32 %v1360, %v1396
        %v1429 = vadd.f32 %v1361, %v1397
        %v1430 = vlaneseq
        %v1431 = vshrl.u32 %v1430, 7
        %v1432 = vsub.s32 4, %v1431
        %v1433 = vrot.slane %v516, %v1432
        %v1434 = vmul.f32 %v1056, %v1433
        %v1435 = vmul.f32 %v1057, %v1433
        %v1436 = vmul.f32 %v1058, %v1433
        %v1437 = vmul.f32 %v1059, %v1433
        %v1438 = vmul.f32 %v1060, %v1433
        %v1439 = vmul.f32 %v1061, %v1433
        %v1440 = vmul.f32 %v1062, %v1433
        %v1441 = vmul.f32 %v1063, %v1433
        %v1442 = vmul.f32 %v1064, %v1433
        %v1443 = vmul.f32 %v1065, %v1433
        %v1444 = vmul.f32 %v1066, %v1433
        %v1445 = vmul.f32 %v1067, %v1433
        %v1446 = vmul.f32 %v1068, %v1433
        %v1447 = vmul.f32 %v1069, %v1433
        %v1448 = vmul.f32 %v1070, %v1433
        %v1449 = vmul.f32 %v1071, %v1433
        %v1450 = vmul.f32 %v1072, %v1433
        %v1451 = vmul.f32 %v1073, %v1433
        %v1452 = vmul.f32 %v1074, %v1433
        %v1453 = vmul.f32 %v1075, %v1433
        %v1454 = vmul.f32 %v1076, %v1433
        %v1455 = vmul.f32 %v1077, %v1433
        %v1456 = vmul.f32 %v1078, %v1433
        %v1457 = vmul.f32 %v1079, %v1433
        %v1458 = vmul.f32 %v1080, %v1433
        %v1459 = vmul.f32 %v1081, %v1433
        %v1460 = vmul.f32 %v1082, %v1433
        %v1461 = vmul.f32 %v1083, %v1433
        %v1462 = vmul.f32 %v1084, %v1433
        %v1463 = vmul.f32 %v1085, %v1433
        %v1464 = vmul.f32 %v1086, %v1433
        %v1465 = vmul.f32 %v1087, %v1433
        %v1466 = vadd.f32 %v1398, %v1434
        %v1467 = vadd.f32 %v1399, %v1435
        %v1468 = vadd.f32 %v1400, %v1436
        %v1469 = vadd.f32 %v1401, %v1437
        %v1470 = vadd.f32 %v1402, %v1438
        %v1471 = vadd.f32 %v1403, %v1439
        %v1472 = vadd.f32 %v1404, %v1440
        %v1473 = vadd.f32 %v1405, %v1441
        %v1474 = vadd.f32 %v1406, %v1442
        %v1475 = vadd.f32 %v1407, %v1443
        %v1476 = vadd.f32 %v1408, %v1444
        %v1477 = vadd.f32 %v1409, %v1445
        %v1478 = vadd.f32 %v1410, %v1446
        %v1479 = vadd.f32 %v1411, %v1447
        %v1480 = vadd.f32 %v1412, %v1448
        %v1481 = vadd.f32 %v1413, %v1449
        %v1482 = vadd.f32 %v1414, %v1450
        %v1483 = vadd.f32 %v1415, %v1451
        %v1484 = vadd.f32 %v1416, %v1452
        %v1485 = vadd.f32 %v1417, %v1453
        %v1486 = vadd.f32 %v1418, %v1454
        %v1487 = vadd.f32 %v1419, %v1455
        %v1488 = vadd.f32 %v1420, %v1456
        %v1489 = vadd.f32 %v1421, %v1457
        %v1490 = vadd.f32 %v1422, %v1458
        %v1491 = vadd.f32 %v1423, %v1459
        %v1492 = vadd.f32 %v1424, %v1460
        %v1493 = vadd.f32 %v1425, %v1461
        %v1494 = vadd.f32 %v1426, %v1462
        %v1495 = vadd.f32 %v1427, %v1463
        %v1496 = vadd.f32 %v1428, %v1464
        %v1497 = vadd.f32 %v1429, %v1465
        %v1498 = vlaneseq
        %v1499 = vshrl.u32 %v1498, 7
        %v1500 = vsub.s32 3, %v1499
        %v1501 = vrot.slane %v517, %v1500
        %v1502 = vmul.f32 %v1058, %v1501
        %v1503 = vmul.f32 %v1059, %v1501
        %v1504 = vmul.f32 %v1060, %v1501
        %v1505 = vmul.f32 %v1061, %v1501
        %v1506 = vmul.f32 %v1062, %v1501
        %v1507 = vmul.f32 %v1063, %v1501
        %v1508 = vmul.f32 %v1064, %v1501
        %v1509 = vmul.f32 %v1065, %v1501
        %v1510 = vmul.f32 %v1066, %v1501
        %v1511 = vmul.f32 %v1067, %v1501
        %v1512 = vmul.f32 %v1068, %v1501
        %v1513 = vmul.f32 %v1069, %v1501
        %v1514 = vmul.f32 %v1070, %v1501
        %v1515 = vmul.f32 %v1071, %v1501
        %v1516 = vmul.f32 %v1072, %v1501
        %v1517 = vmul.f32 %v1073, %v1501
        %v1518 = vmul.f32 %v1074, %v1501
        %v1519 = vmul.f32 %v1075, %v1501
        %v1520 = vmul.f32 %v1076, %v1501
        %v1521 = vmul.f32 %v1077, %v1501
        %v1522 = vmul.f32 %v1078, %v1501
        %v1523 = vmul.f32 %v1079, %v1501
        %v1524 = vmul.f32 %v1080, %v1501
        %v1525 = vmul.f32 %v1081, %v1501
        %v1526 = vmul.f32 %v1082, %v1501
        %v1527 = vmul.f32 %v1083, %v1501
        %v1528 = vmul.f32 %v1084, %v1501
        %v1529 = vmul.f32 %v1085, %v1501
        %v1530 = vmul.f32 %v1086, %v1501
        %v1531 = vmul.f32 %v1087, %v1501
        %v1532 = vmul.f32 %v1088, %v1501
        %v1533 = vmul.f32 %v1089, %v1501
        %v1534 = vadd.f32 %v1466, %v1502
        %v1535 = vadd.f32 %v1467, %v1503
        %v1536 = vadd.f32 %v1468, %v1504
        %v1537 = vadd.f32 %v1469, %v1505
        %v1538 = vadd.f32 %v1470, %v1506
        %v1539 = vadd.f32 %v1471, %v1507
        %v1540 = vadd.f32 %v1472, %v1508
        %v1541 = vadd.f32 %v1473, %v1509
        %v1542 = vadd.f32 %v1474, %v1510
        %v1543 = vadd.f32 %v1475, %v1511
        %v1544 = vadd.f32 %v1476, %v1512
        %v1545 = vadd.f32 %v1477, %v1513
        %v1546 = vadd.f32 %v1478, %v1514
        %v1547 = vadd.f32 %v1479, %v1515
        %v1548 = vadd.f32 %v1480, %v1516
        %v1549 = vadd.f32 %v1481, %v1517
        %v1550 = vadd.f32 %v1482, %v1518
        %v1551 = vadd.f32 %v1483, %v1519
        %v1552 = vadd.f32 %v1484, %v1520
        %v1553 = vadd.f32 %v1485, %v1521
        %v1554 = vadd.f32 %v1486, %v1522
        %v1555 = vadd.f32 %v1487, %v1523
        %v1556 = vadd.f32 %v1488, %v1524
        %v1557 = vadd.f32 %v1489, %v1525
        %v1558 = vadd.f32 %v1490, %v1526
        %v1559 = vadd.f32 %v1491, %v1527
        %v1560 = vadd.f32 %v1492, %v1528
        %v1561 = vadd.f32 %v1493, %v1529
        %v1562 = vadd.f32 %v1494, %v1530
        %v1563 = vadd.f32 %v1495, %v1531
        %v1564 = vadd.f32 %v1496, %v1532
        %v1565 = vadd.f32 %v1497, %v1533
        %v1566 = vld [vmem:[#allocation2 + $0x2] sm:$0xff]
        %v1567 = vld [vmem:[#allocation2 + $0xa] sm:$0xff]
        %v1568 = vld [vmem:[#allocation2 + $0x1a] sm:$0xff]
        %v1569 = vld [vmem:[#allocation2 + $0x22] sm:$0xff]
        %v1570 = vld [vmem:[#allocation2 + $0x32] sm:$0xff]
        %v1571 = vld [vmem:[#allocation2 + $0x3a] sm:$0xff]
        %v1572 = vld [vmem:[#allocation2 + $0x4a] sm:$0xff]
        %v1573 = vld [vmem:[#allocation2 + $0x52] sm:$0xff]
        %v1574 = vld [vmem:[#allocation2 + $0x62] sm:$0xff]
        %v1575 = vld [vmem:[#allocation2 + $0x6a] sm:$0xff]
        %v1576 = vld [vmem:[#allocation2 + $0x7a] sm:$0xff]
        %v1577 = vld [vmem:[#allocation2 + $0x82] sm:$0xff]
        %v1578 = vld [vmem:[#allocation2 + $0x92] sm:$0xff]
        %v1579 = vld [vmem:[#allocation2 + $0x9a] sm:$0xff]
        %v1580 = vld [vmem:[#allocation2 + $0xaa] sm:$0xff]
        %v1581 = vld [vmem:[#allocation2 + $0xb2] sm:$0xff]
        %v1582 = vld [vmem:[#allocation2 + $0xc2] sm:$0xff]
        %v1583 = vld [vmem:[#allocation2 + $0xca] sm:$0xff]
        %v1584 = vld [vmem:[#allocation2 + $0xda] sm:$0xff]
        %v1585 = vld [vmem:[#allocation2 + $0xe2] sm:$0xff]
        %v1586 = vld [vmem:[#allocation2 + $0xf2] sm:$0xff]
        %v1587 = vld [vmem:[#allocation2 + $0xfa] sm:$0xff]
        %v1588 = vld [vmem:[#allocation2 + $0x10a] sm:$0xff]
        %v1589 = vld [vmem:[#allocation2 + $0x112] sm:$0xff]
        %v1590 = vld [vmem:[#allocation2 + $0x122] sm:$0xff]
        %v1591 = vld [vmem:[#allocation2 + $0x12a] sm:$0xff]
        %v1592 = vld [vmem:[#allocation2 + $0x13a] sm:$0xff]
        %v1593 = vld [vmem:[#allocation2 + $0x142] sm:$0xff]
        %v1594 = vld [vmem:[#allocation2 + $0x152] sm:$0xff]
        %v1595 = vld [vmem:[#allocation2 + $0x15a] sm:$0xff]
        %v1596 = vld [vmem:[#allocation2 + $0x16a] sm:$0xff]
        %v1597 = vld [vmem:[#allocation2 + $0x172] sm:$0xff]
        %v1598 = vld [vmem:[#allocation2 + $0x182] sm:$0xff]
        %v1599 = vld [vmem:[#allocation2 + $0x18a] sm:$0xff]
        %v1600 = vld [vmem:[#allocation2 + $0x19a] sm:$0xff]
        %v1601 = vld [vmem:[#allocation2 + $0x1a2] sm:$0xff]
        %v1602 = vld [vmem:[#allocation2 + $0x1b2] sm:$0xff]
        %v1603 = vld [vmem:[#allocation2 + $0x1ba] sm:$0xff]
        %v1604 = vld [vmem:[#allocation2 + $0x1ca] sm:$0xff]
        %v1605 = vld [vmem:[#allocation2 + $0x1d2] sm:$0xff]
        %v1606 = vld [vmem:[#allocation2 + $0x1e2] sm:$0xff]
        %v1607 = vld [vmem:[#allocation2 + $0x1ea] sm:$0xff]
        %v1608 = vld [vmem:[#allocation2 + $0x1fa] sm:$0xff]
        %v1609 = vld [vmem:[#allocation2 + $0x202] sm:$0xff]
        %v1610 = vlaneseq
        %v1611 = vshrl.u32 %v1610, 7
        %v1612 = vsub.s32 2, %v1611
        %v1613 = vrot.slane %v512, %v1612
        %v1614 = vmul.f32 %v1566, %v1613
        %v1615 = vmul.f32 %v1567, %v1613
        %v1616 = vmul.f32 %v1568, %v1613
        %v1617 = vmul.f32 %v1569, %v1613
        %v1618 = vmul.f32 %v1570, %v1613
        %v1619 = vmul.f32 %v1571, %v1613
        %v1620 = vmul.f32 %v1572, %v1613
        %v1621 = vmul.f32 %v1573, %v1613
        %v1622 = vmul.f32 %v1574, %v1613
        %v1623 = vmul.f32 %v1575, %v1613
        %v1624 = vmul.f32 %v1576, %v1613
        %v1625 = vmul.f32 %v1577, %v1613
        %v1626 = vmul.f32 %v1578, %v1613
        %v1627 = vmul.f32 %v1579, %v1613
        %v1628 = vmul.f32 %v1580, %v1613
        %v1629 = vmul.f32 %v1581, %v1613
        %v1630 = vmul.f32 %v1582, %v1613
        %v1631 = vmul.f32 %v1583, %v1613
        %v1632 = vmul.f32 %v1584, %v1613
        %v1633 = vmul.f32 %v1585, %v1613
        %v1634 = vmul.f32 %v1586, %v1613
        %v1635 = vmul.f32 %v1587, %v1613
        %v1636 = vmul.f32 %v1588, %v1613
        %v1637 = vmul.f32 %v1589, %v1613
        %v1638 = vmul.f32 %v1590, %v1613
        %v1639 = vmul.f32 %v1591, %v1613
        %v1640 = vmul.f32 %v1592, %v1613
        %v1641 = vmul.f32 %v1593, %v1613
        %v1642 = vmul.f32 %v1594, %v1613
        %v1643 = vmul.f32 %v1595, %v1613
        %v1644 = vmul.f32 %v1596, %v1613
        %v1645 = vmul.f32 %v1597, %v1613
        %v1646 = vadd.f32 %v1534, %v1614
        %v1647 = vadd.f32 %v1535, %v1615
        %v1648 = vadd.f32 %v1536, %v1616
        %v1649 = vadd.f32 %v1537, %v1617
        %v1650 = vadd.f32 %v1538, %v1618
        %v1651 = vadd.f32 %v1539, %v1619
        %v1652 = vadd.f32 %v1540, %v1620
        %v1653 = vadd.f32 %v1541, %v1621
        %v1654 = vadd.f32 %v1542, %v1622
        %v1655 = vadd.f32 %v1543, %v1623
        %v1656 = vadd.f32 %v1544, %v1624
        %v1657 = vadd.f32 %v1545, %v1625
        %v1658 = vadd.f32 %v1546, %v1626
        %v1659 = vadd.f32 %v1547, %v1627
        %v1660 = vadd.f32 %v1548, %v1628
        %v1661 = vadd.f32 %v1549, %v1629
        %v1662 = vadd.f32 %v1550, %v1630
        %v1663 = vadd.f32 %v1551, %v1631
        %v1664 = vadd.f32 %v1552, %v1632
        %v1665 = vadd.f32 %v1553, %v1633
        %v1666 = vadd.f32 %v1554, %v1634
        %v1667 = vadd.f32 %v1555, %v1635
        %v1668 = vadd.f32 %v1556, %v1636
        %v1669 = vadd.f32 %v1557, %v1637
        %v1670 = vadd.f32 %v1558, %v1638
        %v1671 = vadd.f32 %v1559, %v1639
        %v1672 = vadd.f32 %v1560, %v1640
        %v1673 = vadd.f32 %v1561, %v1641
        %v1674 = vadd.f32 %v1562, %v1642
        %v1675 = vadd.f32 %v1563, %v1643
        %v1676 = vadd.f32 %v1564, %v1644
        %v1677 = vadd.f32 %v1565, %v1645
        %v1678 = vlaneseq
        %v1679 = vshrl.u32 %v1678, 7
        %v1680 = vsub.s32 1, %v1679
        %v1681 = vrot.slane %v513, %v1680
        %v1682 = vmul.f32 %v1568, %v1681
        %v1683 = vmul.f32 %v1569, %v1681
        %v1684 = vmul.f32 %v1570, %v1681
        %v1685 = vmul.f32 %v1571, %v1681
        %v1686 = vmul.f32 %v1572, %v1681
        %v1687 = vmul.f32 %v1573, %v1681
        %v1688 = vmul.f32 %v1574, %v1681
        %v1689 = vmul.f32 %v1575, %v1681
        %v1690 = vmul.f32 %v1576, %v1681
        %v1691 = vmul.f32 %v1577, %v1681
        %v1692 = vmul.f32 %v1578, %v1681
        %v1693 = vmul.f32 %v1579, %v1681
        %v1694 = vmul.f32 %v1580, %v1681
        %v1695 = vmul.f32 %v1581, %v1681
        %v1696 = vmul.f32 %v1582, %v1681
        %v1697 = vmul.f32 %v1583, %v1681
        %v1698 = vmul.f32 %v1584, %v1681
        %v1699 = vmul.f32 %v1585, %v1681
        %v1700 = vmul.f32 %v1586, %v1681
        %v1701 = vmul.f32 %v1587, %v1681
        %v1702 = vmul.f32 %v1588, %v1681
        %v1703 = vmul.f32 %v1589, %v1681
        %v1704 = vmul.f32 %v1590, %v1681
        %v1705 = vmul.f32 %v1591, %v1681
        %v1706 = vmul.f32 %v1592, %v1681
        %v1707 = vmul.f32 %v1593, %v1681
        %v1708 = vmul.f32 %v1594, %v1681
        %v1709 = vmul.f32 %v1595, %v1681
        %v1710 = vmul.f32 %v1596, %v1681
        %v1711 = vmul.f32 %v1597, %v1681
        %v1712 = vmul.f32 %v1598, %v1681
        %v1713 = vmul.f32 %v1599, %v1681
        %v1714 = vadd.f32 %v1646, %v1682
        %v1715 = vadd.f32 %v1647, %v1683
        %v1716 = vadd.f32 %v1648, %v1684
        %v1717 = vadd.f32 %v1649, %v1685
        %v1718 = vadd.f32 %v1650, %v1686
        %v1719 = vadd.f32 %v1651, %v1687
        %v1720 = vadd.f32 %v1652, %v1688
        %v1721 = vadd.f32 %v1653, %v1689
        %v1722 = vadd.f32 %v1654, %v1690
        %v1723 = vadd.f32 %v1655, %v1691
        %v1724 = vadd.f32 %v1656, %v1692
        %v1725 = vadd.f32 %v1657, %v1693
        %v1726 = vadd.f32 %v1658, %v1694
        %v1727 = vadd.f32 %v1659, %v1695
        %v1728 = vadd.f32 %v1660, %v1696
        %v1729 = vadd.f32 %v1661, %v1697
        %v1730 = vadd.f32 %v1662, %v1698
        %v1731 = vadd.f32 %v1663, %v1699
        %v1732 = vadd.f32 %v1664, %v1700
        %v1733 = vadd.f32 %v1665, %v1701
        %v1734 = vadd.f32 %v1666, %v1702
        %v1735 = vadd.f32 %v1667, %v1703
        %v1736 = vadd.f32 %v1668, %v1704
        %v1737 = vadd.f32 %v1669, %v1705
        %v1738 = vadd.f32 %v1670, %v1706
        %v1739 = vadd.f32 %v1671, %v1707
        %v1740 = vadd.f32 %v1672, %v1708
        %v1741 = vadd.f32 %v1673, %v1709
        %v1742 = vadd.f32 %v1674, %v1710
        %v1743 = vadd.f32 %v1675, %v1711
        %v1744 = vadd.f32 %v1676, %v1712
        %v1745 = vadd.f32 %v1677, %v1713
        %v1746 = vlaneseq
        %v1747 = vshrl.u32 %v1746, 7
        %v1748 = vsub.s32 0, %v1747
        %v1749 = vrot.slane %v514, %v1748
        %v1750 = vmul.f32 %v1570, %v1749
        %v1751 = vmul.f32 %v1571, %v1749
        %v1752 = vmul.f32 %v1572, %v1749
        %v1753 = vmul.f32 %v1573, %v1749
        %v1754 = vmul.f32 %v1574, %v1749
        %v1755 = vmul.f32 %v1575, %v1749
        %v1756 = vmul.f32 %v1576, %v1749
        %v1757 = vmul.f32 %v1577, %v1749
        %v1758 = vmul.f32 %v1578, %v1749
        %v1759 = vmul.f32 %v1579, %v1749
        %v1760 = vmul.f32 %v1580, %v1749
        %v1761 = vmul.f32 %v1581, %v1749
        %v1762 = vmul.f32 %v1582, %v1749
        %v1763 = vmul.f32 %v1583, %v1749
        %v1764 = vmul.f32 %v1584, %v1749
        %v1765 = vmul.f32 %v1585, %v1749
        %v1766 = vmul.f32 %v1586, %v1749
        %v1767 = vmul.f32 %v1587, %v1749
        %v1768 = vmul.f32 %v1588, %v1749
        %v1769 = vmul.f32 %v1589, %v1749
        %v1770 = vmul.f32 %v1590, %v1749
        %v1771 = vmul.f32 %v1591, %v1749
        %v1772 = vmul.f32 %v1592, %v1749
        %v1773 = vmul.f32 %v1593, %v1749
        %v1774 = vmul.f32 %v1594, %v1749
        %v1775 = vmul.f32 %v1595, %v1749
        %v1776 = vmul.f32 %v1596, %v1749
        %v1777 = vmul.f32 %v1597, %v1749
        %v1778 = vmul.f32 %v1598, %v1749
        %v1779 = vmul.f32 %v1599, %v1749
        %v1780 = vmul.f32 %v1600, %v1749
        %v1781 = vmul.f32 %v1601, %v1749
        %v1782 = vadd.f32 %v1714, %v1750
        %v1783 = vadd.f32 %v1715, %v1751
        %v1784 = vadd.f32 %v1716, %v1752
        %v1785 = vadd.f32 %v1717, %v1753
        %v1786 = vadd.f32 %v1718, %v1754
        %v1787 = vadd.f32 %v1719, %v1755
        %v1788 = vadd.f32 %v1720, %v1756
        %v1789 = vadd.f32 %v1721, %v1757
        %v1790 = vadd.f32 %v1722, %v1758
        %v1791 = vadd.f32 %v1723, %v1759
        %v1792 = vadd.f32 %v1724, %v1760
        %v1793 = vadd.f32 %v1725, %v1761
        %v1794 = vadd.f32 %v1726, %v1762
        %v1795 = vadd.f32 %v1727, %v1763
        %v1796 = vadd.f32 %v1728, %v1764
        %v1797 = vadd.f32 %v1729, %v1765
        %v1798 = vadd.f32 %v1730, %v1766
        %v1799 = vadd.f32 %v1731, %v1767
        %v1800 = vadd.f32 %v1732, %v1768
        %v1801 = vadd.f32 %v1733, %v1769
        %v1802 = vadd.f32 %v1734, %v1770
        %v1803 = vadd.f32 %v1735, %v1771
        %v1804 = vadd.f32 %v1736, %v1772
        %v1805 = vadd.f32 %v1737, %v1773
        %v1806 = vadd.f32 %v1738, %v1774
        %v1807 = vadd.f32 %v1739, %v1775
        %v1808 = vadd.f32 %v1740, %v1776
        %v1809 = vadd.f32 %v1741, %v1777
        %v1810 = vadd.f32 %v1742, %v1778
        %v1811 = vadd.f32 %v1743, %v1779
        %v1812 = vadd.f32 %v1744, %v1780
        %v1813 = vadd.f32 %v1745, %v1781
        %v1814 = vlaneseq
        %v1815 = vshrl.u32 %v1814, 7
        %v1816 = vsub.s32 7, %v1815
        %v1817 = vrot.slane %v514, %v1816
        %v1818 = vmul.f32 %v1572, %v1817
        %v1819 = vmul.f32 %v1573, %v1817
        %v1820 = vmul.f32 %v1574, %v1817
        %v1821 = vmul.f32 %v1575, %v1817
        %v1822 = vmul.f32 %v1576, %v1817
        %v1823 = vmul.f32 %v1577, %v1817
        %v1824 = vmul.f32 %v1578, %v1817
        %v1825 = vmul.f32 %v1579, %v1817
        %v1826 = vmul.f32 %v1580, %v1817
        %v1827 = vmul.f32 %v1581, %v1817
        %v1828 = vmul.f32 %v1582, %v1817
        %v1829 = vmul.f32 %v1583, %v1817
        %v1830 = vmul.f32 %v1584, %v1817
        %v1831 = vmul.f32 %v1585, %v1817
        %v1832 = vmul.f32 %v1586, %v1817
        %v1833 = vmul.f32 %v1587, %v1817
        %v1834 = vmul.f32 %v1588, %v1817
        %v1835 = vmul.f32 %v1589, %v1817
        %v1836 = vmul.f32 %v1590, %v1817
        %v1837 = vmul.f32 %v1591, %v1817
        %v1838 = vmul.f32 %v1592, %v1817
        %v1839 = vmul.f32 %v1593, %v1817
        %v1840 = vmul.f32 %v1594, %v1817
        %v1841 = vmul.f32 %v1595, %v1817
        %v1842 = vmul.f32 %v1596, %v1817
        %v1843 = vmul.f32 %v1597, %v1817
        %v1844 = vmul.f32 %v1598, %v1817
        %v1845 = vmul.f32 %v1599, %v1817
        %v1846 = vmul.f32 %v1600, %v1817
        %v1847 = vmul.f32 %v1601, %v1817
        %v1848 = vmul.f32 %v1602, %v1817
        %v1849 = vmul.f32 %v1603, %v1817
        %v1850 = vadd.f32 %v1782, %v1818
        %v1851 = vadd.f32 %v1783, %v1819
        %v1852 = vadd.f32 %v1784, %v1820
        %v1853 = vadd.f32 %v1785, %v1821
        %v1854 = vadd.f32 %v1786, %v1822
        %v1855 = vadd.f32 %v1787, %v1823
        %v1856 = vadd.f32 %v1788, %v1824
        %v1857 = vadd.f32 %v1789, %v1825
        %v1858 = vadd.f32 %v1790, %v1826
        %v1859 = vadd.f32 %v1791, %v1827
        %v1860 = vadd.f32 %v1792, %v1828
        %v1861 = vadd.f32 %v1793, %v1829
        %v1862 = vadd.f32 %v1794, %v1830
        %v1863 = vadd.f32 %v1795, %v1831
        %v1864 = vadd.f32 %v1796, %v1832
        %v1865 = vadd.f32 %v1797, %v1833
        %v1866 = vadd.f32 %v1798, %v1834
        %v1867 = vadd.f32 %v1799, %v1835
        %v1868 = vadd.f32 %v1800, %v1836
        %v1869 = vadd.f32 %v1801, %v1837
        %v1870 = vadd.f32 %v1802, %v1838
        %v1871 = vadd.f32 %v1803, %v1839
        %v1872 = vadd.f32 %v1804, %v1840
        %v1873 = vadd.f32 %v1805, %v1841
        %v1874 = vadd.f32 %v1806, %v1842
        %v1875 = vadd.f32 %v1807, %v1843
        %v1876 = vadd.f32 %v1808, %v1844
        %v1877 = vadd.f32 %v1809, %v1845
        %v1878 = vadd.f32 %v1810, %v1846
        %v1879 = vadd.f32 %v1811, %v1847
        %v1880 = vadd.f32 %v1812, %v1848
        %v1881 = vadd.f32 %v1813, %v1849
        %v1882 = vlaneseq
        %v1883 = vshrl.u32 %v1882, 7
        %v1884 = vsub.s32 6, %v1883
        %v1885 = vrot.slane %v515, %v1884
        %v1886 = vmul.f32 %v1574, %v1885
        %v1887 = vmul.f32 %v1575, %v1885
        %v1888 = vmul.f32 %v1576, %v1885
        %v1889 = vmul.f32 %v1577, %v1885
        %v1890 = vmul.f32 %v1578, %v1885
        %v1891 = vmul.f32 %v1579, %v1885
        %v1892 = vmul.f32 %v1580, %v1885
        %v1893 = vmul.f32 %v1581, %v1885
        %v1894 = vmul.f32 %v1582, %v1885
        %v1895 = vmul.f32 %v1583, %v1885
        %v1896 = vmul.f32 %v1584, %v1885
        %v1897 = vmul.f32 %v1585, %v1885
        %v1898 = vmul.f32 %v1586, %v1885
        %v1899 = vmul.f32 %v1587, %v1885
        %v1900 = vmul.f32 %v1588, %v1885
        %v1901 = vmul.f32 %v1589, %v1885
        %v1902 = vmul.f32 %v1590, %v1885
        %v1903 = vmul.f32 %v1591, %v1885
        %v1904 = vmul.f32 %v1592, %v1885
        %v1905 = vmul.f32 %v1593, %v1885
        %v1906 = vmul.f32 %v1594, %v1885
        %v1907 = vmul.f32 %v1595, %v1885
        %v1908 = vmul.f32 %v1596, %v1885
        %v1909 = vmul.f32 %v1597, %v1885
        %v1910 = vmul.f32 %v1598, %v1885
        %v1911 = vmul.f32 %v1599, %v1885
        %v1912 = vmul.f32 %v1600, %v1885
        %v1913 = vmul.f32 %v1601, %v1885
        %v1914 = vmul.f32 %v1602, %v1885
        %v1915 = vmul.f32 %v1603, %v1885
        %v1916 = vmul.f32 %v1604, %v1885
        %v1917 = vmul.f32 %v1605, %v1885
        %v1918 = vadd.f32 %v1850, %v1886
        %v1919 = vadd.f32 %v1851, %v1887
        %v1920 = vadd.f32 %v1852, %v1888
        %v1921 = vadd.f32 %v1853, %v1889
        %v1922 = vadd.f32 %v1854, %v1890
        %v1923 = vadd.f32 %v1855, %v1891
        %v1924 = vadd.f32 %v1856, %v1892
        %v1925 = vadd.f32 %v1857, %v1893
        %v1926 = vadd.f32 %v1858, %v1894
        %v1927 = vadd.f32 %v1859, %v1895
        %v1928 = vadd.f32 %v1860, %v1896
        %v1929 = vadd.f32 %v1861, %v1897
        %v1930 = vadd.f32 %v1862, %v1898
        %v1931 = vadd.f32 %v1863, %v1899
        %v1932 = vadd.f32 %v1864, %v1900
        %v1933 = vadd.f32 %v1865, %v1901
        %v1934 = vadd.f32 %v1866, %v1902
        %v1935 = vadd.f32 %v1867, %v1903
        %v1936 = vadd.f32 %v1868, %v1904
        %v1937 = vadd.f32 %v1869, %v1905
        %v1938 = vadd.f32 %v1870, %v1906
        %v1939 = vadd.f32 %v1871, %v1907
        %v1940 = vadd.f32 %v1872, %v1908
        %v1941 = vadd.f32 %v1873, %v1909
        %v1942 = vadd.f32 %v1874, %v1910
        %v1943 = vadd.f32 %v1875, %v1911
        %v1944 = vadd.f32 %v1876, %v1912
        %v1945 = vadd.f32 %v1877, %v1913
        %v1946 = vadd.f32 %v1878, %v1914
        %v1947 = vadd.f32 %v1879, %v1915
        %v1948 = vadd.f32 %v1880, %v1916
        %v1949 = vadd.f32 %v1881, %v1917
        %v1950 = vlaneseq
        %v1951 = vshrl.u32 %v1950, 7
        %v1952 = vsub.s32 5, %v1951
        %v1953 = vrot.slane %v516, %v1952
        %v1954 = vmul.f32 %v1576, %v1953
        %v1955 = vmul.f32 %v1577, %v1953
        %v1956 = vmul.f32 %v1578, %v1953
        %v1957 = vmul.f32 %v1579, %v1953
        %v1958 = vmul.f32 %v1580, %v1953
        %v1959 = vmul.f32 %v1581, %v1953
        %v1960 = vmul.f32 %v1582, %v1953
        %v1961 = vmul.f32 %v1583, %v1953
        %v1962 = vmul.f32 %v1584, %v1953
        %v1963 = vmul.f32 %v1585, %v1953
        %v1964 = vmul.f32 %v1586, %v1953
        %v1965 = vmul.f32 %v1587, %v1953
        %v1966 = vmul.f32 %v1588, %v1953
        %v1967 = vmul.f32 %v1589, %v1953
        %v1968 = vmul.f32 %v1590, %v1953
        %v1969 = vmul.f32 %v1591, %v1953
        %v1970 = vmul.f32 %v1592, %v1953
        %v1971 = vmul.f32 %v1593, %v1953
        %v1972 = vmul.f32 %v1594, %v1953
        %v1973 = vmul.f32 %v1595, %v1953
        %v1974 = vmul.f32 %v1596, %v1953
        %v1975 = vmul.f32 %v1597, %v1953
        %v1976 = vmul.f32 %v1598, %v1953
        %v1977 = vmul.f32 %v1599, %v1953
        %v1978 = vmul.f32 %v1600, %v1953
        %v1979 = vmul.f32 %v1601, %v1953
        %v1980 = vmul.f32 %v1602, %v1953
        %v1981 = vmul.f32 %v1603, %v1953
        %v1982 = vmul.f32 %v1604, %v1953
        %v1983 = vmul.f32 %v1605, %v1953
        %v1984 = vmul.f32 %v1606, %v1953
        %v1985 = vmul.f32 %v1607, %v1953
        %v1986 = vadd.f32 %v1918, %v1954
        %v1987 = vadd.f32 %v1919, %v1955
        %v1988 = vadd.f32 %v1920, %v1956
        %v1989 = vadd.f32 %v1921, %v1957
        %v1990 = vadd.f32 %v1922, %v1958
        %v1991 = vadd.f32 %v1923, %v1959
        %v1992 = vadd.f32 %v1924, %v1960
        %v1993 = vadd.f32 %v1925, %v1961
        %v1994 = vadd.f32 %v1926, %v1962
        %v1995 = vadd.f32 %v1927, %v1963
        %v1996 = vadd.f32 %v1928, %v1964
        %v1997 = vadd.f32 %v1929, %v1965
        %v1998 = vadd.f32 %v1930, %v1966
        %v1999 = vadd.f32 %v1931, %v1967
        %v2000 = vadd.f32 %v1932, %v1968
        %v2001 = vadd.f32 %v1933, %v1969
        %v2002 = vadd.f32 %v1934, %v1970
        %v2003 = vadd.f32 %v1935, %v1971
        %v2004 = vadd.f32 %v1936, %v1972
        %v2005 = vadd.f32 %v1937, %v1973
        %v2006 = vadd.f32 %v1938, %v1974
        %v2007 = vadd.f32 %v1939, %v1975
        %v2008 = vadd.f32 %v1940, %v1976
        %v2009 = vadd.f32 %v1941, %v1977
        %v2010 = vadd.f32 %v1942, %v1978
        %v2011 = vadd.f32 %v1943, %v1979
        %v2012 = vadd.f32 %v1944, %v1980
        %v2013 = vadd.f32 %v1945, %v1981
        %v2014 = vadd.f32 %v1946, %v1982
        %v2015 = vadd.f32 %v1947, %v1983
        %v2016 = vadd.f32 %v1948, %v1984
        %v2017 = vadd.f32 %v1949, %v1985
        %v2018 = vlaneseq
        %v2019 = vshrl.u32 %v2018, 7
        %v2020 = vsub.s32 4, %v2019
        %v2021 = vrot.slane %v517, %v2020
        %v2022 = vmul.f32 %v1578, %v2021
        %v2023 = vmul.f32 %v1579, %v2021
        %v2024 = vmul.f32 %v1580, %v2021
        %v2025 = vmul.f32 %v1581, %v2021
        %v2026 = vmul.f32 %v1582, %v2021
        %v2027 = vmul.f32 %v1583, %v2021
        %v2028 = vmul.f32 %v1584, %v2021
        %v2029 = vmul.f32 %v1585, %v2021
        %v2030 = vmul.f32 %v1586, %v2021
        %v2031 = vmul.f32 %v1587, %v2021
        %v2032 = vmul.f32 %v1588, %v2021
        %v2033 = vmul.f32 %v1589, %v2021
        %v2034 = vmul.f32 %v1590, %v2021
        %v2035 = vmul.f32 %v1591, %v2021
        %v2036 = vmul.f32 %v1592, %v2021
        %v2037 = vmul.f32 %v1593, %v2021
        %v2038 = vmul.f32 %v1594, %v2021
        %v2039 = vmul.f32 %v1595, %v2021
        %v2040 = vmul.f32 %v1596, %v2021
        %v2041 = vmul.f32 %v1597, %v2021
        %v2042 = vmul.f32 %v1598, %v2021
        %v2043 = vmul.f32 %v1599, %v2021
        %v2044 = vmul.f32 %v1600, %v2021
        %v2045 = vmul.f32 %v1601, %v2021
        %v2046 = vmul.f32 %v1602, %v2021
        %v2047 = vmul.f32 %v1603, %v2021
        %v2048 = vmul.f32 %v1604, %v2021
        %v2049 = vmul.f32 %v1605, %v2021
        %v2050 = vmul.f32 %v1606, %v2021
        %v2051 = vmul.f32 %v1607, %v2021
        %v2052 = vmul.f32 %v1608, %v2021
        %v2053 = vmul.f32 %v1609, %v2021
        %v2054 = vadd.f32 %v1986, %v2022
        %v2055 = vadd.f32 %v1987, %v2023
        %v2056 = vadd.f32 %v1988, %v2024
        %v2057 = vadd.f32 %v1989, %v2025
        %v2058 = vadd.f32 %v1990, %v2026
        %v2059 = vadd.f32 %v1991, %v2027
        %v2060 = vadd.f32 %v1992, %v2028
        %v2061 = vadd.f32 %v1993, %v2029
        %v2062 = vadd.f32 %v1994, %v2030
        %v2063 = vadd.f32 %v1995, %v2031
        %v2064 = vadd.f32 %v1996, %v2032
        %v2065 = vadd.f32 %v1997, %v2033
        %v2066 = vadd.f32 %v1998, %v2034
        %v2067 = vadd.f32 %v1999, %v2035
        %v2068 = vadd.f32 %v2000, %v2036
        %v2069 = vadd.f32 %v2001, %v2037
        %v2070 = vadd.f32 %v2002, %v2038
        %v2071 = vadd.f32 %v2003, %v2039
        %v2072 = vadd.f32 %v2004, %v2040
        %v2073 = vadd.f32 %v2005, %v2041
        %v2074 = vadd.f32 %v2006, %v2042
        %v2075 = vadd.f32 %v2007, %v2043
        %v2076 = vadd.f32 %v2008, %v2044
        %v2077 = vadd.f32 %v2009, %v2045
        %v2078 = vadd.f32 %v2010, %v2046
        %v2079 = vadd.f32 %v2011, %v2047
        %v2080 = vadd.f32 %v2012, %v2048
        %v2081 = vadd.f32 %v2013, %v2049
        %v2082 = vadd.f32 %v2014, %v2050
        %v2083 = vadd.f32 %v2015, %v2051
        %v2084 = vadd.f32 %v2016, %v2052
        %v2085 = vadd.f32 %v2017, %v2053
        %v2086 = vld [vmem:[#allocation2 + $0x3] sm:$0xff]
        %v2087 = vld [vmem:[#allocation2 + $0xb] sm:$0xff]
        %v2088 = vld [vmem:[#allocation2 + $0x1b] sm:$0xff]
        %v2089 = vld [vmem:[#allocation2 + $0x23] sm:$0xff]
        %v2090 = vld [vmem:[#allocation2 + $0x33] sm:$0xff]
        %v2091 = vld [vmem:[#allocation2 + $0x3b] sm:$0xff]
        %v2092 = vld [vmem:[#allocation2 + $0x4b] sm:$0xff]
        %v2093 = vld [vmem:[#allocation2 + $0x53] sm:$0xff]
        %v2094 = vld [vmem:[#allocation2 + $0x63] sm:$0xff]
        %v2095 = vld [vmem:[#allocation2 + $0x6b] sm:$0xff]
        %v2096 = vld [vmem:[#allocation2 + $0x7b] sm:$0xff]
        %v2097 = vld [vmem:[#allocation2 + $0x83] sm:$0xff]
        %v2098 = vld [vmem:[#allocation2 + $0x93] sm:$0xff]
        %v2099 = vld [vmem:[#allocation2 + $0x9b] sm:$0xff]
        %v2100 = vld [vmem:[#allocation2 + $0xab] sm:$0xff]
        %v2101 = vld [vmem:[#allocation2 + $0xb3] sm:$0xff]
        %v2102 = vld [vmem:[#allocation2 + $0xc3] sm:$0xff]
        %v2103 = vld [vmem:[#allocation2 + $0xcb] sm:$0xff]
        %v2104 = vld [vmem:[#allocation2 + $0xdb] sm:$0xff]
        %v2105 = vld [vmem:[#allocation2 + $0xe3] sm:$0xff]
        %v2106 = vld [vmem:[#allocation2 + $0xf3] sm:$0xff]
        %v2107 = vld [vmem:[#allocation2 + $0xfb] sm:$0xff]
        %v2108 = vld [vmem:[#allocation2 + $0x10b] sm:$0xff]
        %v2109 = vld [vmem:[#allocation2 + $0x113] sm:$0xff]
        %v2110 = vld [vmem:[#allocation2 + $0x123] sm:$0xff]
        %v2111 = vld [vmem:[#allocation2 + $0x12b] sm:$0xff]
        %v2112 = vld [vmem:[#allocation2 + $0x13b] sm:$0xff]
        %v2113 = vld [vmem:[#allocation2 + $0x143] sm:$0xff]
        %v2114 = vld [vmem:[#allocation2 + $0x153] sm:$0xff]
        %v2115 = vld [vmem:[#allocation2 + $0x15b] sm:$0xff]
        %v2116 = vld [vmem:[#allocation2 + $0x16b] sm:$0xff]
        %v2117 = vld [vmem:[#allocation2 + $0x173] sm:$0xff]
        %v2118 = vld [vmem:[#allocation2 + $0x183] sm:$0xff]
        %v2119 = vld [vmem:[#allocation2 + $0x18b] sm:$0xff]
        %v2120 = vld [vmem:[#allocation2 + $0x19b] sm:$0xff]
        %v2121 = vld [vmem:[#allocation2 + $0x1a3] sm:$0xff]
        %v2122 = vld [vmem:[#allocation2 + $0x1b3] sm:$0xff]
        %v2123 = vld [vmem:[#allocation2 + $0x1bb] sm:$0xff]
        %v2124 = vld [vmem:[#allocation2 + $0x1cb] sm:$0xff]
        %v2125 = vld [vmem:[#allocation2 + $0x1d3] sm:$0xff]
        %v2126 = vld [vmem:[#allocation2 + $0x1e3] sm:$0xff]
        %v2127 = vld [vmem:[#allocation2 + $0x1eb] sm:$0xff]
        %v2128 = vld [vmem:[#allocation2 + $0x1fb] sm:$0xff]
        %v2129 = vld [vmem:[#allocation2 + $0x203] sm:$0xff]
        %v2130 = vlaneseq
        %v2131 = vshrl.u32 %v2130, 7
        %v2132 = vsub.s32 3, %v2131
        %v2133 = vrot.slane %v512, %v2132
        %v2134 = vmul.f32 %v2086, %v2133
        %v2135 = vmul.f32 %v2087, %v2133
        %v2136 = vmul.f32 %v2088, %v2133
        %v2137 = vmul.f32 %v2089, %v2133
        %v2138 = vmul.f32 %v2090, %v2133
        %v2139 = vmul.f32 %v2091, %v2133
        %v2140 = vmul.f32 %v2092, %v2133
        %v2141 = vmul.f32 %v2093, %v2133
        %v2142 = vmul.f32 %v2094, %v2133
        %v2143 = vmul.f32 %v2095, %v2133
        %v2144 = vmul.f32 %v2096, %v2133
        %v2145 = vmul.f32 %v2097, %v2133
        %v2146 = vmul.f32 %v2098, %v2133
        %v2147 = vmul.f32 %v2099, %v2133
        %v2148 = vmul.f32 %v2100, %v2133
        %v2149 = vmul.f32 %v2101, %v2133
        %v2150 = vmul.f32 %v2102, %v2133
        %v2151 = vmul.f32 %v2103, %v2133
        %v2152 = vmul.f32 %v2104, %v2133
        %v2153 = vmul.f32 %v2105, %v2133
        %v2154 = vmul.f32 %v2106, %v2133
        %v2155 = vmul.f32 %v2107, %v2133
        %v2156 = vmul.f32 %v2108, %v2133
        %v2157 = vmul.f32 %v2109, %v2133
        %v2158 = vmul.f32 %v2110, %v2133
        %v2159 = vmul.f32 %v2111, %v2133
        %v2160 = vmul.f32 %v2112, %v2133
        %v2161 = vmul.f32 %v2113, %v2133
        %v2162 = vmul.f32 %v2114, %v2133
        %v2163 = vmul.f32 %v2115, %v2133
        %v2164 = vmul.f32 %v2116, %v2133
        %v2165 = vmul.f32 %v2117, %v2133
        %v2166 = vadd.f32 %v2054, %v2134
        %v2167 = vadd.f32 %v2055, %v2135
        %v2168 = vadd.f32 %v2056, %v2136
        %v2169 = vadd.f32 %v2057, %v2137
        %v2170 = vadd.f32 %v2058, %v2138
        %v2171 = vadd.f32 %v2059, %v2139
        %v2172 = vadd.f32 %v2060, %v2140
        %v2173 = vadd.f32 %v2061, %v2141
        %v2174 = vadd.f32 %v2062, %v2142
        %v2175 = vadd.f32 %v2063, %v2143
        %v2176 = vadd.f32 %v2064, %v2144
        %v2177 = vadd.f32 %v2065, %v2145
        %v2178 = vadd.f32 %v2066, %v2146
        %v2179 = vadd.f32 %v2067, %v2147
        %v2180 = vadd.f32 %v2068, %v2148
        %v2181 = vadd.f32 %v2069, %v2149
        %v2182 = vadd.f32 %v2070, %v2150
        %v2183 = vadd.f32 %v2071, %v2151
        %v2184 = vadd.f32 %v2072, %v2152
        %v2185 = vadd.f32 %v2073, %v2153
        %v2186 = vadd.f32 %v2074, %v2154
        %v2187 = vadd.f32 %v2075, %v2155
        %v2188 = vadd.f32 %v2076, %v2156
        %v2189 = vadd.f32 %v2077, %v2157
        %v2190 = vadd.f32 %v2078, %v2158
        %v2191 = vadd.f32 %v2079, %v2159
        %v2192 = vadd.f32 %v2080, %v2160
        %v2193 = vadd.f32 %v2081, %v2161
        %v2194 = vadd.f32 %v2082, %v2162
        %v2195 = vadd.f32 %v2083, %v2163
        %v2196 = vadd.f32 %v2084, %v2164
        %v2197 = vadd.f32 %v2085, %v2165
        %v2198 = vlaneseq
        %v2199 = vshrl.u32 %v2198, 7
        %v2200 = vsub.s32 2, %v2199
        %v2201 = vrot.slane %v513, %v2200
        %v2202 = vmul.f32 %v2088, %v2201
        %v2203 = vmul.f32 %v2089, %v2201
        %v2204 = vmul.f32 %v2090, %v2201
        %v2205 = vmul.f32 %v2091, %v2201
        %v2206 = vmul.f32 %v2092, %v2201
        %v2207 = vmul.f32 %v2093, %v2201
        %v2208 = vmul.f32 %v2094, %v2201
        %v2209 = vmul.f32 %v2095, %v2201
        %v2210 = vmul.f32 %v2096, %v2201
        %v2211 = vmul.f32 %v2097, %v2201
        %v2212 = vmul.f32 %v2098, %v2201
        %v2213 = vmul.f32 %v2099, %v2201
        %v2214 = vmul.f32 %v2100, %v2201
        %v2215 = vmul.f32 %v2101, %v2201
        %v2216 = vmul.f32 %v2102, %v2201
        %v2217 = vmul.f32 %v2103, %v2201
        %v2218 = vmul.f32 %v2104, %v2201
        %v2219 = vmul.f32 %v2105, %v2201
        %v2220 = vmul.f32 %v2106, %v2201
        %v2221 = vmul.f32 %v2107, %v2201
        %v2222 = vmul.f32 %v2108, %v2201
        %v2223 = vmul.f32 %v2109, %v2201
        %v2224 = vmul.f32 %v2110, %v2201
        %v2225 = vmul.f32 %v2111, %v2201
        %v2226 = vmul.f32 %v2112, %v2201
        %v2227 = vmul.f32 %v2113, %v2201
        %v2228 = vmul.f32 %v2114, %v2201
        %v2229 = vmul.f32 %v2115, %v2201
        %v2230 = vmul.f32 %v2116, %v2201
        %v2231 = vmul.f32 %v2117, %v2201
        %v2232 = vmul.f32 %v2118, %v2201
        %v2233 = vmul.f32 %v2119, %v2201
        %v2234 = vadd.f32 %v2166, %v2202
        %v2235 = vadd.f32 %v2167, %v2203
        %v2236 = vadd.f32 %v2168, %v2204
        %v2237 = vadd.f32 %v2169, %v2205
        %v2238 = vadd.f32 %v2170, %v2206
        %v2239 = vadd.f32 %v2171, %v2207
        %v2240 = vadd.f32 %v2172, %v2208
        %v2241 = vadd.f32 %v2173, %v2209
        %v2242 = vadd.f32 %v2174, %v2210
        %v2243 = vadd.f32 %v2175, %v2211
        %v2244 = vadd.f32 %v2176, %v2212
        %v2245 = vadd.f32 %v2177, %v2213
        %v2246 = vadd.f32 %v2178, %v2214
        %v2247 = vadd.f32 %v2179, %v2215
        %v2248 = vadd.f32 %v2180, %v2216
        %v2249 = vadd.f32 %v2181, %v2217
        %v2250 = vadd.f32 %v2182, %v2218
        %v2251 = vadd.f32 %v2183, %v2219
        %v2252 = vadd.f32 %v2184, %v2220
        %v2253 = vadd.f32 %v2185, %v2221
        %v2254 = vadd.f32 %v2186, %v2222
        %v2255 = vadd.f32 %v2187, %v2223
        %v2256 = vadd.f32 %v2188, %v2224
        %v2257 = vadd.f32 %v2189, %v2225
        %v2258 = vadd.f32 %v2190, %v2226
        %v2259 = vadd.f32 %v2191, %v2227
        %v2260 = vadd.f32 %v2192, %v2228
        %v2261 = vadd.f32 %v2193, %v2229
        %v2262 = vadd.f32 %v2194, %v2230
        %v2263 = vadd.f32 %v2195, %v2231
        %v2264 = vadd.f32 %v2196, %v2232
        %v2265 = vadd.f32 %v2197, %v2233
        %v2266 = vlaneseq
        %v2267 = vshrl.u32 %v2266, 7
        %v2268 = vsub.s32 1, %v2267
        %v2269 = vrot.slane %v514, %v2268
        %v2270 = vmul.f32 %v2090, %v2269
        %v2271 = vmul.f32 %v2091, %v2269
        %v2272 = vmul.f32 %v2092, %v2269
        %v2273 = vmul.f32 %v2093, %v2269
        %v2274 = vmul.f32 %v2094, %v2269
        %v2275 = vmul.f32 %v2095, %v2269
        %v2276 = vmul.f32 %v2096, %v2269
        %v2277 = vmul.f32 %v2097, %v2269
        %v2278 = vmul.f32 %v2098, %v2269
        %v2279 = vmul.f32 %v2099, %v2269
        %v2280 = vmul.f32 %v2100, %v2269
        %v2281 = vmul.f32 %v2101, %v2269
        %v2282 = vmul.f32 %v2102, %v2269
        %v2283 = vmul.f32 %v2103, %v2269
        %v2284 = vmul.f32 %v2104, %v2269
        %v2285 = vmul.f32 %v2105, %v2269
        %v2286 = vmul.f32 %v2106, %v2269
        %v2287 = vmul.f32 %v2107, %v2269
        %v2288 = vmul.f32 %v2108, %v2269
        %v2289 = vmul.f32 %v2109, %v2269
        %v2290 = vmul.f32 %v2110, %v2269
        %v2291 = vmul.f32 %v2111, %v2269
        %v2292 = vmul.f32 %v2112, %v2269
        %v2293 = vmul.f32 %v2113, %v2269
        %v2294 = vmul.f32 %v2114, %v2269
        %v2295 = vmul.f32 %v2115, %v2269
        %v2296 = vmul.f32 %v2116, %v2269
        %v2297 = vmul.f32 %v2117, %v2269
        %v2298 = vmul.f32 %v2118, %v2269
        %v2299 = vmul.f32 %v2119, %v2269
        %v2300 = vmul.f32 %v2120, %v2269
        %v2301 = vmul.f32 %v2121, %v2269
        %v2302 = vadd.f32 %v2234, %v2270
        %v2303 = vadd.f32 %v2235, %v2271
        %v2304 = vadd.f32 %v2236, %v2272
        %v2305 = vadd.f32 %v2237, %v2273
        %v2306 = vadd.f32 %v2238, %v2274
        %v2307 = vadd.f32 %v2239, %v2275
        %v2308 = vadd.f32 %v2240, %v2276
        %v2309 = vadd.f32 %v2241, %v2277
        %v2310 = vadd.f32 %v2242, %v2278
        %v2311 = vadd.f32 %v2243, %v2279
        %v2312 = vadd.f32 %v2244, %v2280
        %v2313 = vadd.f32 %v2245, %v2281
        %v2314 = vadd.f32 %v2246, %v2282
        %v2315 = vadd.f32 %v2247, %v2283
        %v2316 = vadd.f32 %v2248, %v2284
        %v2317 = vadd.f32 %v2249, %v2285
        %v2318 = vadd.f32 %v2250, %v2286
        %v2319 = vadd.f32 %v2251, %v2287
        %v2320 = vadd.f32 %v2252, %v2288
        %v2321 = vadd.f32 %v2253, %v2289
        %v2322 = vadd.f32 %v2254, %v2290
        %v2323 = vadd.f32 %v2255, %v2291
        %v2324 = vadd.f32 %v2256, %v2292
        %v2325 = vadd.f32 %v2257, %v2293
        %v2326 = vadd.f32 %v2258, %v2294
        %v2327 = vadd.f32 %v2259, %v2295
        %v2328 = vadd.f32 %v2260, %v2296
        %v2329 = vadd.f32 %v2261, %v2297
        %v2330 = vadd.f32 %v2262, %v2298
        %v2331 = vadd.f32 %v2263, %v2299
        %v2332 = vadd.f32 %v2264, %v2300
        %v2333 = vadd.f32 %v2265, %v2301
        %v2334 = vlaneseq
        %v2335 = vshrl.u32 %v2334, 7
        %v2336 = vsub.s32 0, %v2335
        %v2337 = vrot.slane %v515, %v2336
        %v2338 = vmul.f32 %v2092, %v2337
        %v2339 = vmul.f32 %v2093, %v2337
        %v2340 = vmul.f32 %v2094, %v2337
        %v2341 = vmul.f32 %v2095, %v2337
        %v2342 = vmul.f32 %v2096, %v2337
        %v2343 = vmul.f32 %v2097, %v2337
        %v2344 = vmul.f32 %v2098, %v2337
        %v2345 = vmul.f32 %v2099, %v2337
        %v2346 = vmul.f32 %v2100, %v2337
        %v2347 = vmul.f32 %v2101, %v2337
        %v2348 = vmul.f32 %v2102, %v2337
        %v2349 = vmul.f32 %v2103, %v2337
        %v2350 = vmul.f32 %v2104, %v2337
        %v2351 = vmul.f32 %v2105, %v2337
        %v2352 = vmul.f32 %v2106, %v2337
        %v2353 = vmul.f32 %v2107, %v2337
        %v2354 = vmul.f32 %v2108, %v2337
        %v2355 = vmul.f32 %v2109, %v2337
        %v2356 = vmul.f32 %v2110, %v2337
        %v2357 = vmul.f32 %v2111, %v2337
        %v2358 = vmul.f32 %v2112, %v2337
        %v2359 = vmul.f32 %v2113, %v2337
        %v2360 = vmul.f32 %v2114, %v2337
        %v2361 = vmul.f32 %v2115, %v2337
        %v2362 = vmul.f32 %v2116, %v2337
        %v2363 = vmul.f32 %v2117, %v2337
        %v2364 = vmul.f32 %v2118, %v2337
        %v2365 = vmul.f32 %v2119, %v2337
        %v2366 = vmul.f32 %v2120, %v2337
        %v2367 = vmul.f32 %v2121, %v2337
        %v2368 = vmul.f32 %v2122, %v2337
        %v2369 = vmul.f32 %v2123, %v2337
        %v2370 = vadd.f32 %v2302, %v2338
        %v2371 = vadd.f32 %v2303, %v2339
        %v2372 = vadd.f32 %v2304, %v2340
        %v2373 = vadd.f32 %v2305, %v2341
        %v2374 = vadd.f32 %v2306, %v2342
        %v2375 = vadd.f32 %v2307, %v2343
        %v2376 = vadd.f32 %v2308, %v2344
        %v2377 = vadd.f32 %v2309, %v2345
        %v2378 = vadd.f32 %v2310, %v2346
        %v2379 = vadd.f32 %v2311, %v2347
        %v2380 = vadd.f32 %v2312, %v2348
        %v2381 = vadd.f32 %v2313, %v2349
        %v2382 = vadd.f32 %v2314, %v2350
        %v2383 = vadd.f32 %v2315, %v2351
        %v2384 = vadd.f32 %v2316, %v2352
        %v2385 = vadd.f32 %v2317, %v2353
        %v2386 = vadd.f32 %v2318, %v2354
        %v2387 = vadd.f32 %v2319, %v2355
        %v2388 = vadd.f32 %v2320, %v2356
        %v2389 = vadd.f32 %v2321, %v2357
        %v2390 = vadd.f32 %v2322, %v2358
        %v2391 = vadd.f32 %v2323, %v2359
        %v2392 = vadd.f32 %v2324, %v2360
        %v2393 = vadd.f32 %v2325, %v2361
        %v2394 = vadd.f32 %v2326, %v2362
        %v2395 = vadd.f32 %v2327, %v2363
        %v2396 = vadd.f32 %v2328, %v2364
        %v2397 = vadd.f32 %v2329, %v2365
        %v2398 = vadd.f32 %v2330, %v2366
        %v2399 = vadd.f32 %v2331, %v2367
        %v2400 = vadd.f32 %v2332, %v2368
        %v2401 = vadd.f32 %v2333, %v2369
        %v2402 = vlaneseq
        %v2403 = vshrl.u32 %v2402, 7
        %v2404 = vsub.s32 7, %v2403
        %v2405 = vrot.slane %v515, %v2404
        %v2406 = vmul.f32 %v2094, %v2405
        %v2407 = vmul.f32 %v2095, %v2405
        %v2408 = vmul.f32 %v2096, %v2405
        %v2409 = vmul.f32 %v2097, %v2405
        %v2410 = vmul.f32 %v2098, %v2405
        %v2411 = vmul.f32 %v2099, %v2405
        %v2412 = vmul.f32 %v2100, %v2405
        %v2413 = vmul.f32 %v2101, %v2405
        %v2414 = vmul.f32 %v2102, %v2405
        %v2415 = vmul.f32 %v2103, %v2405
        %v2416 = vmul.f32 %v2104, %v2405
        %v2417 = vmul.f32 %v2105, %v2405
        %v2418 = vmul.f32 %v2106, %v2405
        %v2419 = vmul.f32 %v2107, %v2405
        %v2420 = vmul.f32 %v2108, %v2405
        %v2421 = vmul.f32 %v2109, %v2405
        %v2422 = vmul.f32 %v2110, %v2405
        %v2423 = vmul.f32 %v2111, %v2405
        %v2424 = vmul.f32 %v2112, %v2405
        %v2425 = vmul.f32 %v2113, %v2405
        %v2426 = vmul.f32 %v2114, %v2405
        %v2427 = vmul.f32 %v2115, %v2405
        %v2428 = vmul.f32 %v2116, %v2405
        %v2429 = vmul.f32 %v2117, %v2405
        %v2430 = vmul.f32 %v2118, %v2405
        %v2431 = vmul.f32 %v2119, %v2405
        %v2432 = vmul.f32 %v2120, %v2405
        %v2433 = vmul.f32 %v2121, %v2405
        %v2434 = vmul.f32 %v2122, %v2405
        %v2435 = vmul.f32 %v2123, %v2405
        %v2436 = vmul.f32 %v2124, %v2405
        %v2437 = vmul.f32 %v2125, %v2405
        %v2438 = vadd.f32 %v2370, %v2406
        %v2439 = vadd.f32 %v2371, %v2407
        %v2440 = vadd.f32 %v2372, %v2408
        %v2441 = vadd.f32 %v2373, %v2409
        %v2442 = vadd.f32 %v2374, %v2410
        %v2443 = vadd.f32 %v2375, %v2411
        %v2444 = vadd.f32 %v2376, %v2412
        %v2445 = vadd.f32 %v2377, %v2413
        %v2446 = vadd.f32 %v2378, %v2414
        %v2447 = vadd.f32 %v2379, %v2415
        %v2448 = vadd.f32 %v2380, %v2416
        %v2449 = vadd.f32 %v2381, %v2417
        %v2450 = vadd.f32 %v2382, %v2418
        %v2451 = vadd.f32 %v2383, %v2419
        %v2452 = vadd.f32 %v2384, %v2420
        %v2453 = vadd.f32 %v2385, %v2421
        %v2454 = vadd.f32 %v2386, %v2422
        %v2455 = vadd.f32 %v2387, %v2423
        %v2456 = vadd.f32 %v2388, %v2424
        %v2457 = vadd.f32 %v2389, %v2425
        %v2458 = vadd.f32 %v2390, %v2426
        %v2459 = vadd.f32 %v2391, %v2427
        %v2460 = vadd.f32 %v2392, %v2428
        %v2461 = vadd.f32 %v2393, %v2429
        %v2462 = vadd.f32 %v2394, %v2430
        %v2463 = vadd.f32 %v2395, %v2431
        %v2464 = vadd.f32 %v2396, %v2432
        %v2465 = vadd.f32 %v2397, %v2433
        %v2466 = vadd.f32 %v2398, %v2434
        %v2467 = vadd.f32 %v2399, %v2435
        %v2468 = vadd.f32 %v2400, %v2436
        %v2469 = vadd.f32 %v2401, %v2437
        %v2470 = vlaneseq
        %v2471 = vshrl.u32 %v2470, 7
        %v2472 = vsub.s32 6, %v2471
        %v2473 = vrot.slane %v516, %v2472
        %v2474 = vmul.f32 %v2096, %v2473
        %v2475 = vmul.f32 %v2097, %v2473
        %v2476 = vmul.f32 %v2098, %v2473
        %v2477 = vmul.f32 %v2099, %v2473
        %v2478 = vmul.f32 %v2100, %v2473
        %v2479 = vmul.f32 %v2101, %v2473
        %v2480 = vmul.f32 %v2102, %v2473
        %v2481 = vmul.f32 %v2103, %v2473
        %v2482 = vmul.f32 %v2104, %v2473
        %v2483 = vmul.f32 %v2105, %v2473
        %v2484 = vmul.f32 %v2106, %v2473
        %v2485 = vmul.f32 %v2107, %v2473
        %v2486 = vmul.f32 %v2108, %v2473
        %v2487 = vmul.f32 %v2109, %v2473
        %v2488 = vmul.f32 %v2110, %v2473
        %v2489 = vmul.f32 %v2111, %v2473
        %v2490 = vmul.f32 %v2112, %v2473
        %v2491 = vmul.f32 %v2113, %v2473
        %v2492 = vmul.f32 %v2114, %v2473
        %v2493 = vmul.f32 %v2115, %v2473
        %v2494 = vmul.f32 %v2116, %v2473
        %v2495 = vmul.f32 %v2117, %v2473
        %v2496 = vmul.f32 %v2118, %v2473
        %v2497 = vmul.f32 %v2119, %v2473
        %v2498 = vmul.f32 %v2120, %v2473
        %v2499 = vmul.f32 %v2121, %v2473
        %v2500 = vmul.f32 %v2122, %v2473
        %v2501 = vmul.f32 %v2123, %v2473
        %v2502 = vmul.f32 %v2124, %v2473
        %v2503 = vmul.f32 %v2125, %v2473
        %v2504 = vmul.f32 %v2126, %v2473
        %v2505 = vmul.f32 %v2127, %v2473
        %v2506 = vadd.f32 %v2438, %v2474
        %v2507 = vadd.f32 %v2439, %v2475
        %v2508 = vadd.f32 %v2440, %v2476
        %v2509 = vadd.f32 %v2441, %v2477
        %v2510 = vadd.f32 %v2442, %v2478
        %v2511 = vadd.f32 %v2443, %v2479
        %v2512 = vadd.f32 %v2444, %v2480
        %v2513 = vadd.f32 %v2445, %v2481
        %v2514 = vadd.f32 %v2446, %v2482
        %v2515 = vadd.f32 %v2447, %v2483
        %v2516 = vadd.f32 %v2448, %v2484
        %v2517 = vadd.f32 %v2449, %v2485
        %v2518 = vadd.f32 %v2450, %v2486
        %v2519 = vadd.f32 %v2451, %v2487
        %v2520 = vadd.f32 %v2452, %v2488
        %v2521 = vadd.f32 %v2453, %v2489
        %v2522 = vadd.f32 %v2454, %v2490
        %v2523 = vadd.f32 %v2455, %v2491
        %v2524 = vadd.f32 %v2456, %v2492
        %v2525 = vadd.f32 %v2457, %v2493
        %v2526 = vadd.f32 %v2458, %v2494
        %v2527 = vadd.f32 %v2459, %v2495
        %v2528 = vadd.f32 %v2460, %v2496
        %v2529 = vadd.f32 %v2461, %v2497
        %v2530 = vadd.f32 %v2462, %v2498
        %v2531 = vadd.f32 %v2463, %v2499
        %v2532 = vadd.f32 %v2464, %v2500
        %v2533 = vadd.f32 %v2465, %v2501
        %v2534 = vadd.f32 %v2466, %v2502
        %v2535 = vadd.f32 %v2467, %v2503
        %v2536 = vadd.f32 %v2468, %v2504
        %v2537 = vadd.f32 %v2469, %v2505
        %v2538 = vlaneseq
        %v2539 = vshrl.u32 %v2538, 7
        %v2540 = vsub.s32 5, %v2539
        %v2541 = vrot.slane %v517, %v2540
        %v2542 = vmul.f32 %v2098, %v2541
        %v2543 = vmul.f32 %v2099, %v2541
        %v2544 = vmul.f32 %v2100, %v2541
        %v2545 = vmul.f32 %v2101, %v2541
        %v2546 = vmul.f32 %v2102, %v2541
        %v2547 = vmul.f32 %v2103, %v2541
        %v2548 = vmul.f32 %v2104, %v2541
        %v2549 = vmul.f32 %v2105, %v2541
        %v2550 = vmul.f32 %v2106, %v2541
        %v2551 = vmul.f32 %v2107, %v2541
        %v2552 = vmul.f32 %v2108, %v2541
        %v2553 = vmul.f32 %v2109, %v2541
        %v2554 = vmul.f32 %v2110, %v2541
        %v2555 = vmul.f32 %v2111, %v2541
        %v2556 = vmul.f32 %v2112, %v2541
        %v2557 = vmul.f32 %v2113, %v2541
        %v2558 = vmul.f32 %v2114, %v2541
        %v2559 = vmul.f32 %v2115, %v2541
        %v2560 = vmul.f32 %v2116, %v2541
        %v2561 = vmul.f32 %v2117, %v2541
        %v2562 = vmul.f32 %v2118, %v2541
        %v2563 = vmul.f32 %v2119, %v2541
        %v2564 = vmul.f32 %v2120, %v2541
        %v2565 = vmul.f32 %v2121, %v2541
        %v2566 = vmul.f32 %v2122, %v2541
        %v2567 = vmul.f32 %v2123, %v2541
        %v2568 = vmul.f32 %v2124, %v2541
        %v2569 = vmul.f32 %v2125, %v2541
        %v2570 = vmul.f32 %v2126, %v2541
        %v2571 = vmul.f32 %v2127, %v2541
        %v2572 = vmul.f32 %v2128, %v2541
        %v2573 = vmul.f32 %v2129, %v2541
        %v2574 = vadd.f32 %v2506, %v2542
        %v2575 = vadd.f32 %v2507, %v2543
        %v2576 = vadd.f32 %v2508, %v2544
        %v2577 = vadd.f32 %v2509, %v2545
        %v2578 = vadd.f32 %v2510, %v2546
        %v2579 = vadd.f32 %v2511, %v2547
        %v2580 = vadd.f32 %v2512, %v2548
        %v2581 = vadd.f32 %v2513, %v2549
        %v2582 = vadd.f32 %v2514, %v2550
        %v2583 = vadd.f32 %v2515, %v2551
        %v2584 = vadd.f32 %v2516, %v2552
        %v2585 = vadd.f32 %v2517, %v2553
        %v2586 = vadd.f32 %v2518, %v2554
        %v2587 = vadd.f32 %v2519, %v2555
        %v2588 = vadd.f32 %v2520, %v2556
        %v2589 = vadd.f32 %v2521, %v2557
        %v2590 = vadd.f32 %v2522, %v2558
        %v2591 = vadd.f32 %v2523, %v2559
        %v2592 = vadd.f32 %v2524, %v2560
        %v2593 = vadd.f32 %v2525, %v2561
        %v2594 = vadd.f32 %v2526, %v2562
        %v2595 = vadd.f32 %v2527, %v2563
        %v2596 = vadd.f32 %v2528, %v2564
        %v2597 = vadd.f32 %v2529, %v2565
        %v2598 = vadd.f32 %v2530, %v2566
        %v2599 = vadd.f32 %v2531, %v2567
        %v2600 = vadd.f32 %v2532, %v2568
        %v2601 = vadd.f32 %v2533, %v2569
        %v2602 = vadd.f32 %v2534, %v2570
        %v2603 = vadd.f32 %v2535, %v2571
        %v2604 = vadd.f32 %v2536, %v2572
        %v2605 = vadd.f32 %v2537, %v2573
        %v2606 = vld [vmem:[#allocation2 + $0x4] sm:$0xff]
        %v2607 = vld [vmem:[#allocation2 + $0xc] sm:$0xff]
        %v2608 = vld [vmem:[#allocation2 + $0x1c] sm:$0xff]
        %v2609 = vld [vmem:[#allocation2 + $0x24] sm:$0xff]
        %v2610 = vld [vmem:[#allocation2 + $0x34] sm:$0xff]
        %v2611 = vld [vmem:[#allocation2 + $0x3c] sm:$0xff]
        %v2612 = vld [vmem:[#allocation2 + $0x4c] sm:$0xff]
        %v2613 = vld [vmem:[#allocation2 + $0x54] sm:$0xff]
        %v2614 = vld [vmem:[#allocation2 + $0x64] sm:$0xff]
        %v2615 = vld [vmem:[#allocation2 + $0x6c] sm:$0xff]
        %v2616 = vld [vmem:[#allocation2 + $0x7c] sm:$0xff]
        %v2617 = vld [vmem:[#allocation2 + $0x84] sm:$0xff]
        %v2618 = vld [vmem:[#allocation2 + $0x94] sm:$0xff]
        %v2619 = vld [vmem:[#allocation2 + $0x9c] sm:$0xff]
        %v2620 = vld [vmem:[#allocation2 + $0xac] sm:$0xff]
        %v2621 = vld [vmem:[#allocation2 + $0xb4] sm:$0xff]
        %v2622 = vld [vmem:[#allocation2 + $0xc4] sm:$0xff]
        %v2623 = vld [vmem:[#allocation2 + $0xcc] sm:$0xff]
        %v2624 = vld [vmem:[#allocation2 + $0xdc] sm:$0xff]
        %v2625 = vld [vmem:[#allocation2 + $0xe4] sm:$0xff]
        %v2626 = vld [vmem:[#allocation2 + $0xf4] sm:$0xff]
        %v2627 = vld [vmem:[#allocation2 + $0xfc] sm:$0xff]
        %v2628 = vld [vmem:[#allocation2 + $0x10c] sm:$0xff]
        %v2629 = vld [vmem:[#allocation2 + $0x114] sm:$0xff]
        %v2630 = vld [vmem:[#allocation2 + $0x124] sm:$0xff]
        %v2631 = vld [vmem:[#allocation2 + $0x12c] sm:$0xff]
        %v2632 = vld [vmem:[#allocation2 + $0x13c] sm:$0xff]
        %v2633 = vld [vmem:[#allocation2 + $0x144] sm:$0xff]
        %v2634 = vld [vmem:[#allocation2 + $0x154] sm:$0xff]
        %v2635 = vld [vmem:[#allocation2 + $0x15c] sm:$0xff]
        %v2636 = vld [vmem:[#allocation2 + $0x16c] sm:$0xff]
        %v2637 = vld [vmem:[#allocation2 + $0x174] sm:$0xff]
        %v2638 = vld [vmem:[#allocation2 + $0x184] sm:$0xff]
        %v2639 = vld [vmem:[#allocation2 + $0x18c] sm:$0xff]
        %v2640 = vld [vmem:[#allocation2 + $0x19c] sm:$0xff]
        %v2641 = vld [vmem:[#allocation2 + $0x1a4] sm:$0xff]
        %v2642 = vld [vmem:[#allocation2 + $0x1b4] sm:$0xff]
        %v2643 = vld [vmem:[#allocation2 + $0x1bc] sm:$0xff]
        %v2644 = vld [vmem:[#allocation2 + $0x1cc] sm:$0xff]
        %v2645 = vld [vmem:[#allocation2 + $0x1d4] sm:$0xff]
        %v2646 = vld [vmem:[#allocation2 + $0x1e4] sm:$0xff]
        %v2647 = vld [vmem:[#allocation2 + $0x1ec] sm:$0xff]
        %v2648 = vld [vmem:[#allocation2 + $0x1fc] sm:$0xff]
        %v2649 = vld [vmem:[#allocation2 + $0x204] sm:$0xff]
        %v2650 = vlaneseq
        %v2651 = vshrl.u32 %v2650, 7
        %v2652 = vsub.s32 4, %v2651
        %v2653 = vrot.slane %v512, %v2652
        %v2654 = vmul.f32 %v2606, %v2653
        %v2655 = vmul.f32 %v2607, %v2653
        %v2656 = vmul.f32 %v2608, %v2653
        %v2657 = vmul.f32 %v2609, %v2653
        %v2658 = vmul.f32 %v2610, %v2653
        %v2659 = vmul.f32 %v2611, %v2653
        %v2660 = vmul.f32 %v2612, %v2653
        %v2661 = vmul.f32 %v2613, %v2653
        %v2662 = vmul.f32 %v2614, %v2653
        %v2663 = vmul.f32 %v2615, %v2653
        %v2664 = vmul.f32 %v2616, %v2653
        %v2665 = vmul.f32 %v2617, %v2653
        %v2666 = vmul.f32 %v2618, %v2653
        %v2667 = vmul.f32 %v2619, %v2653
        %v2668 = vmul.f32 %v2620, %v2653
        %v2669 = vmul.f32 %v2621, %v2653
        %v2670 = vmul.f32 %v2622, %v2653
        %v2671 = vmul.f32 %v2623, %v2653
        %v2672 = vmul.f32 %v2624, %v2653
        %v2673 = vmul.f32 %v2625, %v2653
        %v2674 = vmul.f32 %v2626, %v2653
        %v2675 = vmul.f32 %v2627, %v2653
        %v2676 = vmul.f32 %v2628, %v2653
        %v2677 = vmul.f32 %v2629, %v2653
        %v2678 = vmul.f32 %v2630, %v2653
        %v2679 = vmul.f32 %v2631, %v2653
        %v2680 = vmul.f32 %v2632, %v2653
        %v2681 = vmul.f32 %v2633, %v2653
        %v2682 = vmul.f32 %v2634, %v2653
        %v2683 = vmul.f32 %v2635, %v2653
        %v2684 = vmul.f32 %v2636, %v2653
        %v2685 = vmul.f32 %v2637, %v2653
        %v2686 = vadd.f32 %v2574, %v2654
        %v2687 = vadd.f32 %v2575, %v2655
        %v2688 = vadd.f32 %v2576, %v2656
        %v2689 = vadd.f32 %v2577, %v2657
        %v2690 = vadd.f32 %v2578, %v2658
        %v2691 = vadd.f32 %v2579, %v2659
        %v2692 = vadd.f32 %v2580, %v2660
        %v2693 = vadd.f32 %v2581, %v2661
        %v2694 = vadd.f32 %v2582, %v2662
        %v2695 = vadd.f32 %v2583, %v2663
        %v2696 = vadd.f32 %v2584, %v2664
        %v2697 = vadd.f32 %v2585, %v2665
        %v2698 = vadd.f32 %v2586, %v2666
        %v2699 = vadd.f32 %v2587, %v2667
        %v2700 = vadd.f32 %v2588, %v2668
        %v2701 = vadd.f32 %v2589, %v2669
        %v2702 = vadd.f32 %v2590, %v2670
        %v2703 = vadd.f32 %v2591, %v2671
        %v2704 = vadd.f32 %v2592, %v2672
        %v2705 = vadd.f32 %v2593, %v2673
        %v2706 = vadd.f32 %v2594, %v2674
        %v2707 = vadd.f32 %v2595, %v2675
        %v2708 = vadd.f32 %v2596, %v2676
        %v2709 = vadd.f32 %v2597, %v2677
        %v2710 = vadd.f32 %v2598, %v2678
        %v2711 = vadd.f32 %v2599, %v2679
        %v2712 = vadd.f32 %v2600, %v2680
        %v2713 = vadd.f32 %v2601, %v2681
        %v2714 = vadd.f32 %v2602, %v2682
        %v2715 = vadd.f32 %v2603, %v2683
        %v2716 = vadd.f32 %v2604, %v2684
        %v2717 = vadd.f32 %v2605, %v2685
        %v2718 = vlaneseq
        %v2719 = vshrl.u32 %v2718, 7
        %v2720 = vsub.s32 3, %v2719
        %v2721 = vrot.slane %v513, %v2720
        %v2722 = vmul.f32 %v2608, %v2721
        %v2723 = vmul.f32 %v2609, %v2721
        %v2724 = vmul.f32 %v2610, %v2721
        %v2725 = vmul.f32 %v2611, %v2721
        %v2726 = vmul.f32 %v2612, %v2721
        %v2727 = vmul.f32 %v2613, %v2721
        %v2728 = vmul.f32 %v2614, %v2721
        %v2729 = vmul.f32 %v2615, %v2721
        %v2730 = vmul.f32 %v2616, %v2721
        %v2731 = vmul.f32 %v2617, %v2721
        %v2732 = vmul.f32 %v2618, %v2721
        %v2733 = vmul.f32 %v2619, %v2721
        %v2734 = vmul.f32 %v2620, %v2721
        %v2735 = vmul.f32 %v2621, %v2721
        %v2736 = vmul.f32 %v2622, %v2721
        %v2737 = vmul.f32 %v2623, %v2721
        %v2738 = vmul.f32 %v2624, %v2721
        %v2739 = vmul.f32 %v2625, %v2721
        %v2740 = vmul.f32 %v2626, %v2721
        %v2741 = vmul.f32 %v2627, %v2721
        %v2742 = vmul.f32 %v2628, %v2721
        %v2743 = vmul.f32 %v2629, %v2721
        %v2744 = vmul.f32 %v2630, %v2721
        %v2745 = vmul.f32 %v2631, %v2721
        %v2746 = vmul.f32 %v2632, %v2721
        %v2747 = vmul.f32 %v2633, %v2721
        %v2748 = vmul.f32 %v2634, %v2721
        %v2749 = vmul.f32 %v2635, %v2721
        %v2750 = vmul.f32 %v2636, %v2721
        %v2751 = vmul.f32 %v2637, %v2721
        %v2752 = vmul.f32 %v2638, %v2721
        %v2753 = vmul.f32 %v2639, %v2721
        %v2754 = vadd.f32 %v2686, %v2722
        %v2755 = vadd.f32 %v2687, %v2723
        %v2756 = vadd.f32 %v2688, %v2724
        %v2757 = vadd.f32 %v2689, %v2725
        %v2758 = vadd.f32 %v2690, %v2726
        %v2759 = vadd.f32 %v2691, %v2727
        %v2760 = vadd.f32 %v2692, %v2728
        %v2761 = vadd.f32 %v2693, %v2729
        %v2762 = vadd.f32 %v2694, %v2730
        %v2763 = vadd.f32 %v2695, %v2731
        %v2764 = vadd.f32 %v2696, %v2732
        %v2765 = vadd.f32 %v2697, %v2733
        %v2766 = vadd.f32 %v2698, %v2734
        %v2767 = vadd.f32 %v2699, %v2735
        %v2768 = vadd.f32 %v2700, %v2736
        %v2769 = vadd.f32 %v2701, %v2737
        %v2770 = vadd.f32 %v2702, %v2738
        %v2771 = vadd.f32 %v2703, %v2739
        %v2772 = vadd.f32 %v2704, %v2740
        %v2773 = vadd.f32 %v2705, %v2741
        %v2774 = vadd.f32 %v2706, %v2742
        %v2775 = vadd.f32 %v2707, %v2743
        %v2776 = vadd.f32 %v2708, %v2744
        %v2777 = vadd.f32 %v2709, %v2745
        %v2778 = vadd.f32 %v2710, %v2746
        %v2779 = vadd.f32 %v2711, %v2747
        %v2780 = vadd.f32 %v2712, %v2748
        %v2781 = vadd.f32 %v2713, %v2749
        %v2782 = vadd.f32 %v2714, %v2750
        %v2783 = vadd.f32 %v2715, %v2751
        %v2784 = vadd.f32 %v2716, %v2752
        %v2785 = vadd.f32 %v2717, %v2753
        %v2786 = vlaneseq
        %v2787 = vshrl.u32 %v2786, 7
        %v2788 = vsub.s32 2, %v2787
        %v2789 = vrot.slane %v514, %v2788
        %v2790 = vmul.f32 %v2610, %v2789
        %v2791 = vmul.f32 %v2611, %v2789
        %v2792 = vmul.f32 %v2612, %v2789
        %v2793 = vmul.f32 %v2613, %v2789
        %v2794 = vmul.f32 %v2614, %v2789
        %v2795 = vmul.f32 %v2615, %v2789
        %v2796 = vmul.f32 %v2616, %v2789
        %v2797 = vmul.f32 %v2617, %v2789
        %v2798 = vmul.f32 %v2618, %v2789
        %v2799 = vmul.f32 %v2619, %v2789
        %v2800 = vmul.f32 %v2620, %v2789
        %v2801 = vmul.f32 %v2621, %v2789
        %v2802 = vmul.f32 %v2622, %v2789
        %v2803 = vmul.f32 %v2623, %v2789
        %v2804 = vmul.f32 %v2624, %v2789
        %v2805 = vmul.f32 %v2625, %v2789
        %v2806 = vmul.f32 %v2626, %v2789
        %v2807 = vmul.f32 %v2627, %v2789
        %v2808 = vmul.f32 %v2628, %v2789
        %v2809 = vmul.f32 %v2629, %v2789
        %v2810 = vmul.f32 %v2630, %v2789
        %v2811 = vmul.f32 %v2631, %v2789
        %v2812 = vmul.f32 %v2632, %v2789
        %v2813 = vmul.f32 %v2633, %v2789
        %v2814 = vmul.f32 %v2634, %v2789
        %v2815 = vmul.f32 %v2635, %v2789
        %v2816 = vmul.f32 %v2636, %v2789
        %v2817 = vmul.f32 %v2637, %v2789
        %v2818 = vmul.f32 %v2638, %v2789
        %v2819 = vmul.f32 %v2639, %v2789
        %v2820 = vmul.f32 %v2640, %v2789
        %v2821 = vmul.f32 %v2641, %v2789
        %v2822 = vadd.f32 %v2754, %v2790
        %v2823 = vadd.f32 %v2755, %v2791
        %v2824 = vadd.f32 %v2756, %v2792
        %v2825 = vadd.f32 %v2757, %v2793
        %v2826 = vadd.f32 %v2758, %v2794
        %v2827 = vadd.f32 %v2759, %v2795
        %v2828 = vadd.f32 %v2760, %v2796
        %v2829 = vadd.f32 %v2761, %v2797
        %v2830 = vadd.f32 %v2762, %v2798
        %v2831 = vadd.f32 %v2763, %v2799
        %v2832 = vadd.f32 %v2764, %v2800
        %v2833 = vadd.f32 %v2765, %v2801
        %v2834 = vadd.f32 %v2766, %v2802
        %v2835 = vadd.f32 %v2767, %v2803
        %v2836 = vadd.f32 %v2768, %v2804
        %v2837 = vadd.f32 %v2769, %v2805
        %v2838 = vadd.f32 %v2770, %v2806
        %v2839 = vadd.f32 %v2771, %v2807
        %v2840 = vadd.f32 %v2772, %v2808
        %v2841 = vadd.f32 %v2773, %v2809
        %v2842 = vadd.f32 %v2774, %v2810
        %v2843 = vadd.f32 %v2775, %v2811
        %v2844 = vadd.f32 %v2776, %v2812
        %v2845 = vadd.f32 %v2777, %v2813
        %v2846 = vadd.f32 %v2778, %v2814
        %v2847 = vadd.f32 %v2779, %v2815
        %v2848 = vadd.f32 %v2780, %v2816
        %v2849 = vadd.f32 %v2781, %v2817
        %v2850 = vadd.f32 %v2782, %v2818
        %v2851 = vadd.f32 %v2783, %v2819
        %v2852 = vadd.f32 %v2784, %v2820
        %v2853 = vadd.f32 %v2785, %v2821
        %v2854 = vlaneseq
        %v2855 = vshrl.u32 %v2854, 7
        %v2856 = vsub.s32 1, %v2855
        %v2857 = vrot.slane %v515, %v2856
        %v2858 = vmul.f32 %v2612, %v2857
        %v2859 = vmul.f32 %v2613, %v2857
        %v2860 = vmul.f32 %v2614, %v2857
        %v2861 = vmul.f32 %v2615, %v2857
        %v2862 = vmul.f32 %v2616, %v2857
        %v2863 = vmul.f32 %v2617, %v2857
        %v2864 = vmul.f32 %v2618, %v2857
        %v2865 = vmul.f32 %v2619, %v2857
        %v2866 = vmul.f32 %v2620, %v2857
        %v2867 = vmul.f32 %v2621, %v2857
        %v2868 = vmul.f32 %v2622, %v2857
        %v2869 = vmul.f32 %v2623, %v2857
        %v2870 = vmul.f32 %v2624, %v2857
        %v2871 = vmul.f32 %v2625, %v2857
        %v2872 = vmul.f32 %v2626, %v2857
        %v2873 = vmul.f32 %v2627, %v2857
        %v2874 = vmul.f32 %v2628, %v2857
        %v2875 = vmul.f32 %v2629, %v2857
        %v2876 = vmul.f32 %v2630, %v2857
        %v2877 = vmul.f32 %v2631, %v2857
        %v2878 = vmul.f32 %v2632, %v2857
        %v2879 = vmul.f32 %v2633, %v2857
        %v2880 = vmul.f32 %v2634, %v2857
        %v2881 = vmul.f32 %v2635, %v2857
        %v2882 = vmul.f32 %v2636, %v2857
        %v2883 = vmul.f32 %v2637, %v2857
        %v2884 = vmul.f32 %v2638, %v2857
        %v2885 = vmul.f32 %v2639, %v2857
        %v2886 = vmul.f32 %v2640, %v2857
        %v2887 = vmul.f32 %v2641, %v2857
        %v2888 = vmul.f32 %v2642, %v2857
        %v2889 = vmul.f32 %v2643, %v2857
        %v2890 = vadd.f32 %v2822, %v2858
        %v2891 = vadd.f32 %v2823, %v2859
        %v2892 = vadd.f32 %v2824, %v2860
        %v2893 = vadd.f32 %v2825, %v2861
        %v2894 = vadd.f32 %v2826, %v2862
        %v2895 = vadd.f32 %v2827, %v2863
        %v2896 = vadd.f32 %v2828, %v2864
        %v2897 = vadd.f32 %v2829, %v2865
        %v2898 = vadd.f32 %v2830, %v2866
        %v2899 = vadd.f32 %v2831, %v2867
        %v2900 = vadd.f32 %v2832, %v2868
        %v2901 = vadd.f32 %v2833, %v2869
        %v2902 = vadd.f32 %v2834, %v2870
        %v2903 = vadd.f32 %v2835, %v2871
        %v2904 = vadd.f32 %v2836, %v2872
        %v2905 = vadd.f32 %v2837, %v2873
        %v2906 = vadd.f32 %v2838, %v2874
        %v2907 = vadd.f32 %v2839, %v2875
        %v2908 = vadd.f32 %v2840, %v2876
        %v2909 = vadd.f32 %v2841, %v2877
        %v2910 = vadd.f32 %v2842, %v2878
        %v2911 = vadd.f32 %v2843, %v2879
        %v2912 = vadd.f32 %v2844, %v2880
        %v2913 = vadd.f32 %v2845, %v2881
        %v2914 = vadd.f32 %v2846, %v2882
        %v2915 = vadd.f32 %v2847, %v2883
        %v2916 = vadd.f32 %v2848, %v2884
        %v2917 = vadd.f32 %v2849, %v2885
        %v2918 = vadd.f32 %v2850, %v2886
        %v2919 = vadd.f32 %v2851, %v2887
        %v2920 = vadd.f32 %v2852, %v2888
        %v2921 = vadd.f32 %v2853, %v2889
        %v2922 = vlaneseq
        %v2923 = vshrl.u32 %v2922, 7
        %v2924 = vsub.s32 0, %v2923
        %v2925 = vrot.slane %v516, %v2924
        %v2926 = vmul.f32 %v2614, %v2925
        %v2927 = vmul.f32 %v2615, %v2925
        %v2928 = vmul.f32 %v2616, %v2925
        %v2929 = vmul.f32 %v2617, %v2925
        %v2930 = vmul.f32 %v2618, %v2925
        %v2931 = vmul.f32 %v2619, %v2925
        %v2932 = vmul.f32 %v2620, %v2925
        %v2933 = vmul.f32 %v2621, %v2925
        %v2934 = vmul.f32 %v2622, %v2925
        %v2935 = vmul.f32 %v2623, %v2925
        %v2936 = vmul.f32 %v2624, %v2925
        %v2937 = vmul.f32 %v2625, %v2925
        %v2938 = vmul.f32 %v2626, %v2925
        %v2939 = vmul.f32 %v2627, %v2925
        %v2940 = vmul.f32 %v2628, %v2925
        %v2941 = vmul.f32 %v2629, %v2925
        %v2942 = vmul.f32 %v2630, %v2925
        %v2943 = vmul.f32 %v2631, %v2925
        %v2944 = vmul.f32 %v2632, %v2925
        %v2945 = vmul.f32 %v2633, %v2925
        %v2946 = vmul.f32 %v2634, %v2925
        %v2947 = vmul.f32 %v2635, %v2925
        %v2948 = vmul.f32 %v2636, %v2925
        %v2949 = vmul.f32 %v2637, %v2925
        %v2950 = vmul.f32 %v2638, %v2925
        %v2951 = vmul.f32 %v2639, %v2925
        %v2952 = vmul.f32 %v2640, %v2925
        %v2953 = vmul.f32 %v2641, %v2925
        %v2954 = vmul.f32 %v2642, %v2925
        %v2955 = vmul.f32 %v2643, %v2925
        %v2956 = vmul.f32 %v2644, %v2925
        %v2957 = vmul.f32 %v2645, %v2925
        %v2958 = vadd.f32 %v2890, %v2926
        %v2959 = vadd.f32 %v2891, %v2927
        %v2960 = vadd.f32 %v2892, %v2928
        %v2961 = vadd.f32 %v2893, %v2929
        %v2962 = vadd.f32 %v2894, %v2930
        %v2963 = vadd.f32 %v2895, %v2931
        %v2964 = vadd.f32 %v2896, %v2932
        %v2965 = vadd.f32 %v2897, %v2933
        %v2966 = vadd.f32 %v2898, %v2934
        %v2967 = vadd.f32 %v2899, %v2935
        %v2968 = vadd.f32 %v2900, %v2936
        %v2969 = vadd.f32 %v2901, %v2937
        %v2970 = vadd.f32 %v2902, %v2938
        %v2971 = vadd.f32 %v2903, %v2939
        %v2972 = vadd.f32 %v2904, %v2940
        %v2973 = vadd.f32 %v2905, %v2941
        %v2974 = vadd.f32 %v2906, %v2942
        %v2975 = vadd.f32 %v2907, %v2943
        %v2976 = vadd.f32 %v2908, %v2944
        %v2977 = vadd.f32 %v2909, %v2945
        %v2978 = vadd.f32 %v2910, %v2946
        %v2979 = vadd.f32 %v2911, %v2947
        %v2980 = vadd.f32 %v2912, %v2948
        %v2981 = vadd.f32 %v2913, %v2949
        %v2982 = vadd.f32 %v2914, %v2950
        %v2983 = vadd.f32 %v2915, %v2951
        %v2984 = vadd.f32 %v2916, %v2952
        %v2985 = vadd.f32 %v2917, %v2953
        %v2986 = vadd.f32 %v2918, %v2954
        %v2987 = vadd.f32 %v2919, %v2955
        %v2988 = vadd.f32 %v2920, %v2956
        %v2989 = vadd.f32 %v2921, %v2957
        %v2990 = vlaneseq
        %v2991 = vshrl.u32 %v2990, 7
        %v2992 = vsub.s32 7, %v2991
        %v2993 = vrot.slane %v516, %v2992
        %v2994 = vmul.f32 %v2616, %v2993
        %v2995 = vmul.f32 %v2617, %v2993
        %v2996 = vmul.f32 %v2618, %v2993
        %v2997 = vmul.f32 %v2619, %v2993
        %v2998 = vmul.f32 %v2620, %v2993
        %v2999 = vmul.f32 %v2621, %v2993
        %v3000 = vmul.f32 %v2622, %v2993
        %v3001 = vmul.f32 %v2623, %v2993
        %v3002 = vmul.f32 %v2624, %v2993
        %v3003 = vmul.f32 %v2625, %v2993
        %v3004 = vmul.f32 %v2626, %v2993
        %v3005 = vmul.f32 %v2627, %v2993
        %v3006 = vmul.f32 %v2628, %v2993
        %v3007 = vmul.f32 %v2629, %v2993
        %v3008 = vmul.f32 %v2630, %v2993
        %v3009 = vmul.f32 %v2631, %v2993
        %v3010 = vmul.f32 %v2632, %v2993
        %v3011 = vmul.f32 %v2633, %v2993
        %v3012 = vmul.f32 %v2634, %v2993
        %v3013 = vmul.f32 %v2635, %v2993
        %v3014 = vmul.f32 %v2636, %v2993
        %v3015 = vmul.f32 %v2637, %v2993
        %v3016 = vmul.f32 %v2638, %v2993
        %v3017 = vmul.f32 %v2639, %v2993
        %v3018 = vmul.f32 %v2640, %v2993
        %v3019 = vmul.f32 %v2641, %v2993
        %v3020 = vmul.f32 %v2642, %v2993
        %v3021 = vmul.f32 %v2643, %v2993
        %v3022 = vmul.f32 %v2644, %v2993
        %v3023 = vmul.f32 %v2645, %v2993
        %v3024 = vmul.f32 %v2646, %v2993
        %v3025 = vmul.f32 %v2647, %v2993
        %v3026 = vadd.f32 %v2958, %v2994
        %v3027 = vadd.f32 %v2959, %v2995
        %v3028 = vadd.f32 %v2960, %v2996
        %v3029 = vadd.f32 %v2961, %v2997
        %v3030 = vadd.f32 %v2962, %v2998
        %v3031 = vadd.f32 %v2963, %v2999
        %v3032 = vadd.f32 %v2964, %v3000
        %v3033 = vadd.f32 %v2965, %v3001
        %v3034 = vadd.f32 %v2966, %v3002
        %v3035 = vadd.f32 %v2967, %v3003
        %v3036 = vadd.f32 %v2968, %v3004
        %v3037 = vadd.f32 %v2969, %v3005
        %v3038 = vadd.f32 %v2970, %v3006
        %v3039 = vadd.f32 %v2971, %v3007
        %v3040 = vadd.f32 %v2972, %v3008
        %v3041 = vadd.f32 %v2973, %v3009
        %v3042 = vadd.f32 %v2974, %v3010
        %v3043 = vadd.f32 %v2975, %v3011
        %v3044 = vadd.f32 %v2976, %v3012
        %v3045 = vadd.f32 %v2977, %v3013
        %v3046 = vadd.f32 %v2978, %v3014
        %v3047 = vadd.f32 %v2979, %v3015
        %v3048 = vadd.f32 %v2980, %v3016
        %v3049 = vadd.f32 %v2981, %v3017
        %v3050 = vadd.f32 %v2982, %v3018
        %v3051 = vadd.f32 %v2983, %v3019
        %v3052 = vadd.f32 %v2984, %v3020
        %v3053 = vadd.f32 %v2985, %v3021
        %v3054 = vadd.f32 %v2986, %v3022
        %v3055 = vadd.f32 %v2987, %v3023
        %v3056 = vadd.f32 %v2988, %v3024
        %v3057 = vadd.f32 %v2989, %v3025
        %v3058 = vlaneseq
        %v3059 = vshrl.u32 %v3058, 7
        %v3060 = vsub.s32 6, %v3059
        %v3061 = vrot.slane %v517, %v3060
        %v3062 = vmul.f32 %v2618, %v3061
        %v3063 = vmul.f32 %v2619, %v3061
        %v3064 = vmul.f32 %v2620, %v3061
        %v3065 = vmul.f32 %v2621, %v3061
        %v3066 = vmul.f32 %v2622, %v3061
        %v3067 = vmul.f32 %v2623, %v3061
        %v3068 = vmul.f32 %v2624, %v3061
        %v3069 = vmul.f32 %v2625, %v3061
        %v3070 = vmul.f32 %v2626, %v3061
        %v3071 = vmul.f32 %v2627, %v3061
        %v3072 = vmul.f32 %v2628, %v3061
        %v3073 = vmul.f32 %v2629, %v3061
        %v3074 = vmul.f32 %v2630, %v3061
        %v3075 = vmul.f32 %v2631, %v3061
        %v3076 = vmul.f32 %v2632, %v3061
        %v3077 = vmul.f32 %v2633, %v3061
        %v3078 = vmul.f32 %v2634, %v3061
        %v3079 = vmul.f32 %v2635, %v3061
        %v3080 = vmul.f32 %v2636, %v3061
        %v3081 = vmul.f32 %v2637, %v3061
        %v3082 = vmul.f32 %v2638, %v3061
        %v3083 = vmul.f32 %v2639, %v3061
        %v3084 = vmul.f32 %v2640, %v3061
        %v3085 = vmul.f32 %v2641, %v3061
        %v3086 = vmul.f32 %v2642, %v3061
        %v3087 = vmul.f32 %v2643, %v3061
        %v3088 = vmul.f32 %v2644, %v3061
        %v3089 = vmul.f32 %v2645, %v3061
        %v3090 = vmul.f32 %v2646, %v3061
        %v3091 = vmul.f32 %v2647, %v3061
        %v3092 = vmul.f32 %v2648, %v3061
        %v3093 = vmul.f32 %v2649, %v3061
        %v3094 = vadd.f32 %v3026, %v3062
        %v3095 = vadd.f32 %v3027, %v3063
        %v3096 = vadd.f32 %v3028, %v3064
        %v3097 = vadd.f32 %v3029, %v3065
        %v3098 = vadd.f32 %v3030, %v3066
        %v3099 = vadd.f32 %v3031, %v3067
        %v3100 = vadd.f32 %v3032, %v3068
        %v3101 = vadd.f32 %v3033, %v3069
        %v3102 = vadd.f32 %v3034, %v3070
        %v3103 = vadd.f32 %v3035, %v3071
        %v3104 = vadd.f32 %v3036, %v3072
        %v3105 = vadd.f32 %v3037, %v3073
        %v3106 = vadd.f32 %v3038, %v3074
        %v3107 = vadd.f32 %v3039, %v3075
        %v3108 = vadd.f32 %v3040, %v3076
        %v3109 = vadd.f32 %v3041, %v3077
        %v3110 = vadd.f32 %v3042, %v3078
        %v3111 = vadd.f32 %v3043, %v3079
        %v3112 = vadd.f32 %v3044, %v3080
        %v3113 = vadd.f32 %v3045, %v3081
        %v3114 = vadd.f32 %v3046, %v3082
        %v3115 = vadd.f32 %v3047, %v3083
        %v3116 = vadd.f32 %v3048, %v3084
        %v3117 = vadd.f32 %v3049, %v3085
        %v3118 = vadd.f32 %v3050, %v3086
        %v3119 = vadd.f32 %v3051, %v3087
        %v3120 = vadd.f32 %v3052, %v3088
        %v3121 = vadd.f32 %v3053, %v3089
        %v3122 = vadd.f32 %v3054, %v3090
        %v3123 = vadd.f32 %v3055, %v3091
        %v3124 = vadd.f32 %v3056, %v3092
        %v3125 = vadd.f32 %v3057, %v3093
        %v3126 = vld [vmem:[#allocation2 + $0x5] sm:$0xff]
        %v3127 = vld [vmem:[#allocation2 + $0xd] sm:$0xff]
        %v3128 = vld [vmem:[#allocation2 + $0x1d] sm:$0xff]
        %v3129 = vld [vmem:[#allocation2 + $0x25] sm:$0xff]
        %v3130 = vld [vmem:[#allocation2 + $0x35] sm:$0xff]
        %v3131 = vld [vmem:[#allocation2 + $0x3d] sm:$0xff]
        %v3132 = vld [vmem:[#allocation2 + $0x4d] sm:$0xff]
        %v3133 = vld [vmem:[#allocation2 + $0x55] sm:$0xff]
        %v3134 = vld [vmem:[#allocation2 + $0x65] sm:$0xff]
        %v3135 = vld [vmem:[#allocation2 + $0x6d] sm:$0xff]
        %v3136 = vld [vmem:[#allocation2 + $0x7d] sm:$0xff]
        %v3137 = vld [vmem:[#allocation2 + $0x85] sm:$0xff]
        %v3138 = vld [vmem:[#allocation2 + $0x95] sm:$0xff]
        %v3139 = vld [vmem:[#allocation2 + $0x9d] sm:$0xff]
        %v3140 = vld [vmem:[#allocation2 + $0xad] sm:$0xff]
        %v3141 = vld [vmem:[#allocation2 + $0xb5] sm:$0xff]
        %v3142 = vld [vmem:[#allocation2 + $0xc5] sm:$0xff]
        %v3143 = vld [vmem:[#allocation2 + $0xcd] sm:$0xff]
        %v3144 = vld [vmem:[#allocation2 + $0xdd] sm:$0xff]
        %v3145 = vld [vmem:[#allocation2 + $0xe5] sm:$0xff]
        %v3146 = vld [vmem:[#allocation2 + $0xf5] sm:$0xff]
        %v3147 = vld [vmem:[#allocation2 + $0xfd] sm:$0xff]
        %v3148 = vld [vmem:[#allocation2 + $0x10d] sm:$0xff]
        %v3149 = vld [vmem:[#allocation2 + $0x115] sm:$0xff]
        %v3150 = vld [vmem:[#allocation2 + $0x125] sm:$0xff]
        %v3151 = vld [vmem:[#allocation2 + $0x12d] sm:$0xff]
        %v3152 = vld [vmem:[#allocation2 + $0x13d] sm:$0xff]
        %v3153 = vld [vmem:[#allocation2 + $0x145] sm:$0xff]
        %v3154 = vld [vmem:[#allocation2 + $0x155] sm:$0xff]
        %v3155 = vld [vmem:[#allocation2 + $0x15d] sm:$0xff]
        %v3156 = vld [vmem:[#allocation2 + $0x16d] sm:$0xff]
        %v3157 = vld [vmem:[#allocation2 + $0x175] sm:$0xff]
        %v3158 = vld [vmem:[#allocation2 + $0x185] sm:$0xff]
        %v3159 = vld [vmem:[#allocation2 + $0x18d] sm:$0xff]
        %v3160 = vld [vmem:[#allocation2 + $0x19d] sm:$0xff]
        %v3161 = vld [vmem:[#allocation2 + $0x1a5] sm:$0xff]
        %v3162 = vld [vmem:[#allocation2 + $0x1b5] sm:$0xff]
        %v3163 = vld [vmem:[#allocation2 + $0x1bd] sm:$0xff]
        %v3164 = vld [vmem:[#allocation2 + $0x1cd] sm:$0xff]
        %v3165 = vld [vmem:[#allocation2 + $0x1d5] sm:$0xff]
        %v3166 = vld [vmem:[#allocation2 + $0x1e5] sm:$0xff]
        %v3167 = vld [vmem:[#allocation2 + $0x1ed] sm:$0xff]
        %v3168 = vld [vmem:[#allocation2 + $0x1fd] sm:$0xff]
        %v3169 = vld [vmem:[#allocation2 + $0x205] sm:$0xff]
        %v3170 = vlaneseq
        %v3171 = vshrl.u32 %v3170, 7
        %v3172 = vsub.s32 5, %v3171
        %v3173 = vrot.slane %v512, %v3172
        %v3174 = vmul.f32 %v3126, %v3173
        %v3175 = vmul.f32 %v3127, %v3173
        %v3176 = vmul.f32 %v3128, %v3173
        %v3177 = vmul.f32 %v3129, %v3173
        %v3178 = vmul.f32 %v3130, %v3173
        %v3179 = vmul.f32 %v3131, %v3173
        %v3180 = vmul.f32 %v3132, %v3173
        %v3181 = vmul.f32 %v3133, %v3173
        %v3182 = vmul.f32 %v3134, %v3173
        %v3183 = vmul.f32 %v3135, %v3173
        %v3184 = vmul.f32 %v3136, %v3173
        %v3185 = vmul.f32 %v3137, %v3173
        %v3186 = vmul.f32 %v3138, %v3173
        %v3187 = vmul.f32 %v3139, %v3173
        %v3188 = vmul.f32 %v3140, %v3173
        %v3189 = vmul.f32 %v3141, %v3173
        %v3190 = vmul.f32 %v3142, %v3173
        %v3191 = vmul.f32 %v3143, %v3173
        %v3192 = vmul.f32 %v3144, %v3173
        %v3193 = vmul.f32 %v3145, %v3173
        %v3194 = vmul.f32 %v3146, %v3173
        %v3195 = vmul.f32 %v3147, %v3173
        %v3196 = vmul.f32 %v3148, %v3173
        %v3197 = vmul.f32 %v3149, %v3173
        %v3198 = vmul.f32 %v3150, %v3173
        %v3199 = vmul.f32 %v3151, %v3173
        %v3200 = vmul.f32 %v3152, %v3173
        %v3201 = vmul.f32 %v3153, %v3173
        %v3202 = vmul.f32 %v3154, %v3173
        %v3203 = vmul.f32 %v3155, %v3173
        %v3204 = vmul.f32 %v3156, %v3173
        %v3205 = vmul.f32 %v3157, %v3173
        %v3206 = vadd.f32 %v3094, %v3174
        %v3207 = vadd.f32 %v3095, %v3175
        %v3208 = vadd.f32 %v3096, %v3176
        %v3209 = vadd.f32 %v3097, %v3177
        %v3210 = vadd.f32 %v3098, %v3178
        %v3211 = vadd.f32 %v3099, %v3179
        %v3212 = vadd.f32 %v3100, %v3180
        %v3213 = vadd.f32 %v3101, %v3181
        %v3214 = vadd.f32 %v3102, %v3182
        %v3215 = vadd.f32 %v3103, %v3183
        %v3216 = vadd.f32 %v3104, %v3184
        %v3217 = vadd.f32 %v3105, %v3185
        %v3218 = vadd.f32 %v3106, %v3186
        %v3219 = vadd.f32 %v3107, %v3187
        %v3220 = vadd.f32 %v3108, %v3188
        %v3221 = vadd.f32 %v3109, %v3189
        %v3222 = vadd.f32 %v3110, %v3190
        %v3223 = vadd.f32 %v3111, %v3191
        %v3224 = vadd.f32 %v3112, %v3192
        %v3225 = vadd.f32 %v3113, %v3193
        %v3226 = vadd.f32 %v3114, %v3194
        %v3227 = vadd.f32 %v3115, %v3195
        %v3228 = vadd.f32 %v3116, %v3196
        %v3229 = vadd.f32 %v3117, %v3197
        %v3230 = vadd.f32 %v3118, %v3198
        %v3231 = vadd.f32 %v3119, %v3199
        %v3232 = vadd.f32 %v3120, %v3200
        %v3233 = vadd.f32 %v3121, %v3201
        %v3234 = vadd.f32 %v3122, %v3202
        %v3235 = vadd.f32 %v3123, %v3203
        %v3236 = vadd.f32 %v3124, %v3204
        %v3237 = vadd.f32 %v3125, %v3205
        %v3238 = vlaneseq
        %v3239 = vshrl.u32 %v3238, 7
        %v3240 = vsub.s32 4, %v3239
        %v3241 = vrot.slane %v513, %v3240
        %v3242 = vmul.f32 %v3128, %v3241
        %v3243 = vmul.f32 %v3129, %v3241
        %v3244 = vmul.f32 %v3130, %v3241
        %v3245 = vmul.f32 %v3131, %v3241
        %v3246 = vmul.f32 %v3132, %v3241
        %v3247 = vmul.f32 %v3133, %v3241
        %v3248 = vmul.f32 %v3134, %v3241
        %v3249 = vmul.f32 %v3135, %v3241
        %v3250 = vmul.f32 %v3136, %v3241
        %v3251 = vmul.f32 %v3137, %v3241
        %v3252 = vmul.f32 %v3138, %v3241
        %v3253 = vmul.f32 %v3139, %v3241
        %v3254 = vmul.f32 %v3140, %v3241
        %v3255 = vmul.f32 %v3141, %v3241
        %v3256 = vmul.f32 %v3142, %v3241
        %v3257 = vmul.f32 %v3143, %v3241
        %v3258 = vmul.f32 %v3144, %v3241
        %v3259 = vmul.f32 %v3145, %v3241
        %v3260 = vmul.f32 %v3146, %v3241
        %v3261 = vmul.f32 %v3147, %v3241
        %v3262 = vmul.f32 %v3148, %v3241
        %v3263 = vmul.f32 %v3149, %v3241
        %v3264 = vmul.f32 %v3150, %v3241
        %v3265 = vmul.f32 %v3151, %v3241
        %v3266 = vmul.f32 %v3152, %v3241
        %v3267 = vmul.f32 %v3153, %v3241
        %v3268 = vmul.f32 %v3154, %v3241
        %v3269 = vmul.f32 %v3155, %v3241
        %v3270 = vmul.f32 %v3156, %v3241
        %v3271 = vmul.f32 %v3157, %v3241
        %v3272 = vmul.f32 %v3158, %v3241
        %v3273 = vmul.f32 %v3159, %v3241
        %v3274 = vadd.f32 %v3206, %v3242
        %v3275 = vadd.f32 %v3207, %v3243
        %v3276 = vadd.f32 %v3208, %v3244
        %v3277 = vadd.f32 %v3209, %v3245
        %v3278 = vadd.f32 %v3210, %v3246
        %v3279 = vadd.f32 %v3211, %v3247
        %v3280 = vadd.f32 %v3212, %v3248
        %v3281 = vadd.f32 %v3213, %v3249
        %v3282 = vadd.f32 %v3214, %v3250
        %v3283 = vadd.f32 %v3215, %v3251
        %v3284 = vadd.f32 %v3216, %v3252
        %v3285 = vadd.f32 %v3217, %v3253
        %v3286 = vadd.f32 %v3218, %v3254
        %v3287 = vadd.f32 %v3219, %v3255
        %v3288 = vadd.f32 %v3220, %v3256
        %v3289 = vadd.f32 %v3221, %v3257
        %v3290 = vadd.f32 %v3222, %v3258
        %v3291 = vadd.f32 %v3223, %v3259
        %v3292 = vadd.f32 %v3224, %v3260
        %v3293 = vadd.f32 %v3225, %v3261
        %v3294 = vadd.f32 %v3226, %v3262
        %v3295 = vadd.f32 %v3227, %v3263
        %v3296 = vadd.f32 %v3228, %v3264
        %v3297 = vadd.f32 %v3229, %v3265
        %v3298 = vadd.f32 %v3230, %v3266
        %v3299 = vadd.f32 %v3231, %v3267
        %v3300 = vadd.f32 %v3232, %v3268
        %v3301 = vadd.f32 %v3233, %v3269
        %v3302 = vadd.f32 %v3234, %v3270
        %v3303 = vadd.f32 %v3235, %v3271
        %v3304 = vadd.f32 %v3236, %v3272
        %v3305 = vadd.f32 %v3237, %v3273
        %v3306 = vlaneseq
        %v3307 = vshrl.u32 %v3306, 7
        %v3308 = vsub.s32 3, %v3307
        %v3309 = vrot.slane %v514, %v3308
        %v3310 = vmul.f32 %v3130, %v3309
        %v3311 = vmul.f32 %v3131, %v3309
        %v3312 = vmul.f32 %v3132, %v3309
        %v3313 = vmul.f32 %v3133, %v3309
        %v3314 = vmul.f32 %v3134, %v3309
        %v3315 = vmul.f32 %v3135, %v3309
        %v3316 = vmul.f32 %v3136, %v3309
        %v3317 = vmul.f32 %v3137, %v3309
        %v3318 = vmul.f32 %v3138, %v3309
        %v3319 = vmul.f32 %v3139, %v3309
        %v3320 = vmul.f32 %v3140, %v3309
        %v3321 = vmul.f32 %v3141, %v3309
        %v3322 = vmul.f32 %v3142, %v3309
        %v3323 = vmul.f32 %v3143, %v3309
        %v3324 = vmul.f32 %v3144, %v3309
        %v3325 = vmul.f32 %v3145, %v3309
        %v3326 = vmul.f32 %v3146, %v3309
        %v3327 = vmul.f32 %v3147, %v3309
        %v3328 = vmul.f32 %v3148, %v3309
        %v3329 = vmul.f32 %v3149, %v3309
        %v3330 = vmul.f32 %v3150, %v3309
        %v3331 = vmul.f32 %v3151, %v3309
        %v3332 = vmul.f32 %v3152, %v3309
        %v3333 = vmul.f32 %v3153, %v3309
        %v3334 = vmul.f32 %v3154, %v3309
        %v3335 = vmul.f32 %v3155, %v3309
        %v3336 = vmul.f32 %v3156, %v3309
        %v3337 = vmul.f32 %v3157, %v3309
        %v3338 = vmul.f32 %v3158, %v3309
        %v3339 = vmul.f32 %v3159, %v3309
        %v3340 = vmul.f32 %v3160, %v3309
        %v3341 = vmul.f32 %v3161, %v3309
        %v3342 = vadd.f32 %v3274, %v3310
        %v3343 = vadd.f32 %v3275, %v3311
        %v3344 = vadd.f32 %v3276, %v3312
        %v3345 = vadd.f32 %v3277, %v3313
        %v3346 = vadd.f32 %v3278, %v3314
        %v3347 = vadd.f32 %v3279, %v3315
        %v3348 = vadd.f32 %v3280, %v3316
        %v3349 = vadd.f32 %v3281, %v3317
        %v3350 = vadd.f32 %v3282, %v3318
        %v3351 = vadd.f32 %v3283, %v3319
        %v3352 = vadd.f32 %v3284, %v3320
        %v3353 = vadd.f32 %v3285, %v3321
        %v3354 = vadd.f32 %v3286, %v3322
        %v3355 = vadd.f32 %v3287, %v3323
        %v3356 = vadd.f32 %v3288, %v3324
        %v3357 = vadd.f32 %v3289, %v3325
        %v3358 = vadd.f32 %v3290, %v3326
        %v3359 = vadd.f32 %v3291, %v3327
        %v3360 = vadd.f32 %v3292, %v3328
        %v3361 = vadd.f32 %v3293, %v3329
        %v3362 = vadd.f32 %v3294, %v3330
        %v3363 = vadd.f32 %v3295, %v3331
        %v3364 = vadd.f32 %v3296, %v3332
        %v3365 = vadd.f32 %v3297, %v3333
        %v3366 = vadd.f32 %v3298, %v3334
        %v3367 = vadd.f32 %v3299, %v3335
        %v3368 = vadd.f32 %v3300, %v3336
        %v3369 = vadd.f32 %v3301, %v3337
        %v3370 = vadd.f32 %v3302, %v3338
        %v3371 = vadd.f32 %v3303, %v3339
        %v3372 = vadd.f32 %v3304, %v3340
        %v3373 = vadd.f32 %v3305, %v3341
        %v3374 = vlaneseq
        %v3375 = vshrl.u32 %v3374, 7
        %v3376 = vsub.s32 2, %v3375
        %v3377 = vrot.slane %v515, %v3376
        %v3378 = vmul.f32 %v3132, %v3377
        %v3379 = vmul.f32 %v3133, %v3377
        %v3380 = vmul.f32 %v3134, %v3377
        %v3381 = vmul.f32 %v3135, %v3377
        %v3382 = vmul.f32 %v3136, %v3377
        %v3383 = vmul.f32 %v3137, %v3377
        %v3384 = vmul.f32 %v3138, %v3377
        %v3385 = vmul.f32 %v3139, %v3377
        %v3386 = vmul.f32 %v3140, %v3377
        %v3387 = vmul.f32 %v3141, %v3377
        %v3388 = vmul.f32 %v3142, %v3377
        %v3389 = vmul.f32 %v3143, %v3377
        %v3390 = vmul.f32 %v3144, %v3377
        %v3391 = vmul.f32 %v3145, %v3377
        %v3392 = vmul.f32 %v3146, %v3377
        %v3393 = vmul.f32 %v3147, %v3377
        %v3394 = vmul.f32 %v3148, %v3377
        %v3395 = vmul.f32 %v3149, %v3377
        %v3396 = vmul.f32 %v3150, %v3377
        %v3397 = vmul.f32 %v3151, %v3377
        %v3398 = vmul.f32 %v3152, %v3377
        %v3399 = vmul.f32 %v3153, %v3377
        %v3400 = vmul.f32 %v3154, %v3377
        %v3401 = vmul.f32 %v3155, %v3377
        %v3402 = vmul.f32 %v3156, %v3377
        %v3403 = vmul.f32 %v3157, %v3377
        %v3404 = vmul.f32 %v3158, %v3377
        %v3405 = vmul.f32 %v3159, %v3377
        %v3406 = vmul.f32 %v3160, %v3377
        %v3407 = vmul.f32 %v3161, %v3377
        %v3408 = vmul.f32 %v3162, %v3377
        %v3409 = vmul.f32 %v3163, %v3377
        %v3410 = vadd.f32 %v3342, %v3378
        %v3411 = vadd.f32 %v3343, %v3379
        %v3412 = vadd.f32 %v3344, %v3380
        %v3413 = vadd.f32 %v3345, %v3381
        %v3414 = vadd.f32 %v3346, %v3382
        %v3415 = vadd.f32 %v3347, %v3383
        %v3416 = vadd.f32 %v3348, %v3384
        %v3417 = vadd.f32 %v3349, %v3385
        %v3418 = vadd.f32 %v3350, %v3386
        %v3419 = vadd.f32 %v3351, %v3387
        %v3420 = vadd.f32 %v3352, %v3388
        %v3421 = vadd.f32 %v3353, %v3389
        %v3422 = vadd.f32 %v3354, %v3390
        %v3423 = vadd.f32 %v3355, %v3391
        %v3424 = vadd.f32 %v3356, %v3392
        %v3425 = vadd.f32 %v3357, %v3393
        %v3426 = vadd.f32 %v3358, %v3394
        %v3427 = vadd.f32 %v3359, %v3395
        %v3428 = vadd.f32 %v3360, %v3396
        %v3429 = vadd.f32 %v3361, %v3397
        %v3430 = vadd.f32 %v3362, %v3398
        %v3431 = vadd.f32 %v3363, %v3399
        %v3432 = vadd.f32 %v3364, %v3400
        %v3433 = vadd.f32 %v3365, %v3401
        %v3434 = vadd.f32 %v3366, %v3402
        %v3435 = vadd.f32 %v3367, %v3403
        %v3436 = vadd.f32 %v3368, %v3404
        %v3437 = vadd.f32 %v3369, %v3405
        %v3438 = vadd.f32 %v3370, %v3406
        %v3439 = vadd.f32 %v3371, %v3407
        %v3440 = vadd.f32 %v3372, %v3408
        %v3441 = vadd.f32 %v3373, %v3409
        %v3442 = vlaneseq
        %v3443 = vshrl.u32 %v3442, 7
        %v3444 = vsub.s32 1, %v3443
        %v3445 = vrot.slane %v516, %v3444
        %v3446 = vmul.f32 %v3134, %v3445
        %v3447 = vmul.f32 %v3135, %v3445
        %v3448 = vmul.f32 %v3136, %v3445
        %v3449 = vmul.f32 %v3137, %v3445
        %v3450 = vmul.f32 %v3138, %v3445
        %v3451 = vmul.f32 %v3139, %v3445
        %v3452 = vmul.f32 %v3140, %v3445
        %v3453 = vmul.f32 %v3141, %v3445
        %v3454 = vmul.f32 %v3142, %v3445
        %v3455 = vmul.f32 %v3143, %v3445
        %v3456 = vmul.f32 %v3144, %v3445
        %v3457 = vmul.f32 %v3145, %v3445
        %v3458 = vmul.f32 %v3146, %v3445
        %v3459 = vmul.f32 %v3147, %v3445
        %v3460 = vmul.f32 %v3148, %v3445
        %v3461 = vmul.f32 %v3149, %v3445
        %v3462 = vmul.f32 %v3150, %v3445
        %v3463 = vmul.f32 %v3151, %v3445
        %v3464 = vmul.f32 %v3152, %v3445
        %v3465 = vmul.f32 %v3153, %v3445
        %v3466 = vmul.f32 %v3154, %v3445
        %v3467 = vmul.f32 %v3155, %v3445
        %v3468 = vmul.f32 %v3156, %v3445
        %v3469 = vmul.f32 %v3157, %v3445
        %v3470 = vmul.f32 %v3158, %v3445
        %v3471 = vmul.f32 %v3159, %v3445
        %v3472 = vmul.f32 %v3160, %v3445
        %v3473 = vmul.f32 %v3161, %v3445
        %v3474 = vmul.f32 %v3162, %v3445
        %v3475 = vmul.f32 %v3163, %v3445
        %v3476 = vmul.f32 %v3164, %v3445
        %v3477 = vmul.f32 %v3165, %v3445
        %v3478 = vadd.f32 %v3410, %v3446
        %v3479 = vadd.f32 %v3411, %v3447
        %v3480 = vadd.f32 %v3412, %v3448
        %v3481 = vadd.f32 %v3413, %v3449
        %v3482 = vadd.f32 %v3414, %v3450
        %v3483 = vadd.f32 %v3415, %v3451
        %v3484 = vadd.f32 %v3416, %v3452
        %v3485 = vadd.f32 %v3417, %v3453
        %v3486 = vadd.f32 %v3418, %v3454
        %v3487 = vadd.f32 %v3419, %v3455
        %v3488 = vadd.f32 %v3420, %v3456
        %v3489 = vadd.f32 %v3421, %v3457
        %v3490 = vadd.f32 %v3422, %v3458
        %v3491 = vadd.f32 %v3423, %v3459
        %v3492 = vadd.f32 %v3424, %v3460
        %v3493 = vadd.f32 %v3425, %v3461
        %v3494 = vadd.f32 %v3426, %v3462
        %v3495 = vadd.f32 %v3427, %v3463
        %v3496 = vadd.f32 %v3428, %v3464
        %v3497 = vadd.f32 %v3429, %v3465
        %v3498 = vadd.f32 %v3430, %v3466
        %v3499 = vadd.f32 %v3431, %v3467
        %v3500 = vadd.f32 %v3432, %v3468
        %v3501 = vadd.f32 %v3433, %v3469
        %v3502 = vadd.f32 %v3434, %v3470
        %v3503 = vadd.f32 %v3435, %v3471
        %v3504 = vadd.f32 %v3436, %v3472
        %v3505 = vadd.f32 %v3437, %v3473
        %v3506 = vadd.f32 %v3438, %v3474
        %v3507 = vadd.f32 %v3439, %v3475
        %v3508 = vadd.f32 %v3440, %v3476
        %v3509 = vadd.f32 %v3441, %v3477
        %v3510 = vlaneseq
        %v3511 = vshrl.u32 %v3510, 7
        %v3512 = vsub.s32 0, %v3511
        %v3513 = vrot.slane %v517, %v3512
        %v3514 = vmul.f32 %v3136, %v3513
        %v3515 = vmul.f32 %v3137, %v3513
        %v3516 = vmul.f32 %v3138, %v3513
        %v3517 = vmul.f32 %v3139, %v3513
        %v3518 = vmul.f32 %v3140, %v3513
        %v3519 = vmul.f32 %v3141, %v3513
        %v3520 = vmul.f32 %v3142, %v3513
        %v3521 = vmul.f32 %v3143, %v3513
        %v3522 = vmul.f32 %v3144, %v3513
        %v3523 = vmul.f32 %v3145, %v3513
        %v3524 = vmul.f32 %v3146, %v3513
        %v3525 = vmul.f32 %v3147, %v3513
        %v3526 = vmul.f32 %v3148, %v3513
        %v3527 = vmul.f32 %v3149, %v3513
        %v3528 = vmul.f32 %v3150, %v3513
        %v3529 = vmul.f32 %v3151, %v3513
        %v3530 = vmul.f32 %v3152, %v3513
        %v3531 = vmul.f32 %v3153, %v3513
        %v3532 = vmul.f32 %v3154, %v3513
        %v3533 = vmul.f32 %v3155, %v3513
        %v3534 = vmul.f32 %v3156, %v3513
        %v3535 = vmul.f32 %v3157, %v3513
        %v3536 = vmul.f32 %v3158, %v3513
        %v3537 = vmul.f32 %v3159, %v3513
        %v3538 = vmul.f32 %v3160, %v3513
        %v3539 = vmul.f32 %v3161, %v3513
        %v3540 = vmul.f32 %v3162, %v3513
        %v3541 = vmul.f32 %v3163, %v3513
        %v3542 = vmul.f32 %v3164, %v3513
        %v3543 = vmul.f32 %v3165, %v3513
        %v3544 = vmul.f32 %v3166, %v3513
        %v3545 = vmul.f32 %v3167, %v3513
        %v3546 = vadd.f32 %v3478, %v3514
        %v3547 = vadd.f32 %v3479, %v3515
        %v3548 = vadd.f32 %v3480, %v3516
        %v3549 = vadd.f32 %v3481, %v3517
        %v3550 = vadd.f32 %v3482, %v3518
        %v3551 = vadd.f32 %v3483, %v3519
        %v3552 = vadd.f32 %v3484, %v3520
        %v3553 = vadd.f32 %v3485, %v3521
        %v3554 = vadd.f32 %v3486, %v3522
        %v3555 = vadd.f32 %v3487, %v3523
        %v3556 = vadd.f32 %v3488, %v3524
        %v3557 = vadd.f32 %v3489, %v3525
        %v3558 = vadd.f32 %v3490, %v3526
        %v3559 = vadd.f32 %v3491, %v3527
        %v3560 = vadd.f32 %v3492, %v3528
        %v3561 = vadd.f32 %v3493, %v3529
        %v3562 = vadd.f32 %v3494, %v3530
        %v3563 = vadd.f32 %v3495, %v3531
        %v3564 = vadd.f32 %v3496, %v3532
        %v3565 = vadd.f32 %v3497, %v3533
        %v3566 = vadd.f32 %v3498, %v3534
        %v3567 = vadd.f32 %v3499, %v3535
        %v3568 = vadd.f32 %v3500, %v3536
        %v3569 = vadd.f32 %v3501, %v3537
        %v3570 = vadd.f32 %v3502, %v3538
        %v3571 = vadd.f32 %v3503, %v3539
        %v3572 = vadd.f32 %v3504, %v3540
        %v3573 = vadd.f32 %v3505, %v3541
        %v3574 = vadd.f32 %v3506, %v3542
        %v3575 = vadd.f32 %v3507, %v3543
        %v3576 = vadd.f32 %v3508, %v3544
        %v3577 = vadd.f32 %v3509, %v3545
        %v3578 = vlaneseq
        %v3579 = vshrl.u32 %v3578, 7
        %v3580 = vsub.s32 7, %v3579
        %v3581 = vrot.slane %v517, %v3580
        %v3582 = vmul.f32 %v3138, %v3581
        %v3583 = vmul.f32 %v3139, %v3581
        %v3584 = vmul.f32 %v3140, %v3581
        %v3585 = vmul.f32 %v3141, %v3581
        %v3586 = vmul.f32 %v3142, %v3581
        %v3587 = vmul.f32 %v3143, %v3581
        %v3588 = vmul.f32 %v3144, %v3581
        %v3589 = vmul.f32 %v3145, %v3581
        %v3590 = vmul.f32 %v3146, %v3581
        %v3591 = vmul.f32 %v3147, %v3581
        %v3592 = vmul.f32 %v3148, %v3581
        %v3593 = vmul.f32 %v3149, %v3581
        %v3594 = vmul.f32 %v3150, %v3581
        %v3595 = vmul.f32 %v3151, %v3581
        %v3596 = vmul.f32 %v3152, %v3581
        %v3597 = vmul.f32 %v3153, %v3581
        %v3598 = vmul.f32 %v3154, %v3581
        %v3599 = vmul.f32 %v3155, %v3581
        %v3600 = vmul.f32 %v3156, %v3581
        %v3601 = vmul.f32 %v3157, %v3581
        %v3602 = vmul.f32 %v3158, %v3581
        %v3603 = vmul.f32 %v3159, %v3581
        %v3604 = vmul.f32 %v3160, %v3581
        %v3605 = vmul.f32 %v3161, %v3581
        %v3606 = vmul.f32 %v3162, %v3581
        %v3607 = vmul.f32 %v3163, %v3581
        %v3608 = vmul.f32 %v3164, %v3581
        %v3609 = vmul.f32 %v3165, %v3581
        %v3610 = vmul.f32 %v3166, %v3581
        %v3611 = vmul.f32 %v3167, %v3581
        %v3612 = vmul.f32 %v3168, %v3581
        %v3613 = vmul.f32 %v3169, %v3581
        %v3614 = vadd.f32 %v3546, %v3582
        %v3615 = vadd.f32 %v3547, %v3583
        %v3616 = vadd.f32 %v3548, %v3584
        %v3617 = vadd.f32 %v3549, %v3585
        %v3618 = vadd.f32 %v3550, %v3586
        %v3619 = vadd.f32 %v3551, %v3587
        %v3620 = vadd.f32 %v3552, %v3588
        %v3621 = vadd.f32 %v3553, %v3589
        %v3622 = vadd.f32 %v3554, %v3590
        %v3623 = vadd.f32 %v3555, %v3591
        %v3624 = vadd.f32 %v3556, %v3592
        %v3625 = vadd.f32 %v3557, %v3593
        %v3626 = vadd.f32 %v3558, %v3594
        %v3627 = vadd.f32 %v3559, %v3595
        %v3628 = vadd.f32 %v3560, %v3596
        %v3629 = vadd.f32 %v3561, %v3597
        %v3630 = vadd.f32 %v3562, %v3598
        %v3631 = vadd.f32 %v3563, %v3599
        %v3632 = vadd.f32 %v3564, %v3600
        %v3633 = vadd.f32 %v3565, %v3601
        %v3634 = vadd.f32 %v3566, %v3602
        %v3635 = vadd.f32 %v3567, %v3603
        %v3636 = vadd.f32 %v3568, %v3604
        %v3637 = vadd.f32 %v3569, %v3605
        %v3638 = vadd.f32 %v3570, %v3606
        %v3639 = vadd.f32 %v3571, %v3607
        %v3640 = vadd.f32 %v3572, %v3608
        %v3641 = vadd.f32 %v3573, %v3609
        %v3642 = vadd.f32 %v3574, %v3610
        %v3643 = vadd.f32 %v3575, %v3611
        %v3644 = vadd.f32 %v3576, %v3612
        %v3645 = vadd.f32 %v3577, %v3613
        %v3646 = vld [vmem:[#allocation2 + $0x6] sm:$0xff]
        %v3647 = vld [vmem:[#allocation2 + $0xe] sm:$0xff]
        %v3648 = vld [vmem:[#allocation2 + $0x1e] sm:$0xff]
        %v3649 = vld [vmem:[#allocation2 + $0x26] sm:$0xff]
        %v3650 = vld [vmem:[#allocation2 + $0x36] sm:$0xff]
        %v3651 = vld [vmem:[#allocation2 + $0x3e] sm:$0xff]
        %v3652 = vld [vmem:[#allocation2 + $0x4e] sm:$0xff]
        %v3653 = vld [vmem:[#allocation2 + $0x56] sm:$0xff]
        %v3654 = vld [vmem:[#allocation2 + $0x66] sm:$0xff]
        %v3655 = vld [vmem:[#allocation2 + $0x6e] sm:$0xff]
        %v3656 = vld [vmem:[#allocation2 + $0x7e] sm:$0xff]
        %v3657 = vld [vmem:[#allocation2 + $0x86] sm:$0xff]
        %v3658 = vld [vmem:[#allocation2 + $0x96] sm:$0xff]
        %v3659 = vld [vmem:[#allocation2 + $0x9e] sm:$0xff]
        %v3660 = vld [vmem:[#allocation2 + $0xae] sm:$0xff]
        %v3661 = vld [vmem:[#allocation2 + $0xb6] sm:$0xff]
        %v3662 = vld [vmem:[#allocation2 + $0xc6] sm:$0xff]
        %v3663 = vld [vmem:[#allocation2 + $0xce] sm:$0xff]
        %v3664 = vld [vmem:[#allocation2 + $0xde] sm:$0xff]
        %v3665 = vld [vmem:[#allocation2 + $0xe6] sm:$0xff]
        %v3666 = vld [vmem:[#allocation2 + $0xf6] sm:$0xff]
        %v3667 = vld [vmem:[#allocation2 + $0xfe] sm:$0xff]
        %v3668 = vld [vmem:[#allocation2 + $0x10e] sm:$0xff]
        %v3669 = vld [vmem:[#allocation2 + $0x116] sm:$0xff]
        %v3670 = vld [vmem:[#allocation2 + $0x126] sm:$0xff]
        %v3671 = vld [vmem:[#allocation2 + $0x12e] sm:$0xff]
        %v3672 = vld [vmem:[#allocation2 + $0x13e] sm:$0xff]
        %v3673 = vld [vmem:[#allocation2 + $0x146] sm:$0xff]
        %v3674 = vld [vmem:[#allocation2 + $0x156] sm:$0xff]
        %v3675 = vld [vmem:[#allocation2 + $0x15e] sm:$0xff]
        %v3676 = vld [vmem:[#allocation2 + $0x16e] sm:$0xff]
        %v3677 = vld [vmem:[#allocation2 + $0x176] sm:$0xff]
        %v3678 = vld [vmem:[#allocation2 + $0x186] sm:$0xff]
        %v3679 = vld [vmem:[#allocation2 + $0x18e] sm:$0xff]
        %v3680 = vld [vmem:[#allocation2 + $0x19e] sm:$0xff]
        %v3681 = vld [vmem:[#allocation2 + $0x1a6] sm:$0xff]
        %v3682 = vld [vmem:[#allocation2 + $0x1b6] sm:$0xff]
        %v3683 = vld [vmem:[#allocation2 + $0x1be] sm:$0xff]
        %v3684 = vld [vmem:[#allocation2 + $0x1ce] sm:$0xff]
        %v3685 = vld [vmem:[#allocation2 + $0x1d6] sm:$0xff]
        %v3686 = vld [vmem:[#allocation2 + $0x1e6] sm:$0xff]
        %v3687 = vld [vmem:[#allocation2 + $0x1ee] sm:$0xff]
        %v3688 = vld [vmem:[#allocation2 + $0x1fe] sm:$0xff]
        %v3689 = vld [vmem:[#allocation2 + $0x206] sm:$0xff]
        %v3690 = vlaneseq
        %v3691 = vshrl.u32 %v3690, 7
        %v3692 = vsub.s32 6, %v3691
        %v3693 = vrot.slane %v512, %v3692
        %v3694 = vmul.f32 %v3646, %v3693
        %v3695 = vmul.f32 %v3647, %v3693
        %v3696 = vmul.f32 %v3648, %v3693
        %v3697 = vmul.f32 %v3649, %v3693
        %v3698 = vmul.f32 %v3650, %v3693
        %v3699 = vmul.f32 %v3651, %v3693
        %v3700 = vmul.f32 %v3652, %v3693
        %v3701 = vmul.f32 %v3653, %v3693
        %v3702 = vmul.f32 %v3654, %v3693
        %v3703 = vmul.f32 %v3655, %v3693
        %v3704 = vmul.f32 %v3656, %v3693
        %v3705 = vmul.f32 %v3657, %v3693
        %v3706 = vmul.f32 %v3658, %v3693
        %v3707 = vmul.f32 %v3659, %v3693
        %v3708 = vmul.f32 %v3660, %v3693
        %v3709 = vmul.f32 %v3661, %v3693
        %v3710 = vmul.f32 %v3662, %v3693
        %v3711 = vmul.f32 %v3663, %v3693
        %v3712 = vmul.f32 %v3664, %v3693
        %v3713 = vmul.f32 %v3665, %v3693
        %v3714 = vmul.f32 %v3666, %v3693
        %v3715 = vmul.f32 %v3667, %v3693
        %v3716 = vmul.f32 %v3668, %v3693
        %v3717 = vmul.f32 %v3669, %v3693
        %v3718 = vmul.f32 %v3670, %v3693
        %v3719 = vmul.f32 %v3671, %v3693
        %v3720 = vmul.f32 %v3672, %v3693
        %v3721 = vmul.f32 %v3673, %v3693
        %v3722 = vmul.f32 %v3674, %v3693
        %v3723 = vmul.f32 %v3675, %v3693
        %v3724 = vmul.f32 %v3676, %v3693
        %v3725 = vmul.f32 %v3677, %v3693
        %v3726 = vadd.f32 %v3614, %v3694
        %v3727 = vadd.f32 %v3615, %v3695
        %v3728 = vadd.f32 %v3616, %v3696
        %v3729 = vadd.f32 %v3617, %v3697
        %v3730 = vadd.f32 %v3618, %v3698
        %v3731 = vadd.f32 %v3619, %v3699
        %v3732 = vadd.f32 %v3620, %v3700
        %v3733 = vadd.f32 %v3621, %v3701
        %v3734 = vadd.f32 %v3622, %v3702
        %v3735 = vadd.f32 %v3623, %v3703
        %v3736 = vadd.f32 %v3624, %v3704
        %v3737 = vadd.f32 %v3625, %v3705
        %v3738 = vadd.f32 %v3626, %v3706
        %v3739 = vadd.f32 %v3627, %v3707
        %v3740 = vadd.f32 %v3628, %v3708
        %v3741 = vadd.f32 %v3629, %v3709
        %v3742 = vadd.f32 %v3630, %v3710
        %v3743 = vadd.f32 %v3631, %v3711
        %v3744 = vadd.f32 %v3632, %v3712
        %v3745 = vadd.f32 %v3633, %v3713
        %v3746 = vadd.f32 %v3634, %v3714
        %v3747 = vadd.f32 %v3635, %v3715
        %v3748 = vadd.f32 %v3636, %v3716
        %v3749 = vadd.f32 %v3637, %v3717
        %v3750 = vadd.f32 %v3638, %v3718
        %v3751 = vadd.f32 %v3639, %v3719
        %v3752 = vadd.f32 %v3640, %v3720
        %v3753 = vadd.f32 %v3641, %v3721
        %v3754 = vadd.f32 %v3642, %v3722
        %v3755 = vadd.f32 %v3643, %v3723
        %v3756 = vadd.f32 %v3644, %v3724
        %v3757 = vadd.f32 %v3645, %v3725
        %v3758 = vlaneseq
        %v3759 = vshrl.u32 %v3758, 7
        %v3760 = vsub.s32 5, %v3759
        %v3761 = vrot.slane %v513, %v3760
        %v3762 = vmul.f32 %v3648, %v3761
        %v3763 = vmul.f32 %v3649, %v3761
        %v3764 = vmul.f32 %v3650, %v3761
        %v3765 = vmul.f32 %v3651, %v3761
        %v3766 = vmul.f32 %v3652, %v3761
        %v3767 = vmul.f32 %v3653, %v3761
        %v3768 = vmul.f32 %v3654, %v3761
        %v3769 = vmul.f32 %v3655, %v3761
        %v3770 = vmul.f32 %v3656, %v3761
        %v3771 = vmul.f32 %v3657, %v3761
        %v3772 = vmul.f32 %v3658, %v3761
        %v3773 = vmul.f32 %v3659, %v3761
        %v3774 = vmul.f32 %v3660, %v3761
        %v3775 = vmul.f32 %v3661, %v3761
        %v3776 = vmul.f32 %v3662, %v3761
        %v3777 = vmul.f32 %v3663, %v3761
        %v3778 = vmul.f32 %v3664, %v3761
        %v3779 = vmul.f32 %v3665, %v3761
        %v3780 = vmul.f32 %v3666, %v3761
        %v3781 = vmul.f32 %v3667, %v3761
        %v3782 = vmul.f32 %v3668, %v3761
        %v3783 = vmul.f32 %v3669, %v3761
        %v3784 = vmul.f32 %v3670, %v3761
        %v3785 = vmul.f32 %v3671, %v3761
        %v3786 = vmul.f32 %v3672, %v3761
        %v3787 = vmul.f32 %v3673, %v3761
        %v3788 = vmul.f32 %v3674, %v3761
        %v3789 = vmul.f32 %v3675, %v3761
        %v3790 = vmul.f32 %v3676, %v3761
        %v3791 = vmul.f32 %v3677, %v3761
        %v3792 = vmul.f32 %v3678, %v3761
        %v3793 = vmul.f32 %v3679, %v3761
        %v3794 = vadd.f32 %v3726, %v3762
        %v3795 = vadd.f32 %v3727, %v3763
        %v3796 = vadd.f32 %v3728, %v3764
        %v3797 = vadd.f32 %v3729, %v3765
        %v3798 = vadd.f32 %v3730, %v3766
        %v3799 = vadd.f32 %v3731, %v3767
        %v3800 = vadd.f32 %v3732, %v3768
        %v3801 = vadd.f32 %v3733, %v3769
        %v3802 = vadd.f32 %v3734, %v3770
        %v3803 = vadd.f32 %v3735, %v3771
        %v3804 = vadd.f32 %v3736, %v3772
        %v3805 = vadd.f32 %v3737, %v3773
        %v3806 = vadd.f32 %v3738, %v3774
        %v3807 = vadd.f32 %v3739, %v3775
        %v3808 = vadd.f32 %v3740, %v3776
        %v3809 = vadd.f32 %v3741, %v3777
        %v3810 = vadd.f32 %v3742, %v3778
        %v3811 = vadd.f32 %v3743, %v3779
        %v3812 = vadd.f32 %v3744, %v3780
        %v3813 = vadd.f32 %v3745, %v3781
        %v3814 = vadd.f32 %v3746, %v3782
        %v3815 = vadd.f32 %v3747, %v3783
        %v3816 = vadd.f32 %v3748, %v3784
        %v3817 = vadd.f32 %v3749, %v3785
        %v3818 = vadd.f32 %v3750, %v3786
        %v3819 = vadd.f32 %v3751, %v3787
        %v3820 = vadd.f32 %v3752, %v3788
        %v3821 = vadd.f32 %v3753, %v3789
        %v3822 = vadd.f32 %v3754, %v3790
        %v3823 = vadd.f32 %v3755, %v3791
        %v3824 = vadd.f32 %v3756, %v3792
        %v3825 = vadd.f32 %v3757, %v3793
        %v3826 = vlaneseq
        %v3827 = vshrl.u32 %v3826, 7
        %v3828 = vsub.s32 4, %v3827
        %v3829 = vrot.slane %v514, %v3828
        %v3830 = vmul.f32 %v3650, %v3829
        %v3831 = vmul.f32 %v3651, %v3829
        %v3832 = vmul.f32 %v3652, %v3829
        %v3833 = vmul.f32 %v3653, %v3829
        %v3834 = vmul.f32 %v3654, %v3829
        %v3835 = vmul.f32 %v3655, %v3829
        %v3836 = vmul.f32 %v3656, %v3829
        %v3837 = vmul.f32 %v3657, %v3829
        %v3838 = vmul.f32 %v3658, %v3829
        %v3839 = vmul.f32 %v3659, %v3829
        %v3840 = vmul.f32 %v3660, %v3829
        %v3841 = vmul.f32 %v3661, %v3829
        %v3842 = vmul.f32 %v3662, %v3829
        %v3843 = vmul.f32 %v3663, %v3829
        %v3844 = vmul.f32 %v3664, %v3829
        %v3845 = vmul.f32 %v3665, %v3829
        %v3846 = vmul.f32 %v3666, %v3829
        %v3847 = vmul.f32 %v3667, %v3829
        %v3848 = vmul.f32 %v3668, %v3829
        %v3849 = vmul.f32 %v3669, %v3829
        %v3850 = vmul.f32 %v3670, %v3829
        %v3851 = vmul.f32 %v3671, %v3829
        %v3852 = vmul.f32 %v3672, %v3829
        %v3853 = vmul.f32 %v3673, %v3829
        %v3854 = vmul.f32 %v3674, %v3829
        %v3855 = vmul.f32 %v3675, %v3829
        %v3856 = vmul.f32 %v3676, %v3829
        %v3857 = vmul.f32 %v3677, %v3829
        %v3858 = vmul.f32 %v3678, %v3829
        %v3859 = vmul.f32 %v3679, %v3829
        %v3860 = vmul.f32 %v3680, %v3829
        %v3861 = vmul.f32 %v3681, %v3829
        %v3862 = vadd.f32 %v3794, %v3830
        %v3863 = vadd.f32 %v3795, %v3831
        %v3864 = vadd.f32 %v3796, %v3832
        %v3865 = vadd.f32 %v3797, %v3833
        %v3866 = vadd.f32 %v3798, %v3834
        %v3867 = vadd.f32 %v3799, %v3835
        %v3868 = vadd.f32 %v3800, %v3836
        %v3869 = vadd.f32 %v3801, %v3837
        %v3870 = vadd.f32 %v3802, %v3838
        %v3871 = vadd.f32 %v3803, %v3839
        %v3872 = vadd.f32 %v3804, %v3840
        %v3873 = vadd.f32 %v3805, %v3841
        %v3874 = vadd.f32 %v3806, %v3842
        %v3875 = vadd.f32 %v3807, %v3843
        %v3876 = vadd.f32 %v3808, %v3844
        %v3877 = vadd.f32 %v3809, %v3845
        %v3878 = vadd.f32 %v3810, %v3846
        %v3879 = vadd.f32 %v3811, %v3847
        %v3880 = vadd.f32 %v3812, %v3848
        %v3881 = vadd.f32 %v3813, %v3849
        %v3882 = vadd.f32 %v3814, %v3850
        %v3883 = vadd.f32 %v3815, %v3851
        %v3884 = vadd.f32 %v3816, %v3852
        %v3885 = vadd.f32 %v3817, %v3853
        %v3886 = vadd.f32 %v3818, %v3854
        %v3887 = vadd.f32 %v3819, %v3855
        %v3888 = vadd.f32 %v3820, %v3856
        %v3889 = vadd.f32 %v3821, %v3857
        %v3890 = vadd.f32 %v3822, %v3858
        %v3891 = vadd.f32 %v3823, %v3859
        %v3892 = vadd.f32 %v3824, %v3860
        %v3893 = vadd.f32 %v3825, %v3861
        %v3894 = vlaneseq
        %v3895 = vshrl.u32 %v3894, 7
        %v3896 = vsub.s32 3, %v3895
        %v3897 = vrot.slane %v515, %v3896
        %v3898 = vmul.f32 %v3652, %v3897
        %v3899 = vmul.f32 %v3653, %v3897
        %v3900 = vmul.f32 %v3654, %v3897
        %v3901 = vmul.f32 %v3655, %v3897
        %v3902 = vmul.f32 %v3656, %v3897
        %v3903 = vmul.f32 %v3657, %v3897
        %v3904 = vmul.f32 %v3658, %v3897
        %v3905 = vmul.f32 %v3659, %v3897
        %v3906 = vmul.f32 %v3660, %v3897
        %v3907 = vmul.f32 %v3661, %v3897
        %v3908 = vmul.f32 %v3662, %v3897
        %v3909 = vmul.f32 %v3663, %v3897
        %v3910 = vmul.f32 %v3664, %v3897
        %v3911 = vmul.f32 %v3665, %v3897
        %v3912 = vmul.f32 %v3666, %v3897
        %v3913 = vmul.f32 %v3667, %v3897
        %v3914 = vmul.f32 %v3668, %v3897
        %v3915 = vmul.f32 %v3669, %v3897
        %v3916 = vmul.f32 %v3670, %v3897
        %v3917 = vmul.f32 %v3671, %v3897
        %v3918 = vmul.f32 %v3672, %v3897
        %v3919 = vmul.f32 %v3673, %v3897
        %v3920 = vmul.f32 %v3674, %v3897
        %v3921 = vmul.f32 %v3675, %v3897
        %v3922 = vmul.f32 %v3676, %v3897
        %v3923 = vmul.f32 %v3677, %v3897
        %v3924 = vmul.f32 %v3678, %v3897
        %v3925 = vmul.f32 %v3679, %v3897
        %v3926 = vmul.f32 %v3680, %v3897
        %v3927 = vmul.f32 %v3681, %v3897
        %v3928 = vmul.f32 %v3682, %v3897
        %v3929 = vmul.f32 %v3683, %v3897
        %v3930 = vadd.f32 %v3862, %v3898
        %v3931 = vadd.f32 %v3863, %v3899
        %v3932 = vadd.f32 %v3864, %v3900
        %v3933 = vadd.f32 %v3865, %v3901
        %v3934 = vadd.f32 %v3866, %v3902
        %v3935 = vadd.f32 %v3867, %v3903
        %v3936 = vadd.f32 %v3868, %v3904
        %v3937 = vadd.f32 %v3869, %v3905
        %v3938 = vadd.f32 %v3870, %v3906
        %v3939 = vadd.f32 %v3871, %v3907
        %v3940 = vadd.f32 %v3872, %v3908
        %v3941 = vadd.f32 %v3873, %v3909
        %v3942 = vadd.f32 %v3874, %v3910
        %v3943 = vadd.f32 %v3875, %v3911
        %v3944 = vadd.f32 %v3876, %v3912
        %v3945 = vadd.f32 %v3877, %v3913
        %v3946 = vadd.f32 %v3878, %v3914
        %v3947 = vadd.f32 %v3879, %v3915
        %v3948 = vadd.f32 %v3880, %v3916
        %v3949 = vadd.f32 %v3881, %v3917
        %v3950 = vadd.f32 %v3882, %v3918
        %v3951 = vadd.f32 %v3883, %v3919
        %v3952 = vadd.f32 %v3884, %v3920
        %v3953 = vadd.f32 %v3885, %v3921
        %v3954 = vadd.f32 %v3886, %v3922
        %v3955 = vadd.f32 %v3887, %v3923
        %v3956 = vadd.f32 %v3888, %v3924
        %v3957 = vadd.f32 %v3889, %v3925
        %v3958 = vadd.f32 %v3890, %v3926
        %v3959 = vadd.f32 %v3891, %v3927
        %v3960 = vadd.f32 %v3892, %v3928
        %v3961 = vadd.f32 %v3893, %v3929
        %v3962 = vlaneseq
        %v3963 = vshrl.u32 %v3962, 7
        %v3964 = vsub.s32 2, %v3963
        %v3965 = vrot.slane %v516, %v3964
        %v3966 = vmul.f32 %v3654, %v3965
        %v3967 = vmul.f32 %v3655, %v3965
        %v3968 = vmul.f32 %v3656, %v3965
        %v3969 = vmul.f32 %v3657, %v3965
        %v3970 = vmul.f32 %v3658, %v3965
        %v3971 = vmul.f32 %v3659, %v3965
        %v3972 = vmul.f32 %v3660, %v3965
        %v3973 = vmul.f32 %v3661, %v3965
        %v3974 = vmul.f32 %v3662, %v3965
        %v3975 = vmul.f32 %v3663, %v3965
        %v3976 = vmul.f32 %v3664, %v3965
        %v3977 = vmul.f32 %v3665, %v3965
        %v3978 = vmul.f32 %v3666, %v3965
        %v3979 = vmul.f32 %v3667, %v3965
        %v3980 = vmul.f32 %v3668, %v3965
        %v3981 = vmul.f32 %v3669, %v3965
        %v3982 = vmul.f32 %v3670, %v3965
        %v3983 = vmul.f32 %v3671, %v3965
        %v3984 = vmul.f32 %v3672, %v3965
        %v3985 = vmul.f32 %v3673, %v3965
        %v3986 = vmul.f32 %v3674, %v3965
        %v3987 = vmul.f32 %v3675, %v3965
        %v3988 = vmul.f32 %v3676, %v3965
        %v3989 = vmul.f32 %v3677, %v3965
        %v3990 = vmul.f32 %v3678, %v3965
        %v3991 = vmul.f32 %v3679, %v3965
        %v3992 = vmul.f32 %v3680, %v3965
        %v3993 = vmul.f32 %v3681, %v3965
        %v3994 = vmul.f32 %v3682, %v3965
        %v3995 = vmul.f32 %v3683, %v3965
        %v3996 = vmul.f32 %v3684, %v3965
        %v3997 = vmul.f32 %v3685, %v3965
        %v3998 = vadd.f32 %v3930, %v3966
        %v3999 = vadd.f32 %v3931, %v3967
        %v4000 = vadd.f32 %v3932, %v3968
        %v4001 = vadd.f32 %v3933, %v3969
        %v4002 = vadd.f32 %v3934, %v3970
        %v4003 = vadd.f32 %v3935, %v3971
        %v4004 = vadd.f32 %v3936, %v3972
        %v4005 = vadd.f32 %v3937, %v3973
        %v4006 = vadd.f32 %v3938, %v3974
        %v4007 = vadd.f32 %v3939, %v3975
        %v4008 = vadd.f32 %v3940, %v3976
        %v4009 = vadd.f32 %v3941, %v3977
        %v4010 = vadd.f32 %v3942, %v3978
        %v4011 = vadd.f32 %v3943, %v3979
        %v4012 = vadd.f32 %v3944, %v3980
        %v4013 = vadd.f32 %v3945, %v3981
        %v4014 = vadd.f32 %v3946, %v3982
        %v4015 = vadd.f32 %v3947, %v3983
        %v4016 = vadd.f32 %v3948, %v3984
        %v4017 = vadd.f32 %v3949, %v3985
        %v4018 = vadd.f32 %v3950, %v3986
        %v4019 = vadd.f32 %v3951, %v3987
        %v4020 = vadd.f32 %v3952, %v3988
        %v4021 = vadd.f32 %v3953, %v3989
        %v4022 = vadd.f32 %v3954, %v3990
        %v4023 = vadd.f32 %v3955, %v3991
        %v4024 = vadd.f32 %v3956, %v3992
        %v4025 = vadd.f32 %v3957, %v3993
        %v4026 = vadd.f32 %v3958, %v3994
        %v4027 = vadd.f32 %v3959, %v3995
        %v4028 = vadd.f32 %v3960, %v3996
        %v4029 = vadd.f32 %v3961, %v3997
        %v4030 = vlaneseq
        %v4031 = vshrl.u32 %v4030, 7
        %v4032 = vsub.s32 1, %v4031
        %v4033 = vrot.slane %v517, %v4032
        %v4034 = vmul.f32 %v3656, %v4033
        %v4035 = vmul.f32 %v3657, %v4033
        %v4036 = vmul.f32 %v3658, %v4033
        %v4037 = vmul.f32 %v3659, %v4033
        %v4038 = vmul.f32 %v3660, %v4033
        %v4039 = vmul.f32 %v3661, %v4033
        %v4040 = vmul.f32 %v3662, %v4033
        %v4041 = vmul.f32 %v3663, %v4033
        %v4042 = vmul.f32 %v3664, %v4033
        %v4043 = vmul.f32 %v3665, %v4033
        %v4044 = vmul.f32 %v3666, %v4033
        %v4045 = vmul.f32 %v3667, %v4033
        %v4046 = vmul.f32 %v3668, %v4033
        %v4047 = vmul.f32 %v3669, %v4033
        %v4048 = vmul.f32 %v3670, %v4033
        %v4049 = vmul.f32 %v3671, %v4033
        %v4050 = vmul.f32 %v3672, %v4033
        %v4051 = vmul.f32 %v3673, %v4033
        %v4052 = vmul.f32 %v3674, %v4033
        %v4053 = vmul.f32 %v3675, %v4033
        %v4054 = vmul.f32 %v3676, %v4033
        %v4055 = vmul.f32 %v3677, %v4033
        %v4056 = vmul.f32 %v3678, %v4033
        %v4057 = vmul.f32 %v3679, %v4033
        %v4058 = vmul.f32 %v3680, %v4033
        %v4059 = vmul.f32 %v3681, %v4033
        %v4060 = vmul.f32 %v3682, %v4033
        %v4061 = vmul.f32 %v3683, %v4033
        %v4062 = vmul.f32 %v3684, %v4033
        %v4063 = vmul.f32 %v3685, %v4033
        %v4064 = vmul.f32 %v3686, %v4033
        %v4065 = vmul.f32 %v3687, %v4033
        %v4066 = vadd.f32 %v3998, %v4034
        %v4067 = vadd.f32 %v3999, %v4035
        %v4068 = vadd.f32 %v4000, %v4036
        %v4069 = vadd.f32 %v4001, %v4037
        %v4070 = vadd.f32 %v4002, %v4038
        %v4071 = vadd.f32 %v4003, %v4039
        %v4072 = vadd.f32 %v4004, %v4040
        %v4073 = vadd.f32 %v4005, %v4041
        %v4074 = vadd.f32 %v4006, %v4042
        %v4075 = vadd.f32 %v4007, %v4043
        %v4076 = vadd.f32 %v4008, %v4044
        %v4077 = vadd.f32 %v4009, %v4045
        %v4078 = vadd.f32 %v4010, %v4046
        %v4079 = vadd.f32 %v4011, %v4047
        %v4080 = vadd.f32 %v4012, %v4048
        %v4081 = vadd.f32 %v4013, %v4049
        %v4082 = vadd.f32 %v4014, %v4050
        %v4083 = vadd.f32 %v4015, %v4051
        %v4084 = vadd.f32 %v4016, %v4052
        %v4085 = vadd.f32 %v4017, %v4053
        %v4086 = vadd.f32 %v4018, %v4054
        %v4087 = vadd.f32 %v4019, %v4055
        %v4088 = vadd.f32 %v4020, %v4056
        %v4089 = vadd.f32 %v4021, %v4057
        %v4090 = vadd.f32 %v4022, %v4058
        %v4091 = vadd.f32 %v4023, %v4059
        %v4092 = vadd.f32 %v4024, %v4060
        %v4093 = vadd.f32 %v4025, %v4061
        %v4094 = vadd.f32 %v4026, %v4062
        %v4095 = vadd.f32 %v4027, %v4063
        %v4096 = vadd.f32 %v4028, %v4064
        %v4097 = vadd.f32 %v4029, %v4065
        %v4098 = vlaneseq
        %v4099 = vshrl.u32 %v4098, 7
        %v4100 = vsub.s32 0, %v4099
        %v4101 = vrot.slane %v518, %v4100
        %v4102 = vmul.f32 %v3658, %v4101
        %v4103 = vmul.f32 %v3659, %v4101
        %v4104 = vmul.f32 %v3660, %v4101
        %v4105 = vmul.f32 %v3661, %v4101
        %v4106 = vmul.f32 %v3662, %v4101
        %v4107 = vmul.f32 %v3663, %v4101
        %v4108 = vmul.f32 %v3664, %v4101
        %v4109 = vmul.f32 %v3665, %v4101
        %v4110 = vmul.f32 %v3666, %v4101
        %v4111 = vmul.f32 %v3667, %v4101
        %v4112 = vmul.f32 %v3668, %v4101
        %v4113 = vmul.f32 %v3669, %v4101
        %v4114 = vmul.f32 %v3670, %v4101
        %v4115 = vmul.f32 %v3671, %v4101
        %v4116 = vmul.f32 %v3672, %v4101
        %v4117 = vmul.f32 %v3673, %v4101
        %v4118 = vmul.f32 %v3674, %v4101
        %v4119 = vmul.f32 %v3675, %v4101
        %v4120 = vmul.f32 %v3676, %v4101
        %v4121 = vmul.f32 %v3677, %v4101
        %v4122 = vmul.f32 %v3678, %v4101
        %v4123 = vmul.f32 %v3679, %v4101
        %v4124 = vmul.f32 %v3680, %v4101
        %v4125 = vmul.f32 %v3681, %v4101
        %v4126 = vmul.f32 %v3682, %v4101
        %v4127 = vmul.f32 %v3683, %v4101
        %v4128 = vmul.f32 %v3684, %v4101
        %v4129 = vmul.f32 %v3685, %v4101
        %v4130 = vmul.f32 %v3686, %v4101
        %v4131 = vmul.f32 %v3687, %v4101
        %v4132 = vmul.f32 %v3688, %v4101
        %v4133 = vmul.f32 %v3689, %v4101
        %v4134 = vadd.f32 %v4066, %v4102
        %v4135 = vadd.f32 %v4067, %v4103
        %v4136 = vadd.f32 %v4068, %v4104
        %v4137 = vadd.f32 %v4069, %v4105
        %v4138 = vadd.f32 %v4070, %v4106
        %v4139 = vadd.f32 %v4071, %v4107
        %v4140 = vadd.f32 %v4072, %v4108
        %v4141 = vadd.f32 %v4073, %v4109
        %v4142 = vadd.f32 %v4074, %v4110
        %v4143 = vadd.f32 %v4075, %v4111
        %v4144 = vadd.f32 %v4076, %v4112
        %v4145 = vadd.f32 %v4077, %v4113
        %v4146 = vadd.f32 %v4078, %v4114
        %v4147 = vadd.f32 %v4079, %v4115
        %v4148 = vadd.f32 %v4080, %v4116
        %v4149 = vadd.f32 %v4081, %v4117
        %v4150 = vadd.f32 %v4082, %v4118
        %v4151 = vadd.f32 %v4083, %v4119
        %v4152 = vadd.f32 %v4084, %v4120
        %v4153 = vadd.f32 %v4085, %v4121
        %v4154 = vadd.f32 %v4086, %v4122
        %v4155 = vadd.f32 %v4087, %v4123
        %v4156 = vadd.f32 %v4088, %v4124
        %v4157 = vadd.f32 %v4089, %v4125
        %v4158 = vadd.f32 %v4090, %v4126
        %v4159 = vadd.f32 %v4091, %v4127
        %v4160 = vadd.f32 %v4092, %v4128
        %v4161 = vadd.f32 %v4093, %v4129
        %v4162 = vadd.f32 %v4094, %v4130
        %v4163 = vadd.f32 %v4095, %v4131
        %v4164 = vadd.f32 %v4096, %v4132
        %v4165 = vadd.f32 %v4097, %v4133
        %v4166 = vsel %vm379, %v4134, 0.0
        %4167 = vadd.xlane.f32.xlu0 %v4166
        %v4168 = vpop.xlane.xlu0 %4167
        %v4169 = vsel %vm379, %v4135, 0.0
        %4170 = vadd.xlane.f32.xlu0 %v4169
        %v4171 = vpop.xlane.xlu0 %4170
        %v4172 = vsel %vm379, %v4136, 0.0
        %4173 = vadd.xlane.f32.xlu0 %v4172
        %v4174 = vpop.xlane.xlu0 %4173
        %v4175 = vsel %vm379, %v4137, 0.0
        %4176 = vadd.xlane.f32.xlu0 %v4175
        %v4177 = vpop.xlane.xlu0 %4176
        %v4178 = vsel %vm379, %v4138, 0.0
        %4179 = vadd.xlane.f32.xlu0 %v4178
        %v4180 = vpop.xlane.xlu0 %4179
        %v4181 = vsel %vm379, %v4139, 0.0
        %4182 = vadd.xlane.f32.xlu0 %v4181
        %v4183 = vpop.xlane.xlu0 %4182
        %v4184 = vsel %vm379, %v4140, 0.0
        %4185 = vadd.xlane.f32.xlu0 %v4184
        %v4186 = vpop.xlane.xlu0 %4185
        %v4187 = vsel %vm379, %v4141, 0.0
        %4188 = vadd.xlane.f32.xlu0 %v4187
        %v4189 = vpop.xlane.xlu0 %4188
        %v4190 = vsel %vm379, %v4142, 0.0
        %4191 = vadd.xlane.f32.xlu0 %v4190
        %v4192 = vpop.xlane.xlu0 %4191
        %v4193 = vsel %vm379, %v4143, 0.0
        %4194 = vadd.xlane.f32.xlu0 %v4193
        %v4195 = vpop.xlane.xlu0 %4194
        %v4196 = vsel %vm379, %v4144, 0.0
        %4197 = vadd.xlane.f32.xlu0 %v4196
        %v4198 = vpop.xlane.xlu0 %4197
        %v4199 = vsel %vm379, %v4145, 0.0
        %4200 = vadd.xlane.f32.xlu0 %v4199
        %v4201 = vpop.xlane.xlu0 %4200
        %v4202 = vsel %vm379, %v4146, 0.0
        %4203 = vadd.xlane.f32.xlu0 %v4202
        %v4204 = vpop.xlane.xlu0 %4203
        %v4205 = vsel %vm379, %v4147, 0.0
        %4206 = vadd.xlane.f32.xlu0 %v4205
        %v4207 = vpop.xlane.xlu0 %4206
        %v4208 = vsel %vm379, %v4148, 0.0
        %4209 = vadd.xlane.f32.xlu0 %v4208
        %v4210 = vpop.xlane.xlu0 %4209
        %v4211 = vsel %vm379, %v4149, 0.0
        %4212 = vadd.xlane.f32.xlu0 %v4211
        %v4213 = vpop.xlane.xlu0 %4212
        %v4214 = vsel %vm379, %v4150, 0.0
        %4215 = vadd.xlane.f32.xlu0 %v4214
        %v4216 = vpop.xlane.xlu0 %4215
        %v4217 = vsel %vm379, %v4151, 0.0
        %4218 = vadd.xlane.f32.xlu0 %v4217
        %v4219 = vpop.xlane.xlu0 %4218
        %v4220 = vsel %vm379, %v4152, 0.0
        %4221 = vadd.xlane.f32.xlu0 %v4220
        %v4222 = vpop.xlane.xlu0 %4221
        %v4223 = vsel %vm379, %v4153, 0.0
        %4224 = vadd.xlane.f32.xlu0 %v4223
        %v4225 = vpop.xlane.xlu0 %4224
        %v4226 = vsel %vm379, %v4154, 0.0
        %4227 = vadd.xlane.f32.xlu0 %v4226
        %v4228 = vpop.xlane.xlu0 %4227
        %v4229 = vsel %vm379, %v4155, 0.0
        %4230 = vadd.xlane.f32.xlu0 %v4229
        %v4231 = vpop.xlane.xlu0 %4230
        %v4232 = vsel %vm379, %v4156, 0.0
        %4233 = vadd.xlane.f32.xlu0 %v4232
        %v4234 = vpop.xlane.xlu0 %4233
        %v4235 = vsel %vm379, %v4157, 0.0
        %4236 = vadd.xlane.f32.xlu0 %v4235
        %v4237 = vpop.xlane.xlu0 %4236
        %v4238 = vsel %vm379, %v4158, 0.0
        %4239 = vadd.xlane.f32.xlu0 %v4238
        %v4240 = vpop.xlane.xlu0 %4239
        %v4241 = vsel %vm379, %v4159, 0.0
        %4242 = vadd.xlane.f32.xlu0 %v4241
        %v4243 = vpop.xlane.xlu0 %4242
        %v4244 = vsel %vm379, %v4160, 0.0
        %4245 = vadd.xlane.f32.xlu0 %v4244
        %v4246 = vpop.xlane.xlu0 %4245
        %v4247 = vsel %vm379, %v4161, 0.0
        %4248 = vadd.xlane.f32.xlu0 %v4247
        %v4249 = vpop.xlane.xlu0 %4248
        %v4250 = vsel %vm379, %v4162, 0.0
        %4251 = vadd.xlane.f32.xlu0 %v4250
        %v4252 = vpop.xlane.xlu0 %4251
        %v4253 = vsel %vm379, %v4163, 0.0
        %4254 = vadd.xlane.f32.xlu0 %v4253
        %v4255 = vpop.xlane.xlu0 %4254
        %v4256 = vsel %vm379, %v4164, 0.0
        %4257 = vadd.xlane.f32.xlu0 %v4256
        %v4258 = vpop.xlane.xlu0 %4257
        %v4259 = vsel %vm379, %v4165, 0.0
        %4260 = vadd.xlane.f32.xlu0 %v4259
        %v4261 = vpop.xlane.xlu0 %4260
        %v4262 = vmul.f32 %v4134, %v4134
        %v4263 = vmul.f32 %v4135, %v4135
        %v4264 = vmul.f32 %v4136, %v4136
        %v4265 = vmul.f32 %v4137, %v4137
        %v4266 = vmul.f32 %v4138, %v4138
        %v4267 = vmul.f32 %v4139, %v4139
        %v4268 = vmul.f32 %v4140, %v4140
        %v4269 = vmul.f32 %v4141, %v4141
        %v4270 = vmul.f32 %v4142, %v4142
        %v4271 = vmul.f32 %v4143, %v4143
        %v4272 = vmul.f32 %v4144, %v4144
        %v4273 = vmul.f32 %v4145, %v4145
        %v4274 = vmul.f32 %v4146, %v4146
        %v4275 = vmul.f32 %v4147, %v4147
        %v4276 = vmul.f32 %v4148, %v4148
        %v4277 = vmul.f32 %v4149, %v4149
        %v4278 = vmul.f32 %v4150, %v4150
        %v4279 = vmul.f32 %v4151, %v4151
        %v4280 = vmul.f32 %v4152, %v4152
        %v4281 = vmul.f32 %v4153, %v4153
        %v4282 = vmul.f32 %v4154, %v4154
        %v4283 = vmul.f32 %v4155, %v4155
        %v4284 = vmul.f32 %v4156, %v4156
        %v4285 = vmul.f32 %v4157, %v4157
        %v4286 = vmul.f32 %v4158, %v4158
        %v4287 = vmul.f32 %v4159, %v4159
        %v4288 = vmul.f32 %v4160, %v4160
        %v4289 = vmul.f32 %v4161, %v4161
        %v4290 = vmul.f32 %v4162, %v4162
        %v4291 = vmul.f32 %v4163, %v4163
        %v4292 = vmul.f32 %v4164, %v4164
        %v4293 = vmul.f32 %v4165, %v4165
        %v4294 = vsel %vm379, %v4262, 0.0
        %4295 = vadd.xlane.f32.xlu0 %v4294
        %v4296 = vpop.xlane.xlu0 %4295
        %v4297 = vsel %vm379, %v4263, 0.0
        %4298 = vadd.xlane.f32.xlu0 %v4297
        %v4299 = vpop.xlane.xlu0 %4298
        %v4300 = vsel %vm379, %v4264, 0.0
        %4301 = vadd.xlane.f32.xlu0 %v4300
        %v4302 = vpop.xlane.xlu0 %4301
        %v4303 = vsel %vm379, %v4265, 0.0
        %4304 = vadd.xlane.f32.xlu0 %v4303
        %v4305 = vpop.xlane.xlu0 %4304
        %v4306 = vsel %vm379, %v4266, 0.0
        %4307 = vadd.xlane.f32.xlu0 %v4306
        %v4308 = vpop.xlane.xlu0 %4307
        %v4309 = vsel %vm379, %v4267, 0.0
        %4310 = vadd.xlane.f32.xlu0 %v4309
        %v4311 = vpop.xlane.xlu0 %4310
        %v4312 = vsel %vm379, %v4268, 0.0
        %4313 = vadd.xlane.f32.xlu0 %v4312
        %v4314 = vpop.xlane.xlu0 %4313
        %v4315 = vsel %vm379, %v4269, 0.0
        %4316 = vadd.xlane.f32.xlu0 %v4315
        %v4317 = vpop.xlane.xlu0 %4316
        %v4318 = vsel %vm379, %v4270, 0.0
        %4319 = vadd.xlane.f32.xlu0 %v4318
        %v4320 = vpop.xlane.xlu0 %4319
        %v4321 = vsel %vm379, %v4271, 0.0
        %4322 = vadd.xlane.f32.xlu0 %v4321
        %v4323 = vpop.xlane.xlu0 %4322
        %v4324 = vsel %vm379, %v4272, 0.0
        %4325 = vadd.xlane.f32.xlu0 %v4324
        %v4326 = vpop.xlane.xlu0 %4325
        %v4327 = vsel %vm379, %v4273, 0.0
        %4328 = vadd.xlane.f32.xlu0 %v4327
        %v4329 = vpop.xlane.xlu0 %4328
        %v4330 = vsel %vm379, %v4274, 0.0
        %4331 = vadd.xlane.f32.xlu0 %v4330
        %v4332 = vpop.xlane.xlu0 %4331
        %v4333 = vsel %vm379, %v4275, 0.0
        %4334 = vadd.xlane.f32.xlu0 %v4333
        %v4335 = vpop.xlane.xlu0 %4334
        %v4336 = vsel %vm379, %v4276, 0.0
        %4337 = vadd.xlane.f32.xlu0 %v4336
        %v4338 = vpop.xlane.xlu0 %4337
        %v4339 = vsel %vm379, %v4277, 0.0
        %4340 = vadd.xlane.f32.xlu0 %v4339
        %v4341 = vpop.xlane.xlu0 %4340
        %v4342 = vsel %vm379, %v4278, 0.0
        %4343 = vadd.xlane.f32.xlu0 %v4342
        %v4344 = vpop.xlane.xlu0 %4343
        %v4345 = vsel %vm379, %v4279, 0.0
        %4346 = vadd.xlane.f32.xlu0 %v4345
        %v4347 = vpop.xlane.xlu0 %4346
        %v4348 = vsel %vm379, %v4280, 0.0
        %4349 = vadd.xlane.f32.xlu0 %v4348
        %v4350 = vpop.xlane.xlu0 %4349
        %v4351 = vsel %vm379, %v4281, 0.0
        %4352 = vadd.xlane.f32.xlu0 %v4351
        %v4353 = vpop.xlane.xlu0 %4352
        %v4354 = vsel %vm379, %v4282, 0.0
        %4355 = vadd.xlane.f32.xlu0 %v4354
        %v4356 = vpop.xlane.xlu0 %4355
        %v4357 = vsel %vm379, %v4283, 0.0
        %4358 = vadd.xlane.f32.xlu0 %v4357
        %v4359 = vpop.xlane.xlu0 %4358
        %v4360 = vsel %vm379, %v4284, 0.0
        %4361 = vadd.xlane.f32.xlu0 %v4360
        %v4362 = vpop.xlane.xlu0 %4361
        %v4363 = vsel %vm379, %v4285, 0.0
        %4364 = vadd.xlane.f32.xlu0 %v4363
        %v4365 = vpop.xlane.xlu0 %4364
        %v4366 = vsel %vm379, %v4286, 0.0
        %4367 = vadd.xlane.f32.xlu0 %v4366
        %v4368 = vpop.xlane.xlu0 %4367
        %v4369 = vsel %vm379, %v4287, 0.0
        %4370 = vadd.xlane.f32.xlu0 %v4369
        %v4371 = vpop.xlane.xlu0 %4370
        %v4372 = vsel %vm379, %v4288, 0.0
        %4373 = vadd.xlane.f32.xlu0 %v4372
        %v4374 = vpop.xlane.xlu0 %4373
        %v4375 = vsel %vm379, %v4289, 0.0
        %4376 = vadd.xlane.f32.xlu0 %v4375
        %v4377 = vpop.xlane.xlu0 %4376
        %v4378 = vsel %vm379, %v4290, 0.0
        %4379 = vadd.xlane.f32.xlu0 %v4378
        %v4380 = vpop.xlane.xlu0 %4379
        %v4381 = vsel %vm379, %v4291, 0.0
        %4382 = vadd.xlane.f32.xlu0 %v4381
        %v4383 = vpop.xlane.xlu0 %4382
        %v4384 = vsel %vm379, %v4292, 0.0
        %4385 = vadd.xlane.f32.xlu0 %v4384
        %v4386 = vpop.xlane.xlu0 %4385
        %v4387 = vsel %vm379, %v4293, 0.0
        %4388 = vadd.xlane.f32.xlu0 %v4387
        %v4389 = vpop.xlane.xlu0 %4388
        %v4390 = vmul.f32 %v4168, 0.03125
        %v4391 = vmul.f32 %v4171, 0.03125
        %v4392 = vmul.f32 %v4174, 0.03125
        %v4393 = vmul.f32 %v4177, 0.03125
        %v4394 = vmul.f32 %v4180, 0.03125
        %v4395 = vmul.f32 %v4183, 0.03125
        %v4396 = vmul.f32 %v4186, 0.03125
        %v4397 = vmul.f32 %v4189, 0.03125
        %v4398 = vmul.f32 %v4192, 0.03125
        %v4399 = vmul.f32 %v4195, 0.03125
        %v4400 = vmul.f32 %v4198, 0.03125
        %v4401 = vmul.f32 %v4201, 0.03125
        %v4402 = vmul.f32 %v4204, 0.03125
        %v4403 = vmul.f32 %v4207, 0.03125
        %v4404 = vmul.f32 %v4210, 0.03125
        %v4405 = vmul.f32 %v4213, 0.03125
        %v4406 = vmul.f32 %v4216, 0.03125
        %v4407 = vmul.f32 %v4219, 0.03125
        %v4408 = vmul.f32 %v4222, 0.03125
        %v4409 = vmul.f32 %v4225, 0.03125
        %v4410 = vmul.f32 %v4228, 0.03125
        %v4411 = vmul.f32 %v4231, 0.03125
        %v4412 = vmul.f32 %v4234, 0.03125
        %v4413 = vmul.f32 %v4237, 0.03125
        %v4414 = vmul.f32 %v4240, 0.03125
        %v4415 = vmul.f32 %v4243, 0.03125
        %v4416 = vmul.f32 %v4246, 0.03125
        %v4417 = vmul.f32 %v4249, 0.03125
        %v4418 = vmul.f32 %v4252, 0.03125
        %v4419 = vmul.f32 %v4255, 0.03125
        %v4420 = vmul.f32 %v4258, 0.03125
        %v4421 = vmul.f32 %v4261, 0.03125
        %v4422 = vmul.f32 %v4296, 0.03125
        %v4423 = vmul.f32 %v4299, 0.03125
        %v4424 = vmul.f32 %v4302, 0.03125
        %v4425 = vmul.f32 %v4305, 0.03125
        %v4426 = vmul.f32 %v4308, 0.03125
        %v4427 = vmul.f32 %v4311, 0.03125
        %v4428 = vmul.f32 %v4314, 0.03125
        %v4429 = vmul.f32 %v4317, 0.03125
        %v4430 = vmul.f32 %v4320, 0.03125
        %v4431 = vmul.f32 %v4323, 0.03125
        %v4432 = vmul.f32 %v4326, 0.03125
        %v4433 = vmul.f32 %v4329, 0.03125
        %v4434 = vmul.f32 %v4332, 0.03125
        %v4435 = vmul.f32 %v4335, 0.03125
        %v4436 = vmul.f32 %v4338, 0.03125
        %v4437 = vmul.f32 %v4341, 0.03125
        %v4438 = vmul.f32 %v4344, 0.03125
        %v4439 = vmul.f32 %v4347, 0.03125
        %v4440 = vmul.f32 %v4350, 0.03125
        %v4441 = vmul.f32 %v4353, 0.03125
        %v4442 = vmul.f32 %v4356, 0.03125
        %v4443 = vmul.f32 %v4359, 0.03125
        %v4444 = vmul.f32 %v4362, 0.03125
        %v4445 = vmul.f32 %v4365, 0.03125
        %v4446 = vmul.f32 %v4368, 0.03125
        %v4447 = vmul.f32 %v4371, 0.03125
        %v4448 = vmul.f32 %v4374, 0.03125
        %v4449 = vmul.f32 %v4377, 0.03125
        %v4450 = vmul.f32 %v4380, 0.03125
        %v4451 = vmul.f32 %v4383, 0.03125
        %v4452 = vmul.f32 %v4386, 0.03125
        %v4453 = vmul.f32 %v4389, 0.03125
        %v4454 = vmul.f32 %v4390, %v4390
        %v4455 = vmul.f32 %v4391, %v4391
        %v4456 = vmul.f32 %v4392, %v4392
        %v4457 = vmul.f32 %v4393, %v4393
        %v4458 = vmul.f32 %v4394, %v4394
        %v4459 = vmul.f32 %v4395, %v4395
        %v4460 = vmul.f32 %v4396, %v4396
        %v4461 = vmul.f32 %v4397, %v4397
        %v4462 = vmul.f32 %v4398, %v4398
        %v4463 = vmul.f32 %v4399, %v4399
        %v4464 = vmul.f32 %v4400, %v4400
        %v4465 = vmul.f32 %v4401, %v4401
        %v4466 = vmul.f32 %v4402, %v4402
        %v4467 = vmul.f32 %v4403, %v4403
        %v4468 = vmul.f32 %v4404, %v4404
        %v4469 = vmul.f32 %v4405, %v4405
        %v4470 = vmul.f32 %v4406, %v4406
        %v4471 = vmul.f32 %v4407, %v4407
        %v4472 = vmul.f32 %v4408, %v4408
        %v4473 = vmul.f32 %v4409, %v4409
        %v4474 = vmul.f32 %v4410, %v4410
        %v4475 = vmul.f32 %v4411, %v4411
        %v4476 = vmul.f32 %v4412, %v4412
        %v4477 = vmul.f32 %v4413, %v4413
        %v4478 = vmul.f32 %v4414, %v4414
        %v4479 = vmul.f32 %v4415, %v4415
        %v4480 = vmul.f32 %v4416, %v4416
        %v4481 = vmul.f32 %v4417, %v4417
        %v4482 = vmul.f32 %v4418, %v4418
        %v4483 = vmul.f32 %v4419, %v4419
        %v4484 = vmul.f32 %v4420, %v4420
        %v4485 = vmul.f32 %v4421, %v4421
        %v4486 = vsub.f32 %v4422, %v4454
        %v4487 = vsub.f32 %v4423, %v4455
        %v4488 = vsub.f32 %v4424, %v4456
        %v4489 = vsub.f32 %v4425, %v4457
        %v4490 = vsub.f32 %v4426, %v4458
        %v4491 = vsub.f32 %v4427, %v4459
        %v4492 = vsub.f32 %v4428, %v4460
        %v4493 = vsub.f32 %v4429, %v4461
        %v4494 = vsub.f32 %v4430, %v4462
        %v4495 = vsub.f32 %v4431, %v4463
        %v4496 = vsub.f32 %v4432, %v4464
        %v4497 = vsub.f32 %v4433, %v4465
        %v4498 = vsub.f32 %v4434, %v4466
        %v4499 = vsub.f32 %v4435, %v4467
        %v4500 = vsub.f32 %v4436, %v4468
        %v4501 = vsub.f32 %v4437, %v4469
        %v4502 = vsub.f32 %v4438, %v4470
        %v4503 = vsub.f32 %v4439, %v4471
        %v4504 = vsub.f32 %v4440, %v4472
        %v4505 = vsub.f32 %v4441, %v4473
        %v4506 = vsub.f32 %v4442, %v4474
        %v4507 = vsub.f32 %v4443, %v4475
        %v4508 = vsub.f32 %v4444, %v4476
        %v4509 = vsub.f32 %v4445, %v4477
        %v4510 = vsub.f32 %v4446, %v4478
        %v4511 = vsub.f32 %v4447, %v4479
        %v4512 = vsub.f32 %v4448, %v4480
        %v4513 = vsub.f32 %v4449, %v4481
        %v4514 = vsub.f32 %v4450, %v4482
        %v4515 = vsub.f32 %v4451, %v4483
        %v4516 = vsub.f32 %v4452, %v4484
        %v4517 = vsub.f32 %v4453, %v4485
        %v4518 = vmax.f32 %v4486, 0.0
        %v4519 = vmax.f32 %v4487, 0.0
        %v4520 = vmax.f32 %v4488, 0.0
        %v4521 = vmax.f32 %v4489, 0.0
        %v4522 = vmax.f32 %v4490, 0.0
        %v4523 = vmax.f32 %v4491, 0.0
        %v4524 = vmax.f32 %v4492, 0.0
        %v4525 = vmax.f32 %v4493, 0.0
        %v4526 = vmax.f32 %v4494, 0.0
        %v4527 = vmax.f32 %v4495, 0.0
        %v4528 = vmax.f32 %v4496, 0.0
        %v4529 = vmax.f32 %v4497, 0.0
        %v4530 = vmax.f32 %v4498, 0.0
        %v4531 = vmax.f32 %v4499, 0.0
        %v4532 = vmax.f32 %v4500, 0.0
        %v4533 = vmax.f32 %v4501, 0.0
        %v4534 = vmax.f32 %v4502, 0.0
        %v4535 = vmax.f32 %v4503, 0.0
        %v4536 = vmax.f32 %v4504, 0.0
        %v4537 = vmax.f32 %v4505, 0.0
        %v4538 = vmax.f32 %v4506, 0.0
        %v4539 = vmax.f32 %v4507, 0.0
        %v4540 = vmax.f32 %v4508, 0.0
        %v4541 = vmax.f32 %v4509, 0.0
        %v4542 = vmax.f32 %v4510, 0.0
        %v4543 = vmax.f32 %v4511, 0.0
        %v4544 = vmax.f32 %v4512, 0.0
        %v4545 = vmax.f32 %v4513, 0.0
        %v4546 = vmax.f32 %v4514, 0.0
        %v4547 = vmax.f32 %v4515, 0.0
        %v4548 = vmax.f32 %v4516, 0.0
        %v4549 = vmax.f32 %v4517, 0.0
        %v4550 = vsub.f32 %v4134, %v4390
        %v4551 = vsub.f32 %v4135, %v4391
        %v4552 = vsub.f32 %v4136, %v4392
        %v4553 = vsub.f32 %v4137, %v4393
        %v4554 = vsub.f32 %v4138, %v4394
        %v4555 = vsub.f32 %v4139, %v4395
        %v4556 = vsub.f32 %v4140, %v4396
        %v4557 = vsub.f32 %v4141, %v4397
        %v4558 = vsub.f32 %v4142, %v4398
        %v4559 = vsub.f32 %v4143, %v4399
        %v4560 = vsub.f32 %v4144, %v4400
        %v4561 = vsub.f32 %v4145, %v4401
        %v4562 = vsub.f32 %v4146, %v4402
        %v4563 = vsub.f32 %v4147, %v4403
        %v4564 = vsub.f32 %v4148, %v4404
        %v4565 = vsub.f32 %v4149, %v4405
        %v4566 = vsub.f32 %v4150, %v4406
        %v4567 = vsub.f32 %v4151, %v4407
        %v4568 = vsub.f32 %v4152, %v4408
        %v4569 = vsub.f32 %v4153, %v4409
        %v4570 = vsub.f32 %v4154, %v4410
        %v4571 = vsub.f32 %v4155, %v4411
        %v4572 = vsub.f32 %v4156, %v4412
        %v4573 = vsub.f32 %v4157, %v4413
        %v4574 = vsub.f32 %v4158, %v4414
        %v4575 = vsub.f32 %v4159, %v4415
        %v4576 = vsub.f32 %v4160, %v4416
        %v4577 = vsub.f32 %v4161, %v4417
        %v4578 = vsub.f32 %v4162, %v4418
        %v4579 = vsub.f32 %v4163, %v4419
        %v4580 = vsub.f32 %v4164, %v4420
        %v4581 = vsub.f32 %v4165, %v4421
        %v4582 = vadd.f32 %v4518, 1e-06
        %v4583 = vadd.f32 %v4519, 1e-06
        %v4584 = vadd.f32 %v4520, 1e-06
        %v4585 = vadd.f32 %v4521, 1e-06
        %v4586 = vadd.f32 %v4522, 1e-06
        %v4587 = vadd.f32 %v4523, 1e-06
        %v4588 = vadd.f32 %v4524, 1e-06
        %v4589 = vadd.f32 %v4525, 1e-06
        %v4590 = vadd.f32 %v4526, 1e-06
        %v4591 = vadd.f32 %v4527, 1e-06
        %v4592 = vadd.f32 %v4528, 1e-06
        %v4593 = vadd.f32 %v4529, 1e-06
        %v4594 = vadd.f32 %v4530, 1e-06
        %v4595 = vadd.f32 %v4531, 1e-06
        %v4596 = vadd.f32 %v4532, 1e-06
        %v4597 = vadd.f32 %v4533, 1e-06
        %v4598 = vadd.f32 %v4534, 1e-06
        %v4599 = vadd.f32 %v4535, 1e-06
        %v4600 = vadd.f32 %v4536, 1e-06
        %v4601 = vadd.f32 %v4537, 1e-06
        %v4602 = vadd.f32 %v4538, 1e-06
        %v4603 = vadd.f32 %v4539, 1e-06
        %v4604 = vadd.f32 %v4540, 1e-06
        %v4605 = vadd.f32 %v4541, 1e-06
        %v4606 = vadd.f32 %v4542, 1e-06
        %v4607 = vadd.f32 %v4543, 1e-06
        %v4608 = vadd.f32 %v4544, 1e-06
        %v4609 = vadd.f32 %v4545, 1e-06
        %v4610 = vadd.f32 %v4546, 1e-06
        %v4611 = vadd.f32 %v4547, 1e-06
        %v4612 = vadd.f32 %v4548, 1e-06
        %v4613 = vadd.f32 %v4549, 1e-06
        %v4614 = vrsqrt.pop %v4582
        %v4615 = vrsqrt.pop %v4583
        %v4616 = vrsqrt.pop %v4584
        %v4617 = vrsqrt.pop %v4585
        %v4618 = vrsqrt.pop %v4586
        %v4619 = vrsqrt.pop %v4587
        %v4620 = vrsqrt.pop %v4588
        %v4621 = vrsqrt.pop %v4589
        %v4622 = vrsqrt.pop %v4590
        %v4623 = vrsqrt.pop %v4591
        %v4624 = vrsqrt.pop %v4592
        %v4625 = vrsqrt.pop %v4593
        %v4626 = vrsqrt.pop %v4594
        %v4627 = vrsqrt.pop %v4595
        %v4628 = vrsqrt.pop %v4596
        %v4629 = vrsqrt.pop %v4597
        %v4630 = vrsqrt.pop %v4598
        %v4631 = vrsqrt.pop %v4599
        %v4632 = vrsqrt.pop %v4600
        %v4633 = vrsqrt.pop %v4601
        %v4634 = vrsqrt.pop %v4602
        %v4635 = vrsqrt.pop %v4603
        %v4636 = vrsqrt.pop %v4604
        %v4637 = vrsqrt.pop %v4605
        %v4638 = vrsqrt.pop %v4606
        %v4639 = vrsqrt.pop %v4607
        %v4640 = vrsqrt.pop %v4608
        %v4641 = vrsqrt.pop %v4609
        %v4642 = vrsqrt.pop %v4610
        %v4643 = vrsqrt.pop %v4611
        %v4644 = vrsqrt.pop %v4612
        %v4645 = vrsqrt.pop %v4613
        %v4646 = vmul.f32 %v4550, %v4614
        %v4647 = vmul.f32 %v4551, %v4615
        %v4648 = vmul.f32 %v4552, %v4616
        %v4649 = vmul.f32 %v4553, %v4617
        %v4650 = vmul.f32 %v4554, %v4618
        %v4651 = vmul.f32 %v4555, %v4619
        %v4652 = vmul.f32 %v4556, %v4620
        %v4653 = vmul.f32 %v4557, %v4621
        %v4654 = vmul.f32 %v4558, %v4622
        %v4655 = vmul.f32 %v4559, %v4623
        %v4656 = vmul.f32 %v4560, %v4624
        %v4657 = vmul.f32 %v4561, %v4625
        %v4658 = vmul.f32 %v4562, %v4626
        %v4659 = vmul.f32 %v4563, %v4627
        %v4660 = vmul.f32 %v4564, %v4628
        %v4661 = vmul.f32 %v4565, %v4629
        %v4662 = vmul.f32 %v4566, %v4630
        %v4663 = vmul.f32 %v4567, %v4631
        %v4664 = vmul.f32 %v4568, %v4632
        %v4665 = vmul.f32 %v4569, %v4633
        %v4666 = vmul.f32 %v4570, %v4634
        %v4667 = vmul.f32 %v4571, %v4635
        %v4668 = vmul.f32 %v4572, %v4636
        %v4669 = vmul.f32 %v4573, %v4637
        %v4670 = vmul.f32 %v4574, %v4638
        %v4671 = vmul.f32 %v4575, %v4639
        %v4672 = vmul.f32 %v4576, %v4640
        %v4673 = vmul.f32 %v4577, %v4641
        %v4674 = vmul.f32 %v4578, %v4642
        %v4675 = vmul.f32 %v4579, %v4643
        %v4676 = vmul.f32 %v4580, %v4644
        %v4677 = vmul.f32 %v4581, %v4645
        %v4678 = vld [vmem:[%s3] sm:$0x1]
        %v4680 = vlaneseq
        %v4681 = vshrl.u32 %v4680, 7
        %v4682 = vsub.s32 0, %v4681
        %v4683 = vrot.slane %v4678, %v4682
        %v4685 = vmul.f32 %v4646, %v4683
        %v4686 = vmul.f32 %v4647, %v4683
        %v4687 = vmul.f32 %v4648, %v4683
        %v4688 = vmul.f32 %v4649, %v4683
        %v4689 = vmul.f32 %v4650, %v4683
        %v4690 = vmul.f32 %v4651, %v4683
        %v4691 = vmul.f32 %v4652, %v4683
        %v4692 = vmul.f32 %v4653, %v4683
        %v4693 = vmul.f32 %v4654, %v4683
        %v4694 = vmul.f32 %v4655, %v4683
        %v4695 = vmul.f32 %v4656, %v4683
        %v4696 = vmul.f32 %v4657, %v4683
        %v4697 = vmul.f32 %v4658, %v4683
        %v4698 = vmul.f32 %v4659, %v4683
        %v4699 = vmul.f32 %v4660, %v4683
        %v4700 = vmul.f32 %v4661, %v4683
        %v4701 = vmul.f32 %v4662, %v4683
        %v4702 = vmul.f32 %v4663, %v4683
        %v4703 = vmul.f32 %v4664, %v4683
        %v4704 = vmul.f32 %v4665, %v4683
        %v4705 = vmul.f32 %v4666, %v4683
        %v4706 = vmul.f32 %v4667, %v4683
        %v4707 = vmul.f32 %v4668, %v4683
        %v4708 = vmul.f32 %v4669, %v4683
        %v4709 = vmul.f32 %v4670, %v4683
        %v4710 = vmul.f32 %v4671, %v4683
        %v4711 = vmul.f32 %v4672, %v4683
        %v4712 = vmul.f32 %v4673, %v4683
        %v4713 = vmul.f32 %v4674, %v4683
        %v4714 = vmul.f32 %v4675, %v4683
        %v4715 = vmul.f32 %v4676, %v4683
        %v4716 = vmul.f32 %v4677, %v4683
        %v4717 = vld [vmem:[%s4] sm:$0x1]
        %v4719 = vlaneseq
        %v4720 = vshrl.u32 %v4719, 7
        %v4721 = vsub.s32 0, %v4720
        %v4722 = vrot.slane %v4717, %v4721
        %v4724 = vadd.f32 %v4685, %v4722
        %v4725 = vadd.f32 %v4686, %v4722
        %v4726 = vadd.f32 %v4687, %v4722
        %v4727 = vadd.f32 %v4688, %v4722
        %v4728 = vadd.f32 %v4689, %v4722
        %v4729 = vadd.f32 %v4690, %v4722
        %v4730 = vadd.f32 %v4691, %v4722
        %v4731 = vadd.f32 %v4692, %v4722
        %v4732 = vadd.f32 %v4693, %v4722
        %v4733 = vadd.f32 %v4694, %v4722
        %v4734 = vadd.f32 %v4695, %v4722
        %v4735 = vadd.f32 %v4696, %v4722
        %v4736 = vadd.f32 %v4697, %v4722
        %v4737 = vadd.f32 %v4698, %v4722
        %v4738 = vadd.f32 %v4699, %v4722
        %v4739 = vadd.f32 %v4700, %v4722
        %v4740 = vadd.f32 %v4701, %v4722
        %v4741 = vadd.f32 %v4702, %v4722
        %v4742 = vadd.f32 %v4703, %v4722
        %v4743 = vadd.f32 %v4704, %v4722
        %v4744 = vadd.f32 %v4705, %v4722
        %v4745 = vadd.f32 %v4706, %v4722
        %v4746 = vadd.f32 %v4707, %v4722
        %v4747 = vadd.f32 %v4708, %v4722
        %v4748 = vadd.f32 %v4709, %v4722
        %v4749 = vadd.f32 %v4710, %v4722
        %v4750 = vadd.f32 %v4711, %v4722
        %v4751 = vadd.f32 %v4712, %v4722
        %v4752 = vadd.f32 %v4713, %v4722
        %v4753 = vadd.f32 %v4714, %v4722
        %v4754 = vadd.f32 %v4715, %v4722
        %v4755 = vadd.f32 %v4716, %v4722
        %v4756 = vpack.c.bf16 %v4725, %v4724
        %v4757 = vpack.c.bf16 %v4727, %v4726
        %v4758 = vpack.c.bf16 %v4729, %v4728
        %v4759 = vpack.c.bf16 %v4731, %v4730
        %v4760 = vpack.c.bf16 %v4733, %v4732
        %v4761 = vpack.c.bf16 %v4735, %v4734
        %v4762 = vpack.c.bf16 %v4737, %v4736
        %v4763 = vpack.c.bf16 %v4739, %v4738
        %v4764 = vpack.c.bf16 %v4741, %v4740
        %v4765 = vpack.c.bf16 %v4743, %v4742
        %v4766 = vpack.c.bf16 %v4745, %v4744
        %v4767 = vpack.c.bf16 %v4747, %v4746
        %v4768 = vpack.c.bf16 %v4749, %v4748
        %v4769 = vpack.c.bf16 %v4751, %v4750
        %v4770 = vpack.c.bf16 %v4753, %v4752
        %v4771 = vpack.c.bf16 %v4755, %v4754
        %v4772 = vld [vmem:[%s5] sm:$0xf]
        %v4773 = vld [vmem:[%s5 + $0x4] sm:$0xf]
        %v4774 = vld [vmem:[%s5 + $0x8] sm:$0xf]
        %v4775 = vld [vmem:[%s5 + $0xc] sm:$0xf]
        %v4776 = vld [vmem:[%s6] sm:$0x1]
        %v4778 = vlaneseq
        %v4779 = vshrl.u32 %v4778, 7
        %v4780 = vsub.s32 0, %v4779
        %v4781 = vrot.slane %v4776, %v4780
        %v4787 = vunpack.c.l.b16 %v4772
        %v4788 = vunpack.c.l.b16 %v4773
        %v4789 = vunpack.c.l.b16 %v4774
        %v4790 = vunpack.c.l.b16 %v4775
        %v4791 = vpack.c.b16 %v4788, %v4787
        %v4792 = vpack.c.b16 %v4790, %v4789
        %v4796 = vsel %vm379, %v4756, 0
        %v4799 = vsel %vm379, %v4757, 0
        %v4802 = vsel %vm379, %v4758, 0
        %v4805 = vsel %vm379, %v4759, 0
        %v4808 = vsel %vm379, %v4760, 0
        %v4811 = vsel %vm379, %v4761, 0
        %v4814 = vsel %vm379, %v4762, 0
        %v4817 = vsel %vm379, %v4763, 0
        %v4820 = vsel %vm379, %v4764, 0
        %v4823 = vsel %vm379, %v4765, 0
        %v4826 = vsel %vm379, %v4766, 0
        %v4829 = vsel %vm379, %v4767, 0
        %v4832 = vsel %vm379, %v4768, 0
        %v4835 = vsel %vm379, %v4769, 0
        %v4838 = vsel %vm379, %v4770, 0
        %v4841 = vsel %vm379, %v4771, 0
        %4843 = vmatprep.subr.bf16.mxu0 0
        %4844 = vmatpush1.bf16.msra.mxu0 %v4791
        %4845 = vmatprep.subr.bf16.mxu0 0
        %4846 = vmatpush1.bf16.msra.mxu0 %v4792
        %4847 = vmatprep.subr.bf16.mxu0 0
        %4848 = vmatpush1.bf16.msra.mxu0 0
        %4849 = vmatprep.subr.bf16.mxu0 0
        %4850 = vmatpush1.bf16.msra.mxu0 0
        %4851 = vmatprep.subr.bf16.mxu0 0
        %4852 = vmatpush1.bf16.msra.mxu0 0
        %4853 = vmatprep.subr.bf16.mxu0 0
        %4854 = vmatpush1.bf16.msra.mxu0 0
        %4855 = vmatprep.subr.bf16.mxu0 0
        %4856 = vmatpush1.bf16.msra.mxu0 0
        %4857 = vmatprep.subr.bf16.mxu0 0
        %4858 = vmatpush1.bf16.msra.mxu0 0
        %4859 = vmatprep.subr.bf16.mxu0 0
        %4860 = vmatpush1.bf16.msra.mxu0 0
        %4861 = vmatprep.subr.bf16.mxu0 0
        %4862 = vmatpush1.bf16.msra.mxu0 0
        %4863 = vmatprep.subr.bf16.mxu0 0
        %4864 = vmatpush1.bf16.msra.mxu0 0
        %4865 = vmatprep.subr.bf16.mxu0 0
        %4866 = vmatpush1.bf16.msra.mxu0 0
        %4867 = vmatprep.subr.bf16.mxu0 0
        %4868 = vmatpush1.bf16.msra.mxu0 0
        %4869 = vmatprep.subr.bf16.mxu0 0
        %4870 = vmatpush1.bf16.msra.mxu0 0
        %4871 = vmatprep.subr.bf16.mxu0 0
        %4872 = vmatpush1.bf16.msra.mxu0 0
        %4873 = vmatprep.subr.bf16.mxu0 0
        %4874 = vmatpush1.bf16.msra.mxu0 0
        %4875 = vmatprep.mubr.bf16.mxu0 0
        %4876 = vmatmul.mubr.bf16.gmra.mrb[0].mxu0 %v4796
        %v4877 = vpop.f32.mrb[0].mxu0
        %v4878 = vadd.f32 %v4781, %v4877
        %v4879 = vpop.f32.mrb[0].mxu0
        %v4880 = vpop.f32.mrb[0].mxu0
        %v4881 = vadd.f32 %v4781, %v4880
        %v4882 = vpop.f32.mrb[0].mxu0
        %4883 = vmatprep.mubr.bf16.mxu0 0
        %4884 = vmatmul.mubr.bf16.gmra.mrb[0].mxu0 %v4799
        %v4885 = vpop.f32.mrb[0].mxu0
        %v4886 = vadd.f32 %v4781, %v4885
        %v4887 = vpop.f32.mrb[0].mxu0
        %v4888 = vpop.f32.mrb[0].mxu0
        %v4889 = vadd.f32 %v4781, %v4888
        %v4890 = vpop.f32.mrb[0].mxu0
        %4891 = vmatprep.mubr.bf16.mxu0 0
        %4892 = vmatmul.mubr.bf16.gmra.mrb[0].mxu0 %v4802
        %v4893 = vpop.f32.mrb[0].mxu0
        %v4894 = vadd.f32 %v4781, %v4893
        %v4895 = vpop.f32.mrb[0].mxu0
        %v4896 = vpop.f32.mrb[0].mxu0
        %v4897 = vadd.f32 %v4781, %v4896
        %v4898 = vpop.f32.mrb[0].mxu0
        %4899 = vmatprep.mubr.bf16.mxu0 0
        %4900 = vmatmul.mubr.bf16.gmra.mrb[0].mxu0 %v4805
        %v4901 = vpop.f32.mrb[0].mxu0
        %v4902 = vadd.f32 %v4781, %v4901
        %v4903 = vpop.f32.mrb[0].mxu0
        %v4904 = vpop.f32.mrb[0].mxu0
        %v4905 = vadd.f32 %v4781, %v4904
        %v4906 = vpop.f32.mrb[0].mxu0
        %4907 = vmatprep.mubr.bf16.mxu0 0
        %4908 = vmatmul.mubr.bf16.gmra.mrb[0].mxu0 %v4808
        %v4909 = vpop.f32.mrb[0].mxu0
        %v4910 = vadd.f32 %v4781, %v4909
        %v4911 = vpop.f32.mrb[0].mxu0
        %v4912 = vpop.f32.mrb[0].mxu0
        %v4913 = vadd.f32 %v4781, %v4912
        %v4914 = vpop.f32.mrb[0].mxu0
        %4915 = vmatprep.mubr.bf16.mxu0 0
        %4916 = vmatmul.mubr.bf16.gmra.mrb[0].mxu0 %v4811
        %v4917 = vpop.f32.mrb[0].mxu0
        %v4918 = vadd.f32 %v4781, %v4917
        %v4919 = vpop.f32.mrb[0].mxu0
        %v4920 = vpop.f32.mrb[0].mxu0
        %v4921 = vadd.f32 %v4781, %v4920
        %v4922 = vpop.f32.mrb[0].mxu0
        %4923 = vmatprep.mubr.bf16.mxu0 0
        %4924 = vmatmul.mubr.bf16.gmra.mrb[0].mxu0 %v4814
        %v4925 = vpop.f32.mrb[0].mxu0
        %v4926 = vadd.f32 %v4781, %v4925
        %v4927 = vpop.f32.mrb[0].mxu0
        %v4928 = vpop.f32.mrb[0].mxu0
        %v4929 = vadd.f32 %v4781, %v4928
        %v4930 = vpop.f32.mrb[0].mxu0
        %4931 = vmatprep.mubr.bf16.mxu0 0
        %4932 = vmatmul.mubr.bf16.gmra.mrb[0].mxu0 %v4817
        %v4933 = vpop.f32.mrb[0].mxu0
        %v4934 = vadd.f32 %v4781, %v4933
        %v4935 = vpop.f32.mrb[0].mxu0
        %v4936 = vpop.f32.mrb[0].mxu0
        %v4937 = vadd.f32 %v4781, %v4936
        %v4938 = vpop.f32.mrb[0].mxu0
        %4939 = vmatprep.mubr.bf16.mxu0 0
        %4940 = vmatmul.mubr.bf16.gmra.mrb[0].mxu0 %v4820
        %v4941 = vpop.f32.mrb[0].mxu0
        %v4942 = vadd.f32 %v4781, %v4941
        %v4943 = vpop.f32.mrb[0].mxu0
        %v4944 = vpop.f32.mrb[0].mxu0
        %v4945 = vadd.f32 %v4781, %v4944
        %v4946 = vpop.f32.mrb[0].mxu0
        %4947 = vmatprep.mubr.bf16.mxu0 0
        %4948 = vmatmul.mubr.bf16.gmra.mrb[0].mxu0 %v4823
        %v4949 = vpop.f32.mrb[0].mxu0
        %v4950 = vadd.f32 %v4781, %v4949
        %v4951 = vpop.f32.mrb[0].mxu0
        %v4952 = vpop.f32.mrb[0].mxu0
        %v4953 = vadd.f32 %v4781, %v4952
        %v4954 = vpop.f32.mrb[0].mxu0
        %4955 = vmatprep.mubr.bf16.mxu0 0
        %4956 = vmatmul.mubr.bf16.gmra.mrb[0].mxu0 %v4826
        %v4957 = vpop.f32.mrb[0].mxu0
        %v4958 = vadd.f32 %v4781, %v4957
        %v4959 = vpop.f32.mrb[0].mxu0
        %v4960 = vpop.f32.mrb[0].mxu0
        %v4961 = vadd.f32 %v4781, %v4960
        %v4962 = vpop.f32.mrb[0].mxu0
        %4963 = vmatprep.mubr.bf16.mxu0 0
        %4964 = vmatmul.mubr.bf16.gmra.mrb[0].mxu0 %v4829
        %v4965 = vpop.f32.mrb[0].mxu0
        %v4966 = vadd.f32 %v4781, %v4965
        %v4967 = vpop.f32.mrb[0].mxu0
        %v4968 = vpop.f32.mrb[0].mxu0
        %v4969 = vadd.f32 %v4781, %v4968
        %v4970 = vpop.f32.mrb[0].mxu0
        %4971 = vmatprep.mubr.bf16.mxu0 0
        %4972 = vmatmul.mubr.bf16.gmra.mrb[0].mxu0 %v4832
        %v4973 = vpop.f32.mrb[0].mxu0
        %v4974 = vadd.f32 %v4781, %v4973
        %v4975 = vpop.f32.mrb[0].mxu0
        %v4976 = vpop.f32.mrb[0].mxu0
        %v4977 = vadd.f32 %v4781, %v4976
        %v4978 = vpop.f32.mrb[0].mxu0
        %4979 = vmatprep.mubr.bf16.mxu0 0
        %4980 = vmatmul.mubr.bf16.gmra.mrb[0].mxu0 %v4835
        %v4981 = vpop.f32.mrb[0].mxu0
        %v4982 = vadd.f32 %v4781, %v4981
        %v4983 = vpop.f32.mrb[0].mxu0
        %v4984 = vpop.f32.mrb[0].mxu0
        %v4985 = vadd.f32 %v4781, %v4984
        %v4986 = vpop.f32.mrb[0].mxu0
        %4987 = vmatprep.mubr.bf16.mxu0 0
        %4988 = vmatmul.mubr.bf16.gmra.mrb[0].mxu0 %v4838
        %v4989 = vpop.f32.mrb[0].mxu0
        %v4990 = vadd.f32 %v4781, %v4989
        %v4991 = vpop.f32.mrb[0].mxu0
        %v4992 = vpop.f32.mrb[0].mxu0
        %v4993 = vadd.f32 %v4781, %v4992
        %v4994 = vpop.f32.mrb[0].mxu0
        %4995 = vmatprep.mubr.bf16.mxu0 0
        %4996 = vmatmul.mubr.bf16.gmra.mrb[0].mxu0 %v4841
        %v4997 = vpop.f32.mrb[0].mxu0
        %v4998 = vadd.f32 %v4781, %v4997
        %v4999 = vpop.f32.mrb[0].mxu0
        %v5000 = vpop.f32.mrb[0].mxu0
        %v5001 = vadd.f32 %v4781, %v5000
        %v5002 = vpop.f32.mrb[0].mxu0
        %5003 = vdwg.mxu0
        %v5004 = vmul.f32 %v4878, 0.5
        %v5005 = vmul.f32 %v4881, 0.5
        %v5006 = vmul.f32 %v4886, 0.5
        %v5007 = vmul.f32 %v4889, 0.5
        %v5008 = vmul.f32 %v4894, 0.5
        %v5009 = vmul.f32 %v4897, 0.5
        %v5010 = vmul.f32 %v4902, 0.5
        %v5011 = vmul.f32 %v4905, 0.5
        %v5012 = vmul.f32 %v4910, 0.5
        %v5013 = vmul.f32 %v4913, 0.5
        %v5014 = vmul.f32 %v4918, 0.5
        %v5015 = vmul.f32 %v4921, 0.5
        %v5016 = vmul.f32 %v4926, 0.5
        %v5017 = vmul.f32 %v4929, 0.5
        %v5018 = vmul.f32 %v4934, 0.5
        %v5019 = vmul.f32 %v4937, 0.5
        %v5020 = vmul.f32 %v4942, 0.5
        %v5021 = vmul.f32 %v4945, 0.5
        %v5022 = vmul.f32 %v4950, 0.5
        %v5023 = vmul.f32 %v4953, 0.5
        %v5024 = vmul.f32 %v4958, 0.5
        %v5025 = vmul.f32 %v4961, 0.5
        %v5026 = vmul.f32 %v4966, 0.5
        %v5027 = vmul.f32 %v4969, 0.5
        %v5028 = vmul.f32 %v4974, 0.5
        %v5029 = vmul.f32 %v4977, 0.5
        %v5030 = vmul.f32 %v4982, 0.5
        %v5031 = vmul.f32 %v4985, 0.5
        %v5032 = vmul.f32 %v4990, 0.5
        %v5033 = vmul.f32 %v4993, 0.5
        %v5034 = vmul.f32 %v4998, 0.5
        %v5035 = vmul.f32 %v5001, 0.5
        %v5036 = vmul.f32 %v4878, 0.70710677
        %v5037 = vmul.f32 %v4881, 0.70710677
        %v5038 = vmul.f32 %v4886, 0.70710677
        %v5039 = vmul.f32 %v4889, 0.70710677
        %v5040 = vmul.f32 %v4894, 0.70710677
        %v5041 = vmul.f32 %v4897, 0.70710677
        %v5042 = vmul.f32 %v4902, 0.70710677
        %v5043 = vmul.f32 %v4905, 0.70710677
        %v5044 = vmul.f32 %v4910, 0.70710677
        %v5045 = vmul.f32 %v4913, 0.70710677
        %v5046 = vmul.f32 %v4918, 0.70710677
        %v5047 = vmul.f32 %v4921, 0.70710677
        %v5048 = vmul.f32 %v4926, 0.70710677
        %v5049 = vmul.f32 %v4929, 0.70710677
        %v5050 = vmul.f32 %v4934, 0.70710677
        %v5051 = vmul.f32 %v4937, 0.70710677
        %v5052 = vmul.f32 %v4942, 0.70710677
        %v5053 = vmul.f32 %v4945, 0.70710677
        %v5054 = vmul.f32 %v4950, 0.70710677
        %v5055 = vmul.f32 %v4953, 0.70710677
        %v5056 = vmul.f32 %v4958, 0.70710677
        %v5057 = vmul.f32 %v4961, 0.70710677
        %v5058 = vmul.f32 %v4966, 0.70710677
        %v5059 = vmul.f32 %v4969, 0.70710677
        %v5060 = vmul.f32 %v4974, 0.70710677
        %v5061 = vmul.f32 %v4977, 0.70710677
        %v5062 = vmul.f32 %v4982, 0.70710677
        %v5063 = vmul.f32 %v4985, 0.70710677
        %v5064 = vmul.f32 %v4990, 0.70710677
        %v5065 = vmul.f32 %v4993, 0.70710677
        %v5066 = vmul.f32 %v4998, 0.70710677
        %v5067 = vmul.f32 %v5001, 0.70710677
        %v5068 = verf.f32.pop %v5036
        %v5069 = verf.f32.pop %v5037
        %v5070 = verf.f32.pop %v5038
        %v5071 = verf.f32.pop %v5039
        %v5072 = verf.f32.pop %v5040
        %v5073 = verf.f32.pop %v5041
        %v5074 = verf.f32.pop %v5042
        %v5075 = verf.f32.pop %v5043
        %v5076 = verf.f32.pop %v5044
        %v5077 = verf.f32.pop %v5045
        %v5078 = verf.f32.pop %v5046
        %v5079 = verf.f32.pop %v5047
        %v5080 = verf.f32.pop %v5048
        %v5081 = verf.f32.pop %v5049
        %v5082 = verf.f32.pop %v5050
        %v5083 = verf.f32.pop %v5051
        %v5084 = verf.f32.pop %v5052
        %v5085 = verf.f32.pop %v5053
        %v5086 = verf.f32.pop %v5054
        %v5087 = verf.f32.pop %v5055
        %v5088 = verf.f32.pop %v5056
        %v5089 = verf.f32.pop %v5057
        %v5090 = verf.f32.pop %v5058
        %v5091 = verf.f32.pop %v5059
        %v5092 = verf.f32.pop %v5060
        %v5093 = verf.f32.pop %v5061
        %v5094 = verf.f32.pop %v5062
        %v5095 = verf.f32.pop %v5063
        %v5096 = verf.f32.pop %v5064
        %v5097 = verf.f32.pop %v5065
        %v5098 = verf.f32.pop %v5066
        %v5099 = verf.f32.pop %v5067
        %v5100 = vadd.f32 %v5068, 1.0
        %v5101 = vadd.f32 %v5069, 1.0
        %v5102 = vadd.f32 %v5070, 1.0
        %v5103 = vadd.f32 %v5071, 1.0
        %v5104 = vadd.f32 %v5072, 1.0
        %v5105 = vadd.f32 %v5073, 1.0
        %v5106 = vadd.f32 %v5074, 1.0
        %v5107 = vadd.f32 %v5075, 1.0
        %v5108 = vadd.f32 %v5076, 1.0
        %v5109 = vadd.f32 %v5077, 1.0
        %v5110 = vadd.f32 %v5078, 1.0
        %v5111 = vadd.f32 %v5079, 1.0
        %v5112 = vadd.f32 %v5080, 1.0
        %v5113 = vadd.f32 %v5081, 1.0
        %v5114 = vadd.f32 %v5082, 1.0
        %v5115 = vadd.f32 %v5083, 1.0
        %v5116 = vadd.f32 %v5084, 1.0
        %v5117 = vadd.f32 %v5085, 1.0
        %v5118 = vadd.f32 %v5086, 1.0
        %v5119 = vadd.f32 %v5087, 1.0
        %v5120 = vadd.f32 %v5088, 1.0
        %v5121 = vadd.f32 %v5089, 1.0
        %v5122 = vadd.f32 %v5090, 1.0
        %v5123 = vadd.f32 %v5091, 1.0
        %v5124 = vadd.f32 %v5092, 1.0
        %v5125 = vadd.f32 %v5093, 1.0
        %v5126 = vadd.f32 %v5094, 1.0
        %v5127 = vadd.f32 %v5095, 1.0
        %v5128 = vadd.f32 %v5096, 1.0
        %v5129 = vadd.f32 %v5097, 1.0
        %v5130 = vadd.f32 %v5098, 1.0
        %v5131 = vadd.f32 %v5099, 1.0
        %v5132 = vmul.f32 %v5004, %v5100
        %v5133 = vmul.f32 %v5005, %v5101
        %v5134 = vmul.f32 %v5006, %v5102
        %v5135 = vmul.f32 %v5007, %v5103
        %v5136 = vmul.f32 %v5008, %v5104
        %v5137 = vmul.f32 %v5009, %v5105
        %v5138 = vmul.f32 %v5010, %v5106
        %v5139 = vmul.f32 %v5011, %v5107
        %v5140 = vmul.f32 %v5012, %v5108
        %v5141 = vmul.f32 %v5013, %v5109
        %v5142 = vmul.f32 %v5014, %v5110
        %v5143 = vmul.f32 %v5015, %v5111
        %v5144 = vmul.f32 %v5016, %v5112
        %v5145 = vmul.f32 %v5017, %v5113
        %v5146 = vmul.f32 %v5018, %v5114
        %v5147 = vmul.f32 %v5019, %v5115
        %v5148 = vmul.f32 %v5020, %v5116
        %v5149 = vmul.f32 %v5021, %v5117
        %v5150 = vmul.f32 %v5022, %v5118
        %v5151 = vmul.f32 %v5023, %v5119
        %v5152 = vmul.f32 %v5024, %v5120
        %v5153 = vmul.f32 %v5025, %v5121
        %v5154 = vmul.f32 %v5026, %v5122
        %v5155 = vmul.f32 %v5027, %v5123
        %v5156 = vmul.f32 %v5028, %v5124
        %v5157 = vmul.f32 %v5029, %v5125
        %v5158 = vmul.f32 %v5030, %v5126
        %v5159 = vmul.f32 %v5031, %v5127
        %v5160 = vmul.f32 %v5032, %v5128
        %v5161 = vmul.f32 %v5033, %v5129
        %v5162 = vmul.f32 %v5034, %v5130
        %v5163 = vmul.f32 %v5035, %v5131
        %v5164 = vpack.c.bf16 %v5133, %v5132
        %v5165 = vpack.c.bf16 %v5135, %v5134
        %v5166 = vpack.c.bf16 %v5137, %v5136
        %v5167 = vpack.c.bf16 %v5139, %v5138
        %v5168 = vpack.c.bf16 %v5141, %v5140
        %v5169 = vpack.c.bf16 %v5143, %v5142
        %v5170 = vpack.c.bf16 %v5145, %v5144
        %v5171 = vpack.c.bf16 %v5147, %v5146
        %v5172 = vpack.c.bf16 %v5149, %v5148
        %v5173 = vpack.c.bf16 %v5151, %v5150
        %v5174 = vpack.c.bf16 %v5153, %v5152
        %v5175 = vpack.c.bf16 %v5155, %v5154
        %v5176 = vpack.c.bf16 %v5157, %v5156
        %v5177 = vpack.c.bf16 %v5159, %v5158
        %v5178 = vpack.c.bf16 %v5161, %v5160
        %v5179 = vpack.c.bf16 %v5163, %v5162
        %v5180 = vld [vmem:[%s7] sm:$0xf]
        %v5181 = vld [vmem:[%s7 + $0x4] sm:$0xf]
        %v5182 = vld [vmem:[%s7 + $0x8] sm:$0xf]
        %v5183 = vld [vmem:[%s7 + $0xc] sm:$0xf]
        %v5184 = vld [vmem:[%s7 + $0x10] sm:$0xf]
        %v5185 = vld [vmem:[%s7 + $0x14] sm:$0xf]
        %v5186 = vld [vmem:[%s7 + $0x18] sm:$0xf]
        %v5187 = vld [vmem:[%s7 + $0x1c] sm:$0xf]
        %v5188 = vld [vmem:[%s7 + $0x20] sm:$0xf]
        %v5189 = vld [vmem:[%s7 + $0x24] sm:$0xf]
        %v5190 = vld [vmem:[%s7 + $0x28] sm:$0xf]
        %v5191 = vld [vmem:[%s7 + $0x2c] sm:$0xf]
        %v5192 = vld [vmem:[%s7 + $0x30] sm:$0xf]
        %v5193 = vld [vmem:[%s7 + $0x34] sm:$0xf]
        %v5194 = vld [vmem:[%s7 + $0x38] sm:$0xf]
        %v5195 = vld [vmem:[%s7 + $0x3c] sm:$0xf]
        %v5196 = vld [vmem:[%s8] sm:$0x1]
        %v5198 = vlaneseq
        %v5199 = vshrl.u32 %v5198, 7
        %v5200 = vsub.s32 0, %v5199
        %v5201 = vrot.slane %v5196, %v5200
        %v5219 = vunpack.c.l.b16 %v5180
        %v5220 = vunpack.c.l.b16 %v5181
        %v5221 = vunpack.c.l.b16 %v5182
        %v5222 = vunpack.c.l.b16 %v5183
        %v5223 = vunpack.c.l.b16 %v5184
        %v5224 = vunpack.c.l.b16 %v5185
        %v5225 = vunpack.c.l.b16 %v5186
        %v5226 = vunpack.c.l.b16 %v5187
        %v5227 = vunpack.c.l.b16 %v5188
        %v5228 = vunpack.c.l.b16 %v5189
        %v5229 = vunpack.c.l.b16 %v5190
        %v5230 = vunpack.c.l.b16 %v5191
        %v5231 = vunpack.c.l.b16 %v5192
        %v5232 = vunpack.c.l.b16 %v5193
        %v5233 = vunpack.c.l.b16 %v5194
        %v5234 = vunpack.c.l.b16 %v5195
        %v5235 = vpack.c.b16 %v5220, %v5219
        %v5236 = vpack.c.b16 %v5222, %v5221
        %v5237 = vpack.c.b16 %v5224, %v5223
        %v5238 = vpack.c.b16 %v5226, %v5225
        %v5239 = vpack.c.b16 %v5228, %v5227
        %v5240 = vpack.c.b16 %v5230, %v5229
        %v5241 = vpack.c.b16 %v5232, %v5231
        %v5242 = vpack.c.b16 %v5234, %v5233
        %5251 = vmatprep.subr.bf16.mxu0 0
        %5252 = vmatpush1.bf16.msra.mxu0 %v5235
        %5253 = vmatprep.subr.bf16.mxu0 0
        %5254 = vmatpush1.bf16.msra.mxu0 %v5236
        %5255 = vmatprep.subr.bf16.mxu0 0
        %5256 = vmatpush1.bf16.msra.mxu0 %v5237
        %5257 = vmatprep.subr.bf16.mxu0 0
        %5258 = vmatpush1.bf16.msra.mxu0 %v5238
        %5259 = vmatprep.subr.bf16.mxu0 0
        %5260 = vmatpush1.bf16.msra.mxu0 %v5239
        %5261 = vmatprep.subr.bf16.mxu0 0
        %5262 = vmatpush1.bf16.msra.mxu0 %v5240
        %5263 = vmatprep.subr.bf16.mxu0 0
        %5264 = vmatpush1.bf16.msra.mxu0 %v5241
        %5265 = vmatprep.subr.bf16.mxu0 0
        %5266 = vmatpush1.bf16.msra.mxu0 %v5242
        %5267 = vmatprep.subr.bf16.mxu0 0
        %5268 = vmatpush1.bf16.msra.mxu0 0
        %5269 = vmatprep.subr.bf16.mxu0 0
        %5270 = vmatpush1.bf16.msra.mxu0 0
        %5271 = vmatprep.subr.bf16.mxu0 0
        %5272 = vmatpush1.bf16.msra.mxu0 0
        %5273 = vmatprep.subr.bf16.mxu0 0
        %5274 = vmatpush1.bf16.msra.mxu0 0
        %5275 = vmatprep.subr.bf16.mxu0 0
        %5276 = vmatpush1.bf16.msra.mxu0 0
        %5277 = vmatprep.subr.bf16.mxu0 0
        %5278 = vmatpush1.bf16.msra.mxu0 0
        %5279 = vmatprep.subr.bf16.mxu0 0
        %5280 = vmatpush1.bf16.msra.mxu0 0
        %5281 = vmatprep.subr.bf16.mxu0 0
        %5282 = vmatpush1.bf16.msra.mxu0 0
        %5283 = vmatprep.mubr.bf16.mxu0 0
        %5284 = vmatmul.mubr.bf16.gmra.mrb[0].mxu0 %v5164
        %v5285 = vpop.f32.mrb[0].mxu0
        %v5286 = vadd.f32 %v5201, %v5285
        %v5287 = vpop.f32.mrb[0].mxu0
        %v5288 = vpop.f32.mrb[0].mxu0
        %v5289 = vadd.f32 %v5201, %v5288
        %v5290 = vpop.f32.mrb[0].mxu0
        %5291 = vmatprep.mubr.bf16.mxu0 0
        %5292 = vmatmul.mubr.bf16.gmra.mrb[0].mxu0 %v5165
        %v5293 = vpop.f32.mrb[0].mxu0
        %v5294 = vadd.f32 %v5201, %v5293
        %v5295 = vpop.f32.mrb[0].mxu0
        %v5296 = vpop.f32.mrb[0].mxu0
        %v5297 = vadd.f32 %v5201, %v5296
        %v5298 = vpop.f32.mrb[0].mxu0
        %5299 = vmatprep.mubr.bf16.mxu0 0
        %5300 = vmatmul.mubr.bf16.gmra.mrb[0].mxu0 %v5166
        %v5301 = vpop.f32.mrb[0].mxu0
        %v5302 = vadd.f32 %v5201, %v5301
        %v5303 = vpop.f32.mrb[0].mxu0
        %v5304 = vpop.f32.mrb[0].mxu0
        %v5305 = vadd.f32 %v5201, %v5304
        %v5306 = vpop.f32.mrb[0].mxu0
        %5307 = vmatprep.mubr.bf16.mxu0 0
        %5308 = vmatmul.mubr.bf16.gmra.mrb[0].mxu0 %v5167
        %v5309 = vpop.f32.mrb[0].mxu0
        %v5310 = vadd.f32 %v5201, %v5309
        %v5311 = vpop.f32.mrb[0].mxu0
        %v5312 = vpop.f32.mrb[0].mxu0
        %v5313 = vadd.f32 %v5201, %v5312
        %v5314 = vpop.f32.mrb[0].mxu0
        %5315 = vmatprep.mubr.bf16.mxu0 0
        %5316 = vmatmul.mubr.bf16.gmra.mrb[0].mxu0 %v5168
        %v5317 = vpop.f32.mrb[0].mxu0
        %v5318 = vadd.f32 %v5201, %v5317
        %v5319 = vpop.f32.mrb[0].mxu0
        %v5320 = vpop.f32.mrb[0].mxu0
        %v5321 = vadd.f32 %v5201, %v5320
        %v5322 = vpop.f32.mrb[0].mxu0
        %5323 = vmatprep.mubr.bf16.mxu0 0
        %5324 = vmatmul.mubr.bf16.gmra.mrb[0].mxu0 %v5169
        %v5325 = vpop.f32.mrb[0].mxu0
        %v5326 = vadd.f32 %v5201, %v5325
        %v5327 = vpop.f32.mrb[0].mxu0
        %v5328 = vpop.f32.mrb[0].mxu0
        %v5329 = vadd.f32 %v5201, %v5328
        %v5330 = vpop.f32.mrb[0].mxu0
        %5331 = vmatprep.mubr.bf16.mxu0 0
        %5332 = vmatmul.mubr.bf16.gmra.mrb[0].mxu0 %v5170
        %v5333 = vpop.f32.mrb[0].mxu0
        %v5334 = vadd.f32 %v5201, %v5333
        %v5335 = vpop.f32.mrb[0].mxu0
        %v5336 = vpop.f32.mrb[0].mxu0
        %v5337 = vadd.f32 %v5201, %v5336
        %v5338 = vpop.f32.mrb[0].mxu0
        %5339 = vmatprep.mubr.bf16.mxu0 0
        %5340 = vmatmul.mubr.bf16.gmra.mrb[0].mxu0 %v5171
        %v5341 = vpop.f32.mrb[0].mxu0
        %v5342 = vadd.f32 %v5201, %v5341
        %v5343 = vpop.f32.mrb[0].mxu0
        %v5344 = vpop.f32.mrb[0].mxu0
        %v5345 = vadd.f32 %v5201, %v5344
        %v5346 = vpop.f32.mrb[0].mxu0
        %5347 = vmatprep.mubr.bf16.mxu0 0
        %5348 = vmatmul.mubr.bf16.gmra.mrb[0].mxu0 %v5172
        %v5349 = vpop.f32.mrb[0].mxu0
        %v5350 = vadd.f32 %v5201, %v5349
        %v5351 = vpop.f32.mrb[0].mxu0
        %v5352 = vpop.f32.mrb[0].mxu0
        %v5353 = vadd.f32 %v5201, %v5352
        %v5354 = vpop.f32.mrb[0].mxu0
        %5355 = vmatprep.mubr.bf16.mxu0 0
        %5356 = vmatmul.mubr.bf16.gmra.mrb[0].mxu0 %v5173
        %v5357 = vpop.f32.mrb[0].mxu0
        %v5358 = vadd.f32 %v5201, %v5357
        %v5359 = vpop.f32.mrb[0].mxu0
        %v5360 = vpop.f32.mrb[0].mxu0
        %v5361 = vadd.f32 %v5201, %v5360
        %v5362 = vpop.f32.mrb[0].mxu0
        %5363 = vmatprep.mubr.bf16.mxu0 0
        %5364 = vmatmul.mubr.bf16.gmra.mrb[0].mxu0 %v5174
        %v5365 = vpop.f32.mrb[0].mxu0
        %v5366 = vadd.f32 %v5201, %v5365
        %v5367 = vpop.f32.mrb[0].mxu0
        %v5368 = vpop.f32.mrb[0].mxu0
        %v5369 = vadd.f32 %v5201, %v5368
        %v5370 = vpop.f32.mrb[0].mxu0
        %5371 = vmatprep.mubr.bf16.mxu0 0
        %5372 = vmatmul.mubr.bf16.gmra.mrb[0].mxu0 %v5175
        %v5373 = vpop.f32.mrb[0].mxu0
        %v5374 = vadd.f32 %v5201, %v5373
        %v5375 = vpop.f32.mrb[0].mxu0
        %v5376 = vpop.f32.mrb[0].mxu0
        %v5377 = vadd.f32 %v5201, %v5376
        %v5378 = vpop.f32.mrb[0].mxu0
        %5379 = vmatprep.mubr.bf16.mxu0 0
        %5380 = vmatmul.mubr.bf16.gmra.mrb[0].mxu0 %v5176
        %v5381 = vpop.f32.mrb[0].mxu0
        %v5382 = vadd.f32 %v5201, %v5381
        %v5383 = vpop.f32.mrb[0].mxu0
        %v5384 = vpop.f32.mrb[0].mxu0
        %v5385 = vadd.f32 %v5201, %v5384
        %v5386 = vpop.f32.mrb[0].mxu0
        %5387 = vmatprep.mubr.bf16.mxu0 0
        %5388 = vmatmul.mubr.bf16.gmra.mrb[0].mxu0 %v5177
        %v5389 = vpop.f32.mrb[0].mxu0
        %v5390 = vadd.f32 %v5201, %v5389
        %v5391 = vpop.f32.mrb[0].mxu0
        %v5392 = vpop.f32.mrb[0].mxu0
        %v5393 = vadd.f32 %v5201, %v5392
        %v5394 = vpop.f32.mrb[0].mxu0
        %5395 = vmatprep.mubr.bf16.mxu0 0
        %5396 = vmatmul.mubr.bf16.gmra.mrb[0].mxu0 %v5178
        %v5397 = vpop.f32.mrb[0].mxu0
        %v5398 = vadd.f32 %v5201, %v5397
        %v5399 = vpop.f32.mrb[0].mxu0
        %v5400 = vpop.f32.mrb[0].mxu0
        %v5401 = vadd.f32 %v5201, %v5400
        %v5402 = vpop.f32.mrb[0].mxu0
        %5403 = vmatprep.mubr.bf16.mxu0 0
        %5404 = vmatmul.mubr.bf16.gmra.mrb[0].mxu0 %v5179
        %v5405 = vpop.f32.mrb[0].mxu0
        %v5406 = vadd.f32 %v5201, %v5405
        %v5407 = vpop.f32.mrb[0].mxu0
        %v5408 = vpop.f32.mrb[0].mxu0
        %v5409 = vadd.f32 %v5201, %v5408
        %v5410 = vpop.f32.mrb[0].mxu0
        %5411 = vdwg.mxu0
        %v5412 = vld [vmem:[%s9] sm:$0x1]
        %v5414 = vlaneseq
        %v5415 = vshrl.u32 %v5414, 7
        %v5416 = vsub.s32 0, %v5415
        %v5417 = vrot.slane %v5412, %v5416
        %v5419 = vmul.f32 %v5286, %v5417
        %v5420 = vmul.f32 %v5289, %v5417
        %v5421 = vmul.f32 %v5294, %v5417
        %v5422 = vmul.f32 %v5297, %v5417
        %v5423 = vmul.f32 %v5302, %v5417
        %v5424 = vmul.f32 %v5305, %v5417
        %v5425 = vmul.f32 %v5310, %v5417
        %v5426 = vmul.f32 %v5313, %v5417
        %v5427 = vmul.f32 %v5318, %v5417
        %v5428 = vmul.f32 %v5321, %v5417
        %v5429 = vmul.f32 %v5326, %v5417
        %v5430 = vmul.f32 %v5329, %v5417
        %v5431 = vmul.f32 %v5334, %v5417
        %v5432 = vmul.f32 %v5337, %v5417
        %v5433 = vmul.f32 %v5342, %v5417
        %v5434 = vmul.f32 %v5345, %v5417
        %v5435 = vmul.f32 %v5350, %v5417
        %v5436 = vmul.f32 %v5353, %v5417
        %v5437 = vmul.f32 %v5358, %v5417
        %v5438 = vmul.f32 %v5361, %v5417
        %v5439 = vmul.f32 %v5366, %v5417
        %v5440 = vmul.f32 %v5369, %v5417
        %v5441 = vmul.f32 %v5374, %v5417
        %v5442 = vmul.f32 %v5377, %v5417
        %v5443 = vmul.f32 %v5382, %v5417
        %v5444 = vmul.f32 %v5385, %v5417
        %v5445 = vmul.f32 %v5390, %v5417
        %v5446 = vmul.f32 %v5393, %v5417
        %v5447 = vmul.f32 %v5398, %v5417
        %v5448 = vmul.f32 %v5401, %v5417
        %v5449 = vmul.f32 %v5406, %v5417
        %v5450 = vmul.f32 %v5409, %v5417
        %v5451 = vld [vmem:[%s341] sm:$0xff]
        %v5452 = vld [vmem:[%s341 + $0x8] sm:$0xff]
        %v5453 = vld [vmem:[%s341 + $0x10] sm:$0xff]
        %v5454 = vld [vmem:[%s341 + $0x18] sm:$0xff]
        %v5455 = vld [vmem:[%s341 + $0x20] sm:$0xff]
        %v5456 = vld [vmem:[%s341 + $0x28] sm:$0xff]
        %v5457 = vld [vmem:[%s341 + $0x30] sm:$0xff]
        %v5458 = vld [vmem:[%s341 + $0x38] sm:$0xff]
        %v5459 = vld [vmem:[%s341 + $0x40] sm:$0xff]
        %v5460 = vld [vmem:[%s341 + $0x48] sm:$0xff]
        %v5461 = vld [vmem:[%s341 + $0x50] sm:$0xff]
        %v5462 = vld [vmem:[%s341 + $0x58] sm:$0xff]
        %v5463 = vld [vmem:[%s341 + $0x60] sm:$0xff]
        %v5464 = vld [vmem:[%s341 + $0x68] sm:$0xff]
        %v5465 = vld [vmem:[%s341 + $0x70] sm:$0xff]
        %v5466 = vld [vmem:[%s341 + $0x78] sm:$0xff]
        %v5467 = vld [vmem:[%s341 + $0x80] sm:$0xff]
        %v5468 = vld [vmem:[%s341 + $0x88] sm:$0xff]
        %v5469 = vld [vmem:[%s341 + $0x90] sm:$0xff]
        %v5470 = vld [vmem:[%s341 + $0x98] sm:$0xff]
        %v5471 = vld [vmem:[%s341 + $0xa0] sm:$0xff]
        %v5472 = vld [vmem:[%s341 + $0xa8] sm:$0xff]
        %v5473 = vld [vmem:[%s341 + $0xb0] sm:$0xff]
        %v5474 = vld [vmem:[%s341 + $0xb8] sm:$0xff]
        %v5475 = vld [vmem:[%s341 + $0xc0] sm:$0xff]
        %v5476 = vld [vmem:[%s341 + $0xc8] sm:$0xff]
        %v5477 = vld [vmem:[%s341 + $0xd0] sm:$0xff]
        %v5478 = vld [vmem:[%s341 + $0xd8] sm:$0xff]
        %v5479 = vld [vmem:[%s341 + $0xe0] sm:$0xff]
        %v5480 = vld [vmem:[%s341 + $0xe8] sm:$0xff]
        %v5481 = vld [vmem:[%s341 + $0xf0] sm:$0xff]
        %v5482 = vld [vmem:[%s341 + $0xf8] sm:$0xff]
        %v5483 = vadd.f32 %v5451, %v5419
        %v5484 = vadd.f32 %v5452, %v5420
        %v5485 = vadd.f32 %v5453, %v5421
        %v5486 = vadd.f32 %v5454, %v5422
        %v5487 = vadd.f32 %v5455, %v5423
        %v5488 = vadd.f32 %v5456, %v5424
        %v5489 = vadd.f32 %v5457, %v5425
        %v5490 = vadd.f32 %v5458, %v5426
        %v5491 = vadd.f32 %v5459, %v5427
        %v5492 = vadd.f32 %v5460, %v5428
        %v5493 = vadd.f32 %v5461, %v5429
        %v5494 = vadd.f32 %v5462, %v5430
        %v5495 = vadd.f32 %v5463, %v5431
        %v5496 = vadd.f32 %v5464, %v5432
        %v5497 = vadd.f32 %v5465, %v5433
        %v5498 = vadd.f32 %v5466, %v5434
        %v5499 = vadd.f32 %v5467, %v5435
        %v5500 = vadd.f32 %v5468, %v5436
        %v5501 = vadd.f32 %v5469, %v5437
        %v5502 = vadd.f32 %v5470, %v5438
        %v5503 = vadd.f32 %v5471, %v5439
        %v5504 = vadd.f32 %v5472, %v5440
        %v5505 = vadd.f32 %v5473, %v5441
        %v5506 = vadd.f32 %v5474, %v5442
        %v5507 = vadd.f32 %v5475, %v5443
        %v5508 = vadd.f32 %v5476, %v5444
        %v5509 = vadd.f32 %v5477, %v5445
        %v5510 = vadd.f32 %v5478, %v5446
        %v5511 = vadd.f32 %v5479, %v5447
        %v5512 = vadd.f32 %v5480, %v5448
        %v5513 = vadd.f32 %v5481, %v5449
        %v5514 = vadd.f32 %v5482, %v5450
        %v5515 = vcombine.low %v5483, %v5487
        %v5516 = vcombine.high %v5483, %v5487
        %v5518 = vunpack.c.l.s4 1983009808
        %v5519 = vunpack.c.0.s8 %v5518
        %v5520 = vlaneseq
        %v5521 = vshrl.u32 %v5520, 7
        %v5522 = vsub.s32 %v5519, %v5521
        %v5523 = vrot.slane %v5515, %v5522
        %v5525 = vunpack.c.l.s4 1983009808
        %v5526 = vunpack.c.0.s8 %v5525
        %v5527 = vlaneseq
        %v5528 = vshrl.u32 %v5527, 7
        %v5529 = vsub.s32 %v5526, %v5528
        %v5530 = vrot.slane %v5516, %v5529
        %v5531 = vcombine.low %v5485, %v5489
        %v5532 = vcombine.high %v5485, %v5489
        %v5534 = vunpack.c.l.s4 1983009808
        %v5535 = vunpack.c.0.s8 %v5534
        %v5536 = vlaneseq
        %v5537 = vshrl.u32 %v5536, 7
        %v5538 = vsub.s32 %v5535, %v5537
        %v5539 = vrot.slane %v5531, %v5538
        %v5541 = vunpack.c.l.s4 1983009808
        %v5542 = vunpack.c.0.s8 %v5541
        %v5543 = vlaneseq
        %v5544 = vshrl.u32 %v5543, 7
        %v5545 = vsub.s32 %v5542, %v5544
        %v5546 = vrot.slane %v5532, %v5545
        %v5547 = vcombine.low %v5491, %v5495
        %v5548 = vcombine.high %v5491, %v5495
        %v5550 = vunpack.c.l.s4 1983009808
        %v5551 = vunpack.c.0.s8 %v5550
        %v5552 = vlaneseq
        %v5553 = vshrl.u32 %v5552, 7
        %v5554 = vsub.s32 %v5551, %v5553
        %v5555 = vrot.slane %v5547, %v5554
        %v5557 = vunpack.c.l.s4 1983009808
        %v5558 = vunpack.c.0.s8 %v5557
        %v5559 = vlaneseq
        %v5560 = vshrl.u32 %v5559, 7
        %v5561 = vsub.s32 %v5558, %v5560
        %v5562 = vrot.slane %v5548, %v5561
        %v5563 = vcombine.low %v5493, %v5497
        %v5564 = vcombine.high %v5493, %v5497
        %v5566 = vunpack.c.l.s4 1983009808
        %v5567 = vunpack.c.0.s8 %v5566
        %v5568 = vlaneseq
        %v5569 = vshrl.u32 %v5568, 7
        %v5570 = vsub.s32 %v5567, %v5569
        %v5571 = vrot.slane %v5563, %v5570
        %v5573 = vunpack.c.l.s4 1983009808
        %v5574 = vunpack.c.0.s8 %v5573
        %v5575 = vlaneseq
        %v5576 = vshrl.u32 %v5575, 7
        %v5577 = vsub.s32 %v5574, %v5576
        %v5578 = vrot.slane %v5564, %v5577
        %v5579 = vcombine.low %v5523, %v5539
        %v5580 = vcombine.high %v5523, %v5539
        %v5582 = vunpack.c.l.s4 1934713408
        %v5583 = vunpack.c.0.s8 %v5582
        %v5584 = vlaneseq
        %v5585 = vshrl.u32 %v5584, 7
        %v5586 = vsub.s32 %v5583, %v5585
        %v5587 = vrot.slane %v5579, %v5586
        %v5589 = vunpack.c.l.s4 1934713408
        %v5590 = vunpack.c.0.s8 %v5589
        %v5591 = vlaneseq
        %v5592 = vshrl.u32 %v5591, 7
        %v5593 = vsub.s32 %v5590, %v5592
        %v5594 = vrot.slane %v5580, %v5593
        %v5595 = vcombine.low %v5530, %v5546
        %v5596 = vcombine.high %v5530, %v5546
        %v5598 = vunpack.c.l.s4 1934713408
        %v5599 = vunpack.c.0.s8 %v5598
        %v5600 = vlaneseq
        %v5601 = vshrl.u32 %v5600, 7
        %v5602 = vsub.s32 %v5599, %v5601
        %v5603 = vrot.slane %v5595, %v5602
        %v5605 = vunpack.c.l.s4 1934713408
        %v5606 = vunpack.c.0.s8 %v5605
        %v5607 = vlaneseq
        %v5608 = vshrl.u32 %v5607, 7
        %v5609 = vsub.s32 %v5606, %v5608
        %v5610 = vrot.slane %v5596, %v5609
        %v5611 = vcombine.low %v5555, %v5571
        %v5612 = vcombine.high %v5555, %v5571
        %v5614 = vunpack.c.l.s4 1934713408
        %v5615 = vunpack.c.0.s8 %v5614
        %v5616 = vlaneseq
        %v5617 = vshrl.u32 %v5616, 7
        %v5618 = vsub.s32 %v5615, %v5617
        %v5619 = vrot.slane %v5611, %v5618
        %v5621 = vunpack.c.l.s4 1934713408
        %v5622 = vunpack.c.0.s8 %v5621
        %v5623 = vlaneseq
        %v5624 = vshrl.u32 %v5623, 7
        %v5625 = vsub.s32 %v5622, %v5624
        %v5626 = vrot.slane %v5612, %v5625
        %v5627 = vcombine.low %v5562, %v5578
        %v5628 = vcombine.high %v5562, %v5578
        %v5630 = vunpack.c.l.s4 1934713408
        %v5631 = vunpack.c.0.s8 %v5630
        %v5632 = vlaneseq
        %v5633 = vshrl.u32 %v5632, 7
        %v5634 = vsub.s32 %v5631, %v5633
        %v5635 = vrot.slane %v5627, %v5634
        %v5637 = vunpack.c.l.s4 1934713408
        %v5638 = vunpack.c.0.s8 %v5637
        %v5639 = vlaneseq
        %v5640 = vshrl.u32 %v5639, 7
        %v5641 = vsub.s32 %v5638, %v5640
        %v5642 = vrot.slane %v5628, %v5641
        %v5643 = vcombine.low %v5587, %v5619
        %v5644 = vcombine.high %v5587, %v5619
        %v5645 = vcombine.low %v5594, %v5626
        %v5646 = vcombine.high %v5594, %v5626
        %v5647 = vcombine.low %v5603, %v5635
        %v5648 = vcombine.high %v5603, %v5635
        %v5649 = vcombine.low %v5610, %v5642
        %v5650 = vcombine.high %v5610, %v5642
        %v5651 = vcombine.low %v5499, %v5503
        %v5652 = vcombine.high %v5499, %v5503
        %v5654 = vunpack.c.l.s4 1983009808
        %v5655 = vunpack.c.0.s8 %v5654
        %v5656 = vlaneseq
        %v5657 = vshrl.u32 %v5656, 7
        %v5658 = vsub.s32 %v5655, %v5657
        %v5659 = vrot.slane %v5651, %v5658
        %v5661 = vunpack.c.l.s4 1983009808
        %v5662 = vunpack.c.0.s8 %v5661
        %v5663 = vlaneseq
        %v5664 = vshrl.u32 %v5663, 7
        %v5665 = vsub.s32 %v5662, %v5664
        %v5666 = vrot.slane %v5652, %v5665
        %v5667 = vcombine.low %v5501, %v5505
        %v5668 = vcombine.high %v5501, %v5505
        %v5670 = vunpack.c.l.s4 1983009808
        %v5671 = vunpack.c.0.s8 %v5670
        %v5672 = vlaneseq
        %v5673 = vshrl.u32 %v5672, 7
        %v5674 = vsub.s32 %v5671, %v5673
        %v5675 = vrot.slane %v5667, %v5674
        %v5677 = vunpack.c.l.s4 1983009808
        %v5678 = vunpack.c.0.s8 %v5677
        %v5679 = vlaneseq
        %v5680 = vshrl.u32 %v5679, 7
        %v5681 = vsub.s32 %v5678, %v5680
        %v5682 = vrot.slane %v5668, %v5681
        %v5683 = vcombine.low %v5507, %v5511
        %v5684 = vcombine.high %v5507, %v5511
        %v5686 = vunpack.c.l.s4 1983009808
        %v5687 = vunpack.c.0.s8 %v5686
        %v5688 = vlaneseq
        %v5689 = vshrl.u32 %v5688, 7
        %v5690 = vsub.s32 %v5687, %v5689
        %v5691 = vrot.slane %v5683, %v5690
        %v5693 = vunpack.c.l.s4 1983009808
        %v5694 = vunpack.c.0.s8 %v5693
        %v5695 = vlaneseq
        %v5696 = vshrl.u32 %v5695, 7
        %v5697 = vsub.s32 %v5694, %v5696
        %v5698 = vrot.slane %v5684, %v5697
        %v5699 = vcombine.low %v5509, %v5513
        %v5700 = vcombine.high %v5509, %v5513
        %v5702 = vunpack.c.l.s4 1983009808
        %v5703 = vunpack.c.0.s8 %v5702
        %v5704 = vlaneseq
        %v5705 = vshrl.u32 %v5704, 7
        %v5706 = vsub.s32 %v5703, %v5705
        %v5707 = vrot.slane %v5699, %v5706
        %v5709 = vunpack.c.l.s4 1983009808
        %v5710 = vunpack.c.0.s8 %v5709
        %v5711 = vlaneseq
        %v5712 = vshrl.u32 %v5711, 7
        %v5713 = vsub.s32 %v5710, %v5712
        %v5714 = vrot.slane %v5700, %v5713
        %v5715 = vcombine.low %v5659, %v5675
        %v5716 = vcombine.high %v5659, %v5675
        %v5718 = vunpack.c.l.s4 1934713408
        %v5719 = vunpack.c.0.s8 %v5718
        %v5720 = vlaneseq
        %v5721 = vshrl.u32 %v5720, 7
        %v5722 = vsub.s32 %v5719, %v5721
        %v5723 = vrot.slane %v5715, %v5722
        %v5725 = vunpack.c.l.s4 1934713408
        %v5726 = vunpack.c.0.s8 %v5725
        %v5727 = vlaneseq
        %v5728 = vshrl.u32 %v5727, 7
        %v5729 = vsub.s32 %v5726, %v5728
        %v5730 = vrot.slane %v5716, %v5729
        %v5731 = vcombine.low %v5666, %v5682
        %v5732 = vcombine.high %v5666, %v5682
        %v5734 = vunpack.c.l.s4 1934713408
        %v5735 = vunpack.c.0.s8 %v5734
        %v5736 = vlaneseq
        %v5737 = vshrl.u32 %v5736, 7
        %v5738 = vsub.s32 %v5735, %v5737
        %v5739 = vrot.slane %v5731, %v5738
        %v5741 = vunpack.c.l.s4 1934713408
        %v5742 = vunpack.c.0.s8 %v5741
        %v5743 = vlaneseq
        %v5744 = vshrl.u32 %v5743, 7
        %v5745 = vsub.s32 %v5742, %v5744
        %v5746 = vrot.slane %v5732, %v5745
        %v5747 = vcombine.low %v5691, %v5707
        %v5748 = vcombine.high %v5691, %v5707
        %v5750 = vunpack.c.l.s4 1934713408
        %v5751 = vunpack.c.0.s8 %v5750
        %v5752 = vlaneseq
        %v5753 = vshrl.u32 %v5752, 7
        %v5754 = vsub.s32 %v5751, %v5753
        %v5755 = vrot.slane %v5747, %v5754
        %v5757 = vunpack.c.l.s4 1934713408
        %v5758 = vunpack.c.0.s8 %v5757
        %v5759 = vlaneseq
        %v5760 = vshrl.u32 %v5759, 7
        %v5761 = vsub.s32 %v5758, %v5760
        %v5762 = vrot.slane %v5748, %v5761
        %v5763 = vcombine.low %v5698, %v5714
        %v5764 = vcombine.high %v5698, %v5714
        %v5766 = vunpack.c.l.s4 1934713408
        %v5767 = vunpack.c.0.s8 %v5766
        %v5768 = vlaneseq
        %v5769 = vshrl.u32 %v5768, 7
        %v5770 = vsub.s32 %v5767, %v5769
        %v5771 = vrot.slane %v5763, %v5770
        %v5773 = vunpack.c.l.s4 1934713408
        %v5774 = vunpack.c.0.s8 %v5773
        %v5775 = vlaneseq
        %v5776 = vshrl.u32 %v5775, 7
        %v5777 = vsub.s32 %v5774, %v5776
        %v5778 = vrot.slane %v5764, %v5777
        %v5779 = vcombine.low %v5723, %v5755
        %v5780 = vcombine.high %v5723, %v5755
        %v5781 = vcombine.low %v5730, %v5762
        %v5782 = vcombine.high %v5730, %v5762
        %v5783 = vcombine.low %v5739, %v5771
        %v5784 = vcombine.high %v5739, %v5771
        %v5785 = vcombine.low %v5746, %v5778
        %v5786 = vcombine.high %v5746, %v5778
        %v5787 = vcombine.low %v5484, %v5488
        %v5788 = vcombine.high %v5484, %v5488
        %v5790 = vunpack.c.l.s4 1983009808
        %v5791 = vunpack.c.0.s8 %v5790
        %v5792 = vlaneseq
        %v5793 = vshrl.u32 %v5792, 7
        %v5794 = vsub.s32 %v5791, %v5793
        %v5795 = vrot.slane %v5787, %v5794
        %v5797 = vunpack.c.l.s4 1983009808
        %v5798 = vunpack.c.0.s8 %v5797
        %v5799 = vlaneseq
        %v5800 = vshrl.u32 %v5799, 7
        %v5801 = vsub.s32 %v5798, %v5800
        %v5802 = vrot.slane %v5788, %v5801
        %v5803 = vcombine.low %v5486, %v5490
        %v5804 = vcombine.high %v5486, %v5490
        %v5806 = vunpack.c.l.s4 1983009808
        %v5807 = vunpack.c.0.s8 %v5806
        %v5808 = vlaneseq
        %v5809 = vshrl.u32 %v5808, 7
        %v5810 = vsub.s32 %v5807, %v5809
        %v5811 = vrot.slane %v5803, %v5810
        %v5813 = vunpack.c.l.s4 1983009808
        %v5814 = vunpack.c.0.s8 %v5813
        %v5815 = vlaneseq
        %v5816 = vshrl.u32 %v5815, 7
        %v5817 = vsub.s32 %v5814, %v5816
        %v5818 = vrot.slane %v5804, %v5817
        %v5819 = vcombine.low %v5492, %v5496
        %v5820 = vcombine.high %v5492, %v5496
        %v5822 = vunpack.c.l.s4 1983009808
        %v5823 = vunpack.c.0.s8 %v5822
        %v5824 = vlaneseq
        %v5825 = vshrl.u32 %v5824, 7
        %v5826 = vsub.s32 %v5823, %v5825
        %v5827 = vrot.slane %v5819, %v5826
        %v5829 = vunpack.c.l.s4 1983009808
        %v5830 = vunpack.c.0.s8 %v5829
        %v5831 = vlaneseq
        %v5832 = vshrl.u32 %v5831, 7
        %v5833 = vsub.s32 %v5830, %v5832
        %v5834 = vrot.slane %v5820, %v5833
        %v5835 = vcombine.low %v5494, %v5498
        %v5836 = vcombine.high %v5494, %v5498
        %v5838 = vunpack.c.l.s4 1983009808
        %v5839 = vunpack.c.0.s8 %v5838
        %v5840 = vlaneseq
        %v5841 = vshrl.u32 %v5840, 7
        %v5842 = vsub.s32 %v5839, %v5841
        %v5843 = vrot.slane %v5835, %v5842
        %v5845 = vunpack.c.l.s4 1983009808
        %v5846 = vunpack.c.0.s8 %v5845
        %v5847 = vlaneseq
        %v5848 = vshrl.u32 %v5847, 7
        %v5849 = vsub.s32 %v5846, %v5848
        %v5850 = vrot.slane %v5836, %v5849
        %v5851 = vcombine.low %v5795, %v5811
        %v5852 = vcombine.high %v5795, %v5811
        %v5854 = vunpack.c.l.s4 1934713408
        %v5855 = vunpack.c.0.s8 %v5854
        %v5856 = vlaneseq
        %v5857 = vshrl.u32 %v5856, 7
        %v5858 = vsub.s32 %v5855, %v5857
        %v5859 = vrot.slane %v5851, %v5858
        %v5861 = vunpack.c.l.s4 1934713408
        %v5862 = vunpack.c.0.s8 %v5861
        %v5863 = vlaneseq
        %v5864 = vshrl.u32 %v5863, 7
        %v5865 = vsub.s32 %v5862, %v5864
        %v5866 = vrot.slane %v5852, %v5865
        %v5867 = vcombine.low %v5802, %v5818
        %v5868 = vcombine.high %v5802, %v5818
        %v5870 = vunpack.c.l.s4 1934713408
        %v5871 = vunpack.c.0.s8 %v5870
        %v5872 = vlaneseq
        %v5873 = vshrl.u32 %v5872, 7
        %v5874 = vsub.s32 %v5871, %v5873
        %v5875 = vrot.slane %v5867, %v5874
        %v5877 = vunpack.c.l.s4 1934713408
        %v5878 = vunpack.c.0.s8 %v5877
        %v5879 = vlaneseq
        %v5880 = vshrl.u32 %v5879, 7
        %v5881 = vsub.s32 %v5878, %v5880
        %v5882 = vrot.slane %v5868, %v5881
        %v5883 = vcombine.low %v5827, %v5843
        %v5884 = vcombine.high %v5827, %v5843
        %v5886 = vunpack.c.l.s4 1934713408
        %v5887 = vunpack.c.0.s8 %v5886
        %v5888 = vlaneseq
        %v5889 = vshrl.u32 %v5888, 7
        %v5890 = vsub.s32 %v5887, %v5889
        %v5891 = vrot.slane %v5883, %v5890
        %v5893 = vunpack.c.l.s4 1934713408
        %v5894 = vunpack.c.0.s8 %v5893
        %v5895 = vlaneseq
        %v5896 = vshrl.u32 %v5895, 7
        %v5897 = vsub.s32 %v5894, %v5896
        %v5898 = vrot.slane %v5884, %v5897
        %v5899 = vcombine.low %v5834, %v5850
        %v5900 = vcombine.high %v5834, %v5850
        %v5902 = vunpack.c.l.s4 1934713408
        %v5903 = vunpack.c.0.s8 %v5902
        %v5904 = vlaneseq
        %v5905 = vshrl.u32 %v5904, 7
        %v5906 = vsub.s32 %v5903, %v5905
        %v5907 = vrot.slane %v5899, %v5906
        %v5909 = vunpack.c.l.s4 1934713408
        %v5910 = vunpack.c.0.s8 %v5909
        %v5911 = vlaneseq
        %v5912 = vshrl.u32 %v5911, 7
        %v5913 = vsub.s32 %v5910, %v5912
        %v5914 = vrot.slane %v5900, %v5913
        %v5915 = vcombine.low %v5859, %v5891
        %v5916 = vcombine.high %v5859, %v5891
        %v5917 = vcombine.low %v5866, %v5898
        %v5918 = vcombine.high %v5866, %v5898
        %v5919 = vcombine.low %v5875, %v5907
        %v5920 = vcombine.high %v5875, %v5907
        %v5921 = vcombine.low %v5882, %v5914
        %v5922 = vcombine.high %v5882, %v5914
        %v5923 = vcombine.low %v5500, %v5504
        %v5924 = vcombine.high %v5500, %v5504
        %v5926 = vunpack.c.l.s4 1983009808
        %v5927 = vunpack.c.0.s8 %v5926
        %v5928 = vlaneseq
        %v5929 = vshrl.u32 %v5928, 7
        %v5930 = vsub.s32 %v5927, %v5929
        %v5931 = vrot.slane %v5923, %v5930
        %v5933 = vunpack.c.l.s4 1983009808
        %v5934 = vunpack.c.0.s8 %v5933
        %v5935 = vlaneseq
        %v5936 = vshrl.u32 %v5935, 7
        %v5937 = vsub.s32 %v5934, %v5936
        %v5938 = vrot.slane %v5924, %v5937
        %v5939 = vcombine.low %v5502, %v5506
        %v5940 = vcombine.high %v5502, %v5506
        %v5942 = vunpack.c.l.s4 1983009808
        %v5943 = vunpack.c.0.s8 %v5942
        %v5944 = vlaneseq
        %v5945 = vshrl.u32 %v5944, 7
        %v5946 = vsub.s32 %v5943, %v5945
        %v5947 = vrot.slane %v5939, %v5946
        %v5949 = vunpack.c.l.s4 1983009808
        %v5950 = vunpack.c.0.s8 %v5949
        %v5951 = vlaneseq
        %v5952 = vshrl.u32 %v5951, 7
        %v5953 = vsub.s32 %v5950, %v5952
        %v5954 = vrot.slane %v5940, %v5953
        %v5955 = vcombine.low %v5508, %v5512
        %v5956 = vcombine.high %v5508, %v5512
        %v5958 = vunpack.c.l.s4 1983009808
        %v5959 = vunpack.c.0.s8 %v5958
        %v5960 = vlaneseq
        %v5961 = vshrl.u32 %v5960, 7
        %v5962 = vsub.s32 %v5959, %v5961
        %v5963 = vrot.slane %v5955, %v5962
        %v5965 = vunpack.c.l.s4 1983009808
        %v5966 = vunpack.c.0.s8 %v5965
        %v5967 = vlaneseq
        %v5968 = vshrl.u32 %v5967, 7
        %v5969 = vsub.s32 %v5966, %v5968
        %v5970 = vrot.slane %v5956, %v5969
        %v5971 = vcombine.low %v5510, %v5514
        %v5972 = vcombine.high %v5510, %v5514
        %v5974 = vunpack.c.l.s4 1983009808
        %v5975 = vunpack.c.0.s8 %v5974
        %v5976 = vlaneseq
        %v5977 = vshrl.u32 %v5976, 7
        %v5978 = vsub.s32 %v5975, %v5977
        %v5979 = vrot.slane %v5971, %v5978
        %v5981 = vunpack.c.l.s4 1983009808
        %v5982 = vunpack.c.0.s8 %v5981
        %v5983 = vlaneseq
        %v5984 = vshrl.u32 %v5983, 7
        %v5985 = vsub.s32 %v5982, %v5984
        %v5986 = vrot.slane %v5972, %v5985
        %v5987 = vcombine.low %v5931, %v5947
        %v5988 = vcombine.high %v5931, %v5947
        %v5990 = vunpack.c.l.s4 1934713408
        %v5991 = vunpack.c.0.s8 %v5990
        %v5992 = vlaneseq
        %v5993 = vshrl.u32 %v5992, 7
        %v5994 = vsub.s32 %v5991, %v5993
        %v5995 = vrot.slane %v5987, %v5994
        %v5997 = vunpack.c.l.s4 1934713408
        %v5998 = vunpack.c.0.s8 %v5997
        %v5999 = vlaneseq
        %v6000 = vshrl.u32 %v5999, 7
        %v6001 = vsub.s32 %v5998, %v6000
        %v6002 = vrot.slane %v5988, %v6001
        %v6003 = vcombine.low %v5938, %v5954
        %v6004 = vcombine.high %v5938, %v5954
        %v6006 = vunpack.c.l.s4 1934713408
        %v6007 = vunpack.c.0.s8 %v6006
        %v6008 = vlaneseq
        %v6009 = vshrl.u32 %v6008, 7
        %v6010 = vsub.s32 %v6007, %v6009
        %v6011 = vrot.slane %v6003, %v6010
        %v6013 = vunpack.c.l.s4 1934713408
        %v6014 = vunpack.c.0.s8 %v6013
        %v6015 = vlaneseq
        %v6016 = vshrl.u32 %v6015, 7
        %v6017 = vsub.s32 %v6014, %v6016
        %v6018 = vrot.slane %v6004, %v6017
        %v6019 = vcombine.low %v5963, %v5979
        %v6020 = vcombine.high %v5963, %v5979
        %v6022 = vunpack.c.l.s4 1934713408
        %v6023 = vunpack.c.0.s8 %v6022
        %v6024 = vlaneseq
        %v6025 = vshrl.u32 %v6024, 7
        %v6026 = vsub.s32 %v6023, %v6025
        %v6027 = vrot.slane %v6019, %v6026
        %v6029 = vunpack.c.l.s4 1934713408
        %v6030 = vunpack.c.0.s8 %v6029
        %v6031 = vlaneseq
        %v6032 = vshrl.u32 %v6031, 7
        %v6033 = vsub.s32 %v6030, %v6032
        %v6034 = vrot.slane %v6020, %v6033
        %v6035 = vcombine.low %v5970, %v5986
        %v6036 = vcombine.high %v5970, %v5986
        %v6038 = vunpack.c.l.s4 1934713408
        %v6039 = vunpack.c.0.s8 %v6038
        %v6040 = vlaneseq
        %v6041 = vshrl.u32 %v6040, 7
        %v6042 = vsub.s32 %v6039, %v6041
        %v6043 = vrot.slane %v6035, %v6042
        %v6045 = vunpack.c.l.s4 1934713408
        %v6046 = vunpack.c.0.s8 %v6045
        %v6047 = vlaneseq
        %v6048 = vshrl.u32 %v6047, 7
        %v6049 = vsub.s32 %v6046, %v6048
        %v6050 = vrot.slane %v6036, %v6049
        %v6051 = vcombine.low %v5995, %v6027
        %v6052 = vcombine.high %v5995, %v6027
        %v6053 = vcombine.low %v6002, %v6034
        %v6054 = vcombine.high %v6002, %v6034
        %v6055 = vcombine.low %v6011, %v6043
        %v6056 = vcombine.high %v6011, %v6043
        %v6057 = vcombine.low %v6018, %v6050
        %v6058 = vcombine.high %v6018, %v6050
        %6061 = vrot.lane.b32.xlu0 %v5644, 32
        %v6062 = vpop.permute.xlu0 %6061
        %6063 = vrot.lane.b32.xlu0 %v5780, 32
        %v6064 = vpop.permute.xlu0 %6063
        %6069 = vrot.lane.b32.xlu0 %v5645, 64
        %v6070 = vpop.permute.xlu0 %6069
        %6071 = vrot.lane.b32.xlu0 %v5781, 64
        %v6072 = vpop.permute.xlu0 %6071
        %6077 = vrot.lane.b32.xlu0 %v5646, 96
        %v6078 = vpop.permute.xlu0 %6077
        %6079 = vrot.lane.b32.xlu0 %v5782, 96
        %v6080 = vpop.permute.xlu0 %6079
        %6085 = vrot.lane.b32.xlu0 %v5648, 32
        %v6086 = vpop.permute.xlu0 %6085
        %6087 = vrot.lane.b32.xlu0 %v5784, 32
        %v6088 = vpop.permute.xlu0 %6087
        %6093 = vrot.lane.b32.xlu0 %v5649, 64
        %v6094 = vpop.permute.xlu0 %6093
        %6095 = vrot.lane.b32.xlu0 %v5785, 64
        %v6096 = vpop.permute.xlu0 %6095
        %6101 = vrot.lane.b32.xlu0 %v5650, 96
        %v6102 = vpop.permute.xlu0 %6101
        %6103 = vrot.lane.b32.xlu0 %v5786, 96
        %v6104 = vpop.permute.xlu0 %6103
        %6109 = vrot.lane.b32.xlu0 %v5916, 32
        %v6110 = vpop.permute.xlu0 %6109
        %6111 = vrot.lane.b32.xlu0 %v6052, 32
        %v6112 = vpop.permute.xlu0 %6111
        %6117 = vrot.lane.b32.xlu0 %v5917, 64
        %v6118 = vpop.permute.xlu0 %6117
        %6119 = vrot.lane.b32.xlu0 %v6053, 64
        %v6120 = vpop.permute.xlu0 %6119
        %6125 = vrot.lane.b32.xlu0 %v5918, 96
        %v6126 = vpop.permute.xlu0 %6125
        %6127 = vrot.lane.b32.xlu0 %v6054, 96
        %v6128 = vpop.permute.xlu0 %6127
        %6133 = vrot.lane.b32.xlu0 %v5920, 32
        %v6134 = vpop.permute.xlu0 %6133
        %6135 = vrot.lane.b32.xlu0 %v6056, 32
        %v6136 = vpop.permute.xlu0 %6135
        %6141 = vrot.lane.b32.xlu0 %v5921, 64
        %v6142 = vpop.permute.xlu0 %6141
        %6143 = vrot.lane.b32.xlu0 %v6057, 64
        %v6144 = vpop.permute.xlu0 %6143
        %6149 = vrot.lane.b32.xlu0 %v5922, 96
        %v6150 = vpop.permute.xlu0 %6149
        %6151 = vrot.lane.b32.xlu0 %v6058, 96
        %v6152 = vpop.permute.xlu0 %6151
        %v6155 = vsel %vm379, %v5643, %v6062
        %v6156 = vsel %vm379, %v5779, %v6064
        %vm6157 = vcmask 523264
        %v6158 = vsel %vm6157, %v6155, %v6070
        %v6159 = vsel %vm6157, %v6156, %v6072
        %vm6160 = vcmask 785408
        %v6161 = vsel %vm6160, %v6158, %v6078
        %v6162 = vsel %vm6160, %v6159, %v6080
        %v6163 = vsel %vm379, %v5647, %v6086
        %v6164 = vsel %vm379, %v5783, %v6088
        %v6165 = vsel %vm6157, %v6163, %v6094
        %v6166 = vsel %vm6157, %v6164, %v6096
        %v6167 = vsel %vm6160, %v6165, %v6102
        %v6168 = vsel %vm6160, %v6166, %v6104
        %v6169 = vsel %vm379, %v5915, %v6110
        %v6170 = vsel %vm379, %v6051, %v6112
        %v6171 = vsel %vm6157, %v6169, %v6118
        %v6172 = vsel %vm6157, %v6170, %v6120
        %v6173 = vsel %vm6160, %v6171, %v6126
        %v6174 = vsel %vm6160, %v6172, %v6128
        %v6175 = vsel %vm379, %v5919, %v6134
        %v6176 = vsel %vm379, %v6055, %v6136
        %v6177 = vsel %vm6157, %v6175, %v6142
        %v6178 = vsel %vm6157, %v6176, %v6144
        %v6179 = vsel %vm6160, %v6177, %v6150
        %v6180 = vsel %vm6160, %v6178, %v6152
        %6181 = vst [vmem:[%s377] sm:$0xff] %v6161
        %6182 = vst [vmem:[%s377 + $0x8] sm:$0xff] %v6167
        %6183 = vst [vmem:[%s377 + $0x10] sm:$0xff] %v6173
        %6184 = vst [vmem:[%s377 + $0x18] sm:$0xff] %v6179
        %6185 = vst [vmem:[%s377 + $0x20] sm:$0xff] %v6162
        %6186 = vst [vmem:[%s377 + $0x28] sm:$0xff] %v6168
        %6187 = vst [vmem:[%s377 + $0x30] sm:$0xff] %v6174
        %6188 = vst [vmem:[%s377 + $0x38] sm:$0xff] %v6180
        %s6189 = sand.u32 %s250, 1
        %s6190 = scalar_lea.sflag [#allocation5], %s6189
        %s6191 = sand.u32 %s250, 1
        %s6192 = smul.addr %s6191, 64
        %s6193 = scalar_lea.vmem [#allocation6], %s6192
        // Predicated region
        $region65: #{tpu_custom_call.1} parent=59 // pred_check
          %p6194 = pneg %p260
        $region66: #{tpu_custom_call.1} parent=59 // pred_check_branch
          %6196 = sbr.rel (%p6194) target = $region68
        $region67: #{tpu_custom_call.1} parent=59 // pred_region
          %s6198 = ssub.s32 1024, 1024
          %6199 = vsyncadd %s6190, %s6198
          %s6200 = smul.addr %s27, 8
          %s6201 = smul.addr %s6200, 128
          %s6202 = scalar_lea.hbm %s10, %s6201
          %s6203 = sshll.u32 %s6193, 4
          %s6204 = int_to_ptr.vmem [resolvable:$true] %s6203
          %6209 = dma.vmem_to_hbm [thread:$0]  %s6204, 1024, %s6202, %s6190, 512, 512, 32
        $region68: #{tpu_custom_call.1} parent=59 // pred_fallthru
          _
      $region60: #{tpu_custom_call.1} parent=5 // pred_fallthru
        _
      %p6210 = scmp.le.s32.totalorder 2, %s22
      // Predicated region
      $region69: #{tpu_custom_call.1} parent=5 // pred_check
        %p6211 = pneg %p6210
      $region70: #{tpu_custom_call.1} parent=5 // pred_check_branch
        %6213 = sbr.rel (%p6211) target = $region72
      $region71: #{tpu_custom_call.1} parent=5 // pred_region
        %s6214 = ssub.s32 %s22, 2
        // Predicated region
        $region73: #{tpu_custom_call.1} parent=71 // pred_check
          %p6215 = pneg %p266
        $region74: #{tpu_custom_call.1} parent=71 // pred_check_branch
          %6217 = sbr.rel (%p6215) target = $region76
        $region75: #{tpu_custom_call.1} parent=71 // pred_region
          %s6218 = sand.u32 %s251, 1
          %s6219 = scalar_lea.sflag [#allocation5], %s6218
          %s6220 = sand.u32 %s251, 1
          %s6221 = smul.addr %s6220, 64
          %s6222 = scalar_lea.vmem [#allocation6], %s6221
          %6223 = dma.done %s6219, 1024
        $region76: #{tpu_custom_call.1} parent=71 // pred_fallthru
          _
      $region72: #{tpu_custom_call.1} parent=5 // pred_fallthru
        _
    $region6: #{tpu_custom_call.1} parent=1 // loop_footer
      %s26 = sadd.s32 1, %s22
    $region7: #{tpu_custom_call.1} parent=1 // loop_footer_branch
      %21 = sbr.rel target = $region3
    $region8: #{tpu_custom_call.1} parent=1 // loop_exit
      _
    %6224 = vsyncpa [#allocation4], 1
    %s6225 = scalar_lea.sflag [#allocation4], 1
    %6226 = vsyncpa %s6225, 1
    %6227 = vsyncpa [#allocation5], 1
    %s6228 = scalar_lea.sflag [#allocation5], 1
    %6229 = vsyncpa %s6228, 1

</llo_original>
